<compile_context>
chip_gen: v7x
topology: tpu7x:2x2x1
jax: 0.10.0
libtpu: 0.0.40
codegen_flags: <defaults>
</compile_context>

<pallas_src>
import numpy as np

import jax
import jax.numpy as jnp
from jax import lax
from jax.experimental import pallas as pl
from jax.experimental.pallas import tpu as pltpu

_K = 3  # all layers use 3x3 kernels


# ----------------------------- fused Pallas kernel -----------------------------

def _autoencoder_kernel(x_ref,
                        s1_ref, w1_ref, b1_ref,
                        s2_ref, w2_ref, b2_ref,
                        s3_ref, w3_ref, b3_ref,
                        s4_ref, w4_ref, b4_ref,
                        o_ref):
    """Whole forward pass for one image; activations never leave VMEM/vregs.

    Activation layout: (H*W, C) with channels on the lane axis.
    Per layer:
        patches = S @ x                         # one MXU dot == in-kernel im2col (exact: S is 0/1)
        y       = act( sum_k patches[k*Mo:(k+1)*Mo] @ W_k  +  b )   # f32 accumulate/epilogue
    """

    def layer(x_bf16, s_ref, w_ref, b_ref, act):
        mo = s_ref.shape[0] // (_K * _K)
        cout = w_ref.shape[2]
        patches = jnp.dot(s_ref[...], x_bf16,
                          preferred_element_type=jnp.float32)     # (9*mo, cin)
        acc = jnp.zeros((mo, cout), jnp.float32)
        for k in range(_K * _K):                                   # unrolled, 9 taps
            tap = patches[k * mo:(k + 1) * mo, :].astype(jnp.bfloat16)
            acc = acc + jnp.dot(tap, w_ref[k],
                                preferred_element_type=jnp.float32)
        acc = acc + b_ref[...]                                     # f32 epilogue
        if act == "relu":
            return jnp.maximum(acc, 0.0)
        return jax.nn.sigmoid(acc)

    h = layer(x_ref[...], s1_ref, w1_ref, b1_ref, "relu")
    h = layer(h.astype(jnp.bfloat16), s2_ref, w2_ref, b2_ref, "relu")
    h = layer(h.astype(jnp.bfloat16), s3_ref, w3_ref, b3_ref, "relu")
    h = layer(h.astype(jnp.bfloat16), s4_ref, w4_ref, b4_ref, "sigmoid")
    o_ref[...] = h.astype(o_ref.dtype)


# ------------------------- one-time host-side packing -------------------------

def _gather_conv(hi, wi, ho, wo, stride, pad):
    """0/1 matrix (9*ho*wo, hi*wi): row (tap k, output o) selects the input pixel read by
    Conv2d(stride, pad) output o under kernel tap k; zero row when the tap hits padding."""
    s = np.zeros((_K * _K, ho * wo, hi * wi), np.float32)
    for kh in range(_K):
        for kw in range(_K):
            k = kh * _K + kw
            for i in range(ho):
                y = stride * i + kh - pad
                if not 0 <= y < hi:
                    continue
                for j in range(wo):
                    x = stride * j + kw - pad
                    if not 0 <= x < wi:
                        continue
                    s[k, i * wo + j, y * wi + x] = 1.0
    return s.reshape(_K * _K * ho * wo, hi * wi)


def _gather_conv_transpose(hi, wi, ho, wo, stride, pad):
    """Same, for ConvTranspose2d(stride, pad, output_padding): output (i, j) under weight tap
    (kh, kw) reads input (y, x) iff  i + pad - kh == stride*y  and  j + pad - kw == stride*x
    (dilation / cropping / output_padding are all implied by this relation)."""
    s = np.zeros((_K * _K, ho * wo, hi * wi), np.float32)
    for kh in range(_K):
        for kw in range(_K):
            k = kh * _K + kw
            for i in range(ho):
                t = i + pad - kh
                if t < 0 or t % stride or t // stride >= hi:
                    continue
                y = t // stride
                for j in range(wo):
                    u = j + pad - kw
                    if u < 0 or u % stride or u // stride >= wi:
                        continue
                    s[k, i * wo + j, y * wi + u // stride] = 1.0
    return s.reshape(_K * _K * ho * wo, hi * wi)


def init_params(key, input_channels, config):
    """PyTorch-default (kaiming-uniform, a=sqrt(5), i.e. U(+-1/sqrt(fan_in))) parameters with
    the exact PyTorch layouts: Conv2d (Cout,Cin,K,K), ConvTranspose2d (Cin,Cout,K,K)."""
    c1, c2 = config["hidden_channels"]
    ks = jax.random.split(key, 8)

    def uni(k, shape, fan_in):
        b = 1.0 / float(np.sqrt(fan_in))
        return jax.random.uniform(k, shape, jnp.float32, -b, b)

    return {
        "enc1_w": uni(ks[0], (c1, input_channels, _K, _K), input_channels * _K * _K),
        "enc1_b": uni(ks[1], (c1,), input_channels * _K * _K),
        "enc2_w": uni(ks[2], (c2, c1, _K, _K), c1 * _K * _K),
        "enc2_b": uni(ks[3], (c2,), c1 * _K * _K),
        "dec1_w": uni(ks[4], (c2, c1, _K, _K), c1 * _K * _K),
        "dec1_b": uni(ks[5], (c1,), c1 * _K * _K),
        "dec2_w": uni(ks[6], (c1, input_channels, _K, _K), input_channels * _K * _K),
        "dec2_b": uni(ks[7], (input_channels,), input_channels * _K * _K),
    }


def prepare_pallas_params(params, input_hw):
    """One-time packing: per-layer gather matrices + tap-major weights in bf16 (MXU operands),
    biases in f32 (epilogue).  Executed once at init, never re-run per forward."""
    h0, w0 = input_hw

    def conv_out(h, w):
        return (h + 2 - _K) // 2 + 1, (w + 2 - _K) // 2 + 1

    def convt_out(h, w):
        return (h - 1) * 2 - 2 + _K + 1, (w - 1) * 2 - 2 + _K + 1

    h1, w1 = conv_out(h0, w0)
    h2, w2 = conv_out(h1, w1)
    h3, w3 = convt_out(h2, w2)
    h4, w4 = convt_out(h3, w3)
    assert (h4, w4) == (h0, w0), "decoder must reconstruct the input resolution"

    bf16 = jnp.bfloat16

    def conv_taps(wt):       # (Cout, Cin, K, K) -> (K*K, Cin, Cout), tap-major (kh, kw)
        co, ci = wt.shape[0], wt.shape[1]
        return jnp.transpose(wt, (2, 3, 1, 0)).reshape(_K * _K, ci, co).astype(bf16)

    def convt_taps(wt):      # (Cin, Cout, K, K) -> (K*K, Cin, Cout), tap-major (kh, kw)
        ci, co = wt.shape[0], wt.shape[1]
        return jnp.transpose(wt, (2, 3, 0, 1)).reshape(_K * _K, ci, co).astype(bf16)

    def bias(bt):
        return bt.reshape(1, -1).astype(jnp.float32)

    return {
        "s1": jnp.asarray(_gather_conv(h0, w0, h1, w1, 2, 1), bf16),
        "w1": conv_taps(params["enc1_w"]), "b1": bias(params["enc1_b"]),
        "s2": jnp.asarray(_gather_conv(h1, w1, h2, w2, 2, 1), bf16),
        "w2": conv_taps(params["enc2_w"]), "b2": bias(params["enc2_b"]),
        "s3": jnp.asarray(_gather_conv_transpose(h2, w2, h3, w3, 2, 1), bf16),
        "w3": convt_taps(params["dec1_w"]), "b3": bias(params["dec1_b"]),
        "s4": jnp.asarray(_gather_conv_transpose(h3, w3, h4, w4, 2, 1), bf16),
        "w4": convt_taps(params["dec2_w"]), "b4": bias(params["dec2_b"]),
    }


# ----------------------------- model forward -----------------------------

def cifar_autoencoder_forward(packed, x):
    """x: (N, C, H, W) float32 (PyTorch layout).  Returns the reconstruction, same shape."""
    n, c, h, w = x.shape
    m_in = h * w
    # single boundary layout change: NCHW -> (N, H*W, C) channels-last; back again at the end
    xf = x.transpose(0, 2, 3, 1).reshape(n, m_in, c).astype(jnp.bfloat16)

    m_out = packed["s4"].shape[0] // (_K * _K)
    c_out = packed["w4"].shape[2]

    out = pl.pallas_call(
        _autoencoder_kernel,
        out_shape=jax.ShapeDtypeStruct((n, m_out, c_out), jnp.float32),
        grid=(n,),
        in_specs=[
            pl.BlockSpec((None, m_in, c), lambda i: (i, 0, 0)),
            pl.BlockSpec(packed["s1"].shape, lambda i: (0, 0)),
            pl.BlockSpec(packed["w1"].shape, lambda i: (0, 0, 0)),
            pl.BlockSpec(packed["b1"].shape, lambda i: (0, 0)),
            pl.BlockSpec(packed["s2"].shape, lambda i: (0, 0)),
            pl.BlockSpec(packed["w2"].shape, lambda i: (0, 0, 0)),
            pl.BlockSpec(packed["b2"].shape, lambda i: (0, 0)),
            pl.BlockSpec(packed["s3"].shape, lambda i: (0, 0)),
            pl.BlockSpec(packed["w3"].shape, lambda i: (0, 0, 0)),
            pl.BlockSpec(packed["b3"].shape, lambda i: (0, 0)),
            pl.BlockSpec(packed["s4"].shape, lambda i: (0, 0)),
            pl.BlockSpec(packed["w4"].shape, lambda i: (0, 0, 0)),
            pl.BlockSpec(packed["b4"].shape, lambda i: (0, 0)),
        ],
        out_specs=pl.BlockSpec((None, m_out, c_out), lambda i: (i, 0, 0)),
        compiler_params=pltpu.CompilerParams(dimension_semantics=("parallel",)),
    )(xf,
      packed["s1"], packed["w1"], packed["b1"],
      packed["s2"], packed["w2"], packed["b2"],
      packed["s3"], packed["w3"], packed["b3"],
      packed["s4"], packed["w4"], packed["b4"])

    return out.reshape(n, h, w, c_out).transpose(0, 3, 1, 2)


# ----------------------------- pure-JAX reference -----------------------------

def reference_forward(params, x):
    """f32 XLA reference with exact PyTorch conv / conv-transpose semantics (validation only)."""
    dn = ("NCHW", "OIHW", "NCHW")

    def conv(x, w, b):
        y = lax.conv_general_dilated(x, w, (2, 2), [(1, 1), (1, 1)], dimension_numbers=dn)
        return y + b[None, :, None, None]

    def convt(x, w, b):
        w_eq = jnp.flip(w, (2, 3)).transpose(1, 0, 2, 3)
        y = lax.conv_general_dilated(x, w_eq, (1, 1), [(1, 2), (1, 2)],
                                     lhs_dilation=(2, 2), dimension_numbers=dn)
        return y + b[None, :, None, None]

    h = jax.nn.relu(conv(x, params["enc1_w"], params["enc1_b"]))
    h = jax.nn.relu(conv(h, params["enc2_w"], params["enc2_b"]))
    h = jax.nn.relu(convt(h, params["dec1_w"], params["dec1_b"]))
    return jax.nn.sigmoid(convt(h, params["dec2_w"], params["dec2_b"]))


if __name__ == "__main__":
    key = jax.random.PRNGKey(0)
    k_param, k_x = jax.random.split(key)

    config = {"hidden_channels": (8, 16)}
    input_channels = 3
    hw = (16, 16)            # small test size; prep/kernel are generic in (H, W)

    params = init_params(k_param, input_channels, config)
    packed = prepare_pallas_params(params, hw)

    x = jax.random.normal(k_x, (2, input_channels) + hw, dtype=jnp.float32)

    fwd = jax.jit(cifar_autoencoder_forward)
    y = jax.block_until_ready(fwd(packed, x))

    assert y.shape == x.shape, f"shape mismatch: {y.shape} vs {x.shape}"
    assert bool(jnp.all(jnp.isfinite(y)))
    assert bool(jnp.all((y >= 0.0) & (y <= 1.0)))      # final sigmoid

    # numerical check vs the f32 XLA reference (kernel uses bf16 MXU operands)
    y_ref = jax.block_until_ready(jax.jit(reference_forward)(params, x))
    max_err = float(jnp.max(jnp.abs(y - y_ref)))
    assert max_err < 3e-2, f"mismatch vs reference: {max_err}"

    print("KERNEL_OK")
</pallas_src>

<mosaic_0001>
module attributes {stable_mosaic.version = 11 : i64} {
  func.func @_autoencoder_kernel(%arg0: i32, %arg1: memref<1x256x3xbf16, #tpu.memory_space<vmem>>, %arg2: memref<576x256xbf16, #tpu.memory_space<vmem>>, %arg3: memref<9x3x8xbf16, #tpu.memory_space<vmem>>, %arg4: memref<1x8xf32, #tpu.memory_space<vmem>>, %arg5: memref<144x64xbf16, #tpu.memory_space<vmem>>, %arg6: memref<9x8x16xbf16, #tpu.memory_space<vmem>>, %arg7: memref<1x16xf32, #tpu.memory_space<vmem>>, %arg8: memref<576x16xbf16, #tpu.memory_space<vmem>>, %arg9: memref<9x16x8xbf16, #tpu.memory_space<vmem>>, %arg10: memref<1x8xf32, #tpu.memory_space<vmem>>, %arg11: memref<2304x64xbf16, #tpu.memory_space<vmem>>, %arg12: memref<9x8x3xbf16, #tpu.memory_space<vmem>>, %arg13: memref<1x3xf32, #tpu.memory_space<vmem>>, %arg14: memref<1x256x3xf32, #tpu.memory_space<vmem>>) attributes {dimension_semantics = [#tpu.dimension_semantics<parallel>], iteration_bounds = array<i64: 2>, scalar_prefetch = 0 : i64, scratch_operands = 0 : i64, tpu.core_type = #tpu.core_type<tc>, window_params = [{transform_indices = @transform_0, window_bounds = array<i64: 1, 256, 3>}, {pipeline_mode = #tpu.pipeline_mode<synchronous>, transform_indices = @transform_1, window_bounds = array<i64: 576, 256>}, {pipeline_mode = #tpu.pipeline_mode<synchronous>, transform_indices = @transform_2, window_bounds = array<i64: 9, 3, 8>}, {pipeline_mode = #tpu.pipeline_mode<synchronous>, transform_indices = @transform_3, window_bounds = array<i64: 1, 8>}, {pipeline_mode = #tpu.pipeline_mode<synchronous>, transform_indices = @transform_4, window_bounds = array<i64: 144, 64>}, {pipeline_mode = #tpu.pipeline_mode<synchronous>, transform_indices = @transform_5, window_bounds = array<i64: 9, 8, 16>}, {pipeline_mode = #tpu.pipeline_mode<synchronous>, transform_indices = @transform_6, window_bounds = array<i64: 1, 16>}, {pipeline_mode = #tpu.pipeline_mode<synchronous>, transform_indices = @transform_7, window_bounds = array<i64: 576, 16>}, {pipeline_mode = #tpu.pipeline_mode<synchronous>, transform_indices = @transform_8, window_bounds = array<i64: 9, 16, 8>}, {pipeline_mode = #tpu.pipeline_mode<synchronous>, transform_indices = @transform_9, window_bounds = array<i64: 1, 8>}, {pipeline_mode = #tpu.pipeline_mode<synchronous>, transform_indices = @transform_10, window_bounds = array<i64: 2304, 64>}, {pipeline_mode = #tpu.pipeline_mode<synchronous>, transform_indices = @transform_11, window_bounds = array<i64: 9, 8, 3>}, {pipeline_mode = #tpu.pipeline_mode<synchronous>, transform_indices = @transform_12, window_bounds = array<i64: 1, 3>}, {transform_indices = @transform_13, window_bounds = array<i64: 1, 256, 3>}]} {
    %c0 = arith.constant 0 : index
    %c0_0 = arith.constant 0 : index
    %c0_1 = arith.constant 0 : index
    %0 = vector.load %arg1[%c0, %c0_0, %c0_1] : memref<1x256x3xbf16, #tpu.memory_space<vmem>>, vector<1x256x3xbf16>
    %1 = vector.shape_cast %0 : vector<1x256x3xbf16> to vector<256x3xbf16>
    %c0_2 = arith.constant 0 : index
    %c0_3 = arith.constant 0 : index
    %2 = vector.load %arg2[%c0_2, %c0_3] : memref<576x256xbf16, #tpu.memory_space<vmem>>, vector<576x256xbf16>
    %cst = arith.constant dense<0.000000e+00> : vector<576x3xf32>
    %3 = tpu.matmul %2, %1, %cst {dimension_numbers = #tpu.dot_dimension_numbers<[1], [0], [0], [1], [0, 0, 1, 1], [], []>} : vector<576x256xbf16>, vector<256x3xbf16>, vector<576x3xf32> -> vector<576x3xf32>
    %cst_4 = arith.constant 0.000000e+00 : f32
    %4 = vector.broadcast %cst_4 : f32 to vector<64x8xf32>
    %5 = vector.extract_strided_slice %3 {offsets = [0, 0], sizes = [64, 3], strides = [1, 1]} : vector<576x3xf32> to vector<64x3xf32>
    %6 = arith.truncf %5 : vector<64x3xf32> to vector<64x3xbf16>
    %c0_5 = arith.constant 0 : index
    %c0_6 = arith.constant 0 : index
    %c0_7 = arith.constant 0 : index
    %7 = vector.load %arg3[%c0_5, %c0_6, %c0_7] : memref<9x3x8xbf16, #tpu.memory_space<vmem>>, vector<1x3x8xbf16>
    %8 = vector.shape_cast %7 : vector<1x3x8xbf16> to vector<3x8xbf16>
    %cst_8 = arith.constant dense<0.000000e+00> : vector<64x8xf32>
    %9 = tpu.matmul %6, %8, %cst_8 {dimension_numbers = #tpu.dot_dimension_numbers<[1], [0], [0], [1], [0, 0, 1, 1], [], []>} : vector<64x3xbf16>, vector<3x8xbf16>, vector<64x8xf32> -> vector<64x8xf32>
    %10 = arith.addf %4, %9 : vector<64x8xf32>
    %11 = vector.extract_strided_slice %3 {offsets = [64, 0], sizes = [64, 3], strides = [1, 1]} : vector<576x3xf32> to vector<64x3xf32>
    %12 = arith.truncf %11 : vector<64x3xf32> to vector<64x3xbf16>
    %c1 = arith.constant 1 : index
    %c0_9 = arith.constant 0 : index
    %c0_10 = arith.constant 0 : index
    %13 = vector.load %arg3[%c1, %c0_9, %c0_10] : memref<9x3x8xbf16, #tpu.memory_space<vmem>>, vector<1x3x8xbf16>
    %14 = vector.shape_cast %13 : vector<1x3x8xbf16> to vector<3x8xbf16>
    %cst_11 = arith.constant dense<0.000000e+00> : vector<64x8xf32>
    %15 = tpu.matmul %12, %14, %cst_11 {dimension_numbers = #tpu.dot_dimension_numbers<[1], [0], [0], [1], [0, 0, 1, 1], [], []>} : vector<64x3xbf16>, vector<3x8xbf16>, vector<64x8xf32> -> vector<64x8xf32>
    %16 = arith.addf %10, %15 : vector<64x8xf32>
    %17 = vector.extract_strided_slice %3 {offsets = [128, 0], sizes = [64, 3], strides = [1, 1]} : vector<576x3xf32> to vector<64x3xf32>
    %18 = arith.truncf %17 : vector<64x3xf32> to vector<64x3xbf16>
    %c2 = arith.constant 2 : index
    %c0_12 = arith.constant 0 : index
    %c0_13 = arith.constant 0 : index
    %19 = vector.load %arg3[%c2, %c0_12, %c0_13] : memref<9x3x8xbf16, #tpu.memory_space<vmem>>, vector<1x3x8xbf16>
    %20 = vector.shape_cast %19 : vector<1x3x8xbf16> to vector<3x8xbf16>
    %cst_14 = arith.constant dense<0.000000e+00> : vector<64x8xf32>
    %21 = tpu.matmul %18, %20, %cst_14 {dimension_numbers = #tpu.dot_dimension_numbers<[1], [0], [0], [1], [0, 0, 1, 1], [], []>} : vector<64x3xbf16>, vector<3x8xbf16>, vector<64x8xf32> -> vector<64x8xf32>
    %22 = arith.addf %16, %21 : vector<64x8xf32>
    %23 = vector.extract_strided_slice %3 {offsets = [192, 0], sizes = [64, 3], strides = [1, 1]} : vector<576x3xf32> to vector<64x3xf32>
    %24 = arith.truncf %23 : vector<64x3xf32> to vector<64x3xbf16>
    %c3 = arith.constant 3 : index
    %c0_15 = arith.constant 0 : index
    %c0_16 = arith.constant 0 : index
    %25 = vector.load %arg3[%c3, %c0_15, %c0_16] : memref<9x3x8xbf16, #tpu.memory_space<vmem>>, vector<1x3x8xbf16>
    %26 = vector.shape_cast %25 : vector<1x3x8xbf16> to vector<3x8xbf16>
    %cst_17 = arith.constant dense<0.000000e+00> : vector<64x8xf32>
    %27 = tpu.matmul %24, %26, %cst_17 {dimension_numbers = #tpu.dot_dimension_numbers<[1], [0], [0], [1], [0, 0, 1, 1], [], []>} : vector<64x3xbf16>, vector<3x8xbf16>, vector<64x8xf32> -> vector<64x8xf32>
    %28 = arith.addf %22, %27 : vector<64x8xf32>
    %29 = vector.extract_strided_slice %3 {offsets = [256, 0], sizes = [64, 3], strides = [1, 1]} : vector<576x3xf32> to vector<64x3xf32>
    %30 = arith.truncf %29 : vector<64x3xf32> to vector<64x3xbf16>
    %c4 = arith.constant 4 : index
    %c0_18 = arith.constant 0 : index
    %c0_19 = arith.constant 0 : index
    %31 = vector.load %arg3[%c4, %c0_18, %c0_19] : memref<9x3x8xbf16, #tpu.memory_space<vmem>>, vector<1x3x8xbf16>
    %32 = vector.shape_cast %31 : vector<1x3x8xbf16> to vector<3x8xbf16>
    %cst_20 = arith.constant dense<0.000000e+00> : vector<64x8xf32>
    %33 = tpu.matmul %30, %32, %cst_20 {dimension_numbers = #tpu.dot_dimension_numbers<[1], [0], [0], [1], [0, 0, 1, 1], [], []>} : vector<64x3xbf16>, vector<3x8xbf16>, vector<64x8xf32> -> vector<64x8xf32>
    %34 = arith.addf %28, %33 : vector<64x8xf32>
    %35 = vector.extract_strided_slice %3 {offsets = [320, 0], sizes = [64, 3], strides = [1, 1]} : vector<576x3xf32> to vector<64x3xf32>
    %36 = arith.truncf %35 : vector<64x3xf32> to vector<64x3xbf16>
    %c5 = arith.constant 5 : index
    %c0_21 = arith.constant 0 : index
    %c0_22 = arith.constant 0 : index
    %37 = vector.load %arg3[%c5, %c0_21, %c0_22] : memref<9x3x8xbf16, #tpu.memory_space<vmem>>, vector<1x3x8xbf16>
    %38 = vector.shape_cast %37 : vector<1x3x8xbf16> to vector<3x8xbf16>
    %cst_23 = arith.constant dense<0.000000e+00> : vector<64x8xf32>
    %39 = tpu.matmul %36, %38, %cst_23 {dimension_numbers = #tpu.dot_dimension_numbers<[1], [0], [0], [1], [0, 0, 1, 1], [], []>} : vector<64x3xbf16>, vector<3x8xbf16>, vector<64x8xf32> -> vector<64x8xf32>
    %40 = arith.addf %34, %39 : vector<64x8xf32>
    %41 = vector.extract_strided_slice %3 {offsets = [384, 0], sizes = [64, 3], strides = [1, 1]} : vector<576x3xf32> to vector<64x3xf32>
    %42 = arith.truncf %41 : vector<64x3xf32> to vector<64x3xbf16>
    %c6 = arith.constant 6 : index
    %c0_24 = arith.constant 0 : index
    %c0_25 = arith.constant 0 : index
    %43 = vector.load %arg3[%c6, %c0_24, %c0_25] : memref<9x3x8xbf16, #tpu.memory_space<vmem>>, vector<1x3x8xbf16>
    %44 = vector.shape_cast %43 : vector<1x3x8xbf16> to vector<3x8xbf16>
    %cst_26 = arith.constant dense<0.000000e+00> : vector<64x8xf32>
    %45 = tpu.matmul %42, %44, %cst_26 {dimension_numbers = #tpu.dot_dimension_numbers<[1], [0], [0], [1], [0, 0, 1, 1], [], []>} : vector<64x3xbf16>, vector<3x8xbf16>, vector<64x8xf32> -> vector<64x8xf32>
    %46 = arith.addf %40, %45 : vector<64x8xf32>
    %47 = vector.extract_strided_slice %3 {offsets = [448, 0], sizes = [64, 3], strides = [1, 1]} : vector<576x3xf32> to vector<64x3xf32>
    %48 = arith.truncf %47 : vector<64x3xf32> to vector<64x3xbf16>
    %c7 = arith.constant 7 : index
    %c0_27 = arith.constant 0 : index
    %c0_28 = arith.constant 0 : index
    %49 = vector.load %arg3[%c7, %c0_27, %c0_28] : memref<9x3x8xbf16, #tpu.memory_space<vmem>>, vector<1x3x8xbf16>
    %50 = vector.shape_cast %49 : vector<1x3x8xbf16> to vector<3x8xbf16>
    %cst_29 = arith.constant dense<0.000000e+00> : vector<64x8xf32>
    %51 = tpu.matmul %48, %50, %cst_29 {dimension_numbers = #tpu.dot_dimension_numbers<[1], [0], [0], [1], [0, 0, 1, 1], [], []>} : vector<64x3xbf16>, vector<3x8xbf16>, vector<64x8xf32> -> vector<64x8xf32>
    %52 = arith.addf %46, %51 : vector<64x8xf32>
    %53 = vector.extract_strided_slice %3 {offsets = [512, 0], sizes = [64, 3], strides = [1, 1]} : vector<576x3xf32> to vector<64x3xf32>
    %54 = arith.truncf %53 : vector<64x3xf32> to vector<64x3xbf16>
    %c8 = arith.constant 8 : index
    %c0_30 = arith.constant 0 : index
    %c0_31 = arith.constant 0 : index
    %55 = vector.load %arg3[%c8, %c0_30, %c0_31] : memref<9x3x8xbf16, #tpu.memory_space<vmem>>, vector<1x3x8xbf16>
    %56 = vector.shape_cast %55 : vector<1x3x8xbf16> to vector<3x8xbf16>
    %cst_32 = arith.constant dense<0.000000e+00> : vector<64x8xf32>
    %57 = tpu.matmul %54, %56, %cst_32 {dimension_numbers = #tpu.dot_dimension_numbers<[1], [0], [0], [1], [0, 0, 1, 1], [], []>} : vector<64x3xbf16>, vector<3x8xbf16>, vector<64x8xf32> -> vector<64x8xf32>
    %58 = arith.addf %52, %57 : vector<64x8xf32>
    %c0_33 = arith.constant 0 : index
    %c0_34 = arith.constant 0 : index
    %59 = vector.load %arg4[%c0_33, %c0_34] : memref<1x8xf32, #tpu.memory_space<vmem>>, vector<1x8xf32>
    %60 = vector.broadcast %59 : vector<1x8xf32> to vector<64x8xf32>
    %61 = arith.addf %58, %60 : vector<64x8xf32>
    %cst_35 = arith.constant 0.000000e+00 : f32
    %62 = vector.broadcast %cst_35 : f32 to vector<64x8xf32>
    %63 = arith.maximumf %61, %62 : vector<64x8xf32>
    %64 = arith.truncf %63 : vector<64x8xf32> to vector<64x8xbf16>
    %c0_36 = arith.constant 0 : index
    %c0_37 = arith.constant 0 : index
    %65 = vector.load %arg5[%c0_36, %c0_37] : memref<144x64xbf16, #tpu.memory_space<vmem>>, vector<144x64xbf16>
    %cst_38 = arith.constant dense<0.000000e+00> : vector<144x8xf32>
    %66 = tpu.matmul %65, %64, %cst_38 {dimension_numbers = #tpu.dot_dimension_numbers<[1], [0], [0], [1], [0, 0, 1, 1], [], []>} : vector<144x64xbf16>, vector<64x8xbf16>, vector<144x8xf32> -> vector<144x8xf32>
    %cst_39 = arith.constant 0.000000e+00 : f32
    %67 = vector.broadcast %cst_39 : f32 to vector<16x16xf32>
    %68 = vector.extract_strided_slice %66 {offsets = [0, 0], sizes = [16, 8], strides = [1, 1]} : vector<144x8xf32> to vector<16x8xf32>
    %69 = arith.truncf %68 : vector<16x8xf32> to vector<16x8xbf16>
    %c0_40 = arith.constant 0 : index
    %c0_41 = arith.constant 0 : index
    %c0_42 = arith.constant 0 : index
    %70 = vector.load %arg6[%c0_40, %c0_41, %c0_42] : memref<9x8x16xbf16, #tpu.memory_space<vmem>>, vector<1x8x16xbf16>
    %71 = vector.shape_cast %70 : vector<1x8x16xbf16> to vector<8x16xbf16>
    %cst_43 = arith.constant dense<0.000000e+00> : vector<16x16xf32>
    %72 = tpu.matmul %69, %71, %cst_43 {dimension_numbers = #tpu.dot_dimension_numbers<[1], [0], [0], [1], [0, 0, 1, 1], [], []>} : vector<16x8xbf16>, vector<8x16xbf16>, vector<16x16xf32> -> vector<16x16xf32>
    %73 = arith.addf %67, %72 : vector<16x16xf32>
    %74 = vector.extract_strided_slice %66 {offsets = [16, 0], sizes = [16, 8], strides = [1, 1]} : vector<144x8xf32> to vector<16x8xf32>
    %75 = arith.truncf %74 : vector<16x8xf32> to vector<16x8xbf16>
    %c1_44 = arith.constant 1 : index
    %c0_45 = arith.constant 0 : index
    %c0_46 = arith.constant 0 : index
    %76 = vector.load %arg6[%c1_44, %c0_45, %c0_46] : memref<9x8x16xbf16, #tpu.memory_space<vmem>>, vector<1x8x16xbf16>
    %77 = vector.shape_cast %76 : vector<1x8x16xbf16> to vector<8x16xbf16>
    %cst_47 = arith.constant dense<0.000000e+00> : vector<16x16xf32>
    %78 = tpu.matmul %75, %77, %cst_47 {dimension_numbers = #tpu.dot_dimension_numbers<[1], [0], [0], [1], [0, 0, 1, 1], [], []>} : vector<16x8xbf16>, vector<8x16xbf16>, vector<16x16xf32> -> vector<16x16xf32>
    %79 = arith.addf %73, %78 : vector<16x16xf32>
    %80 = vector.extract_strided_slice %66 {offsets = [32, 0], sizes = [16, 8], strides = [1, 1]} : vector<144x8xf32> to vector<16x8xf32>
    %81 = arith.truncf %80 : vector<16x8xf32> to vector<16x8xbf16>
    %c2_48 = arith.constant 2 : index
    %c0_49 = arith.constant 0 : index
    %c0_50 = arith.constant 0 : index
    %82 = vector.load %arg6[%c2_48, %c0_49, %c0_50] : memref<9x8x16xbf16, #tpu.memory_space<vmem>>, vector<1x8x16xbf16>
    %83 = vector.shape_cast %82 : vector<1x8x16xbf16> to vector<8x16xbf16>
    %cst_51 = arith.constant dense<0.000000e+00> : vector<16x16xf32>
    %84 = tpu.matmul %81, %83, %cst_51 {dimension_numbers = #tpu.dot_dimension_numbers<[1], [0], [0], [1], [0, 0, 1, 1], [], []>} : vector<16x8xbf16>, vector<8x16xbf16>, vector<16x16xf32> -> vector<16x16xf32>
    %85 = arith.addf %79, %84 : vector<16x16xf32>
    %86 = vector.extract_strided_slice %66 {offsets = [48, 0], sizes = [16, 8], strides = [1, 1]} : vector<144x8xf32> to vector<16x8xf32>
    %87 = arith.truncf %86 : vector<16x8xf32> to vector<16x8xbf16>
    %c3_52 = arith.constant 3 : index
    %c0_53 = arith.constant 0 : index
    %c0_54 = arith.constant 0 : index
    %88 = vector.load %arg6[%c3_52, %c0_53, %c0_54] : memref<9x8x16xbf16, #tpu.memory_space<vmem>>, vector<1x8x16xbf16>
    %89 = vector.shape_cast %88 : vector<1x8x16xbf16> to vector<8x16xbf16>
    %cst_55 = arith.constant dense<0.000000e+00> : vector<16x16xf32>
    %90 = tpu.matmul %87, %89, %cst_55 {dimension_numbers = #tpu.dot_dimension_numbers<[1], [0], [0], [1], [0, 0, 1, 1], [], []>} : vector<16x8xbf16>, vector<8x16xbf16>, vector<16x16xf32> -> vector<16x16xf32>
    %91 = arith.addf %85, %90 : vector<16x16xf32>
    %92 = vector.extract_strided_slice %66 {offsets = [64, 0], sizes = [16, 8], strides = [1, 1]} : vector<144x8xf32> to vector<16x8xf32>
    %93 = arith.truncf %92 : vector<16x8xf32> to vector<16x8xbf16>
    %c4_56 = arith.constant 4 : index
    %c0_57 = arith.constant 0 : index
    %c0_58 = arith.constant 0 : index
    %94 = vector.load %arg6[%c4_56, %c0_57, %c0_58] : memref<9x8x16xbf16, #tpu.memory_space<vmem>>, vector<1x8x16xbf16>
    %95 = vector.shape_cast %94 : vector<1x8x16xbf16> to vector<8x16xbf16>
    %cst_59 = arith.constant dense<0.000000e+00> : vector<16x16xf32>
    %96 = tpu.matmul %93, %95, %cst_59 {dimension_numbers = #tpu.dot_dimension_numbers<[1], [0], [0], [1], [0, 0, 1, 1], [], []>} : vector<16x8xbf16>, vector<8x16xbf16>, vector<16x16xf32> -> vector<16x16xf32>
    %97 = arith.addf %91, %96 : vector<16x16xf32>
    %98 = vector.extract_strided_slice %66 {offsets = [80, 0], sizes = [16, 8], strides = [1, 1]} : vector<144x8xf32> to vector<16x8xf32>
    %99 = arith.truncf %98 : vector<16x8xf32> to vector<16x8xbf16>
    %c5_60 = arith.constant 5 : index
    %c0_61 = arith.constant 0 : index
    %c0_62 = arith.constant 0 : index
    %100 = vector.load %arg6[%c5_60, %c0_61, %c0_62] : memref<9x8x16xbf16, #tpu.memory_space<vmem>>, vector<1x8x16xbf16>
    %101 = vector.shape_cast %100 : vector<1x8x16xbf16> to vector<8x16xbf16>
    %cst_63 = arith.constant dense<0.000000e+00> : vector<16x16xf32>
    %102 = tpu.matmul %99, %101, %cst_63 {dimension_numbers = #tpu.dot_dimension_numbers<[1], [0], [0], [1], [0, 0, 1, 1], [], []>} : vector<16x8xbf16>, vector<8x16xbf16>, vector<16x16xf32> -> vector<16x16xf32>
    %103 = arith.addf %97, %102 : vector<16x16xf32>
    %104 = vector.extract_strided_slice %66 {offsets = [96, 0], sizes = [16, 8], strides = [1, 1]} : vector<144x8xf32> to vector<16x8xf32>
    %105 = arith.truncf %104 : vector<16x8xf32> to vector<16x8xbf16>
    %c6_64 = arith.constant 6 : index
    %c0_65 = arith.constant 0 : index
    %c0_66 = arith.constant 0 : index
    %106 = vector.load %arg6[%c6_64, %c0_65, %c0_66] : memref<9x8x16xbf16, #tpu.memory_space<vmem>>, vector<1x8x16xbf16>
    %107 = vector.shape_cast %106 : vector<1x8x16xbf16> to vector<8x16xbf16>
    %cst_67 = arith.constant dense<0.000000e+00> : vector<16x16xf32>
    %108 = tpu.matmul %105, %107, %cst_67 {dimension_numbers = #tpu.dot_dimension_numbers<[1], [0], [0], [1], [0, 0, 1, 1], [], []>} : vector<16x8xbf16>, vector<8x16xbf16>, vector<16x16xf32> -> vector<16x16xf32>
    %109 = arith.addf %103, %108 : vector<16x16xf32>
    %110 = vector.extract_strided_slice %66 {offsets = [112, 0], sizes = [16, 8], strides = [1, 1]} : vector<144x8xf32> to vector<16x8xf32>
    %111 = arith.truncf %110 : vector<16x8xf32> to vector<16x8xbf16>
    %c7_68 = arith.constant 7 : index
    %c0_69 = arith.constant 0 : index
    %c0_70 = arith.constant 0 : index
    %112 = vector.load %arg6[%c7_68, %c0_69, %c0_70] : memref<9x8x16xbf16, #tpu.memory_space<vmem>>, vector<1x8x16xbf16>
    %113 = vector.shape_cast %112 : vector<1x8x16xbf16> to vector<8x16xbf16>
    %cst_71 = arith.constant dense<0.000000e+00> : vector<16x16xf32>
    %114 = tpu.matmul %111, %113, %cst_71 {dimension_numbers = #tpu.dot_dimension_numbers<[1], [0], [0], [1], [0, 0, 1, 1], [], []>} : vector<16x8xbf16>, vector<8x16xbf16>, vector<16x16xf32> -> vector<16x16xf32>
    %115 = arith.addf %109, %114 : vector<16x16xf32>
    %116 = vector.extract_strided_slice %66 {offsets = [128, 0], sizes = [16, 8], strides = [1, 1]} : vector<144x8xf32> to vector<16x8xf32>
    %117 = arith.truncf %116 : vector<16x8xf32> to vector<16x8xbf16>
    %c8_72 = arith.constant 8 : index
    %c0_73 = arith.constant 0 : index
    %c0_74 = arith.constant 0 : index
    %118 = vector.load %arg6[%c8_72, %c0_73, %c0_74] : memref<9x8x16xbf16, #tpu.memory_space<vmem>>, vector<1x8x16xbf16>
    %119 = vector.shape_cast %118 : vector<1x8x16xbf16> to vector<8x16xbf16>
    %cst_75 = arith.constant dense<0.000000e+00> : vector<16x16xf32>
    %120 = tpu.matmul %117, %119, %cst_75 {dimension_numbers = #tpu.dot_dimension_numbers<[1], [0], [0], [1], [0, 0, 1, 1], [], []>} : vector<16x8xbf16>, vector<8x16xbf16>, vector<16x16xf32> -> vector<16x16xf32>
    %121 = arith.addf %115, %120 : vector<16x16xf32>
    %c0_76 = arith.constant 0 : index
    %c0_77 = arith.constant 0 : index
    %122 = vector.load %arg7[%c0_76, %c0_77] : memref<1x16xf32, #tpu.memory_space<vmem>>, vector<1x16xf32>
    %123 = vector.broadcast %122 : vector<1x16xf32> to vector<16x16xf32>
    %124 = arith.addf %121, %123 : vector<16x16xf32>
    %cst_78 = arith.constant 0.000000e+00 : f32
    %125 = vector.broadcast %cst_78 : f32 to vector<16x16xf32>
    %126 = arith.maximumf %124, %125 : vector<16x16xf32>
    %127 = arith.truncf %126 : vector<16x16xf32> to vector<16x16xbf16>
    %c0_79 = arith.constant 0 : index
    %c0_80 = arith.constant 0 : index
    %128 = vector.load %arg8[%c0_79, %c0_80] : memref<576x16xbf16, #tpu.memory_space<vmem>>, vector<576x16xbf16>
    %cst_81 = arith.constant dense<0.000000e+00> : vector<576x16xf32>
    %129 = tpu.matmul %128, %127, %cst_81 {dimension_numbers = #tpu.dot_dimension_numbers<[1], [0], [0], [1], [0, 0, 1, 1], [], []>} : vector<576x16xbf16>, vector<16x16xbf16>, vector<576x16xf32> -> vector<576x16xf32>
    %cst_82 = arith.constant 0.000000e+00 : f32
    %130 = vector.broadcast %cst_82 : f32 to vector<64x8xf32>
    %131 = vector.extract_strided_slice %129 {offsets = [0, 0], sizes = [64, 16], strides = [1, 1]} : vector<576x16xf32> to vector<64x16xf32>
    %132 = arith.truncf %131 : vector<64x16xf32> to vector<64x16xbf16>
    %c0_83 = arith.constant 0 : index
    %c0_84 = arith.constant 0 : index
    %c0_85 = arith.constant 0 : index
    %133 = vector.load %arg9[%c0_83, %c0_84, %c0_85] : memref<9x16x8xbf16, #tpu.memory_space<vmem>>, vector<1x16x8xbf16>
    %134 = vector.shape_cast %133 : vector<1x16x8xbf16> to vector<16x8xbf16>
    %cst_86 = arith.constant dense<0.000000e+00> : vector<64x8xf32>
    %135 = tpu.matmul %132, %134, %cst_86 {dimension_numbers = #tpu.dot_dimension_numbers<[1], [0], [0], [1], [0, 0, 1, 1], [], []>} : vector<64x16xbf16>, vector<16x8xbf16>, vector<64x8xf32> -> vector<64x8xf32>
    %136 = arith.addf %130, %135 : vector<64x8xf32>
    %137 = vector.extract_strided_slice %129 {offsets = [64, 0], sizes = [64, 16], strides = [1, 1]} : vector<576x16xf32> to vector<64x16xf32>
    %138 = arith.truncf %137 : vector<64x16xf32> to vector<64x16xbf16>
    %c1_87 = arith.constant 1 : index
    %c0_88 = arith.constant 0 : index
    %c0_89 = arith.constant 0 : index
    %139 = vector.load %arg9[%c1_87, %c0_88, %c0_89] : memref<9x16x8xbf16, #tpu.memory_space<vmem>>, vector<1x16x8xbf16>
    %140 = vector.shape_cast %139 : vector<1x16x8xbf16> to vector<16x8xbf16>
    %cst_90 = arith.constant dense<0.000000e+00> : vector<64x8xf32>
    %141 = tpu.matmul %138, %140, %cst_90 {dimension_numbers = #tpu.dot_dimension_numbers<[1], [0], [0], [1], [0, 0, 1, 1], [], []>} : vector<64x16xbf16>, vector<16x8xbf16>, vector<64x8xf32> -> vector<64x8xf32>
    %142 = arith.addf %136, %141 : vector<64x8xf32>
    %143 = vector.extract_strided_slice %129 {offsets = [128, 0], sizes = [64, 16], strides = [1, 1]} : vector<576x16xf32> to vector<64x16xf32>
    %144 = arith.truncf %143 : vector<64x16xf32> to vector<64x16xbf16>
    %c2_91 = arith.constant 2 : index
    %c0_92 = arith.constant 0 : index
    %c0_93 = arith.constant 0 : index
    %145 = vector.load %arg9[%c2_91, %c0_92, %c0_93] : memref<9x16x8xbf16, #tpu.memory_space<vmem>>, vector<1x16x8xbf16>
    %146 = vector.shape_cast %145 : vector<1x16x8xbf16> to vector<16x8xbf16>
    %cst_94 = arith.constant dense<0.000000e+00> : vector<64x8xf32>
    %147 = tpu.matmul %144, %146, %cst_94 {dimension_numbers = #tpu.dot_dimension_numbers<[1], [0], [0], [1], [0, 0, 1, 1], [], []>} : vector<64x16xbf16>, vector<16x8xbf16>, vector<64x8xf32> -> vector<64x8xf32>
    %148 = arith.addf %142, %147 : vector<64x8xf32>
    %149 = vector.extract_strided_slice %129 {offsets = [192, 0], sizes = [64, 16], strides = [1, 1]} : vector<576x16xf32> to vector<64x16xf32>
    %150 = arith.truncf %149 : vector<64x16xf32> to vector<64x16xbf16>
    %c3_95 = arith.constant 3 : index
    %c0_96 = arith.constant 0 : index
    %c0_97 = arith.constant 0 : index
    %151 = vector.load %arg9[%c3_95, %c0_96, %c0_97] : memref<9x16x8xbf16, #tpu.memory_space<vmem>>, vector<1x16x8xbf16>
    %152 = vector.shape_cast %151 : vector<1x16x8xbf16> to vector<16x8xbf16>
    %cst_98 = arith.constant dense<0.000000e+00> : vector<64x8xf32>
    %153 = tpu.matmul %150, %152, %cst_98 {dimension_numbers = #tpu.dot_dimension_numbers<[1], [0], [0], [1], [0, 0, 1, 1], [], []>} : vector<64x16xbf16>, vector<16x8xbf16>, vector<64x8xf32> -> vector<64x8xf32>
    %154 = arith.addf %148, %153 : vector<64x8xf32>
    %155 = vector.extract_strided_slice %129 {offsets = [256, 0], sizes = [64, 16], strides = [1, 1]} : vector<576x16xf32> to vector<64x16xf32>
    %156 = arith.truncf %155 : vector<64x16xf32> to vector<64x16xbf16>
    %c4_99 = arith.constant 4 : index
    %c0_100 = arith.constant 0 : index
    %c0_101 = arith.constant 0 : index
    %157 = vector.load %arg9[%c4_99, %c0_100, %c0_101] : memref<9x16x8xbf16, #tpu.memory_space<vmem>>, vector<1x16x8xbf16>
    %158 = vector.shape_cast %157 : vector<1x16x8xbf16> to vector<16x8xbf16>
    %cst_102 = arith.constant dense<0.000000e+00> : vector<64x8xf32>
    %159 = tpu.matmul %156, %158, %cst_102 {dimension_numbers = #tpu.dot_dimension_numbers<[1], [0], [0], [1], [0, 0, 1, 1], [], []>} : vector<64x16xbf16>, vector<16x8xbf16>, vector<64x8xf32> -> vector<64x8xf32>
    %160 = arith.addf %154, %159 : vector<64x8xf32>
    %161 = vector.extract_strided_slice %129 {offsets = [320, 0], sizes = [64, 16], strides = [1, 1]} : vector<576x16xf32> to vector<64x16xf32>
    %162 = arith.truncf %161 : vector<64x16xf32> to vector<64x16xbf16>
    %c5_103 = arith.constant 5 : index
    %c0_104 = arith.constant 0 : index
    %c0_105 = arith.constant 0 : index
    %163 = vector.load %arg9[%c5_103, %c0_104, %c0_105] : memref<9x16x8xbf16, #tpu.memory_space<vmem>>, vector<1x16x8xbf16>
    %164 = vector.shape_cast %163 : vector<1x16x8xbf16> to vector<16x8xbf16>
    %cst_106 = arith.constant dense<0.000000e+00> : vector<64x8xf32>
    %165 = tpu.matmul %162, %164, %cst_106 {dimension_numbers = #tpu.dot_dimension_numbers<[1], [0], [0], [1], [0, 0, 1, 1], [], []>} : vector<64x16xbf16>, vector<16x8xbf16>, vector<64x8xf32> -> vector<64x8xf32>
    %166 = arith.addf %160, %165 : vector<64x8xf32>
    %167 = vector.extract_strided_slice %129 {offsets = [384, 0], sizes = [64, 16], strides = [1, 1]} : vector<576x16xf32> to vector<64x16xf32>
    %168 = arith.truncf %167 : vector<64x16xf32> to vector<64x16xbf16>
    %c6_107 = arith.constant 6 : index
    %c0_108 = arith.constant 0 : index
    %c0_109 = arith.constant 0 : index
    %169 = vector.load %arg9[%c6_107, %c0_108, %c0_109] : memref<9x16x8xbf16, #tpu.memory_space<vmem>>, vector<1x16x8xbf16>
    %170 = vector.shape_cast %169 : vector<1x16x8xbf16> to vector<16x8xbf16>
    %cst_110 = arith.constant dense<0.000000e+00> : vector<64x8xf32>
    %171 = tpu.matmul %168, %170, %cst_110 {dimension_numbers = #tpu.dot_dimension_numbers<[1], [0], [0], [1], [0, 0, 1, 1], [], []>} : vector<64x16xbf16>, vector<16x8xbf16>, vector<64x8xf32> -> vector<64x8xf32>
    %172 = arith.addf %166, %171 : vector<64x8xf32>
    %173 = vector.extract_strided_slice %129 {offsets = [448, 0], sizes = [64, 16], strides = [1, 1]} : vector<576x16xf32> to vector<64x16xf32>
    %174 = arith.truncf %173 : vector<64x16xf32> to vector<64x16xbf16>
    %c7_111 = arith.constant 7 : index
    %c0_112 = arith.constant 0 : index
    %c0_113 = arith.constant 0 : index
    %175 = vector.load %arg9[%c7_111, %c0_112, %c0_113] : memref<9x16x8xbf16, #tpu.memory_space<vmem>>, vector<1x16x8xbf16>
    %176 = vector.shape_cast %175 : vector<1x16x8xbf16> to vector<16x8xbf16>
    %cst_114 = arith.constant dense<0.000000e+00> : vector<64x8xf32>
    %177 = tpu.matmul %174, %176, %cst_114 {dimension_numbers = #tpu.dot_dimension_numbers<[1], [0], [0], [1], [0, 0, 1, 1], [], []>} : vector<64x16xbf16>, vector<16x8xbf16>, vector<64x8xf32> -> vector<64x8xf32>
    %178 = arith.addf %172, %177 : vector<64x8xf32>
    %179 = vector.extract_strided_slice %129 {offsets = [512, 0], sizes = [64, 16], strides = [1, 1]} : vector<576x16xf32> to vector<64x16xf32>
    %180 = arith.truncf %179 : vector<64x16xf32> to vector<64x16xbf16>
    %c8_115 = arith.constant 8 : index
    %c0_116 = arith.constant 0 : index
    %c0_117 = arith.constant 0 : index
    %181 = vector.load %arg9[%c8_115, %c0_116, %c0_117] : memref<9x16x8xbf16, #tpu.memory_space<vmem>>, vector<1x16x8xbf16>
    %182 = vector.shape_cast %181 : vector<1x16x8xbf16> to vector<16x8xbf16>
    %cst_118 = arith.constant dense<0.000000e+00> : vector<64x8xf32>
    %183 = tpu.matmul %180, %182, %cst_118 {dimension_numbers = #tpu.dot_dimension_numbers<[1], [0], [0], [1], [0, 0, 1, 1], [], []>} : vector<64x16xbf16>, vector<16x8xbf16>, vector<64x8xf32> -> vector<64x8xf32>
    %184 = arith.addf %178, %183 : vector<64x8xf32>
    %c0_119 = arith.constant 0 : index
    %c0_120 = arith.constant 0 : index
    %185 = vector.load %arg10[%c0_119, %c0_120] : memref<1x8xf32, #tpu.memory_space<vmem>>, vector<1x8xf32>
    %186 = vector.broadcast %185 : vector<1x8xf32> to vector<64x8xf32>
    %187 = arith.addf %184, %186 : vector<64x8xf32>
    %cst_121 = arith.constant 0.000000e+00 : f32
    %188 = vector.broadcast %cst_121 : f32 to vector<64x8xf32>
    %189 = arith.maximumf %187, %188 : vector<64x8xf32>
    %190 = arith.truncf %189 : vector<64x8xf32> to vector<64x8xbf16>
    %c0_122 = arith.constant 0 : index
    %c0_123 = arith.constant 0 : index
    %191 = vector.load %arg11[%c0_122, %c0_123] : memref<2304x64xbf16, #tpu.memory_space<vmem>>, vector<2304x64xbf16>
    %cst_124 = arith.constant dense<0.000000e+00> : vector<2304x8xf32>
    %192 = tpu.matmul %191, %190, %cst_124 {dimension_numbers = #tpu.dot_dimension_numbers<[1], [0], [0], [1], [0, 0, 1, 1], [], []>} : vector<2304x64xbf16>, vector<64x8xbf16>, vector<2304x8xf32> -> vector<2304x8xf32>
    %cst_125 = arith.constant 0.000000e+00 : f32
    %193 = vector.broadcast %cst_125 : f32 to vector<256x3xf32>
    %194 = vector.extract_strided_slice %192 {offsets = [0, 0], sizes = [256, 8], strides = [1, 1]} : vector<2304x8xf32> to vector<256x8xf32>
    %195 = arith.truncf %194 : vector<256x8xf32> to vector<256x8xbf16>
    %c0_126 = arith.constant 0 : index
    %c0_127 = arith.constant 0 : index
    %c0_128 = arith.constant 0 : index
    %196 = vector.load %arg12[%c0_126, %c0_127, %c0_128] : memref<9x8x3xbf16, #tpu.memory_space<vmem>>, vector<1x8x3xbf16>
    %197 = vector.shape_cast %196 : vector<1x8x3xbf16> to vector<8x3xbf16>
    %cst_129 = arith.constant dense<0.000000e+00> : vector<256x3xf32>
    %198 = tpu.matmul %195, %197, %cst_129 {dimension_numbers = #tpu.dot_dimension_numbers<[1], [0], [0], [1], [0, 0, 1, 1], [], []>} : vector<256x8xbf16>, vector<8x3xbf16>, vector<256x3xf32> -> vector<256x3xf32>
    %199 = arith.addf %193, %198 : vector<256x3xf32>
    %200 = vector.extract_strided_slice %192 {offsets = [256, 0], sizes = [256, 8], strides = [1, 1]} : vector<2304x8xf32> to vector<256x8xf32>
    %201 = arith.truncf %200 : vector<256x8xf32> to vector<256x8xbf16>
    %c1_130 = arith.constant 1 : index
    %c0_131 = arith.constant 0 : index
    %c0_132 = arith.constant 0 : index
    %202 = vector.load %arg12[%c1_130, %c0_131, %c0_132] : memref<9x8x3xbf16, #tpu.memory_space<vmem>>, vector<1x8x3xbf16>
    %203 = vector.shape_cast %202 : vector<1x8x3xbf16> to vector<8x3xbf16>
    %cst_133 = arith.constant dense<0.000000e+00> : vector<256x3xf32>
    %204 = tpu.matmul %201, %203, %cst_133 {dimension_numbers = #tpu.dot_dimension_numbers<[1], [0], [0], [1], [0, 0, 1, 1], [], []>} : vector<256x8xbf16>, vector<8x3xbf16>, vector<256x3xf32> -> vector<256x3xf32>
    %205 = arith.addf %199, %204 : vector<256x3xf32>
    %206 = vector.extract_strided_slice %192 {offsets = [512, 0], sizes = [256, 8], strides = [1, 1]} : vector<2304x8xf32> to vector<256x8xf32>
    %207 = arith.truncf %206 : vector<256x8xf32> to vector<256x8xbf16>
    %c2_134 = arith.constant 2 : index
    %c0_135 = arith.constant 0 : index
    %c0_136 = arith.constant 0 : index
    %208 = vector.load %arg12[%c2_134, %c0_135, %c0_136] : memref<9x8x3xbf16, #tpu.memory_space<vmem>>, vector<1x8x3xbf16>
    %209 = vector.shape_cast %208 : vector<1x8x3xbf16> to vector<8x3xbf16>
    %cst_137 = arith.constant dense<0.000000e+00> : vector<256x3xf32>
    %210 = tpu.matmul %207, %209, %cst_137 {dimension_numbers = #tpu.dot_dimension_numbers<[1], [0], [0], [1], [0, 0, 1, 1], [], []>} : vector<256x8xbf16>, vector<8x3xbf16>, vector<256x3xf32> -> vector<256x3xf32>
    %211 = arith.addf %205, %210 : vector<256x3xf32>
    %212 = vector.extract_strided_slice %192 {offsets = [768, 0], sizes = [256, 8], strides = [1, 1]} : vector<2304x8xf32> to vector<256x8xf32>
    %213 = arith.truncf %212 : vector<256x8xf32> to vector<256x8xbf16>
    %c3_138 = arith.constant 3 : index
    %c0_139 = arith.constant 0 : index
    %c0_140 = arith.constant 0 : index
    %214 = vector.load %arg12[%c3_138, %c0_139, %c0_140] : memref<9x8x3xbf16, #tpu.memory_space<vmem>>, vector<1x8x3xbf16>
    %215 = vector.shape_cast %214 : vector<1x8x3xbf16> to vector<8x3xbf16>
    %cst_141 = arith.constant dense<0.000000e+00> : vector<256x3xf32>
    %216 = tpu.matmul %213, %215, %cst_141 {dimension_numbers = #tpu.dot_dimension_numbers<[1], [0], [0], [1], [0, 0, 1, 1], [], []>} : vector<256x8xbf16>, vector<8x3xbf16>, vector<256x3xf32> -> vector<256x3xf32>
    %217 = arith.addf %211, %216 : vector<256x3xf32>
    %218 = vector.extract_strided_slice %192 {offsets = [1024, 0], sizes = [256, 8], strides = [1, 1]} : vector<2304x8xf32> to vector<256x8xf32>
    %219 = arith.truncf %218 : vector<256x8xf32> to vector<256x8xbf16>
    %c4_142 = arith.constant 4 : index
    %c0_143 = arith.constant 0 : index
    %c0_144 = arith.constant 0 : index
    %220 = vector.load %arg12[%c4_142, %c0_143, %c0_144] : memref<9x8x3xbf16, #tpu.memory_space<vmem>>, vector<1x8x3xbf16>
    %221 = vector.shape_cast %220 : vector<1x8x3xbf16> to vector<8x3xbf16>
    %cst_145 = arith.constant dense<0.000000e+00> : vector<256x3xf32>
    %222 = tpu.matmul %219, %221, %cst_145 {dimension_numbers = #tpu.dot_dimension_numbers<[1], [0], [0], [1], [0, 0, 1, 1], [], []>} : vector<256x8xbf16>, vector<8x3xbf16>, vector<256x3xf32> -> vector<256x3xf32>
    %223 = arith.addf %217, %222 : vector<256x3xf32>
    %224 = vector.extract_strided_slice %192 {offsets = [1280, 0], sizes = [256, 8], strides = [1, 1]} : vector<2304x8xf32> to vector<256x8xf32>
    %225 = arith.truncf %224 : vector<256x8xf32> to vector<256x8xbf16>
    %c5_146 = arith.constant 5 : index
    %c0_147 = arith.constant 0 : index
    %c0_148 = arith.constant 0 : index
    %226 = vector.load %arg12[%c5_146, %c0_147, %c0_148] : memref<9x8x3xbf16, #tpu.memory_space<vmem>>, vector<1x8x3xbf16>
    %227 = vector.shape_cast %226 : vector<1x8x3xbf16> to vector<8x3xbf16>
    %cst_149 = arith.constant dense<0.000000e+00> : vector<256x3xf32>
    %228 = tpu.matmul %225, %227, %cst_149 {dimension_numbers = #tpu.dot_dimension_numbers<[1], [0], [0], [1], [0, 0, 1, 1], [], []>} : vector<256x8xbf16>, vector<8x3xbf16>, vector<256x3xf32> -> vector<256x3xf32>
    %229 = arith.addf %223, %228 : vector<256x3xf32>
    %230 = vector.extract_strided_slice %192 {offsets = [1536, 0], sizes = [256, 8], strides = [1, 1]} : vector<2304x8xf32> to vector<256x8xf32>
    %231 = arith.truncf %230 : vector<256x8xf32> to vector<256x8xbf16>
    %c6_150 = arith.constant 6 : index
    %c0_151 = arith.constant 0 : index
    %c0_152 = arith.constant 0 : index
    %232 = vector.load %arg12[%c6_150, %c0_151, %c0_152] : memref<9x8x3xbf16, #tpu.memory_space<vmem>>, vector<1x8x3xbf16>
    %233 = vector.shape_cast %232 : vector<1x8x3xbf16> to vector<8x3xbf16>
    %cst_153 = arith.constant dense<0.000000e+00> : vector<256x3xf32>
    %234 = tpu.matmul %231, %233, %cst_153 {dimension_numbers = #tpu.dot_dimension_numbers<[1], [0], [0], [1], [0, 0, 1, 1], [], []>} : vector<256x8xbf16>, vector<8x3xbf16>, vector<256x3xf32> -> vector<256x3xf32>
    %235 = arith.addf %229, %234 : vector<256x3xf32>
    %236 = vector.extract_strided_slice %192 {offsets = [1792, 0], sizes = [256, 8], strides = [1, 1]} : vector<2304x8xf32> to vector<256x8xf32>
    %237 = arith.truncf %236 : vector<256x8xf32> to vector<256x8xbf16>
    %c7_154 = arith.constant 7 : index
    %c0_155 = arith.constant 0 : index
    %c0_156 = arith.constant 0 : index
    %238 = vector.load %arg12[%c7_154, %c0_155, %c0_156] : memref<9x8x3xbf16, #tpu.memory_space<vmem>>, vector<1x8x3xbf16>
    %239 = vector.shape_cast %238 : vector<1x8x3xbf16> to vector<8x3xbf16>
    %cst_157 = arith.constant dense<0.000000e+00> : vector<256x3xf32>
    %240 = tpu.matmul %237, %239, %cst_157 {dimension_numbers = #tpu.dot_dimension_numbers<[1], [0], [0], [1], [0, 0, 1, 1], [], []>} : vector<256x8xbf16>, vector<8x3xbf16>, vector<256x3xf32> -> vector<256x3xf32>
    %241 = arith.addf %235, %240 : vector<256x3xf32>
    %242 = vector.extract_strided_slice %192 {offsets = [2048, 0], sizes = [256, 8], strides = [1, 1]} : vector<2304x8xf32> to vector<256x8xf32>
    %243 = arith.truncf %242 : vector<256x8xf32> to vector<256x8xbf16>
    %c8_158 = arith.constant 8 : index
    %c0_159 = arith.constant 0 : index
    %c0_160 = arith.constant 0 : index
    %244 = vector.load %arg12[%c8_158, %c0_159, %c0_160] : memref<9x8x3xbf16, #tpu.memory_space<vmem>>, vector<1x8x3xbf16>
    %245 = vector.shape_cast %244 : vector<1x8x3xbf16> to vector<8x3xbf16>
    %cst_161 = arith.constant dense<0.000000e+00> : vector<256x3xf32>
    %246 = tpu.matmul %243, %245, %cst_161 {dimension_numbers = #tpu.dot_dimension_numbers<[1], [0], [0], [1], [0, 0, 1, 1], [], []>} : vector<256x8xbf16>, vector<8x3xbf16>, vector<256x3xf32> -> vector<256x3xf32>
    %247 = arith.addf %241, %246 : vector<256x3xf32>
    %c0_162 = arith.constant 0 : index
    %c0_163 = arith.constant 0 : index
    %248 = vector.load %arg13[%c0_162, %c0_163] : memref<1x3xf32, #tpu.memory_space<vmem>>, vector<1x3xf32>
    %249 = vector.broadcast %248 : vector<1x3xf32> to vector<256x3xf32>
    %250 = arith.addf %247, %249 : vector<256x3xf32>
    %251 = arith.negf %250 : vector<256x3xf32>
    %252 = math.exp %251 : vector<256x3xf32>
    %cst_164 = arith.constant 1.000000e+00 : f32
    %253 = vector.broadcast %cst_164 : f32 to vector<256x3xf32>
    %254 = arith.addf %253, %252 : vector<256x3xf32>
    %255 = arith.divf %253, %254 : vector<256x3xf32>
    %c0_165 = arith.constant 0 : index
    %c0_166 = arith.constant 0 : index
    %c0_167 = arith.constant 0 : index
    %256 = vector.load %arg14[%c0_165, %c0_166, %c0_167] : memref<1x256x3xf32, #tpu.memory_space<vmem>>, vector<1x256x3xf32>
    %257 = vector.shape_cast %256 : vector<1x256x3xf32> to vector<256x3xf32>
    %258 = vector.shape_cast %255 : vector<256x3xf32> to vector<1x256x3xf32>
    tpu.vector_store %arg14[%c0_165, %c0_166, %c0_167], %258 {strides = array<i32>} : memref<1x256x3xf32, #tpu.memory_space<vmem>>, vector<1x256x3xf32>,
    return
  }
  func.func @transform_0(%arg0: i32) -> (i32, i32, i32) {
    %c0_i32 = arith.constant 0 : i32
    %c0_i32_0 = arith.constant 0 : i32
    %c0_i32_1 = arith.constant 0 : i32
    return %arg0, %c0_i32, %c0_i32_0 : i32, i32, i32
  }
  func.func @transform_1(%arg0: i32) -> (i32, i32) {
    %c0_i32 = arith.constant 0 : i32
    %c0_i32_0 = arith.constant 0 : i32
    %c0_i32_1 = arith.constant 0 : i32
    return %c0_i32, %c0_i32_0 : i32, i32
  }
  func.func @transform_2(%arg0: i32) -> (i32, i32, i32) {
    %c0_i32 = arith.constant 0 : i32
    %c0_i32_0 = arith.constant 0 : i32
    %c0_i32_1 = arith.constant 0 : i32
    %c0_i32_2 = arith.constant 0 : i32
    return %c0_i32, %c0_i32_0, %c0_i32_1 : i32, i32, i32
  }
  func.func @transform_3(%arg0: i32) -> (i32, i32) {
    %c0_i32 = arith.constant 0 : i32
    %c0_i32_0 = arith.constant 0 : i32
    %c0_i32_1 = arith.constant 0 : i32
    return %c0_i32, %c0_i32_0 : i32, i32
  }
  func.func @transform_4(%arg0: i32) -> (i32, i32) {
    %c0_i32 = arith.constant 0 : i32
    %c0_i32_0 = arith.constant 0 : i32
    %c0_i32_1 = arith.constant 0 : i32
    return %c0_i32, %c0_i32_0 : i32, i32
  }
  func.func @transform_5(%arg0: i32) -> (i32, i32, i32) {
    %c0_i32 = arith.constant 0 : i32
    %c0_i32_0 = arith.constant 0 : i32
    %c0_i32_1 = arith.constant 0 : i32
    %c0_i32_2 = arith.constant 0 : i32
    return %c0_i32, %c0_i32_0, %c0_i32_1 : i32, i32, i32
  }
  func.func @transform_6(%arg0: i32) -> (i32, i32) {
    %c0_i32 = arith.constant 0 : i32
    %c0_i32_0 = arith.constant 0 : i32
    %c0_i32_1 = arith.constant 0 : i32
    return %c0_i32, %c0_i32_0 : i32, i32
  }
  func.func @transform_7(%arg0: i32) -> (i32, i32) {
    %c0_i32 = arith.constant 0 : i32
    %c0_i32_0 = arith.constant 0 : i32
    %c0_i32_1 = arith.constant 0 : i32
    return %c0_i32, %c0_i32_0 : i32, i32
  }
  func.func @transform_8(%arg0: i32) -> (i32, i32, i32) {
    %c0_i32 = arith.constant 0 : i32
    %c0_i32_0 = arith.constant 0 : i32
    %c0_i32_1 = arith.constant 0 : i32
    %c0_i32_2 = arith.constant 0 : i32
    return %c0_i32, %c0_i32_0, %c0_i32_1 : i32, i32, i32
  }
  func.func @transform_9(%arg0: i32) -> (i32, i32) {
    %c0_i32 = arith.constant 0 : i32
    %c0_i32_0 = arith.constant 0 : i32
    %c0_i32_1 = arith.constant 0 : i32
    return %c0_i32, %c0_i32_0 : i32, i32
  }
  func.func @transform_10(%arg0: i32) -> (i32, i32) {
    %c0_i32 = arith.constant 0 : i32
    %c0_i32_0 = arith.constant 0 : i32
    %c0_i32_1 = arith.constant 0 : i32
    return %c0_i32, %c0_i32_0 : i32, i32
  }
  func.func @transform_11(%arg0: i32) -> (i32, i32, i32) {
    %c0_i32 = arith.constant 0 : i32
    %c0_i32_0 = arith.constant 0 : i32
    %c0_i32_1 = arith.constant 0 : i32
    %c0_i32_2 = arith.constant 0 : i32
    return %c0_i32, %c0_i32_0, %c0_i32_1 : i32, i32, i32
  }
  func.func @transform_12(%arg0: i32) -> (i32, i32) {
    %c0_i32 = arith.constant 0 : i32
    %c0_i32_0 = arith.constant 0 : i32
    %c0_i32_1 = arith.constant 0 : i32
    return %c0_i32, %c0_i32_0 : i32, i32
  }
  func.func @transform_13(%arg0: i32) -> (i32, i32, i32) {
    %c0_i32 = arith.constant 0 : i32
    %c0_i32_0 = arith.constant 0 : i32
    %c0_i32_1 = arith.constant 0 : i32
    return %arg0, %c0_i32, %c0_i32_0 : i32, i32, i32
  }
}

</mosaic_0001>

<llo_original>
// kernel: cifar_autoencoder_forward.1
$region0: #{cifar_autoencoder_forward.1}
  #allocation0 [shape = 'u32[]', space=smem, size = 0x4, offset = 0x4, fixed_abs, tag = 'smem constant byte address 0x4 - core index']
  #allocation1 [shape = 'u32[144,128]{1,0:T(1,128)}', space=vmem, size = 0x12000, scoped, tag = 'internal scratch']
  %s0 = inlined_call_operand.vmem [shape: bf16[2,256,3], index: 0, kind: input, shape index: {}]
  %s1 = inlined_call_operand.vmem [shape: bf16[576,256], index: 1, kind: input, shape index: {}]
  %s2 = inlined_call_operand.vmem [shape: bf16[9,3,8], index: 2, kind: input, shape index: {}]
  %s3 = inlined_call_operand.vmem [shape: f32[1,8], index: 3, kind: input, shape index: {}]
  %s4 = inlined_call_operand.vmem [shape: bf16[144,64], index: 4, kind: input, shape index: {}]
  %s5 = inlined_call_operand.vmem [shape: bf16[9,8,16], index: 5, kind: input, shape index: {}]
  %s6 = inlined_call_operand.vmem [shape: f32[1,16], index: 6, kind: input, shape index: {}]
  %s7 = inlined_call_operand.vmem [shape: bf16[576,16], index: 7, kind: input, shape index: {}]
  %s8 = inlined_call_operand.vmem [shape: bf16[9,16,8], index: 8, kind: input, shape index: {}]
  %s9 = inlined_call_operand.vmem [shape: f32[1,8], index: 9, kind: input, shape index: {}]
  %s10 = inlined_call_operand.vmem [shape: bf16[2304,64], index: 10, kind: input, shape index: {}]
  %s11 = inlined_call_operand.vmem [shape: bf16[9,8,3], index: 11, kind: input, shape index: {}]
  %s12 = inlined_call_operand.vmem [shape: f32[1,3], index: 12, kind: input, shape index: {}]
  %s13 = inlined_call_operand.vmem [shape: f32[2,256,3], index: 13, kind: output, shape index: {}]
  %s14 = sld [smem:[#allocation0]]
  $region85: #{cifar_autoencoder_forward.1} parent=0
    _
  %s16 = ssub.s32 1, %s14
  %s17 = scalar_select 0, %s16, %s14
  loop: start=0, step=1, limit=4
  $region2: #{cifar_autoencoder_forward.1} parent=0 // loop_pre_header
    _
  $region3: #{cifar_autoencoder_forward.1} parent=0 // loop_header
    %s19 = sphi 0, %s23
    %p20 = scmp.ge.s32.totalorder %s19, 4
    %s29 = sphi 0, %s31
    %s32 = sphi 0, %s29
    %s33 = sphi 0, %s32
    %s49 = sphi 0, %s33
    %s53 = sphi 0, %s53
    %s55 = sphi 0, %s53
    %s56 = sphi 0, %s55
    %s70 = sphi 0, %s56
    %s74 = sphi 0, %s74
    %s76 = sphi 0, %s74
    %s77 = sphi 0, %s76
    %s91 = sphi 0, %s77
    %s95 = sphi 0, %s95
    %s97 = sphi 0, %s95
    %s98 = sphi 0, %s97
    %s112 = sphi 0, %s98
    %s116 = sphi 0, %s116
    %s118 = sphi 0, %s116
    %s119 = sphi 0, %s118
    %s133 = sphi 0, %s119
    %s137 = sphi 0, %s137
    %s139 = sphi 0, %s137
    %s140 = sphi 0, %s139
    %s154 = sphi 0, %s140
    %s158 = sphi 0, %s158
    %s160 = sphi 0, %s158
    %s161 = sphi 0, %s160
    %s175 = sphi 0, %s161
    %s179 = sphi 0, %s179
    %s181 = sphi 0, %s179
    %s182 = sphi 0, %s181
    %s196 = sphi 0, %s182
    %s200 = sphi 0, %s200
    %s202 = sphi 0, %s200
    %s203 = sphi 0, %s202
    %s217 = sphi 0, %s203
    %s221 = sphi 0, %s221
    %s223 = sphi 0, %s221
    %s224 = sphi 0, %s223
    %s238 = sphi 0, %s224
    %s242 = sphi 0, %s242
    %s244 = sphi 0, %s242
    %s245 = sphi 0, %s244
    %s259 = sphi 0, %s245
    %s263 = sphi 0, %s263
    %s265 = sphi 0, %s263
    %s266 = sphi 0, %s265
    %s280 = sphi 0, %s266
    %s284 = sphi 0, %s284
    %s286 = sphi 0, %s284
    %s287 = sphi 0, %s286
    %s301 = sphi 0, %s287
    %s307 = sphi 0, %s309
    %s310 = sphi 0, %s307
    %s311 = sphi 0, %s310
    %s327 = sphi 0, %s311
  $region4: #{cifar_autoencoder_forward.1} parent=0 // loop_header_branch
    %22 = sbr.rel (%p20) target = $region8
  $region5: #{cifar_autoencoder_forward.1} parent=0 // loop_body
    %s24 = ssub.s32 %s19, 1
    %s25 = ssub.s32 %s19, 2
    %s26 = sadd.s32 %s19, 1
    %s27 = ssub.s32 %s19, %s26
    %p28 = scmp.eq.s32.totalorder %s27, 0
    %s30 = sadd.s32 %s29, 1
    %s31 = scalar_select %p28, %s29, %s30
    %p34 = pneg %p28
    %p35 = scmp.eq.s32.totalorder %s19, 1
    %p36 = por %p34, %p35
    %p37 = scmp.ne.s32.totalorder %s29, %s32
    %p38 = scmp.eq.s32.totalorder %s19, 0
    %p39 = por %p37, %p38
    %p40 = scmp.ne.s32.totalorder %s29, %s32
    %p41 = scmp.eq.s32.totalorder %s24, 1
    %p42 = por %p40, %p41
    %p43 = scmp.ne.s32.totalorder %s32, %s33
    %p44 = scmp.eq.s32.totalorder %s24, 0
    %p45 = por %p43, %p44
    %p46 = scmp.ne.s32.totalorder %s32, %s33
    %p47 = scmp.eq.s32.totalorder %s25, 1
    %p48 = por %p46, %p47
    %p50 = scmp.ne.s32.totalorder %s33, %s49
    %p51 = scmp.eq.s32.totalorder %s25, 0
    %p52 = por %p50, %p51
    %s54 = sadd.s32 %s53, 1
    %p57 = scmp.eq.s32.totalorder %s19, 1
    %p58 = scmp.ne.s32.totalorder %s53, %s55
    %p59 = scmp.eq.s32.totalorder %s19, 0
    %p60 = por %p58, %p59
    %p61 = scmp.ne.s32.totalorder %s53, %s55
    %p62 = scmp.eq.s32.totalorder %s24, 1
    %p63 = por %p61, %p62
    %p64 = scmp.ne.s32.totalorder %s55, %s56
    %p65 = scmp.eq.s32.totalorder %s24, 0
    %p66 = por %p64, %p65
    %p67 = scmp.ne.s32.totalorder %s55, %s56
    %p68 = scmp.eq.s32.totalorder %s25, 1
    %p69 = por %p67, %p68
    %p71 = scmp.ne.s32.totalorder %s56, %s70
    %p72 = scmp.eq.s32.totalorder %s25, 0
    %p73 = por %p71, %p72
    %s75 = sadd.s32 %s74, 1
    %p78 = scmp.eq.s32.totalorder %s19, 1
    %p79 = scmp.ne.s32.totalorder %s74, %s76
    %p80 = scmp.eq.s32.totalorder %s19, 0
    %p81 = por %p79, %p80
    %p82 = scmp.ne.s32.totalorder %s74, %s76
    %p83 = scmp.eq.s32.totalorder %s24, 1
    %p84 = por %p82, %p83
    %p85 = scmp.ne.s32.totalorder %s76, %s77
    %p86 = scmp.eq.s32.totalorder %s24, 0
    %p87 = por %p85, %p86
    %p88 = scmp.ne.s32.totalorder %s76, %s77
    %p89 = scmp.eq.s32.totalorder %s25, 1
    %p90 = por %p88, %p89
    %p92 = scmp.ne.s32.totalorder %s77, %s91
    %p93 = scmp.eq.s32.totalorder %s25, 0
    %p94 = por %p92, %p93
    %s96 = sadd.s32 %s95, 1
    %p99 = scmp.eq.s32.totalorder %s19, 1
    %p100 = scmp.ne.s32.totalorder %s95, %s97
    %p101 = scmp.eq.s32.totalorder %s19, 0
    %p102 = por %p100, %p101
    %p103 = scmp.ne.s32.totalorder %s95, %s97
    %p104 = scmp.eq.s32.totalorder %s24, 1
    %p105 = por %p103, %p104
    %p106 = scmp.ne.s32.totalorder %s97, %s98
    %p107 = scmp.eq.s32.totalorder %s24, 0
    %p108 = por %p106, %p107
    %p109 = scmp.ne.s32.totalorder %s97, %s98
    %p110 = scmp.eq.s32.totalorder %s25, 1
    %p111 = por %p109, %p110
    %p113 = scmp.ne.s32.totalorder %s98, %s112
    %p114 = scmp.eq.s32.totalorder %s25, 0
    %p115 = por %p113, %p114
    %s117 = sadd.s32 %s116, 1
    %p120 = scmp.eq.s32.totalorder %s19, 1
    %p121 = scmp.ne.s32.totalorder %s116, %s118
    %p122 = scmp.eq.s32.totalorder %s19, 0
    %p123 = por %p121, %p122
    %p124 = scmp.ne.s32.totalorder %s116, %s118
    %p125 = scmp.eq.s32.totalorder %s24, 1
    %p126 = por %p124, %p125
    %p127 = scmp.ne.s32.totalorder %s118, %s119
    %p128 = scmp.eq.s32.totalorder %s24, 0
    %p129 = por %p127, %p128
    %p130 = scmp.ne.s32.totalorder %s118, %s119
    %p131 = scmp.eq.s32.totalorder %s25, 1
    %p132 = por %p130, %p131
    %p134 = scmp.ne.s32.totalorder %s119, %s133
    %p135 = scmp.eq.s32.totalorder %s25, 0
    %p136 = por %p134, %p135
    %s138 = sadd.s32 %s137, 1
    %p141 = scmp.eq.s32.totalorder %s19, 1
    %p142 = scmp.ne.s32.totalorder %s137, %s139
    %p143 = scmp.eq.s32.totalorder %s19, 0
    %p144 = por %p142, %p143
    %p145 = scmp.ne.s32.totalorder %s137, %s139
    %p146 = scmp.eq.s32.totalorder %s24, 1
    %p147 = por %p145, %p146
    %p148 = scmp.ne.s32.totalorder %s139, %s140
    %p149 = scmp.eq.s32.totalorder %s24, 0
    %p150 = por %p148, %p149
    %p151 = scmp.ne.s32.totalorder %s139, %s140
    %p152 = scmp.eq.s32.totalorder %s25, 1
    %p153 = por %p151, %p152
    %p155 = scmp.ne.s32.totalorder %s140, %s154
    %p156 = scmp.eq.s32.totalorder %s25, 0
    %p157 = por %p155, %p156
    %s159 = sadd.s32 %s158, 1
    %p162 = scmp.eq.s32.totalorder %s19, 1
    %p163 = scmp.ne.s32.totalorder %s158, %s160
    %p164 = scmp.eq.s32.totalorder %s19, 0
    %p165 = por %p163, %p164
    %p166 = scmp.ne.s32.totalorder %s158, %s160
    %p167 = scmp.eq.s32.totalorder %s24, 1
    %p168 = por %p166, %p167
    %p169 = scmp.ne.s32.totalorder %s160, %s161
    %p170 = scmp.eq.s32.totalorder %s24, 0
    %p171 = por %p169, %p170
    %p172 = scmp.ne.s32.totalorder %s160, %s161
    %p173 = scmp.eq.s32.totalorder %s25, 1
    %p174 = por %p172, %p173
    %p176 = scmp.ne.s32.totalorder %s161, %s175
    %p177 = scmp.eq.s32.totalorder %s25, 0
    %p178 = por %p176, %p177
    %s180 = sadd.s32 %s179, 1
    %p183 = scmp.eq.s32.totalorder %s19, 1
    %p184 = scmp.ne.s32.totalorder %s179, %s181
    %p185 = scmp.eq.s32.totalorder %s19, 0
    %p186 = por %p184, %p185
    %p187 = scmp.ne.s32.totalorder %s179, %s181
    %p188 = scmp.eq.s32.totalorder %s24, 1
    %p189 = por %p187, %p188
    %p190 = scmp.ne.s32.totalorder %s181, %s182
    %p191 = scmp.eq.s32.totalorder %s24, 0
    %p192 = por %p190, %p191
    %p193 = scmp.ne.s32.totalorder %s181, %s182
    %p194 = scmp.eq.s32.totalorder %s25, 1
    %p195 = por %p193, %p194
    %p197 = scmp.ne.s32.totalorder %s182, %s196
    %p198 = scmp.eq.s32.totalorder %s25, 0
    %p199 = por %p197, %p198
    %s201 = sadd.s32 %s200, 1
    %p204 = scmp.eq.s32.totalorder %s19, 1
    %p205 = scmp.ne.s32.totalorder %s200, %s202
    %p206 = scmp.eq.s32.totalorder %s19, 0
    %p207 = por %p205, %p206
    %p208 = scmp.ne.s32.totalorder %s200, %s202
    %p209 = scmp.eq.s32.totalorder %s24, 1
    %p210 = por %p208, %p209
    %p211 = scmp.ne.s32.totalorder %s202, %s203
    %p212 = scmp.eq.s32.totalorder %s24, 0
    %p213 = por %p211, %p212
    %p214 = scmp.ne.s32.totalorder %s202, %s203
    %p215 = scmp.eq.s32.totalorder %s25, 1
    %p216 = por %p214, %p215
    %p218 = scmp.ne.s32.totalorder %s203, %s217
    %p219 = scmp.eq.s32.totalorder %s25, 0
    %p220 = por %p218, %p219
    %s222 = sadd.s32 %s221, 1
    %p225 = scmp.eq.s32.totalorder %s19, 1
    %p226 = scmp.ne.s32.totalorder %s221, %s223
    %p227 = scmp.eq.s32.totalorder %s19, 0
    %p228 = por %p226, %p227
    %p229 = scmp.ne.s32.totalorder %s221, %s223
    %p230 = scmp.eq.s32.totalorder %s24, 1
    %p231 = por %p229, %p230
    %p232 = scmp.ne.s32.totalorder %s223, %s224
    %p233 = scmp.eq.s32.totalorder %s24, 0
    %p234 = por %p232, %p233
    %p235 = scmp.ne.s32.totalorder %s223, %s224
    %p236 = scmp.eq.s32.totalorder %s25, 1
    %p237 = por %p235, %p236
    %p239 = scmp.ne.s32.totalorder %s224, %s238
    %p240 = scmp.eq.s32.totalorder %s25, 0
    %p241 = por %p239, %p240
    %s243 = sadd.s32 %s242, 1
    %p246 = scmp.eq.s32.totalorder %s19, 1
    %p247 = scmp.ne.s32.totalorder %s242, %s244
    %p248 = scmp.eq.s32.totalorder %s19, 0
    %p249 = por %p247, %p248
    %p250 = scmp.ne.s32.totalorder %s242, %s244
    %p251 = scmp.eq.s32.totalorder %s24, 1
    %p252 = por %p250, %p251
    %p253 = scmp.ne.s32.totalorder %s244, %s245
    %p254 = scmp.eq.s32.totalorder %s24, 0
    %p255 = por %p253, %p254
    %p256 = scmp.ne.s32.totalorder %s244, %s245
    %p257 = scmp.eq.s32.totalorder %s25, 1
    %p258 = por %p256, %p257
    %p260 = scmp.ne.s32.totalorder %s245, %s259
    %p261 = scmp.eq.s32.totalorder %s25, 0
    %p262 = por %p260, %p261
    %s264 = sadd.s32 %s263, 1
    %p267 = scmp.eq.s32.totalorder %s19, 1
    %p268 = scmp.ne.s32.totalorder %s263, %s265
    %p269 = scmp.eq.s32.totalorder %s19, 0
    %p270 = por %p268, %p269
    %p271 = scmp.ne.s32.totalorder %s263, %s265
    %p272 = scmp.eq.s32.totalorder %s24, 1
    %p273 = por %p271, %p272
    %p274 = scmp.ne.s32.totalorder %s265, %s266
    %p275 = scmp.eq.s32.totalorder %s24, 0
    %p276 = por %p274, %p275
    %p277 = scmp.ne.s32.totalorder %s265, %s266
    %p278 = scmp.eq.s32.totalorder %s25, 1
    %p279 = por %p277, %p278
    %p281 = scmp.ne.s32.totalorder %s266, %s280
    %p282 = scmp.eq.s32.totalorder %s25, 0
    %p283 = por %p281, %p282
    %s285 = sadd.s32 %s284, 1
    %p288 = scmp.eq.s32.totalorder %s19, 1
    %p289 = scmp.ne.s32.totalorder %s284, %s286
    %p290 = scmp.eq.s32.totalorder %s19, 0
    %p291 = por %p289, %p290
    %p292 = scmp.ne.s32.totalorder %s284, %s286
    %p293 = scmp.eq.s32.totalorder %s24, 1
    %p294 = por %p292, %p293
    %p295 = scmp.ne.s32.totalorder %s286, %s287
    %p296 = scmp.eq.s32.totalorder %s24, 0
    %p297 = por %p295, %p296
    %p298 = scmp.ne.s32.totalorder %s286, %s287
    %p299 = scmp.eq.s32.totalorder %s25, 1
    %p300 = por %p298, %p299
    %p302 = scmp.ne.s32.totalorder %s287, %s301
    %p303 = scmp.eq.s32.totalorder %s25, 0
    %p304 = por %p302, %p303
    %s305 = ssub.s32 %s19, %s26
    %p306 = scmp.eq.s32.totalorder %s305, 0
    %s308 = sadd.s32 %s307, 1
    %s309 = scalar_select %p306, %s307, %s308
    %p312 = pneg %p306
    %p313 = scmp.eq.s32.totalorder %s19, 1
    %p314 = por %p312, %p313
    %p315 = scmp.ne.s32.totalorder %s307, %s310
    %p316 = scmp.eq.s32.totalorder %s19, 0
    %p317 = por %p315, %p316
    %p318 = scmp.ne.s32.totalorder %s307, %s310
    %p319 = scmp.eq.s32.totalorder %s24, 1
    %p320 = por %p318, %p319
    %p321 = scmp.ne.s32.totalorder %s310, %s311
    %p322 = scmp.eq.s32.totalorder %s24, 0
    %p323 = por %p321, %p322
    %p324 = scmp.ne.s32.totalorder %s310, %s311
    %p325 = scmp.eq.s32.totalorder %s25, 1
    %p326 = por %p324, %p325
    %p328 = scmp.ne.s32.totalorder %s311, %s327
    %p329 = scmp.eq.s32.totalorder %s25, 0
    %p330 = por %p328, %p329
    %p331 = scmp.le.s32.totalorder 1, %s19
    %p332 = scmp.lt.s32.totalorder %s19, 3
    %p333 = pnand %p331, %p332
    %p334 = pneg %p333
    // Predicated region
    $region9: #{cifar_autoencoder_forward.1} parent=5 // pred_check
      _
    $region10: #{cifar_autoencoder_forward.1} parent=5 // pred_check_branch
      %336 = sbr.rel (%p333) target = $region12
    $region11: #{cifar_autoencoder_forward.1} parent=5 // pred_region
      %s337 = ssub.s32 %s19, 1
      // Predicated region
      $region13: #{cifar_autoencoder_forward.1} parent=11 // pred_check
        %p338 = pneg %p66
      $region14: #{cifar_autoencoder_forward.1} parent=11 // pred_check_branch
        %340 = sbr.rel (%p338) target = $region16
      $region15: #{cifar_autoencoder_forward.1} parent=11 // pred_region
        _
      $region16: #{cifar_autoencoder_forward.1} parent=11 // pred_fallthru
        _
      // Predicated region
      $region17: #{cifar_autoencoder_forward.1} parent=11 // pred_check
        %p341 = pneg %p87
      $region18: #{cifar_autoencoder_forward.1} parent=11 // pred_check_branch
        %343 = sbr.rel (%p341) target = $region20
      $region19: #{cifar_autoencoder_forward.1} parent=11 // pred_region
        _
      $region20: #{cifar_autoencoder_forward.1} parent=11 // pred_fallthru
        _
      // Predicated region
      $region21: #{cifar_autoencoder_forward.1} parent=11 // pred_check
        %p344 = pneg %p108
      $region22: #{cifar_autoencoder_forward.1} parent=11 // pred_check_branch
        %346 = sbr.rel (%p344) target = $region24
      $region23: #{cifar_autoencoder_forward.1} parent=11 // pred_region
        _
      $region24: #{cifar_autoencoder_forward.1} parent=11 // pred_fallthru
        _
      // Predicated region
      $region25: #{cifar_autoencoder_forward.1} parent=11 // pred_check
        %p347 = pneg %p129
      $region26: #{cifar_autoencoder_forward.1} parent=11 // pred_check_branch
        %349 = sbr.rel (%p347) target = $region28
      $region27: #{cifar_autoencoder_forward.1} parent=11 // pred_region
        _
      $region28: #{cifar_autoencoder_forward.1} parent=11 // pred_fallthru
        _
      // Predicated region
      $region29: #{cifar_autoencoder_forward.1} parent=11 // pred_check
        %p350 = pneg %p150
      $region30: #{cifar_autoencoder_forward.1} parent=11 // pred_check_branch
        %352 = sbr.rel (%p350) target = $region32
      $region31: #{cifar_autoencoder_forward.1} parent=11 // pred_region
        _
      $region32: #{cifar_autoencoder_forward.1} parent=11 // pred_fallthru
        _
      // Predicated region
      $region33: #{cifar_autoencoder_forward.1} parent=11 // pred_check
        %p353 = pneg %p171
      $region34: #{cifar_autoencoder_forward.1} parent=11 // pred_check_branch
        %355 = sbr.rel (%p353) target = $region36
      $region35: #{cifar_autoencoder_forward.1} parent=11 // pred_region
        _
      $region36: #{cifar_autoencoder_forward.1} parent=11 // pred_fallthru
        _
      // Predicated region
      $region37: #{cifar_autoencoder_forward.1} parent=11 // pred_check
        %p356 = pneg %p192
      $region38: #{cifar_autoencoder_forward.1} parent=11 // pred_check_branch
        %358 = sbr.rel (%p356) target = $region40
      $region39: #{cifar_autoencoder_forward.1} parent=11 // pred_region
        _
      $region40: #{cifar_autoencoder_forward.1} parent=11 // pred_fallthru
        _
      // Predicated region
      $region41: #{cifar_autoencoder_forward.1} parent=11 // pred_check
        %p359 = pneg %p213
      $region42: #{cifar_autoencoder_forward.1} parent=11 // pred_check_branch
        %361 = sbr.rel (%p359) target = $region44
      $region43: #{cifar_autoencoder_forward.1} parent=11 // pred_region
        _
      $region44: #{cifar_autoencoder_forward.1} parent=11 // pred_fallthru
        _
      // Predicated region
      $region45: #{cifar_autoencoder_forward.1} parent=11 // pred_check
        %p362 = pneg %p234
      $region46: #{cifar_autoencoder_forward.1} parent=11 // pred_check_branch
        %364 = sbr.rel (%p362) target = $region48
      $region47: #{cifar_autoencoder_forward.1} parent=11 // pred_region
        _
      $region48: #{cifar_autoencoder_forward.1} parent=11 // pred_fallthru
        _
      // Predicated region
      $region49: #{cifar_autoencoder_forward.1} parent=11 // pred_check
        %p365 = pneg %p255
      $region50: #{cifar_autoencoder_forward.1} parent=11 // pred_check_branch
        %367 = sbr.rel (%p365) target = $region52
      $region51: #{cifar_autoencoder_forward.1} parent=11 // pred_region
        _
      $region52: #{cifar_autoencoder_forward.1} parent=11 // pred_fallthru
        _
      // Predicated region
      $region53: #{cifar_autoencoder_forward.1} parent=11 // pred_check
        %p368 = pneg %p276
      $region54: #{cifar_autoencoder_forward.1} parent=11 // pred_check_branch
        %370 = sbr.rel (%p368) target = $region56
      $region55: #{cifar_autoencoder_forward.1} parent=11 // pred_region
        _
      $region56: #{cifar_autoencoder_forward.1} parent=11 // pred_fallthru
        _
      // Predicated region
      $region57: #{cifar_autoencoder_forward.1} parent=11 // pred_check
        %p371 = pneg %p297
      $region58: #{cifar_autoencoder_forward.1} parent=11 // pred_check_branch
        %373 = sbr.rel (%p371) target = $region60
      $region59: #{cifar_autoencoder_forward.1} parent=11 // pred_region
        _
      $region60: #{cifar_autoencoder_forward.1} parent=11 // pred_fallthru
        _
    $region12: #{cifar_autoencoder_forward.1} parent=5 // pred_fallthru
      _
    %p374 = scmp.lt.s32.totalorder %s19, 2
    // Predicated region
    $region61: #{cifar_autoencoder_forward.1} parent=5 // pred_check
      %p375 = pneg %p374
    $region62: #{cifar_autoencoder_forward.1} parent=5 // pred_check_branch
      %377 = sbr.rel (%p375) target = $region64
    $region63: #{cifar_autoencoder_forward.1} parent=5 // pred_region
      // Predicated region
      $region65: #{cifar_autoencoder_forward.1} parent=63 // pred_check
        %p378 = pneg %p39
      $region66: #{cifar_autoencoder_forward.1} parent=63 // pred_check_branch
        %380 = sbr.rel (%p378) target = $region68
      $region67: #{cifar_autoencoder_forward.1} parent=63 // pred_region
        %p381 = scmp.lt.s32.totalorder %s19, 1
        %s382 = scalar_select %p381, %s19, 1
        %s383 = smul.addr %s382, 32
        %s384 = smul.addr %s383, 4
        %s385 = scalar_lea.vmem %s0, %s384
      $region68: #{cifar_autoencoder_forward.1} parent=63 // pred_fallthru
        _
    $region64: #{cifar_autoencoder_forward.1} parent=5 // pred_fallthru
      _
    %p386 = scmp.le.s32.totalorder 1, %s19
    %p387 = scmp.lt.s32.totalorder %s19, 3
    %p388 = pnand %p386, %p387
    %p389 = pneg %p388
    // Predicated region
    $region69: #{cifar_autoencoder_forward.1} parent=5 // pred_check
      _
    $region70: #{cifar_autoencoder_forward.1} parent=5 // pred_check_branch
      %391 = sbr.rel (%p388) target = $region72
    $region71: #{cifar_autoencoder_forward.1} parent=5 // pred_region
      %s392 = ssub.s32 %s19, 1
      %p393 = scmp.lt.s32.totalorder %s24, 1
      %s394 = scalar_select %p393, %s24, 1
      %s395 = smul.addr %s394, 32
      %s396 = smul.addr %s395, 4
      %s397 = scalar_lea.vmem %s0, %s396
      %p398 = pneg %p45
      %p399 = pneg %p42
      %p400 = pneg %p66
      %p401 = pneg %p63
      %p402 = pneg %p87
      %p403 = pneg %p84
      %p404 = pneg %p108
      %p405 = pneg %p105
      %p406 = pneg %p129
      %p407 = pneg %p126
      %p408 = pneg %p150
      %p409 = pneg %p147
      %p410 = pneg %p171
      %p411 = pneg %p168
      %p412 = pneg %p192
      %p413 = pneg %p189
      %p414 = pneg %p213
      %p415 = pneg %p210
      %p416 = pneg %p234
      %p417 = pneg %p231
      %p418 = pneg %p255
      %p419 = pneg %p252
      %p420 = pneg %p276
      %p421 = pneg %p273
      %p422 = pneg %p297
      %p423 = pneg %p294
      %p424 = pneg %p323
      %p425 = pneg %p320
      %p426 = scmp.lt.s32.totalorder %s24, 1
      %s427 = scalar_select %p426, %s24, 1
      %s428 = smul.addr %s427, 32
      %s429 = smul.addr %s428, 8
      %s430 = scalar_lea.vmem %s13, %s429
      %p431 = scmp.lt.s32.totalorder %s24, 1
      %s432 = scalar_select %p431, %s24, 1
      %s433 = smul.addr %s432, 32
      %s434 = smul.addr %s433, 4
      %s435 = scalar_lea.vmem %s0, %s434
      %p436 = scmp.lt.s32.totalorder %s24, 1
      %s437 = scalar_select %p436, %s24, 1
      %s438 = smul.addr %s437, 32
      %s439 = smul.addr %s438, 8
      %s440 = scalar_lea.vmem %s13, %s439
      %v442 = vld [vmem:[%s435] sm:$0xf]
      %v443 = vld [vmem:[%s435 + $0x4] sm:$0xf]
      %v444 = vld [vmem:[%s435 + $0x8] sm:$0xf]
      %v445 = vld [vmem:[%s435 + $0xc] sm:$0xf]
      %v446 = vld [vmem:[%s435 + $0x10] sm:$0xf]
      %v447 = vld [vmem:[%s435 + $0x14] sm:$0xf]
      %v448 = vld [vmem:[%s435 + $0x18] sm:$0xf]
      %v449 = vld [vmem:[%s435 + $0x1c] sm:$0xf]
      %v450 = vld [vmem:[%s435 + $0x20] sm:$0xf]
      %v451 = vld [vmem:[%s435 + $0x24] sm:$0xf]
      %v452 = vld [vmem:[%s435 + $0x28] sm:$0xf]
      %v453 = vld [vmem:[%s435 + $0x2c] sm:$0xf]
      %v454 = vld [vmem:[%s435 + $0x30] sm:$0xf]
      %v455 = vld [vmem:[%s435 + $0x34] sm:$0xf]
      %v456 = vld [vmem:[%s435 + $0x38] sm:$0xf]
      %v457 = vld [vmem:[%s435 + $0x3c] sm:$0xf]
      %v458 = vld [vmem:[%s435 + $0x40] sm:$0xf]
      %v459 = vld [vmem:[%s435 + $0x44] sm:$0xf]
      %v460 = vld [vmem:[%s435 + $0x48] sm:$0xf]
      %v461 = vld [vmem:[%s435 + $0x4c] sm:$0xf]
      %v462 = vld [vmem:[%s435 + $0x50] sm:$0xf]
      %v463 = vld [vmem:[%s435 + $0x54] sm:$0xf]
      %v464 = vld [vmem:[%s435 + $0x58] sm:$0xf]
      %v465 = vld [vmem:[%s435 + $0x5c] sm:$0xf]
      %v466 = vld [vmem:[%s435 + $0x60] sm:$0xf]
      %v467 = vld [vmem:[%s435 + $0x64] sm:$0xf]
      %v468 = vld [vmem:[%s435 + $0x68] sm:$0xf]
      %v469 = vld [vmem:[%s435 + $0x6c] sm:$0xf]
      %v470 = vld [vmem:[%s435 + $0x70] sm:$0xf]
      %v471 = vld [vmem:[%s435 + $0x74] sm:$0xf]
      %v472 = vld [vmem:[%s435 + $0x78] sm:$0xf]
      %v473 = vld [vmem:[%s435 + $0x7c] sm:$0xf]
      %v474 = vld [vmem:[%s1] sm:$0xff]
      %v475 = vld [vmem:[%s1 + $0x8] sm:$0xff]
      %v476 = vld [vmem:[%s1 + $0x10] sm:$0xff]
      %v477 = vld [vmem:[%s1 + $0x18] sm:$0xff]
      %v478 = vld [vmem:[%s1 + $0x20] sm:$0xff]
      %v479 = vld [vmem:[%s1 + $0x28] sm:$0xff]
      %v480 = vld [vmem:[%s1 + $0x30] sm:$0xff]
      %v481 = vld [vmem:[%s1 + $0x38] sm:$0xff]
      %v482 = vld [vmem:[%s1 + $0x40] sm:$0xff]
      %v483 = vld [vmem:[%s1 + $0x48] sm:$0xff]
      %v484 = vld [vmem:[%s1 + $0x50] sm:$0xff]
      %v485 = vld [vmem:[%s1 + $0x58] sm:$0xff]
      %v486 = vld [vmem:[%s1 + $0x60] sm:$0xff]
      %v487 = vld [vmem:[%s1 + $0x68] sm:$0xff]
      %v488 = vld [vmem:[%s1 + $0x70] sm:$0xff]
      %v489 = vld [vmem:[%s1 + $0x78] sm:$0xff]
      %v490 = vld [vmem:[%s1 + $0x80] sm:$0xff]
      %v491 = vld [vmem:[%s1 + $0x88] sm:$0xff]
      %v492 = vld [vmem:[%s1 + $0x90] sm:$0xff]
      %v493 = vld [vmem:[%s1 + $0x98] sm:$0xff]
      %v494 = vld [vmem:[%s1 + $0xa0] sm:$0xff]
      %v495 = vld [vmem:[%s1 + $0xa8] sm:$0xff]
      %v496 = vld [vmem:[%s1 + $0xb0] sm:$0xff]
      %v497 = vld [vmem:[%s1 + $0xb8] sm:$0xff]
      %v498 = vld [vmem:[%s1 + $0xc0] sm:$0xff]
      %v499 = vld [vmem:[%s1 + $0xc8] sm:$0xff]
      %v500 = vld [vmem:[%s1 + $0xd0] sm:$0xff]
      %v501 = vld [vmem:[%s1 + $0xd8] sm:$0xff]
      %v502 = vld [vmem:[%s1 + $0xe0] sm:$0xff]
      %v503 = vld [vmem:[%s1 + $0xe8] sm:$0xff]
      %v504 = vld [vmem:[%s1 + $0xf0] sm:$0xff]
      %v505 = vld [vmem:[%s1 + $0xf8] sm:$0xff]
      %v506 = vld [vmem:[%s1 + $0x100] sm:$0xff]
      %v507 = vld [vmem:[%s1 + $0x108] sm:$0xff]
      %v508 = vld [vmem:[%s1 + $0x110] sm:$0xff]
      %v509 = vld [vmem:[%s1 + $0x118] sm:$0xff]
      %v510 = vld [vmem:[%s1 + $0x120] sm:$0xff]
      %v511 = vld [vmem:[%s1 + $0x128] sm:$0xff]
      %v512 = vld [vmem:[%s1 + $0x130] sm:$0xff]
      %v513 = vld [vmem:[%s1 + $0x138] sm:$0xff]
      %v514 = vld [vmem:[%s1 + $0x140] sm:$0xff]
      %v515 = vld [vmem:[%s1 + $0x148] sm:$0xff]
      %v516 = vld [vmem:[%s1 + $0x150] sm:$0xff]
      %v517 = vld [vmem:[%s1 + $0x158] sm:$0xff]
      %v518 = vld [vmem:[%s1 + $0x160] sm:$0xff]
      %v519 = vld [vmem:[%s1 + $0x168] sm:$0xff]
      %v520 = vld [vmem:[%s1 + $0x170] sm:$0xff]
      %v521 = vld [vmem:[%s1 + $0x178] sm:$0xff]
      %v522 = vld [vmem:[%s1 + $0x180] sm:$0xff]
      %v523 = vld [vmem:[%s1 + $0x188] sm:$0xff]
      %v524 = vld [vmem:[%s1 + $0x190] sm:$0xff]
      %v525 = vld [vmem:[%s1 + $0x198] sm:$0xff]
      %v526 = vld [vmem:[%s1 + $0x1a0] sm:$0xff]
      %v527 = vld [vmem:[%s1 + $0x1a8] sm:$0xff]
      %v528 = vld [vmem:[%s1 + $0x1b0] sm:$0xff]
      %v529 = vld [vmem:[%s1 + $0x1b8] sm:$0xff]
      %v530 = vld [vmem:[%s1 + $0x1c0] sm:$0xff]
      %v531 = vld [vmem:[%s1 + $0x1c8] sm:$0xff]
      %v532 = vld [vmem:[%s1 + $0x1d0] sm:$0xff]
      %v533 = vld [vmem:[%s1 + $0x1d8] sm:$0xff]
      %v534 = vld [vmem:[%s1 + $0x1e0] sm:$0xff]
      %v535 = vld [vmem:[%s1 + $0x1e8] sm:$0xff]
      %v536 = vld [vmem:[%s1 + $0x1f0] sm:$0xff]
      %v537 = vld [vmem:[%s1 + $0x1f8] sm:$0xff]
      %v538 = vld [vmem:[%s1 + $0x200] sm:$0xff]
      %v539 = vld [vmem:[%s1 + $0x208] sm:$0xff]
      %v540 = vld [vmem:[%s1 + $0x210] sm:$0xff]
      %v541 = vld [vmem:[%s1 + $0x218] sm:$0xff]
      %v542 = vld [vmem:[%s1 + $0x220] sm:$0xff]
      %v543 = vld [vmem:[%s1 + $0x228] sm:$0xff]
      %v544 = vld [vmem:[%s1 + $0x230] sm:$0xff]
      %v545 = vld [vmem:[%s1 + $0x238] sm:$0xff]
      %v618 = vunpack.c.l.b16 %v474
      %v619 = vunpack.c.h.b16 %v474
      %v620 = vunpack.c.l.b16 %v475
      %v621 = vunpack.c.h.b16 %v475
      %v622 = vunpack.c.l.b16 %v476
      %v623 = vunpack.c.h.b16 %v476
      %v624 = vunpack.c.l.b16 %v477
      %v625 = vunpack.c.h.b16 %v477
      %v626 = vunpack.c.l.b16 %v478
      %v627 = vunpack.c.h.b16 %v478
      %v628 = vunpack.c.l.b16 %v479
      %v629 = vunpack.c.h.b16 %v479
      %v630 = vunpack.c.l.b16 %v480
      %v631 = vunpack.c.h.b16 %v480
      %v632 = vunpack.c.l.b16 %v481
      %v633 = vunpack.c.h.b16 %v481
      %v634 = vunpack.c.l.b16 %v482
      %v635 = vunpack.c.h.b16 %v482
      %v636 = vunpack.c.l.b16 %v483
      %v637 = vunpack.c.h.b16 %v483
      %v638 = vunpack.c.l.b16 %v484
      %v639 = vunpack.c.h.b16 %v484
      %v640 = vunpack.c.l.b16 %v485
      %v641 = vunpack.c.h.b16 %v485
      %v642 = vunpack.c.l.b16 %v486
      %v643 = vunpack.c.h.b16 %v486
      %v644 = vunpack.c.l.b16 %v487
      %v645 = vunpack.c.h.b16 %v487
      %v646 = vunpack.c.l.b16 %v488
      %v647 = vunpack.c.h.b16 %v488
      %v648 = vunpack.c.l.b16 %v489
      %v649 = vunpack.c.h.b16 %v489
      %v650 = vunpack.c.l.b16 %v490
      %v651 = vunpack.c.h.b16 %v490
      %v652 = vunpack.c.l.b16 %v491
      %v653 = vunpack.c.h.b16 %v491
      %v654 = vunpack.c.l.b16 %v492
      %v655 = vunpack.c.h.b16 %v492
      %v656 = vunpack.c.l.b16 %v493
      %v657 = vunpack.c.h.b16 %v493
      %v658 = vunpack.c.l.b16 %v494
      %v659 = vunpack.c.h.b16 %v494
      %v660 = vunpack.c.l.b16 %v495
      %v661 = vunpack.c.h.b16 %v495
      %v662 = vunpack.c.l.b16 %v496
      %v663 = vunpack.c.h.b16 %v496
      %v664 = vunpack.c.l.b16 %v497
      %v665 = vunpack.c.h.b16 %v497
      %v666 = vunpack.c.l.b16 %v498
      %v667 = vunpack.c.h.b16 %v498
      %v668 = vunpack.c.l.b16 %v499
      %v669 = vunpack.c.h.b16 %v499
      %v670 = vunpack.c.l.b16 %v500
      %v671 = vunpack.c.h.b16 %v500
      %v672 = vunpack.c.l.b16 %v501
      %v673 = vunpack.c.h.b16 %v501
      %v674 = vunpack.c.l.b16 %v502
      %v675 = vunpack.c.h.b16 %v502
      %v676 = vunpack.c.l.b16 %v503
      %v677 = vunpack.c.h.b16 %v503
      %v678 = vunpack.c.l.b16 %v504
      %v679 = vunpack.c.h.b16 %v504
      %v680 = vunpack.c.l.b16 %v505
      %v681 = vunpack.c.h.b16 %v505
      %v682 = vunpack.c.l.b16 %v506
      %v683 = vunpack.c.h.b16 %v506
      %v684 = vunpack.c.l.b16 %v507
      %v685 = vunpack.c.h.b16 %v507
      %v686 = vunpack.c.l.b16 %v508
      %v687 = vunpack.c.h.b16 %v508
      %v688 = vunpack.c.l.b16 %v509
      %v689 = vunpack.c.h.b16 %v509
      %v690 = vunpack.c.l.b16 %v510
      %v691 = vunpack.c.h.b16 %v510
      %v692 = vunpack.c.l.b16 %v511
      %v693 = vunpack.c.h.b16 %v511
      %v694 = vunpack.c.l.b16 %v512
      %v695 = vunpack.c.h.b16 %v512
      %v696 = vunpack.c.l.b16 %v513
      %v697 = vunpack.c.h.b16 %v513
      %v698 = vunpack.c.l.b16 %v514
      %v699 = vunpack.c.h.b16 %v514
      %v700 = vunpack.c.l.b16 %v515
      %v701 = vunpack.c.h.b16 %v515
      %v702 = vunpack.c.l.b16 %v516
      %v703 = vunpack.c.h.b16 %v516
      %v704 = vunpack.c.l.b16 %v517
      %v705 = vunpack.c.h.b16 %v517
      %v706 = vunpack.c.l.b16 %v518
      %v707 = vunpack.c.h.b16 %v518
      %v708 = vunpack.c.l.b16 %v519
      %v709 = vunpack.c.h.b16 %v519
      %v710 = vunpack.c.l.b16 %v520
      %v711 = vunpack.c.h.b16 %v520
      %v712 = vunpack.c.l.b16 %v521
      %v713 = vunpack.c.h.b16 %v521
      %v714 = vunpack.c.l.b16 %v522
      %v715 = vunpack.c.h.b16 %v522
      %v716 = vunpack.c.l.b16 %v523
      %v717 = vunpack.c.h.b16 %v523
      %v718 = vunpack.c.l.b16 %v524
      %v719 = vunpack.c.h.b16 %v524
      %v720 = vunpack.c.l.b16 %v525
      %v721 = vunpack.c.h.b16 %v525
      %v722 = vunpack.c.l.b16 %v526
      %v723 = vunpack.c.h.b16 %v526
      %v724 = vunpack.c.l.b16 %v527
      %v725 = vunpack.c.h.b16 %v527
      %v726 = vunpack.c.l.b16 %v528
      %v727 = vunpack.c.h.b16 %v528
      %v728 = vunpack.c.l.b16 %v529
      %v729 = vunpack.c.h.b16 %v529
      %v730 = vunpack.c.l.b16 %v530
      %v731 = vunpack.c.h.b16 %v530
      %v732 = vunpack.c.l.b16 %v531
      %v733 = vunpack.c.h.b16 %v531
      %v734 = vunpack.c.l.b16 %v532
      %v735 = vunpack.c.h.b16 %v532
      %v736 = vunpack.c.l.b16 %v533
      %v737 = vunpack.c.h.b16 %v533
      %v738 = vunpack.c.l.b16 %v534
      %v739 = vunpack.c.h.b16 %v534
      %v740 = vunpack.c.l.b16 %v535
      %v741 = vunpack.c.h.b16 %v535
      %v742 = vunpack.c.l.b16 %v536
      %v743 = vunpack.c.h.b16 %v536
      %v744 = vunpack.c.l.b16 %v537
      %v745 = vunpack.c.h.b16 %v537
      %v746 = vunpack.c.l.b16 %v538
      %v747 = vunpack.c.h.b16 %v538
      %v748 = vunpack.c.l.b16 %v539
      %v749 = vunpack.c.h.b16 %v539
      %v750 = vunpack.c.l.b16 %v540
      %v751 = vunpack.c.h.b16 %v540
      %v752 = vunpack.c.l.b16 %v541
      %v753 = vunpack.c.h.b16 %v541
      %v754 = vunpack.c.l.b16 %v542
      %v755 = vunpack.c.h.b16 %v542
      %v756 = vunpack.c.l.b16 %v543
      %v757 = vunpack.c.h.b16 %v543
      %v758 = vunpack.c.l.b16 %v544
      %v759 = vunpack.c.h.b16 %v544
      %v760 = vunpack.c.l.b16 %v545
      %v761 = vunpack.c.h.b16 %v545
      %v762 = vpack.c.b16 %v620, %v618
      %v763 = vpack.c.b16 %v621, %v619
      %v764 = vpack.c.b16 %v624, %v622
      %v765 = vpack.c.b16 %v625, %v623
      %v766 = vpack.c.b16 %v628, %v626
      %v767 = vpack.c.b16 %v629, %v627
      %v768 = vpack.c.b16 %v632, %v630
      %v769 = vpack.c.b16 %v633, %v631
      %v770 = vpack.c.b16 %v636, %v634
      %v771 = vpack.c.b16 %v637, %v635
      %v772 = vpack.c.b16 %v640, %v638
      %v773 = vpack.c.b16 %v641, %v639
      %v774 = vpack.c.b16 %v644, %v642
      %v775 = vpack.c.b16 %v645, %v643
      %v776 = vpack.c.b16 %v648, %v646
      %v777 = vpack.c.b16 %v649, %v647
      %v778 = vpack.c.b16 %v652, %v650
      %v779 = vpack.c.b16 %v653, %v651
      %v780 = vpack.c.b16 %v656, %v654
      %v781 = vpack.c.b16 %v657, %v655
      %v782 = vpack.c.b16 %v660, %v658
      %v783 = vpack.c.b16 %v661, %v659
      %v784 = vpack.c.b16 %v664, %v662
      %v785 = vpack.c.b16 %v665, %v663
      %v786 = vpack.c.b16 %v668, %v666
      %v787 = vpack.c.b16 %v669, %v667
      %v788 = vpack.c.b16 %v672, %v670
      %v789 = vpack.c.b16 %v673, %v671
      %v790 = vpack.c.b16 %v676, %v674
      %v791 = vpack.c.b16 %v677, %v675
      %v792 = vpack.c.b16 %v680, %v678
      %v793 = vpack.c.b16 %v681, %v679
      %v794 = vpack.c.b16 %v684, %v682
      %v795 = vpack.c.b16 %v685, %v683
      %v796 = vpack.c.b16 %v688, %v686
      %v797 = vpack.c.b16 %v689, %v687
      %v798 = vpack.c.b16 %v692, %v690
      %v799 = vpack.c.b16 %v693, %v691
      %v800 = vpack.c.b16 %v696, %v694
      %v801 = vpack.c.b16 %v697, %v695
      %v802 = vpack.c.b16 %v700, %v698
      %v803 = vpack.c.b16 %v701, %v699
      %v804 = vpack.c.b16 %v704, %v702
      %v805 = vpack.c.b16 %v705, %v703
      %v806 = vpack.c.b16 %v708, %v706
      %v807 = vpack.c.b16 %v709, %v707
      %v808 = vpack.c.b16 %v712, %v710
      %v809 = vpack.c.b16 %v713, %v711
      %v810 = vpack.c.b16 %v716, %v714
      %v811 = vpack.c.b16 %v717, %v715
      %v812 = vpack.c.b16 %v720, %v718
      %v813 = vpack.c.b16 %v721, %v719
      %v814 = vpack.c.b16 %v724, %v722
      %v815 = vpack.c.b16 %v725, %v723
      %v816 = vpack.c.b16 %v728, %v726
      %v817 = vpack.c.b16 %v729, %v727
      %v818 = vpack.c.b16 %v732, %v730
      %v819 = vpack.c.b16 %v733, %v731
      %v820 = vpack.c.b16 %v736, %v734
      %v821 = vpack.c.b16 %v737, %v735
      %v822 = vpack.c.b16 %v740, %v738
      %v823 = vpack.c.b16 %v741, %v739
      %v824 = vpack.c.b16 %v744, %v742
      %v825 = vpack.c.b16 %v745, %v743
      %v826 = vpack.c.b16 %v748, %v746
      %v827 = vpack.c.b16 %v749, %v747
      %v828 = vpack.c.b16 %v752, %v750
      %v829 = vpack.c.b16 %v753, %v751
      %v830 = vpack.c.b16 %v756, %v754
      %v831 = vpack.c.b16 %v757, %v755
      %v832 = vpack.c.b16 %v760, %v758
      %v833 = vpack.c.b16 %v761, %v759
      %v938 = vunpack.c.l.b16 %v442
      %v939 = vunpack.c.l.b16 %v443
      %v940 = vunpack.c.l.b16 %v444
      %v941 = vunpack.c.l.b16 %v445
      %v942 = vunpack.c.l.b16 %v446
      %v943 = vunpack.c.l.b16 %v447
      %v944 = vunpack.c.l.b16 %v448
      %v945 = vunpack.c.l.b16 %v449
      %v946 = vunpack.c.l.b16 %v450
      %v947 = vunpack.c.l.b16 %v451
      %v948 = vunpack.c.l.b16 %v452
      %v949 = vunpack.c.l.b16 %v453
      %v950 = vunpack.c.l.b16 %v454
      %v951 = vunpack.c.l.b16 %v455
      %v952 = vunpack.c.l.b16 %v456
      %v953 = vunpack.c.l.b16 %v457
      %v954 = vunpack.c.l.b16 %v458
      %v955 = vunpack.c.l.b16 %v459
      %v956 = vunpack.c.l.b16 %v460
      %v957 = vunpack.c.l.b16 %v461
      %v958 = vunpack.c.l.b16 %v462
      %v959 = vunpack.c.l.b16 %v463
      %v960 = vunpack.c.l.b16 %v464
      %v961 = vunpack.c.l.b16 %v465
      %v962 = vunpack.c.l.b16 %v466
      %v963 = vunpack.c.l.b16 %v467
      %v964 = vunpack.c.l.b16 %v468
      %v965 = vunpack.c.l.b16 %v469
      %v966 = vunpack.c.l.b16 %v470
      %v967 = vunpack.c.l.b16 %v471
      %v968 = vunpack.c.l.b16 %v472
      %v969 = vunpack.c.l.b16 %v473
      %v970 = vpack.c.b16 %v939, %v938
      %v971 = vpack.c.b16 %v941, %v940
      %v972 = vpack.c.b16 %v943, %v942
      %v973 = vpack.c.b16 %v945, %v944
      %v974 = vpack.c.b16 %v947, %v946
      %v975 = vpack.c.b16 %v949, %v948
      %v976 = vpack.c.b16 %v951, %v950
      %v977 = vpack.c.b16 %v953, %v952
      %v978 = vpack.c.b16 %v955, %v954
      %v979 = vpack.c.b16 %v957, %v956
      %v980 = vpack.c.b16 %v959, %v958
      %v981 = vpack.c.b16 %v961, %v960
      %v982 = vpack.c.b16 %v963, %v962
      %v983 = vpack.c.b16 %v965, %v964
      %v984 = vpack.c.b16 %v967, %v966
      %v985 = vpack.c.b16 %v969, %v968
      %1002 = vmatprep.subr.bf16.mxu0 0
      %1003 = vmatpush1.bf16.msra.mxu0 %v970
      %1004 = vmatprep.subr.bf16.mxu0 0
      %1005 = vmatpush1.bf16.msra.mxu0 %v971
      %1006 = vmatprep.subr.bf16.mxu0 0
      %1007 = vmatpush1.bf16.msra.mxu0 %v972
      %1008 = vmatprep.subr.bf16.mxu0 0
      %1009 = vmatpush1.bf16.msra.mxu0 %v973
      %1010 = vmatprep.subr.bf16.mxu0 0
      %1011 = vmatpush1.bf16.msra.mxu0 %v974
      %1012 = vmatprep.subr.bf16.mxu0 0
      %1013 = vmatpush1.bf16.msra.mxu0 %v975
      %1014 = vmatprep.subr.bf16.mxu0 0
      %1015 = vmatpush1.bf16.msra.mxu0 %v976
      %1016 = vmatprep.subr.bf16.mxu0 0
      %1017 = vmatpush1.bf16.msra.mxu0 %v977
      %1018 = vmatprep.subr.bf16.mxu0 0
      %1019 = vmatpush1.bf16.msra.mxu0 %v978
      %1020 = vmatprep.subr.bf16.mxu0 0
      %1021 = vmatpush1.bf16.msra.mxu0 %v979
      %1022 = vmatprep.subr.bf16.mxu0 0
      %1023 = vmatpush1.bf16.msra.mxu0 %v980
      %1024 = vmatprep.subr.bf16.mxu0 0
      %1025 = vmatpush1.bf16.msra.mxu0 %v981
      %1026 = vmatprep.subr.bf16.mxu0 0
      %1027 = vmatpush1.bf16.msra.mxu0 %v982
      %1028 = vmatprep.subr.bf16.mxu0 0
      %1029 = vmatpush1.bf16.msra.mxu0 %v983
      %1030 = vmatprep.subr.bf16.mxu0 0
      %1031 = vmatpush1.bf16.msra.mxu0 %v984
      %1032 = vmatprep.subr.bf16.mxu0 0
      %1033 = vmatpush1.bf16.msra.mxu0 %v985
      %1034 = vmatprep.mubr.bf16.mxu0 %v763
      %1035 = vmatmul.mubr.bf16.gmra.mrb[0].mxu0 %v762
      %v1036 = vpop.f32.mrb[0].mxu0
      %v1037 = vadd.f32 0.0, %v1036
      %v1038 = vpop.f32.mrb[0].mxu0
      %v1039 = vpop.f32.mrb[0].mxu0
      %v1040 = vadd.f32 0.0, %v1039
      %v1041 = vpop.f32.mrb[0].mxu0
      %1042 = vmatprep.mubr.bf16.mxu0 %v765
      %1043 = vmatmul.mubr.bf16.gmra.mrb[0].mxu0 %v764
      %v1044 = vpop.f32.mrb[0].mxu0
      %v1045 = vadd.f32 0.0, %v1044
      %v1046 = vpop.f32.mrb[0].mxu0
      %v1047 = vpop.f32.mrb[0].mxu0
      %v1048 = vadd.f32 0.0, %v1047
      %v1049 = vpop.f32.mrb[0].mxu0
      %1050 = vmatprep.mubr.bf16.mxu0 %v767
      %1051 = vmatmul.mubr.bf16.gmra.mrb[0].mxu0 %v766
      %v1052 = vpop.f32.mrb[0].mxu0
      %v1053 = vadd.f32 0.0, %v1052
      %v1054 = vpop.f32.mrb[0].mxu0
      %v1055 = vpop.f32.mrb[0].mxu0
      %v1056 = vadd.f32 0.0, %v1055
      %v1057 = vpop.f32.mrb[0].mxu0
      %1058 = vmatprep.mubr.bf16.mxu0 %v769
      %1059 = vmatmul.mubr.bf16.gmra.mrb[0].mxu0 %v768
      %v1060 = vpop.f32.mrb[0].mxu0
      %v1061 = vadd.f32 0.0, %v1060
      %v1062 = vpop.f32.mrb[0].mxu0
      %v1063 = vpop.f32.mrb[0].mxu0
      %v1064 = vadd.f32 0.0, %v1063
      %v1065 = vpop.f32.mrb[0].mxu0
      %1066 = vmatprep.mubr.bf16.mxu0 %v771
      %1067 = vmatmul.mubr.bf16.gmra.mrb[0].mxu0 %v770
      %v1068 = vpop.f32.mrb[0].mxu0
      %v1069 = vadd.f32 0.0, %v1068
      %v1070 = vpop.f32.mrb[0].mxu0
      %v1071 = vpop.f32.mrb[0].mxu0
      %v1072 = vadd.f32 0.0, %v1071
      %v1073 = vpop.f32.mrb[0].mxu0
      %1074 = vmatprep.mubr.bf16.mxu0 %v773
      %1075 = vmatmul.mubr.bf16.gmra.mrb[0].mxu0 %v772
      %v1076 = vpop.f32.mrb[0].mxu0
      %v1077 = vadd.f32 0.0, %v1076
      %v1078 = vpop.f32.mrb[0].mxu0
      %v1079 = vpop.f32.mrb[0].mxu0
      %v1080 = vadd.f32 0.0, %v1079
      %v1081 = vpop.f32.mrb[0].mxu0
      %1082 = vmatprep.mubr.bf16.mxu0 %v775
      %1083 = vmatmul.mubr.bf16.gmra.mrb[0].mxu0 %v774
      %v1084 = vpop.f32.mrb[0].mxu0
      %v1085 = vadd.f32 0.0, %v1084
      %v1086 = vpop.f32.mrb[0].mxu0
      %v1087 = vpop.f32.mrb[0].mxu0
      %v1088 = vadd.f32 0.0, %v1087
      %v1089 = vpop.f32.mrb[0].mxu0
      %1090 = vmatprep.mubr.bf16.mxu0 %v777
      %1091 = vmatmul.mubr.bf16.gmra.mrb[0].mxu0 %v776
      %v1092 = vpop.f32.mrb[0].mxu0
      %v1093 = vadd.f32 0.0, %v1092
      %v1094 = vpop.f32.mrb[0].mxu0
      %v1095 = vpop.f32.mrb[0].mxu0
      %v1096 = vadd.f32 0.0, %v1095
      %v1097 = vpop.f32.mrb[0].mxu0
      %1098 = vmatprep.mubr.bf16.mxu0 %v779
      %1099 = vmatmul.mubr.bf16.gmra.mrb[0].mxu0 %v778
      %v1100 = vpop.f32.mrb[0].mxu0
      %v1101 = vadd.f32 0.0, %v1100
      %v1102 = vpop.f32.mrb[0].mxu0
      %v1103 = vpop.f32.mrb[0].mxu0
      %v1104 = vadd.f32 0.0, %v1103
      %v1105 = vpop.f32.mrb[0].mxu0
      %1106 = vmatprep.mubr.bf16.mxu0 %v781
      %1107 = vmatmul.mubr.bf16.gmra.mrb[0].mxu0 %v780
      %v1108 = vpop.f32.mrb[0].mxu0
      %v1109 = vadd.f32 0.0, %v1108
      %v1110 = vpop.f32.mrb[0].mxu0
      %v1111 = vpop.f32.mrb[0].mxu0
      %v1112 = vadd.f32 0.0, %v1111
      %v1113 = vpop.f32.mrb[0].mxu0
      %1114 = vmatprep.mubr.bf16.mxu0 %v783
      %1115 = vmatmul.mubr.bf16.gmra.mrb[0].mxu0 %v782
      %v1116 = vpop.f32.mrb[0].mxu0
      %v1117 = vadd.f32 0.0, %v1116
      %v1118 = vpop.f32.mrb[0].mxu0
      %v1119 = vpop.f32.mrb[0].mxu0
      %v1120 = vadd.f32 0.0, %v1119
      %v1121 = vpop.f32.mrb[0].mxu0
      %1122 = vmatprep.mubr.bf16.mxu0 %v785
      %1123 = vmatmul.mubr.bf16.gmra.mrb[0].mxu0 %v784
      %v1124 = vpop.f32.mrb[0].mxu0
      %v1125 = vadd.f32 0.0, %v1124
      %v1126 = vpop.f32.mrb[0].mxu0
      %v1127 = vpop.f32.mrb[0].mxu0
      %v1128 = vadd.f32 0.0, %v1127
      %v1129 = vpop.f32.mrb[0].mxu0
      %1130 = vmatprep.mubr.bf16.mxu0 %v787
      %1131 = vmatmul.mubr.bf16.gmra.mrb[0].mxu0 %v786
      %v1132 = vpop.f32.mrb[0].mxu0
      %v1133 = vadd.f32 0.0, %v1132
      %v1134 = vpop.f32.mrb[0].mxu0
      %v1135 = vpop.f32.mrb[0].mxu0
      %v1136 = vadd.f32 0.0, %v1135
      %v1137 = vpop.f32.mrb[0].mxu0
      %1138 = vmatprep.mubr.bf16.mxu0 %v789
      %1139 = vmatmul.mubr.bf16.gmra.mrb[0].mxu0 %v788
      %v1140 = vpop.f32.mrb[0].mxu0
      %v1141 = vadd.f32 0.0, %v1140
      %v1142 = vpop.f32.mrb[0].mxu0
      %v1143 = vpop.f32.mrb[0].mxu0
      %v1144 = vadd.f32 0.0, %v1143
      %v1145 = vpop.f32.mrb[0].mxu0
      %1146 = vmatprep.mubr.bf16.mxu0 %v791
      %1147 = vmatmul.mubr.bf16.gmra.mrb[0].mxu0 %v790
      %v1148 = vpop.f32.mrb[0].mxu0
      %v1149 = vadd.f32 0.0, %v1148
      %v1150 = vpop.f32.mrb[0].mxu0
      %v1151 = vpop.f32.mrb[0].mxu0
      %v1152 = vadd.f32 0.0, %v1151
      %v1153 = vpop.f32.mrb[0].mxu0
      %1154 = vmatprep.mubr.bf16.mxu0 %v793
      %1155 = vmatmul.mubr.bf16.gmra.mrb[0].mxu0 %v792
      %v1156 = vpop.f32.mrb[0].mxu0
      %v1157 = vadd.f32 0.0, %v1156
      %v1158 = vpop.f32.mrb[0].mxu0
      %v1159 = vpop.f32.mrb[0].mxu0
      %v1160 = vadd.f32 0.0, %v1159
      %v1161 = vpop.f32.mrb[0].mxu0
      %1162 = vmatprep.mubr.bf16.mxu0 %v795
      %1163 = vmatmul.mubr.bf16.gmra.mrb[0].mxu0 %v794
      %v1164 = vpop.f32.mrb[0].mxu0
      %v1165 = vadd.f32 0.0, %v1164
      %v1166 = vpop.f32.mrb[0].mxu0
      %v1167 = vpop.f32.mrb[0].mxu0
      %v1168 = vadd.f32 0.0, %v1167
      %v1169 = vpop.f32.mrb[0].mxu0
      %1170 = vmatprep.mubr.bf16.mxu0 %v797
      %1171 = vmatmul.mubr.bf16.gmra.mrb[0].mxu0 %v796
      %v1172 = vpop.f32.mrb[0].mxu0
      %v1173 = vadd.f32 0.0, %v1172
      %v1174 = vpop.f32.mrb[0].mxu0
      %v1175 = vpop.f32.mrb[0].mxu0
      %v1176 = vadd.f32 0.0, %v1175
      %v1177 = vpop.f32.mrb[0].mxu0
      %1178 = vmatprep.mubr.bf16.mxu0 %v799
      %1179 = vmatmul.mubr.bf16.gmra.mrb[0].mxu0 %v798
      %v1180 = vpop.f32.mrb[0].mxu0
      %v1181 = vadd.f32 0.0, %v1180
      %v1182 = vpop.f32.mrb[0].mxu0
      %v1183 = vpop.f32.mrb[0].mxu0
      %v1184 = vadd.f32 0.0, %v1183
      %v1185 = vpop.f32.mrb[0].mxu0
      %1186 = vmatprep.mubr.bf16.mxu0 %v801
      %1187 = vmatmul.mubr.bf16.gmra.mrb[0].mxu0 %v800
      %v1188 = vpop.f32.mrb[0].mxu0
      %v1189 = vadd.f32 0.0, %v1188
      %v1190 = vpop.f32.mrb[0].mxu0
      %v1191 = vpop.f32.mrb[0].mxu0
      %v1192 = vadd.f32 0.0, %v1191
      %v1193 = vpop.f32.mrb[0].mxu0
      %1194 = vmatprep.mubr.bf16.mxu0 %v803
      %1195 = vmatmul.mubr.bf16.gmra.mrb[0].mxu0 %v802
      %v1196 = vpop.f32.mrb[0].mxu0
      %v1197 = vadd.f32 0.0, %v1196
      %v1198 = vpop.f32.mrb[0].mxu0
      %v1199 = vpop.f32.mrb[0].mxu0
      %v1200 = vadd.f32 0.0, %v1199
      %v1201 = vpop.f32.mrb[0].mxu0
      %1202 = vmatprep.mubr.bf16.mxu0 %v805
      %1203 = vmatmul.mubr.bf16.gmra.mrb[0].mxu0 %v804
      %v1204 = vpop.f32.mrb[0].mxu0
      %v1205 = vadd.f32 0.0, %v1204
      %v1206 = vpop.f32.mrb[0].mxu0
      %v1207 = vpop.f32.mrb[0].mxu0
      %v1208 = vadd.f32 0.0, %v1207
      %v1209 = vpop.f32.mrb[0].mxu0
      %1210 = vmatprep.mubr.bf16.mxu0 %v807
      %1211 = vmatmul.mubr.bf16.gmra.mrb[0].mxu0 %v806
      %v1212 = vpop.f32.mrb[0].mxu0
      %v1213 = vadd.f32 0.0, %v1212
      %v1214 = vpop.f32.mrb[0].mxu0
      %v1215 = vpop.f32.mrb[0].mxu0
      %v1216 = vadd.f32 0.0, %v1215
      %v1217 = vpop.f32.mrb[0].mxu0
      %1218 = vmatprep.mubr.bf16.mxu0 %v809
      %1219 = vmatmul.mubr.bf16.gmra.mrb[0].mxu0 %v808
      %v1220 = vpop.f32.mrb[0].mxu0
      %v1221 = vadd.f32 0.0, %v1220
      %v1222 = vpop.f32.mrb[0].mxu0
      %v1223 = vpop.f32.mrb[0].mxu0
      %v1224 = vadd.f32 0.0, %v1223
      %v1225 = vpop.f32.mrb[0].mxu0
      %1226 = vmatprep.mubr.bf16.mxu0 %v811
      %1227 = vmatmul.mubr.bf16.gmra.mrb[0].mxu0 %v810
      %v1228 = vpop.f32.mrb[0].mxu0
      %v1229 = vadd.f32 0.0, %v1228
      %v1230 = vpop.f32.mrb[0].mxu0
      %v1231 = vpop.f32.mrb[0].mxu0
      %v1232 = vadd.f32 0.0, %v1231
      %v1233 = vpop.f32.mrb[0].mxu0
      %1234 = vmatprep.mubr.bf16.mxu0 %v813
      %1235 = vmatmul.mubr.bf16.gmra.mrb[0].mxu0 %v812
      %v1236 = vpop.f32.mrb[0].mxu0
      %v1237 = vadd.f32 0.0, %v1236
      %v1238 = vpop.f32.mrb[0].mxu0
      %v1239 = vpop.f32.mrb[0].mxu0
      %v1240 = vadd.f32 0.0, %v1239
      %v1241 = vpop.f32.mrb[0].mxu0
      %1242 = vmatprep.mubr.bf16.mxu0 %v815
      %1243 = vmatmul.mubr.bf16.gmra.mrb[0].mxu0 %v814
      %v1244 = vpop.f32.mrb[0].mxu0
      %v1245 = vadd.f32 0.0, %v1244
      %v1246 = vpop.f32.mrb[0].mxu0
      %v1247 = vpop.f32.mrb[0].mxu0
      %v1248 = vadd.f32 0.0, %v1247
      %v1249 = vpop.f32.mrb[0].mxu0
      %1250 = vmatprep.mubr.bf16.mxu0 %v817
      %1251 = vmatmul.mubr.bf16.gmra.mrb[0].mxu0 %v816
      %v1252 = vpop.f32.mrb[0].mxu0
      %v1253 = vadd.f32 0.0, %v1252
      %v1254 = vpop.f32.mrb[0].mxu0
      %v1255 = vpop.f32.mrb[0].mxu0
      %v1256 = vadd.f32 0.0, %v1255
      %v1257 = vpop.f32.mrb[0].mxu0
      %1258 = vmatprep.mubr.bf16.mxu0 %v819
      %1259 = vmatmul.mubr.bf16.gmra.mrb[0].mxu0 %v818
      %v1260 = vpop.f32.mrb[0].mxu0
      %v1261 = vadd.f32 0.0, %v1260
      %v1262 = vpop.f32.mrb[0].mxu0
      %v1263 = vpop.f32.mrb[0].mxu0
      %v1264 = vadd.f32 0.0, %v1263
      %v1265 = vpop.f32.mrb[0].mxu0
      %1266 = vmatprep.mubr.bf16.mxu0 %v821
      %1267 = vmatmul.mubr.bf16.gmra.mrb[0].mxu0 %v820
      %v1268 = vpop.f32.mrb[0].mxu0
      %v1269 = vadd.f32 0.0, %v1268
      %v1270 = vpop.f32.mrb[0].mxu0
      %v1271 = vpop.f32.mrb[0].mxu0
      %v1272 = vadd.f32 0.0, %v1271
      %v1273 = vpop.f32.mrb[0].mxu0
      %1274 = vmatprep.mubr.bf16.mxu0 %v823
      %1275 = vmatmul.mubr.bf16.gmra.mrb[0].mxu0 %v822
      %v1276 = vpop.f32.mrb[0].mxu0
      %v1277 = vadd.f32 0.0, %v1276
      %v1278 = vpop.f32.mrb[0].mxu0
      %v1279 = vpop.f32.mrb[0].mxu0
      %v1280 = vadd.f32 0.0, %v1279
      %v1281 = vpop.f32.mrb[0].mxu0
      %1282 = vmatprep.mubr.bf16.mxu0 %v825
      %1283 = vmatmul.mubr.bf16.gmra.mrb[0].mxu0 %v824
      %v1284 = vpop.f32.mrb[0].mxu0
      %v1285 = vadd.f32 0.0, %v1284
      %v1286 = vpop.f32.mrb[0].mxu0
      %v1287 = vpop.f32.mrb[0].mxu0
      %v1288 = vadd.f32 0.0, %v1287
      %v1289 = vpop.f32.mrb[0].mxu0
      %1290 = vmatprep.mubr.bf16.mxu0 %v827
      %1291 = vmatmul.mubr.bf16.gmra.mrb[0].mxu0 %v826
      %v1292 = vpop.f32.mrb[0].mxu0
      %v1293 = vadd.f32 0.0, %v1292
      %v1294 = vpop.f32.mrb[0].mxu0
      %v1295 = vpop.f32.mrb[0].mxu0
      %v1296 = vadd.f32 0.0, %v1295
      %v1297 = vpop.f32.mrb[0].mxu0
      %1298 = vmatprep.mubr.bf16.mxu0 %v829
      %1299 = vmatmul.mubr.bf16.gmra.mrb[0].mxu0 %v828
      %v1300 = vpop.f32.mrb[0].mxu0
      %v1301 = vadd.f32 0.0, %v1300
      %v1302 = vpop.f32.mrb[0].mxu0
      %v1303 = vpop.f32.mrb[0].mxu0
      %v1304 = vadd.f32 0.0, %v1303
      %v1305 = vpop.f32.mrb[0].mxu0
      %1306 = vmatprep.mubr.bf16.mxu0 %v831
      %1307 = vmatmul.mubr.bf16.gmra.mrb[0].mxu0 %v830
      %v1308 = vpop.f32.mrb[0].mxu0
      %v1309 = vadd.f32 0.0, %v1308
      %v1310 = vpop.f32.mrb[0].mxu0
      %v1311 = vpop.f32.mrb[0].mxu0
      %v1312 = vadd.f32 0.0, %v1311
      %v1313 = vpop.f32.mrb[0].mxu0
      %1314 = vmatprep.mubr.bf16.mxu0 %v833
      %1315 = vmatmul.mubr.bf16.gmra.mrb[0].mxu0 %v832
      %v1316 = vpop.f32.mrb[0].mxu0
      %v1317 = vadd.f32 0.0, %v1316
      %v1318 = vpop.f32.mrb[0].mxu0
      %v1319 = vpop.f32.mrb[0].mxu0
      %v1320 = vadd.f32 0.0, %v1319
      %v1321 = vpop.f32.mrb[0].mxu0
      %1322 = vdwg.mxu0
      %v1323 = vpack.c.bf16 %v1040, %v1037
      %v1324 = vpack.c.bf16 %v1048, %v1045
      %v1325 = vpack.c.bf16 %v1056, %v1053
      %v1326 = vpack.c.bf16 %v1064, %v1061
      %v1327 = vld [vmem:[%s2] sm:$0x3]
      %v1328 = vpack.c.bf16 %v1072, %v1069
      %v1329 = vpack.c.bf16 %v1080, %v1077
      %v1330 = vpack.c.bf16 %v1088, %v1085
      %v1331 = vpack.c.bf16 %v1096, %v1093
      %s1332 = scalar_lea.vmem %s2, 2
      %v1333 = vld [vmem:[%s1332] sm:$0x3]
      %vm1334 = vcmask 23552
      %v1336 = vsel %vm1334, %v1328, 0
      %v1339 = vsel %vm1334, %v1329, 0
      %v1342 = vsel %vm1334, %v1330, 0
      %v1345 = vsel %vm1334, %v1331, 0
      %vm1347 = vcmask 1040384
      %vm1348 = vcmask 1041408
      %v1349 = vsel %vm1347, 4294967295, 65535
      %v1350 = vsel %vm1348, %v1349, 0
      %v1352 = vand.u32 %v1333, %v1350
      %1354 = vmatprep.subr.bf16.mxu0 0
      %1355 = vmatpush1.bf16.msra.mxu0 %v1352
      %1356 = vmatprep.subr.bf16.mxu0 0
      %1357 = vmatpush1.bf16.msra.mxu0 0
      %1358 = vmatprep.subr.bf16.mxu0 0
      %1359 = vmatpush1.bf16.msra.mxu0 0
      %1360 = vmatprep.subr.bf16.mxu0 0
      %1361 = vmatpush1.bf16.msra.mxu0 0
      %1362 = vmatprep.subr.bf16.mxu0 0
      %1363 = vmatpush1.bf16.msra.mxu0 0
      %1364 = vmatprep.subr.bf16.mxu0 0
      %1365 = vmatpush1.bf16.msra.mxu0 0
      %1366 = vmatprep.subr.bf16.mxu0 0
      %1367 = vmatpush1.bf16.msra.mxu0 0
      %1368 = vmatprep.subr.bf16.mxu0 0
      %1369 = vmatpush1.bf16.msra.mxu0 0
      %1370 = vmatprep.subr.bf16.mxu0 0
      %1371 = vmatpush1.bf16.msra.mxu0 0
      %1372 = vmatprep.subr.bf16.mxu0 0
      %1373 = vmatpush1.bf16.msra.mxu0 0
      %1374 = vmatprep.subr.bf16.mxu0 0
      %1375 = vmatpush1.bf16.msra.mxu0 0
      %1376 = vmatprep.subr.bf16.mxu0 0
      %1377 = vmatpush1.bf16.msra.mxu0 0
      %1378 = vmatprep.subr.bf16.mxu0 0
      %1379 = vmatpush1.bf16.msra.mxu0 0
      %1380 = vmatprep.subr.bf16.mxu0 0
      %1381 = vmatpush1.bf16.msra.mxu0 0
      %1382 = vmatprep.subr.bf16.mxu0 0
      %1383 = vmatpush1.bf16.msra.mxu0 0
      %1384 = vmatprep.subr.bf16.mxu0 0
      %1385 = vmatpush1.bf16.msra.mxu0 0
      %1386 = vmatprep.mubr.bf16.mxu0 0
      %1387 = vmatmul.mubr.bf16.gmra.mrb[0].mxu0 %v1336
      %v1388 = vpop.f32.mrb[0].mxu0
      %v1389 = vadd.f32 0.0, %v1388
      %v1390 = vpop.f32.mrb[0].mxu0
      %v1391 = vpop.f32.mrb[0].mxu0
      %v1392 = vadd.f32 0.0, %v1391
      %v1393 = vpop.f32.mrb[0].mxu0
      %1394 = vmatprep.mubr.bf16.mxu0 0
      %1395 = vmatmul.mubr.bf16.gmra.mrb[0].mxu0 %v1339
      %v1396 = vpop.f32.mrb[0].mxu0
      %v1397 = vadd.f32 0.0, %v1396
      %v1398 = vpop.f32.mrb[0].mxu0
      %v1399 = vpop.f32.mrb[0].mxu0
      %v1400 = vadd.f32 0.0, %v1399
      %v1401 = vpop.f32.mrb[0].mxu0
      %1402 = vmatprep.mubr.bf16.mxu0 0
      %1403 = vmatmul.mubr.bf16.gmra.mrb[0].mxu0 %v1342
      %v1404 = vpop.f32.mrb[0].mxu0
      %v1405 = vadd.f32 0.0, %v1404
      %v1406 = vpop.f32.mrb[0].mxu0
      %v1407 = vpop.f32.mrb[0].mxu0
      %v1408 = vadd.f32 0.0, %v1407
      %v1409 = vpop.f32.mrb[0].mxu0
      %1410 = vmatprep.mubr.bf16.mxu0 0
      %1411 = vmatmul.mubr.bf16.gmra.mrb[0].mxu0 %v1345
      %v1412 = vpop.f32.mrb[0].mxu0
      %v1413 = vadd.f32 0.0, %v1412
      %v1414 = vpop.f32.mrb[0].mxu0
      %v1415 = vpop.f32.mrb[0].mxu0
      %v1416 = vadd.f32 0.0, %v1415
      %v1417 = vpop.f32.mrb[0].mxu0
      %1418 = vdwg.mxu0
      %v1420 = vsel %vm1334, %v1323, 0
      %v1423 = vsel %vm1334, %v1324, 0
      %v1426 = vsel %vm1334, %v1325, 0
      %v1429 = vsel %vm1334, %v1326, 0
      %v1432 = vand.u32 %v1327, %v1350
      %1434 = vmatprep.subr.bf16.mxu0 0
      %1435 = vmatpush1.bf16.msra.mxu0 %v1432
      %1436 = vmatprep.subr.bf16.mxu0 0
      %1437 = vmatpush1.bf16.msra.mxu0 0
      %1438 = vmatprep.subr.bf16.mxu0 0
      %1439 = vmatpush1.bf16.msra.mxu0 0
      %1440 = vmatprep.subr.bf16.mxu0 0
      %1441 = vmatpush1.bf16.msra.mxu0 0
      %1442 = vmatprep.subr.bf16.mxu0 0
      %1443 = vmatpush1.bf16.msra.mxu0 0
      %1444 = vmatprep.subr.bf16.mxu0 0
      %1445 = vmatpush1.bf16.msra.mxu0 0
      %1446 = vmatprep.subr.bf16.mxu0 0
      %1447 = vmatpush1.bf16.msra.mxu0 0
      %1448 = vmatprep.subr.bf16.mxu0 0
      %1449 = vmatpush1.bf16.msra.mxu0 0
      %1450 = vmatprep.subr.bf16.mxu0 0
      %1451 = vmatpush1.bf16.msra.mxu0 0
      %1452 = vmatprep.subr.bf16.mxu0 0
      %1453 = vmatpush1.bf16.msra.mxu0 0
      %1454 = vmatprep.subr.bf16.mxu0 0
      %1455 = vmatpush1.bf16.msra.mxu0 0
      %1456 = vmatprep.subr.bf16.mxu0 0
      %1457 = vmatpush1.bf16.msra.mxu0 0
      %1458 = vmatprep.subr.bf16.mxu0 0
      %1459 = vmatpush1.bf16.msra.mxu0 0
      %1460 = vmatprep.subr.bf16.mxu0 0
      %1461 = vmatpush1.bf16.msra.mxu0 0
      %1462 = vmatprep.subr.bf16.mxu0 0
      %1463 = vmatpush1.bf16.msra.mxu0 0
      %1464 = vmatprep.subr.bf16.mxu0 0
      %1465 = vmatpush1.bf16.msra.mxu0 0
      %1466 = vmatprep.mubr.bf16.mxu0 0
      %1467 = vmatmul.mubr.bf16.gmra.mrb[0].mxu0 %v1420
      %v1468 = vpop.f32.mrb[0].mxu0
      %v1469 = vadd.f32 %v1389, %v1468
      %v1470 = vpop.f32.mrb[0].mxu0
      %v1471 = vpop.f32.mrb[0].mxu0
      %v1472 = vadd.f32 %v1392, %v1471
      %v1473 = vpop.f32.mrb[0].mxu0
      %1474 = vmatprep.mubr.bf16.mxu0 0
      %1475 = vmatmul.mubr.bf16.gmra.mrb[0].mxu0 %v1423
      %v1476 = vpop.f32.mrb[0].mxu0
      %v1477 = vadd.f32 %v1397, %v1476
      %v1478 = vpop.f32.mrb[0].mxu0
      %v1479 = vpop.f32.mrb[0].mxu0
      %v1480 = vadd.f32 %v1400, %v1479
      %v1481 = vpop.f32.mrb[0].mxu0
      %1482 = vmatprep.mubr.bf16.mxu0 0
      %1483 = vmatmul.mubr.bf16.gmra.mrb[0].mxu0 %v1426
      %v1484 = vpop.f32.mrb[0].mxu0
      %v1485 = vadd.f32 %v1405, %v1484
      %v1486 = vpop.f32.mrb[0].mxu0
      %v1487 = vpop.f32.mrb[0].mxu0
      %v1488 = vadd.f32 %v1408, %v1487
      %v1489 = vpop.f32.mrb[0].mxu0
      %1490 = vmatprep.mubr.bf16.mxu0 0
      %1491 = vmatmul.mubr.bf16.gmra.mrb[0].mxu0 %v1429
      %v1492 = vpop.f32.mrb[0].mxu0
      %v1493 = vadd.f32 %v1413, %v1492
      %v1494 = vpop.f32.mrb[0].mxu0
      %v1495 = vpop.f32.mrb[0].mxu0
      %v1496 = vadd.f32 %v1416, %v1495
      %v1497 = vpop.f32.mrb[0].mxu0
      %1498 = vdwg.mxu0
      %v1499 = vpack.c.bf16 %v1104, %v1101
      %v1500 = vpack.c.bf16 %v1112, %v1109
      %v1501 = vpack.c.bf16 %v1120, %v1117
      %v1502 = vpack.c.bf16 %v1128, %v1125
      %s1503 = scalar_lea.vmem %s2, 4
      %v1504 = vld [vmem:[%s1503] sm:$0x3]
      %v1506 = vsel %vm1334, %v1499, 0
      %v1509 = vsel %vm1334, %v1500, 0
      %v1512 = vsel %vm1334, %v1501, 0
      %v1515 = vsel %vm1334, %v1502, 0
      %v1518 = vand.u32 %v1504, %v1350
      %1520 = vmatprep.subr.bf16.mxu0 0
      %1521 = vmatpush1.bf16.msra.mxu0 %v1518
      %1522 = vmatprep.subr.bf16.mxu0 0
      %1523 = vmatpush1.bf16.msra.mxu0 0
      %1524 = vmatprep.subr.bf16.mxu0 0
      %1525 = vmatpush1.bf16.msra.mxu0 0
      %1526 = vmatprep.subr.bf16.mxu0 0
      %1527 = vmatpush1.bf16.msra.mxu0 0
      %1528 = vmatprep.subr.bf16.mxu0 0
      %1529 = vmatpush1.bf16.msra.mxu0 0
      %1530 = vmatprep.subr.bf16.mxu0 0
      %1531 = vmatpush1.bf16.msra.mxu0 0
      %1532 = vmatprep.subr.bf16.mxu0 0
      %1533 = vmatpush1.bf16.msra.mxu0 0
      %1534 = vmatprep.subr.bf16.mxu0 0
      %1535 = vmatpush1.bf16.msra.mxu0 0
      %1536 = vmatprep.subr.bf16.mxu0 0
      %1537 = vmatpush1.bf16.msra.mxu0 0
      %1538 = vmatprep.subr.bf16.mxu0 0
      %1539 = vmatpush1.bf16.msra.mxu0 0
      %1540 = vmatprep.subr.bf16.mxu0 0
      %1541 = vmatpush1.bf16.msra.mxu0 0
      %1542 = vmatprep.subr.bf16.mxu0 0
      %1543 = vmatpush1.bf16.msra.mxu0 0
      %1544 = vmatprep.subr.bf16.mxu0 0
      %1545 = vmatpush1.bf16.msra.mxu0 0
      %1546 = vmatprep.subr.bf16.mxu0 0
      %1547 = vmatpush1.bf16.msra.mxu0 0
      %1548 = vmatprep.subr.bf16.mxu0 0
      %1549 = vmatpush1.bf16.msra.mxu0 0
      %1550 = vmatprep.subr.bf16.mxu0 0
      %1551 = vmatpush1.bf16.msra.mxu0 0
      %1552 = vmatprep.mubr.bf16.mxu0 0
      %1553 = vmatmul.mubr.bf16.gmra.mrb[0].mxu0 %v1506
      %v1554 = vpop.f32.mrb[0].mxu0
      %v1555 = vadd.f32 0.0, %v1554
      %v1556 = vpop.f32.mrb[0].mxu0
      %v1557 = vpop.f32.mrb[0].mxu0
      %v1558 = vadd.f32 0.0, %v1557
      %v1559 = vpop.f32.mrb[0].mxu0
      %1560 = vmatprep.mubr.bf16.mxu0 0
      %1561 = vmatmul.mubr.bf16.gmra.mrb[0].mxu0 %v1509
      %v1562 = vpop.f32.mrb[0].mxu0
      %v1563 = vadd.f32 0.0, %v1562
      %v1564 = vpop.f32.mrb[0].mxu0
      %v1565 = vpop.f32.mrb[0].mxu0
      %v1566 = vadd.f32 0.0, %v1565
      %v1567 = vpop.f32.mrb[0].mxu0
      %1568 = vmatprep.mubr.bf16.mxu0 0
      %1569 = vmatmul.mubr.bf16.gmra.mrb[0].mxu0 %v1512
      %v1570 = vpop.f32.mrb[0].mxu0
      %v1571 = vadd.f32 0.0, %v1570
      %v1572 = vpop.f32.mrb[0].mxu0
      %v1573 = vpop.f32.mrb[0].mxu0
      %v1574 = vadd.f32 0.0, %v1573
      %v1575 = vpop.f32.mrb[0].mxu0
      %1576 = vmatprep.mubr.bf16.mxu0 0
      %1577 = vmatmul.mubr.bf16.gmra.mrb[0].mxu0 %v1515
      %v1578 = vpop.f32.mrb[0].mxu0
      %v1579 = vadd.f32 0.0, %v1578
      %v1580 = vpop.f32.mrb[0].mxu0
      %v1581 = vpop.f32.mrb[0].mxu0
      %v1582 = vadd.f32 0.0, %v1581
      %v1583 = vpop.f32.mrb[0].mxu0
      %1584 = vdwg.mxu0
      %v1585 = vadd.f32 %v1469, %v1555
      %v1586 = vadd.f32 %v1472, %v1558
      %v1587 = vadd.f32 %v1477, %v1563
      %v1588 = vadd.f32 %v1480, %v1566
      %v1589 = vadd.f32 %v1485, %v1571
      %v1590 = vadd.f32 %v1488, %v1574
      %v1591 = vadd.f32 %v1493, %v1579
      %v1592 = vadd.f32 %v1496, %v1582
      %v1593 = vpack.c.bf16 %v1136, %v1133
      %v1594 = vpack.c.bf16 %v1144, %v1141
      %v1595 = vpack.c.bf16 %v1152, %v1149
      %v1596 = vpack.c.bf16 %v1160, %v1157
      %s1597 = scalar_lea.vmem %s2, 6
      %v1598 = vld [vmem:[%s1597] sm:$0x3]
      %v1600 = vsel %vm1334, %v1593, 0
      %v1603 = vsel %vm1334, %v1594, 0
      %v1606 = vsel %vm1334, %v1595, 0
      %v1609 = vsel %vm1334, %v1596, 0
      %v1612 = vand.u32 %v1598, %v1350
      %1614 = vmatprep.subr.bf16.mxu0 0
      %1615 = vmatpush1.bf16.msra.mxu0 %v1612
      %1616 = vmatprep.subr.bf16.mxu0 0
      %1617 = vmatpush1.bf16.msra.mxu0 0
      %1618 = vmatprep.subr.bf16.mxu0 0
      %1619 = vmatpush1.bf16.msra.mxu0 0
      %1620 = vmatprep.subr.bf16.mxu0 0
      %1621 = vmatpush1.bf16.msra.mxu0 0
      %1622 = vmatprep.subr.bf16.mxu0 0
      %1623 = vmatpush1.bf16.msra.mxu0 0
      %1624 = vmatprep.subr.bf16.mxu0 0
      %1625 = vmatpush1.bf16.msra.mxu0 0
      %1626 = vmatprep.subr.bf16.mxu0 0
      %1627 = vmatpush1.bf16.msra.mxu0 0
      %1628 = vmatprep.subr.bf16.mxu0 0
      %1629 = vmatpush1.bf16.msra.mxu0 0
      %1630 = vmatprep.subr.bf16.mxu0 0
      %1631 = vmatpush1.bf16.msra.mxu0 0
      %1632 = vmatprep.subr.bf16.mxu0 0
      %1633 = vmatpush1.bf16.msra.mxu0 0
      %1634 = vmatprep.subr.bf16.mxu0 0
      %1635 = vmatpush1.bf16.msra.mxu0 0
      %1636 = vmatprep.subr.bf16.mxu0 0
      %1637 = vmatpush1.bf16.msra.mxu0 0
      %1638 = vmatprep.subr.bf16.mxu0 0
      %1639 = vmatpush1.bf16.msra.mxu0 0
      %1640 = vmatprep.subr.bf16.mxu0 0
      %1641 = vmatpush1.bf16.msra.mxu0 0
      %1642 = vmatprep.subr.bf16.mxu0 0
      %1643 = vmatpush1.bf16.msra.mxu0 0
      %1644 = vmatprep.subr.bf16.mxu0 0
      %1645 = vmatpush1.bf16.msra.mxu0 0
      %1646 = vmatprep.mubr.bf16.mxu0 0
      %1647 = vmatmul.mubr.bf16.gmra.mrb[0].mxu0 %v1600
      %v1648 = vpop.f32.mrb[0].mxu0
      %v1649 = vadd.f32 0.0, %v1648
      %v1650 = vpop.f32.mrb[0].mxu0
      %v1651 = vpop.f32.mrb[0].mxu0
      %v1652 = vadd.f32 0.0, %v1651
      %v1653 = vpop.f32.mrb[0].mxu0
      %1654 = vmatprep.mubr.bf16.mxu0 0
      %1655 = vmatmul.mubr.bf16.gmra.mrb[0].mxu0 %v1603
      %v1656 = vpop.f32.mrb[0].mxu0
      %v1657 = vadd.f32 0.0, %v1656
      %v1658 = vpop.f32.mrb[0].mxu0
      %v1659 = vpop.f32.mrb[0].mxu0
      %v1660 = vadd.f32 0.0, %v1659
      %v1661 = vpop.f32.mrb[0].mxu0
      %1662 = vmatprep.mubr.bf16.mxu0 0
      %1663 = vmatmul.mubr.bf16.gmra.mrb[0].mxu0 %v1606
      %v1664 = vpop.f32.mrb[0].mxu0
      %v1665 = vadd.f32 0.0, %v1664
      %v1666 = vpop.f32.mrb[0].mxu0
      %v1667 = vpop.f32.mrb[0].mxu0
      %v1668 = vadd.f32 0.0, %v1667
      %v1669 = vpop.f32.mrb[0].mxu0
      %1670 = vmatprep.mubr.bf16.mxu0 0
      %1671 = vmatmul.mubr.bf16.gmra.mrb[0].mxu0 %v1609
      %v1672 = vpop.f32.mrb[0].mxu0
      %v1673 = vadd.f32 0.0, %v1672
      %v1674 = vpop.f32.mrb[0].mxu0
      %v1675 = vpop.f32.mrb[0].mxu0
      %v1676 = vadd.f32 0.0, %v1675
      %v1677 = vpop.f32.mrb[0].mxu0
      %1678 = vdwg.mxu0
      %v1679 = vadd.f32 %v1585, %v1649
      %v1680 = vadd.f32 %v1586, %v1652
      %v1681 = vadd.f32 %v1587, %v1657
      %v1682 = vadd.f32 %v1588, %v1660
      %v1683 = vadd.f32 %v1589, %v1665
      %v1684 = vadd.f32 %v1590, %v1668
      %v1685 = vadd.f32 %v1591, %v1673
      %v1686 = vadd.f32 %v1592, %v1676
      %v1687 = vpack.c.bf16 %v1168, %v1165
      %v1688 = vpack.c.bf16 %v1176, %v1173
      %v1689 = vpack.c.bf16 %v1184, %v1181
      %v1690 = vpack.c.bf16 %v1192, %v1189
      %s1691 = scalar_lea.vmem %s2, 8
      %v1692 = vld [vmem:[%s1691] sm:$0x3]
      %v1694 = vsel %vm1334, %v1687, 0
      %v1697 = vsel %vm1334, %v1688, 0
      %v1700 = vsel %vm1334, %v1689, 0
      %v1703 = vsel %vm1334, %v1690, 0
      %v1706 = vand.u32 %v1692, %v1350
      %1708 = vmatprep.subr.bf16.mxu0 0
      %1709 = vmatpush1.bf16.msra.mxu0 %v1706
      %1710 = vmatprep.subr.bf16.mxu0 0
      %1711 = vmatpush1.bf16.msra.mxu0 0
      %1712 = vmatprep.subr.bf16.mxu0 0
      %1713 = vmatpush1.bf16.msra.mxu0 0
      %1714 = vmatprep.subr.bf16.mxu0 0
      %1715 = vmatpush1.bf16.msra.mxu0 0
      %1716 = vmatprep.subr.bf16.mxu0 0
      %1717 = vmatpush1.bf16.msra.mxu0 0
      %1718 = vmatprep.subr.bf16.mxu0 0
      %1719 = vmatpush1.bf16.msra.mxu0 0
      %1720 = vmatprep.subr.bf16.mxu0 0
      %1721 = vmatpush1.bf16.msra.mxu0 0
      %1722 = vmatprep.subr.bf16.mxu0 0
      %1723 = vmatpush1.bf16.msra.mxu0 0
      %1724 = vmatprep.subr.bf16.mxu0 0
      %1725 = vmatpush1.bf16.msra.mxu0 0
      %1726 = vmatprep.subr.bf16.mxu0 0
      %1727 = vmatpush1.bf16.msra.mxu0 0
      %1728 = vmatprep.subr.bf16.mxu0 0
      %1729 = vmatpush1.bf16.msra.mxu0 0
      %1730 = vmatprep.subr.bf16.mxu0 0
      %1731 = vmatpush1.bf16.msra.mxu0 0
      %1732 = vmatprep.subr.bf16.mxu0 0
      %1733 = vmatpush1.bf16.msra.mxu0 0
      %1734 = vmatprep.subr.bf16.mxu0 0
      %1735 = vmatpush1.bf16.msra.mxu0 0
      %1736 = vmatprep.subr.bf16.mxu0 0
      %1737 = vmatpush1.bf16.msra.mxu0 0
      %1738 = vmatprep.subr.bf16.mxu0 0
      %1739 = vmatpush1.bf16.msra.mxu0 0
      %1740 = vmatprep.mubr.bf16.mxu0 0
      %1741 = vmatmul.mubr.bf16.gmra.mrb[0].mxu0 %v1694
      %v1742 = vpop.f32.mrb[0].mxu0
      %v1743 = vadd.f32 0.0, %v1742
      %v1744 = vpop.f32.mrb[0].mxu0
      %v1745 = vpop.f32.mrb[0].mxu0
      %v1746 = vadd.f32 0.0, %v1745
      %v1747 = vpop.f32.mrb[0].mxu0
      %1748 = vmatprep.mubr.bf16.mxu0 0
      %1749 = vmatmul.mubr.bf16.gmra.mrb[0].mxu0 %v1697
      %v1750 = vpop.f32.mrb[0].mxu0
      %v1751 = vadd.f32 0.0, %v1750
      %v1752 = vpop.f32.mrb[0].mxu0
      %v1753 = vpop.f32.mrb[0].mxu0
      %v1754 = vadd.f32 0.0, %v1753
      %v1755 = vpop.f32.mrb[0].mxu0
      %1756 = vmatprep.mubr.bf16.mxu0 0
      %1757 = vmatmul.mubr.bf16.gmra.mrb[0].mxu0 %v1700
      %v1758 = vpop.f32.mrb[0].mxu0
      %v1759 = vadd.f32 0.0, %v1758
      %v1760 = vpop.f32.mrb[0].mxu0
      %v1761 = vpop.f32.mrb[0].mxu0
      %v1762 = vadd.f32 0.0, %v1761
      %v1763 = vpop.f32.mrb[0].mxu0
      %1764 = vmatprep.mubr.bf16.mxu0 0
      %1765 = vmatmul.mubr.bf16.gmra.mrb[0].mxu0 %v1703
      %v1766 = vpop.f32.mrb[0].mxu0
      %v1767 = vadd.f32 0.0, %v1766
      %v1768 = vpop.f32.mrb[0].mxu0
      %v1769 = vpop.f32.mrb[0].mxu0
      %v1770 = vadd.f32 0.0, %v1769
      %v1771 = vpop.f32.mrb[0].mxu0
      %1772 = vdwg.mxu0
      %v1773 = vadd.f32 %v1679, %v1743
      %v1774 = vadd.f32 %v1680, %v1746
      %v1775 = vadd.f32 %v1681, %v1751
      %v1776 = vadd.f32 %v1682, %v1754
      %v1777 = vadd.f32 %v1683, %v1759
      %v1778 = vadd.f32 %v1684, %v1762
      %v1779 = vadd.f32 %v1685, %v1767
      %v1780 = vadd.f32 %v1686, %v1770
      %v1781 = vpack.c.bf16 %v1200, %v1197
      %v1782 = vpack.c.bf16 %v1208, %v1205
      %v1783 = vpack.c.bf16 %v1216, %v1213
      %v1784 = vpack.c.bf16 %v1224, %v1221
      %s1785 = scalar_lea.vmem %s2, 10
      %v1786 = vld [vmem:[%s1785] sm:$0x3]
      %v1788 = vsel %vm1334, %v1781, 0
      %v1791 = vsel %vm1334, %v1782, 0
      %v1794 = vsel %vm1334, %v1783, 0
      %v1797 = vsel %vm1334, %v1784, 0
      %v1800 = vand.u32 %v1786, %v1350
      %1802 = vmatprep.subr.bf16.mxu0 0
      %1803 = vmatpush1.bf16.msra.mxu0 %v1800
      %1804 = vmatprep.subr.bf16.mxu0 0
      %1805 = vmatpush1.bf16.msra.mxu0 0
      %1806 = vmatprep.subr.bf16.mxu0 0
      %1807 = vmatpush1.bf16.msra.mxu0 0
      %1808 = vmatprep.subr.bf16.mxu0 0
      %1809 = vmatpush1.bf16.msra.mxu0 0
      %1810 = vmatprep.subr.bf16.mxu0 0
      %1811 = vmatpush1.bf16.msra.mxu0 0
      %1812 = vmatprep.subr.bf16.mxu0 0
      %1813 = vmatpush1.bf16.msra.mxu0 0
      %1814 = vmatprep.subr.bf16.mxu0 0
      %1815 = vmatpush1.bf16.msra.mxu0 0
      %1816 = vmatprep.subr.bf16.mxu0 0
      %1817 = vmatpush1.bf16.msra.mxu0 0
      %1818 = vmatprep.subr.bf16.mxu0 0
      %1819 = vmatpush1.bf16.msra.mxu0 0
      %1820 = vmatprep.subr.bf16.mxu0 0
      %1821 = vmatpush1.bf16.msra.mxu0 0
      %1822 = vmatprep.subr.bf16.mxu0 0
      %1823 = vmatpush1.bf16.msra.mxu0 0
      %1824 = vmatprep.subr.bf16.mxu0 0
      %1825 = vmatpush1.bf16.msra.mxu0 0
      %1826 = vmatprep.subr.bf16.mxu0 0
      %1827 = vmatpush1.bf16.msra.mxu0 0
      %1828 = vmatprep.subr.bf16.mxu0 0
      %1829 = vmatpush1.bf16.msra.mxu0 0
      %1830 = vmatprep.subr.bf16.mxu0 0
      %1831 = vmatpush1.bf16.msra.mxu0 0
      %1832 = vmatprep.subr.bf16.mxu0 0
      %1833 = vmatpush1.bf16.msra.mxu0 0
      %1834 = vmatprep.mubr.bf16.mxu0 0
      %1835 = vmatmul.mubr.bf16.gmra.mrb[0].mxu0 %v1788
      %v1836 = vpop.f32.mrb[0].mxu0
      %v1837 = vadd.f32 0.0, %v1836
      %v1838 = vpop.f32.mrb[0].mxu0
      %v1839 = vpop.f32.mrb[0].mxu0
      %v1840 = vadd.f32 0.0, %v1839
      %v1841 = vpop.f32.mrb[0].mxu0
      %1842 = vmatprep.mubr.bf16.mxu0 0
      %1843 = vmatmul.mubr.bf16.gmra.mrb[0].mxu0 %v1791
      %v1844 = vpop.f32.mrb[0].mxu0
      %v1845 = vadd.f32 0.0, %v1844
      %v1846 = vpop.f32.mrb[0].mxu0
      %v1847 = vpop.f32.mrb[0].mxu0
      %v1848 = vadd.f32 0.0, %v1847
      %v1849 = vpop.f32.mrb[0].mxu0
      %1850 = vmatprep.mubr.bf16.mxu0 0
      %1851 = vmatmul.mubr.bf16.gmra.mrb[0].mxu0 %v1794
      %v1852 = vpop.f32.mrb[0].mxu0
      %v1853 = vadd.f32 0.0, %v1852
      %v1854 = vpop.f32.mrb[0].mxu0
      %v1855 = vpop.f32.mrb[0].mxu0
      %v1856 = vadd.f32 0.0, %v1855
      %v1857 = vpop.f32.mrb[0].mxu0
      %1858 = vmatprep.mubr.bf16.mxu0 0
      %1859 = vmatmul.mubr.bf16.gmra.mrb[0].mxu0 %v1797
      %v1860 = vpop.f32.mrb[0].mxu0
      %v1861 = vadd.f32 0.0, %v1860
      %v1862 = vpop.f32.mrb[0].mxu0
      %v1863 = vpop.f32.mrb[0].mxu0
      %v1864 = vadd.f32 0.0, %v1863
      %v1865 = vpop.f32.mrb[0].mxu0
      %1866 = vdwg.mxu0
      %v1867 = vadd.f32 %v1773, %v1837
      %v1868 = vadd.f32 %v1774, %v1840
      %v1869 = vadd.f32 %v1775, %v1845
      %v1870 = vadd.f32 %v1776, %v1848
      %v1871 = vadd.f32 %v1777, %v1853
      %v1872 = vadd.f32 %v1778, %v1856
      %v1873 = vadd.f32 %v1779, %v1861
      %v1874 = vadd.f32 %v1780, %v1864
      %v1875 = vpack.c.bf16 %v1232, %v1229
      %v1876 = vpack.c.bf16 %v1240, %v1237
      %v1877 = vpack.c.bf16 %v1248, %v1245
      %v1878 = vpack.c.bf16 %v1256, %v1253
      %s1879 = scalar_lea.vmem %s2, 12
      %v1880 = vld [vmem:[%s1879] sm:$0x3]
      %v1882 = vsel %vm1334, %v1875, 0
      %v1885 = vsel %vm1334, %v1876, 0
      %v1888 = vsel %vm1334, %v1877, 0
      %v1891 = vsel %vm1334, %v1878, 0
      %v1894 = vand.u32 %v1880, %v1350
      %1896 = vmatprep.subr.bf16.mxu0 0
      %1897 = vmatpush1.bf16.msra.mxu0 %v1894
      %1898 = vmatprep.subr.bf16.mxu0 0
      %1899 = vmatpush1.bf16.msra.mxu0 0
      %1900 = vmatprep.subr.bf16.mxu0 0
      %1901 = vmatpush1.bf16.msra.mxu0 0
      %1902 = vmatprep.subr.bf16.mxu0 0
      %1903 = vmatpush1.bf16.msra.mxu0 0
      %1904 = vmatprep.subr.bf16.mxu0 0
      %1905 = vmatpush1.bf16.msra.mxu0 0
      %1906 = vmatprep.subr.bf16.mxu0 0
      %1907 = vmatpush1.bf16.msra.mxu0 0
      %1908 = vmatprep.subr.bf16.mxu0 0
      %1909 = vmatpush1.bf16.msra.mxu0 0
      %1910 = vmatprep.subr.bf16.mxu0 0
      %1911 = vmatpush1.bf16.msra.mxu0 0
      %1912 = vmatprep.subr.bf16.mxu0 0
      %1913 = vmatpush1.bf16.msra.mxu0 0
      %1914 = vmatprep.subr.bf16.mxu0 0
      %1915 = vmatpush1.bf16.msra.mxu0 0
      %1916 = vmatprep.subr.bf16.mxu0 0
      %1917 = vmatpush1.bf16.msra.mxu0 0
      %1918 = vmatprep.subr.bf16.mxu0 0
      %1919 = vmatpush1.bf16.msra.mxu0 0
      %1920 = vmatprep.subr.bf16.mxu0 0
      %1921 = vmatpush1.bf16.msra.mxu0 0
      %1922 = vmatprep.subr.bf16.mxu0 0
      %1923 = vmatpush1.bf16.msra.mxu0 0
      %1924 = vmatprep.subr.bf16.mxu0 0
      %1925 = vmatpush1.bf16.msra.mxu0 0
      %1926 = vmatprep.subr.bf16.mxu0 0
      %1927 = vmatpush1.bf16.msra.mxu0 0
      %1928 = vmatprep.mubr.bf16.mxu0 0
      %1929 = vmatmul.mubr.bf16.gmra.mrb[0].mxu0 %v1882
      %v1930 = vpop.f32.mrb[0].mxu0
      %v1931 = vadd.f32 0.0, %v1930
      %v1932 = vpop.f32.mrb[0].mxu0
      %v1933 = vpop.f32.mrb[0].mxu0
      %v1934 = vadd.f32 0.0, %v1933
      %v1935 = vpop.f32.mrb[0].mxu0
      %1936 = vmatprep.mubr.bf16.mxu0 0
      %1937 = vmatmul.mubr.bf16.gmra.mrb[0].mxu0 %v1885
      %v1938 = vpop.f32.mrb[0].mxu0
      %v1939 = vadd.f32 0.0, %v1938
      %v1940 = vpop.f32.mrb[0].mxu0
      %v1941 = vpop.f32.mrb[0].mxu0
      %v1942 = vadd.f32 0.0, %v1941
      %v1943 = vpop.f32.mrb[0].mxu0
      %1944 = vmatprep.mubr.bf16.mxu0 0
      %1945 = vmatmul.mubr.bf16.gmra.mrb[0].mxu0 %v1888
      %v1946 = vpop.f32.mrb[0].mxu0
      %v1947 = vadd.f32 0.0, %v1946
      %v1948 = vpop.f32.mrb[0].mxu0
      %v1949 = vpop.f32.mrb[0].mxu0
      %v1950 = vadd.f32 0.0, %v1949
      %v1951 = vpop.f32.mrb[0].mxu0
      %1952 = vmatprep.mubr.bf16.mxu0 0
      %1953 = vmatmul.mubr.bf16.gmra.mrb[0].mxu0 %v1891
      %v1954 = vpop.f32.mrb[0].mxu0
      %v1955 = vadd.f32 0.0, %v1954
      %v1956 = vpop.f32.mrb[0].mxu0
      %v1957 = vpop.f32.mrb[0].mxu0
      %v1958 = vadd.f32 0.0, %v1957
      %v1959 = vpop.f32.mrb[0].mxu0
      %1960 = vdwg.mxu0
      %v1961 = vadd.f32 %v1867, %v1931
      %v1962 = vadd.f32 %v1868, %v1934
      %v1963 = vadd.f32 %v1869, %v1939
      %v1964 = vadd.f32 %v1870, %v1942
      %v1965 = vadd.f32 %v1871, %v1947
      %v1966 = vadd.f32 %v1872, %v1950
      %v1967 = vadd.f32 %v1873, %v1955
      %v1968 = vadd.f32 %v1874, %v1958
      %v1969 = vpack.c.bf16 %v1264, %v1261
      %v1970 = vpack.c.bf16 %v1272, %v1269
      %v1971 = vpack.c.bf16 %v1280, %v1277
      %v1972 = vpack.c.bf16 %v1288, %v1285
      %s1973 = scalar_lea.vmem %s2, 14
      %v1974 = vld [vmem:[%s1973] sm:$0x3]
      %v1976 = vsel %vm1334, %v1969, 0
      %v1979 = vsel %vm1334, %v1970, 0
      %v1982 = vsel %vm1334, %v1971, 0
      %v1985 = vsel %vm1334, %v1972, 0
      %v1988 = vand.u32 %v1974, %v1350
      %1990 = vmatprep.subr.bf16.mxu0 0
      %1991 = vmatpush1.bf16.msra.mxu0 %v1988
      %1992 = vmatprep.subr.bf16.mxu0 0
      %1993 = vmatpush1.bf16.msra.mxu0 0
      %1994 = vmatprep.subr.bf16.mxu0 0
      %1995 = vmatpush1.bf16.msra.mxu0 0
      %1996 = vmatprep.subr.bf16.mxu0 0
      %1997 = vmatpush1.bf16.msra.mxu0 0
      %1998 = vmatprep.subr.bf16.mxu0 0
      %1999 = vmatpush1.bf16.msra.mxu0 0
      %2000 = vmatprep.subr.bf16.mxu0 0
      %2001 = vmatpush1.bf16.msra.mxu0 0
      %2002 = vmatprep.subr.bf16.mxu0 0
      %2003 = vmatpush1.bf16.msra.mxu0 0
      %2004 = vmatprep.subr.bf16.mxu0 0
      %2005 = vmatpush1.bf16.msra.mxu0 0
      %2006 = vmatprep.subr.bf16.mxu0 0
      %2007 = vmatpush1.bf16.msra.mxu0 0
      %2008 = vmatprep.subr.bf16.mxu0 0
      %2009 = vmatpush1.bf16.msra.mxu0 0
      %2010 = vmatprep.subr.bf16.mxu0 0
      %2011 = vmatpush1.bf16.msra.mxu0 0
      %2012 = vmatprep.subr.bf16.mxu0 0
      %2013 = vmatpush1.bf16.msra.mxu0 0
      %2014 = vmatprep.subr.bf16.mxu0 0
      %2015 = vmatpush1.bf16.msra.mxu0 0
      %2016 = vmatprep.subr.bf16.mxu0 0
      %2017 = vmatpush1.bf16.msra.mxu0 0
      %2018 = vmatprep.subr.bf16.mxu0 0
      %2019 = vmatpush1.bf16.msra.mxu0 0
      %2020 = vmatprep.subr.bf16.mxu0 0
      %2021 = vmatpush1.bf16.msra.mxu0 0
      %2022 = vmatprep.mubr.bf16.mxu0 0
      %2023 = vmatmul.mubr.bf16.gmra.mrb[0].mxu0 %v1976
      %v2024 = vpop.f32.mrb[0].mxu0
      %v2025 = vadd.f32 0.0, %v2024
      %v2026 = vpop.f32.mrb[0].mxu0
      %v2027 = vpop.f32.mrb[0].mxu0
      %v2028 = vadd.f32 0.0, %v2027
      %v2029 = vpop.f32.mrb[0].mxu0
      %2030 = vmatprep.mubr.bf16.mxu0 0
      %2031 = vmatmul.mubr.bf16.gmra.mrb[0].mxu0 %v1979
      %v2032 = vpop.f32.mrb[0].mxu0
      %v2033 = vadd.f32 0.0, %v2032
      %v2034 = vpop.f32.mrb[0].mxu0
      %v2035 = vpop.f32.mrb[0].mxu0
      %v2036 = vadd.f32 0.0, %v2035
      %v2037 = vpop.f32.mrb[0].mxu0
      %2038 = vmatprep.mubr.bf16.mxu0 0
      %2039 = vmatmul.mubr.bf16.gmra.mrb[0].mxu0 %v1982
      %v2040 = vpop.f32.mrb[0].mxu0
      %v2041 = vadd.f32 0.0, %v2040
      %v2042 = vpop.f32.mrb[0].mxu0
      %v2043 = vpop.f32.mrb[0].mxu0
      %v2044 = vadd.f32 0.0, %v2043
      %v2045 = vpop.f32.mrb[0].mxu0
      %2046 = vmatprep.mubr.bf16.mxu0 0
      %2047 = vmatmul.mubr.bf16.gmra.mrb[0].mxu0 %v1985
      %v2048 = vpop.f32.mrb[0].mxu0
      %v2049 = vadd.f32 0.0, %v2048
      %v2050 = vpop.f32.mrb[0].mxu0
      %v2051 = vpop.f32.mrb[0].mxu0
      %v2052 = vadd.f32 0.0, %v2051
      %v2053 = vpop.f32.mrb[0].mxu0
      %2054 = vdwg.mxu0
      %v2055 = vadd.f32 %v1961, %v2025
      %v2056 = vadd.f32 %v1962, %v2028
      %v2057 = vadd.f32 %v1963, %v2033
      %v2058 = vadd.f32 %v1964, %v2036
      %v2059 = vadd.f32 %v1965, %v2041
      %v2060 = vadd.f32 %v1966, %v2044
      %v2061 = vadd.f32 %v1967, %v2049
      %v2062 = vadd.f32 %v1968, %v2052
      %v2063 = vpack.c.bf16 %v1296, %v1293
      %v2064 = vpack.c.bf16 %v1304, %v1301
      %v2065 = vpack.c.bf16 %v1312, %v1309
      %v2066 = vpack.c.bf16 %v1320, %v1317
      %s2067 = scalar_lea.vmem %s2, 16
      %v2068 = vld [vmem:[%s2067] sm:$0x3]
      %v2070 = vsel %vm1334, %v2063, 0
      %v2073 = vsel %vm1334, %v2064, 0
      %v2076 = vsel %vm1334, %v2065, 0
      %v2079 = vsel %vm1334, %v2066, 0
      %v2082 = vand.u32 %v2068, %v1350
      %2084 = vmatprep.subr.bf16.mxu0 0
      %2085 = vmatpush1.bf16.msra.mxu0 %v2082
      %2086 = vmatprep.subr.bf16.mxu0 0
      %2087 = vmatpush1.bf16.msra.mxu0 0
      %2088 = vmatprep.subr.bf16.mxu0 0
      %2089 = vmatpush1.bf16.msra.mxu0 0
      %2090 = vmatprep.subr.bf16.mxu0 0
      %2091 = vmatpush1.bf16.msra.mxu0 0
      %2092 = vmatprep.subr.bf16.mxu0 0
      %2093 = vmatpush1.bf16.msra.mxu0 0
      %2094 = vmatprep.subr.bf16.mxu0 0
      %2095 = vmatpush1.bf16.msra.mxu0 0
      %2096 = vmatprep.subr.bf16.mxu0 0
      %2097 = vmatpush1.bf16.msra.mxu0 0
      %2098 = vmatprep.subr.bf16.mxu0 0
      %2099 = vmatpush1.bf16.msra.mxu0 0
      %2100 = vmatprep.subr.bf16.mxu0 0
      %2101 = vmatpush1.bf16.msra.mxu0 0
      %2102 = vmatprep.subr.bf16.mxu0 0
      %2103 = vmatpush1.bf16.msra.mxu0 0
      %2104 = vmatprep.subr.bf16.mxu0 0
      %2105 = vmatpush1.bf16.msra.mxu0 0
      %2106 = vmatprep.subr.bf16.mxu0 0
      %2107 = vmatpush1.bf16.msra.mxu0 0
      %2108 = vmatprep.subr.bf16.mxu0 0
      %2109 = vmatpush1.bf16.msra.mxu0 0
      %2110 = vmatprep.subr.bf16.mxu0 0
      %2111 = vmatpush1.bf16.msra.mxu0 0
      %2112 = vmatprep.subr.bf16.mxu0 0
      %2113 = vmatpush1.bf16.msra.mxu0 0
      %2114 = vmatprep.subr.bf16.mxu0 0
      %2115 = vmatpush1.bf16.msra.mxu0 0
      %2116 = vmatprep.mubr.bf16.mxu0 0
      %2117 = vmatmul.mubr.bf16.gmra.mrb[0].mxu0 %v2070
      %v2118 = vpop.f32.mrb[0].mxu0
      %v2119 = vadd.f32 0.0, %v2118
      %v2120 = vpop.f32.mrb[0].mxu0
      %v2121 = vpop.f32.mrb[0].mxu0
      %v2122 = vadd.f32 0.0, %v2121
      %v2123 = vpop.f32.mrb[0].mxu0
      %2124 = vmatprep.mubr.bf16.mxu0 0
      %2125 = vmatmul.mubr.bf16.gmra.mrb[0].mxu0 %v2073
      %v2126 = vpop.f32.mrb[0].mxu0
      %v2127 = vadd.f32 0.0, %v2126
      %v2128 = vpop.f32.mrb[0].mxu0
      %v2129 = vpop.f32.mrb[0].mxu0
      %v2130 = vadd.f32 0.0, %v2129
      %v2131 = vpop.f32.mrb[0].mxu0
      %2132 = vmatprep.mubr.bf16.mxu0 0
      %2133 = vmatmul.mubr.bf16.gmra.mrb[0].mxu0 %v2076
      %v2134 = vpop.f32.mrb[0].mxu0
      %v2135 = vadd.f32 0.0, %v2134
      %v2136 = vpop.f32.mrb[0].mxu0
      %v2137 = vpop.f32.mrb[0].mxu0
      %v2138 = vadd.f32 0.0, %v2137
      %v2139 = vpop.f32.mrb[0].mxu0
      %2140 = vmatprep.mubr.bf16.mxu0 0
      %2141 = vmatmul.mubr.bf16.gmra.mrb[0].mxu0 %v2079
      %v2142 = vpop.f32.mrb[0].mxu0
      %v2143 = vadd.f32 0.0, %v2142
      %v2144 = vpop.f32.mrb[0].mxu0
      %v2145 = vpop.f32.mrb[0].mxu0
      %v2146 = vadd.f32 0.0, %v2145
      %v2147 = vpop.f32.mrb[0].mxu0
      %2148 = vdwg.mxu0
      %v2149 = vadd.f32 %v2055, %v2119
      %v2150 = vadd.f32 %v2056, %v2122
      %v2151 = vadd.f32 %v2057, %v2127
      %v2152 = vadd.f32 %v2058, %v2130
      %v2153 = vadd.f32 %v2059, %v2135
      %v2154 = vadd.f32 %v2060, %v2138
      %v2155 = vadd.f32 %v2061, %v2143
      %v2156 = vadd.f32 %v2062, %v2146
      %v2157 = vld [vmem:[%s3] sm:$0x1]
      %v2159 = vlaneseq
      %v2160 = vshrl.u32 %v2159, 7
      %v2161 = vsub.s32 0, %v2160
      %v2162 = vrot.slane %v2157, %v2161
      %v2164 = vadd.f32 %v2149, %v2162
      %v2165 = vadd.f32 %v2150, %v2162
      %v2166 = vadd.f32 %v2151, %v2162
      %v2167 = vadd.f32 %v2152, %v2162
      %v2168 = vadd.f32 %v2153, %v2162
      %v2169 = vadd.f32 %v2154, %v2162
      %v2170 = vadd.f32 %v2155, %v2162
      %v2171 = vadd.f32 %v2156, %v2162
      %v2172 = vmax.f32 %v2164, 0.0
      %v2173 = vmax.f32 %v2165, 0.0
      %v2174 = vmax.f32 %v2166, 0.0
      %v2175 = vmax.f32 %v2167, 0.0
      %v2176 = vmax.f32 %v2168, 0.0
      %v2177 = vmax.f32 %v2169, 0.0
      %v2178 = vmax.f32 %v2170, 0.0
      %v2179 = vmax.f32 %v2171, 0.0
      %v2180 = vpack.c.bf16 %v2173, %v2172
      %v2181 = vpack.c.bf16 %v2175, %v2174
      %v2182 = vpack.c.bf16 %v2177, %v2176
      %v2183 = vpack.c.bf16 %v2179, %v2178
      %v2184 = vld [vmem:[%s4] sm:$0xf]
      %v2185 = vld [vmem:[%s4 + $0x4] sm:$0xf]
      %v2186 = vld [vmem:[%s4 + $0x8] sm:$0xf]
      %v2187 = vld [vmem:[%s4 + $0xc] sm:$0xf]
      %v2188 = vld [vmem:[%s4 + $0x10] sm:$0xf]
      %v2189 = vld [vmem:[%s4 + $0x14] sm:$0xf]
      %v2190 = vld [vmem:[%s4 + $0x18] sm:$0xf]
      %v2191 = vld [vmem:[%s4 + $0x1c] sm:$0xf]
      %v2192 = vld [vmem:[%s4 + $0x20] sm:$0xf]
      %v2193 = vld [vmem:[%s4 + $0x24] sm:$0xf]
      %v2194 = vld [vmem:[%s4 + $0x28] sm:$0xf]
      %v2195 = vld [vmem:[%s4 + $0x2c] sm:$0xf]
      %v2196 = vld [vmem:[%s4 + $0x30] sm:$0xf]
      %v2197 = vld [vmem:[%s4 + $0x34] sm:$0xf]
      %v2198 = vld [vmem:[%s4 + $0x38] sm:$0xf]
      %v2199 = vld [vmem:[%s4 + $0x3c] sm:$0xf]
      %v2200 = vld [vmem:[%s4 + $0x40] sm:$0xf]
      %v2201 = vld [vmem:[%s4 + $0x44] sm:$0xf]
      %v2220 = vunpack.c.l.b16 %v2184
      %v2221 = vunpack.c.l.b16 %v2185
      %v2222 = vunpack.c.l.b16 %v2186
      %v2223 = vunpack.c.l.b16 %v2187
      %v2224 = vunpack.c.l.b16 %v2188
      %v2225 = vunpack.c.l.b16 %v2189
      %v2226 = vunpack.c.l.b16 %v2190
      %v2227 = vunpack.c.l.b16 %v2191
      %v2228 = vunpack.c.l.b16 %v2192
      %v2229 = vunpack.c.l.b16 %v2193
      %v2230 = vunpack.c.l.b16 %v2194
      %v2231 = vunpack.c.l.b16 %v2195
      %v2232 = vunpack.c.l.b16 %v2196
      %v2233 = vunpack.c.l.b16 %v2197
      %v2234 = vunpack.c.l.b16 %v2198
      %v2235 = vunpack.c.l.b16 %v2199
      %v2236 = vunpack.c.l.b16 %v2200
      %v2237 = vunpack.c.l.b16 %v2201
      %v2238 = vpack.c.b16 %v2221, %v2220
      %v2239 = vpack.c.b16 %v2223, %v2222
      %v2240 = vpack.c.b16 %v2225, %v2224
      %v2241 = vpack.c.b16 %v2227, %v2226
      %v2242 = vpack.c.b16 %v2229, %v2228
      %v2243 = vpack.c.b16 %v2231, %v2230
      %v2244 = vpack.c.b16 %v2233, %v2232
      %v2245 = vpack.c.b16 %v2235, %v2234
      %v2246 = vpack.c.b16 %v2237, %v2236
      %vm2247 = vcmask 523264
      %v2249 = vsel %vm2247, %v2238, 0
      %v2252 = vsel %vm2247, %v2239, 0
      %v2255 = vsel %vm2247, %v2240, 0
      %v2258 = vsel %vm2247, %v2241, 0
      %v2261 = vsel %vm2247, %v2242, 0
      %v2264 = vsel %vm2247, %v2243, 0
      %v2267 = vsel %vm2247, %v2244, 0
      %v2270 = vsel %vm2247, %v2245, 0
      %v2273 = vsel %vm2247, %v2246, 0
      %2275 = vmatprep.subr.bf16.mxu0 0
      %2276 = vmatpush1.bf16.msra.mxu0 %v2180
      %2277 = vmatprep.subr.bf16.mxu0 0
      %2278 = vmatpush1.bf16.msra.mxu0 %v2181
      %2279 = vmatprep.subr.bf16.mxu0 0
      %2280 = vmatpush1.bf16.msra.mxu0 %v2182
      %2281 = vmatprep.subr.bf16.mxu0 0
      %2282 = vmatpush1.bf16.msra.mxu0 %v2183
      %2283 = vmatprep.subr.bf16.mxu0 0
      %2284 = vmatpush1.bf16.msra.mxu0 0
      %2285 = vmatprep.subr.bf16.mxu0 0
      %2286 = vmatpush1.bf16.msra.mxu0 0
      %2287 = vmatprep.subr.bf16.mxu0 0
      %2288 = vmatpush1.bf16.msra.mxu0 0
      %2289 = vmatprep.subr.bf16.mxu0 0
      %2290 = vmatpush1.bf16.msra.mxu0 0
      %2291 = vmatprep.subr.bf16.mxu0 0
      %2292 = vmatpush1.bf16.msra.mxu0 0
      %2293 = vmatprep.subr.bf16.mxu0 0
      %2294 = vmatpush1.bf16.msra.mxu0 0
      %2295 = vmatprep.subr.bf16.mxu0 0
      %2296 = vmatpush1.bf16.msra.mxu0 0
      %2297 = vmatprep.subr.bf16.mxu0 0
      %2298 = vmatpush1.bf16.msra.mxu0 0
      %2299 = vmatprep.subr.bf16.mxu0 0
      %2300 = vmatpush1.bf16.msra.mxu0 0
      %2301 = vmatprep.subr.bf16.mxu0 0
      %2302 = vmatpush1.bf16.msra.mxu0 0
      %2303 = vmatprep.subr.bf16.mxu0 0
      %2304 = vmatpush1.bf16.msra.mxu0 0
      %2305 = vmatprep.subr.bf16.mxu0 0
      %2306 = vmatpush1.bf16.msra.mxu0 0
      %2307 = vmatprep.mubr.bf16.mxu0 0
      %2308 = vmatmul.mubr.bf16.gmra.mrb[0].mxu0 %v2249
      %v2309 = vpop.f32.mrb[0].mxu0
      %v2310 = vadd.f32 0.0, %v2309
      %v2311 = vpop.f32.mrb[0].mxu0
      %v2312 = vpop.f32.mrb[0].mxu0
      %v2313 = vadd.f32 0.0, %v2312
      %v2314 = vpop.f32.mrb[0].mxu0
      %2315 = vmatprep.mubr.bf16.mxu0 0
      %2316 = vmatmul.mubr.bf16.gmra.mrb[0].mxu0 %v2252
      %v2317 = vpop.f32.mrb[0].mxu0
      %v2318 = vadd.f32 0.0, %v2317
      %v2319 = vpop.f32.mrb[0].mxu0
      %v2320 = vpop.f32.mrb[0].mxu0
      %v2321 = vadd.f32 0.0, %v2320
      %v2322 = vpop.f32.mrb[0].mxu0
      %2323 = vmatprep.mubr.bf16.mxu0 0
      %2324 = vmatmul.mubr.bf16.gmra.mrb[0].mxu0 %v2255
      %v2325 = vpop.f32.mrb[0].mxu0
      %v2326 = vadd.f32 0.0, %v2325
      %v2327 = vpop.f32.mrb[0].mxu0
      %v2328 = vpop.f32.mrb[0].mxu0
      %v2329 = vadd.f32 0.0, %v2328
      %v2330 = vpop.f32.mrb[0].mxu0
      %2331 = vmatprep.mubr.bf16.mxu0 0
      %2332 = vmatmul.mubr.bf16.gmra.mrb[0].mxu0 %v2258
      %v2333 = vpop.f32.mrb[0].mxu0
      %v2334 = vadd.f32 0.0, %v2333
      %v2335 = vpop.f32.mrb[0].mxu0
      %v2336 = vpop.f32.mrb[0].mxu0
      %v2337 = vadd.f32 0.0, %v2336
      %v2338 = vpop.f32.mrb[0].mxu0
      %2339 = vmatprep.mubr.bf16.mxu0 0
      %2340 = vmatmul.mubr.bf16.gmra.mrb[0].mxu0 %v2261
      %v2341 = vpop.f32.mrb[0].mxu0
      %v2342 = vadd.f32 0.0, %v2341
      %v2343 = vpop.f32.mrb[0].mxu0
      %v2344 = vpop.f32.mrb[0].mxu0
      %v2345 = vadd.f32 0.0, %v2344
      %v2346 = vpop.f32.mrb[0].mxu0
      %2347 = vmatprep.mubr.bf16.mxu0 0
      %2348 = vmatmul.mubr.bf16.gmra.mrb[0].mxu0 %v2264
      %v2349 = vpop.f32.mrb[0].mxu0
      %v2350 = vadd.f32 0.0, %v2349
      %v2351 = vpop.f32.mrb[0].mxu0
      %v2352 = vpop.f32.mrb[0].mxu0
      %v2353 = vadd.f32 0.0, %v2352
      %v2354 = vpop.f32.mrb[0].mxu0
      %2355 = vmatprep.mubr.bf16.mxu0 0
      %2356 = vmatmul.mubr.bf16.gmra.mrb[0].mxu0 %v2267
      %v2357 = vpop.f32.mrb[0].mxu0
      %v2358 = vadd.f32 0.0, %v2357
      %v2359 = vpop.f32.mrb[0].mxu0
      %v2360 = vpop.f32.mrb[0].mxu0
      %v2361 = vadd.f32 0.0, %v2360
      %v2362 = vpop.f32.mrb[0].mxu0
      %2363 = vmatprep.mubr.bf16.mxu0 0
      %2364 = vmatmul.mubr.bf16.gmra.mrb[0].mxu0 %v2270
      %v2365 = vpop.f32.mrb[0].mxu0
      %v2366 = vadd.f32 0.0, %v2365
      %v2367 = vpop.f32.mrb[0].mxu0
      %v2368 = vpop.f32.mrb[0].mxu0
      %v2369 = vadd.f32 0.0, %v2368
      %v2370 = vpop.f32.mrb[0].mxu0
      %2371 = vmatprep.mubr.bf16.mxu0 0
      %2372 = vmatmul.mubr.bf16.gmra.mrb[0].mxu0 %v2273
      %v2373 = vpop.f32.mrb[0].mxu0
      %v2374 = vadd.f32 0.0, %v2373
      %v2375 = vpop.f32.mrb[0].mxu0
      %v2376 = vpop.f32.mrb[0].mxu0
      %v2377 = vadd.f32 0.0, %v2376
      %v2378 = vpop.f32.mrb[0].mxu0
      %2379 = vdwg.mxu0
      %v2380 = vpack.c.bf16 %v2313, %v2310
      %v2381 = vld [vmem:[%s5] sm:$0xf]
      %v2382 = vpack.c.bf16 %v2321, %v2318
      %s2383 = scalar_lea.vmem %s5, 4
      %v2384 = vld [vmem:[%s2383] sm:$0xf]
      %vm2385 = vcmask 64512
      %v2387 = vsel %vm2385, %v2382, 0
      %vm2389 = vcmask 1043456
      %v2391 = vsel %vm2389, %v2384, 0
      %2393 = vmatprep.subr.bf16.mxu0 0
      %2394 = vmatpush1.bf16.msra.mxu0 %v2391
      %2395 = vmatprep.subr.bf16.mxu0 0
      %2396 = vmatpush1.bf16.msra.mxu0 0
      %2397 = vmatprep.subr.bf16.mxu0 0
      %2398 = vmatpush1.bf16.msra.mxu0 0
      %2399 = vmatprep.subr.bf16.mxu0 0
      %2400 = vmatpush1.bf16.msra.mxu0 0
      %2401 = vmatprep.subr.bf16.mxu0 0
      %2402 = vmatpush1.bf16.msra.mxu0 0
      %2403 = vmatprep.subr.bf16.mxu0 0
      %2404 = vmatpush1.bf16.msra.mxu0 0
      %2405 = vmatprep.subr.bf16.mxu0 0
      %2406 = vmatpush1.bf16.msra.mxu0 0
      %2407 = vmatprep.subr.bf16.mxu0 0
      %2408 = vmatpush1.bf16.msra.mxu0 0
      %2409 = vmatprep.subr.bf16.mxu0 0
      %2410 = vmatpush1.bf16.msra.mxu0 0
      %2411 = vmatprep.subr.bf16.mxu0 0
      %2412 = vmatpush1.bf16.msra.mxu0 0
      %2413 = vmatprep.subr.bf16.mxu0 0
      %2414 = vmatpush1.bf16.msra.mxu0 0
      %2415 = vmatprep.subr.bf16.mxu0 0
      %2416 = vmatpush1.bf16.msra.mxu0 0
      %2417 = vmatprep.subr.bf16.mxu0 0
      %2418 = vmatpush1.bf16.msra.mxu0 0
      %2419 = vmatprep.subr.bf16.mxu0 0
      %2420 = vmatpush1.bf16.msra.mxu0 0
      %2421 = vmatprep.subr.bf16.mxu0 0
      %2422 = vmatpush1.bf16.msra.mxu0 0
      %2423 = vmatprep.subr.bf16.mxu0 0
      %2424 = vmatpush1.bf16.msra.mxu0 0
      %2425 = vmatprep.mubr.bf16.mxu0 0
      %2426 = vmatmul.mubr.bf16.gmra.mrb[0].mxu0 %v2387
      %v2427 = vpop.f32.mrb[0].mxu0
      %v2428 = vadd.f32 0.0, %v2427
      %v2429 = vpop.f32.mrb[0].mxu0
      %v2430 = vpop.f32.mrb[0].mxu0
      %v2431 = vadd.f32 0.0, %v2430
      %v2432 = vpop.f32.mrb[0].mxu0
      %2433 = vdwg.mxu0
      %v2435 = vsel %vm2385, %v2380, 0
      %v2438 = vsel %vm2389, %v2381, 0
      %2440 = vmatprep.subr.bf16.mxu0 0
      %2441 = vmatpush1.bf16.msra.mxu0 %v2438
      %2442 = vmatprep.subr.bf16.mxu0 0
      %2443 = vmatpush1.bf16.msra.mxu0 0
      %2444 = vmatprep.subr.bf16.mxu0 0
      %2445 = vmatpush1.bf16.msra.mxu0 0
      %2446 = vmatprep.subr.bf16.mxu0 0
      %2447 = vmatpush1.bf16.msra.mxu0 0
      %2448 = vmatprep.subr.bf16.mxu0 0
      %2449 = vmatpush1.bf16.msra.mxu0 0
      %2450 = vmatprep.subr.bf16.mxu0 0
      %2451 = vmatpush1.bf16.msra.mxu0 0
      %2452 = vmatprep.subr.bf16.mxu0 0
      %2453 = vmatpush1.bf16.msra.mxu0 0
      %2454 = vmatprep.subr.bf16.mxu0 0
      %2455 = vmatpush1.bf16.msra.mxu0 0
      %2456 = vmatprep.subr.bf16.mxu0 0
      %2457 = vmatpush1.bf16.msra.mxu0 0
      %2458 = vmatprep.subr.bf16.mxu0 0
      %2459 = vmatpush1.bf16.msra.mxu0 0
      %2460 = vmatprep.subr.bf16.mxu0 0
      %2461 = vmatpush1.bf16.msra.mxu0 0
      %2462 = vmatprep.subr.bf16.mxu0 0
      %2463 = vmatpush1.bf16.msra.mxu0 0
      %2464 = vmatprep.subr.bf16.mxu0 0
      %2465 = vmatpush1.bf16.msra.mxu0 0
      %2466 = vmatprep.subr.bf16.mxu0 0
      %2467 = vmatpush1.bf16.msra.mxu0 0
      %2468 = vmatprep.subr.bf16.mxu0 0
      %2469 = vmatpush1.bf16.msra.mxu0 0
      %2470 = vmatprep.subr.bf16.mxu0 0
      %2471 = vmatpush1.bf16.msra.mxu0 0
      %2472 = vmatprep.mubr.bf16.mxu0 0
      %2473 = vmatmul.mubr.bf16.gmra.mrb[0].mxu0 %v2435
      %v2474 = vpop.f32.mrb[0].mxu0
      %v2475 = vadd.f32 %v2428, %v2474
      %v2476 = vpop.f32.mrb[0].mxu0
      %v2477 = vpop.f32.mrb[0].mxu0
      %v2478 = vadd.f32 %v2431, %v2477
      %v2479 = vpop.f32.mrb[0].mxu0
      %2480 = vdwg.mxu0
      %v2481 = vpack.c.bf16 %v2329, %v2326
      %s2482 = scalar_lea.vmem %s5, 8
      %v2483 = vld [vmem:[%s2482] sm:$0xf]
      %v2485 = vsel %vm2385, %v2481, 0
      %v2488 = vsel %vm2389, %v2483, 0
      %2490 = vmatprep.subr.bf16.mxu0 0
      %2491 = vmatpush1.bf16.msra.mxu0 %v2488
      %2492 = vmatprep.subr.bf16.mxu0 0
      %2493 = vmatpush1.bf16.msra.mxu0 0
      %2494 = vmatprep.subr.bf16.mxu0 0
      %2495 = vmatpush1.bf16.msra.mxu0 0
      %2496 = vmatprep.subr.bf16.mxu0 0
      %2497 = vmatpush1.bf16.msra.mxu0 0
      %2498 = vmatprep.subr.bf16.mxu0 0
      %2499 = vmatpush1.bf16.msra.mxu0 0
      %2500 = vmatprep.subr.bf16.mxu0 0
      %2501 = vmatpush1.bf16.msra.mxu0 0
      %2502 = vmatprep.subr.bf16.mxu0 0
      %2503 = vmatpush1.bf16.msra.mxu0 0
      %2504 = vmatprep.subr.bf16.mxu0 0
      %2505 = vmatpush1.bf16.msra.mxu0 0
      %2506 = vmatprep.subr.bf16.mxu0 0
      %2507 = vmatpush1.bf16.msra.mxu0 0
      %2508 = vmatprep.subr.bf16.mxu0 0
      %2509 = vmatpush1.bf16.msra.mxu0 0
      %2510 = vmatprep.subr.bf16.mxu0 0
      %2511 = vmatpush1.bf16.msra.mxu0 0
      %2512 = vmatprep.subr.bf16.mxu0 0
      %2513 = vmatpush1.bf16.msra.mxu0 0
      %2514 = vmatprep.subr.bf16.mxu0 0
      %2515 = vmatpush1.bf16.msra.mxu0 0
      %2516 = vmatprep.subr.bf16.mxu0 0
      %2517 = vmatpush1.bf16.msra.mxu0 0
      %2518 = vmatprep.subr.bf16.mxu0 0
      %2519 = vmatpush1.bf16.msra.mxu0 0
      %2520 = vmatprep.subr.bf16.mxu0 0
      %2521 = vmatpush1.bf16.msra.mxu0 0
      %2522 = vmatprep.mubr.bf16.mxu0 0
      %2523 = vmatmul.mubr.bf16.gmra.mrb[0].mxu0 %v2485
      %v2524 = vpop.f32.mrb[0].mxu0
      %v2525 = vadd.f32 0.0, %v2524
      %v2526 = vpop.f32.mrb[0].mxu0
      %v2527 = vpop.f32.mrb[0].mxu0
      %v2528 = vadd.f32 0.0, %v2527
      %v2529 = vpop.f32.mrb[0].mxu0
      %2530 = vdwg.mxu0
      %v2531 = vadd.f32 %v2475, %v2525
      %v2532 = vadd.f32 %v2478, %v2528
      %v2533 = vpack.c.bf16 %v2337, %v2334
      %s2534 = scalar_lea.vmem %s5, 12
      %v2535 = vld [vmem:[%s2534] sm:$0xf]
      %v2537 = vsel %vm2385, %v2533, 0
      %v2540 = vsel %vm2389, %v2535, 0
      %2542 = vmatprep.subr.bf16.mxu0 0
      %2543 = vmatpush1.bf16.msra.mxu0 %v2540
      %2544 = vmatprep.subr.bf16.mxu0 0
      %2545 = vmatpush1.bf16.msra.mxu0 0
      %2546 = vmatprep.subr.bf16.mxu0 0
      %2547 = vmatpush1.bf16.msra.mxu0 0
      %2548 = vmatprep.subr.bf16.mxu0 0
      %2549 = vmatpush1.bf16.msra.mxu0 0
      %2550 = vmatprep.subr.bf16.mxu0 0
      %2551 = vmatpush1.bf16.msra.mxu0 0
      %2552 = vmatprep.subr.bf16.mxu0 0
      %2553 = vmatpush1.bf16.msra.mxu0 0
      %2554 = vmatprep.subr.bf16.mxu0 0
      %2555 = vmatpush1.bf16.msra.mxu0 0
      %2556 = vmatprep.subr.bf16.mxu0 0
      %2557 = vmatpush1.bf16.msra.mxu0 0
      %2558 = vmatprep.subr.bf16.mxu0 0
      %2559 = vmatpush1.bf16.msra.mxu0 0
      %2560 = vmatprep.subr.bf16.mxu0 0
      %2561 = vmatpush1.bf16.msra.mxu0 0
      %2562 = vmatprep.subr.bf16.mxu0 0
      %2563 = vmatpush1.bf16.msra.mxu0 0
      %2564 = vmatprep.subr.bf16.mxu0 0
      %2565 = vmatpush1.bf16.msra.mxu0 0
      %2566 = vmatprep.subr.bf16.mxu0 0
      %2567 = vmatpush1.bf16.msra.mxu0 0
      %2568 = vmatprep.subr.bf16.mxu0 0
      %2569 = vmatpush1.bf16.msra.mxu0 0
      %2570 = vmatprep.subr.bf16.mxu0 0
      %2571 = vmatpush1.bf16.msra.mxu0 0
      %2572 = vmatprep.subr.bf16.mxu0 0
      %2573 = vmatpush1.bf16.msra.mxu0 0
      %2574 = vmatprep.mubr.bf16.mxu0 0
      %2575 = vmatmul.mubr.bf16.gmra.mrb[0].mxu0 %v2537
      %v2576 = vpop.f32.mrb[0].mxu0
      %v2577 = vadd.f32 0.0, %v2576
      %v2578 = vpop.f32.mrb[0].mxu0
      %v2579 = vpop.f32.mrb[0].mxu0
      %v2580 = vadd.f32 0.0, %v2579
      %v2581 = vpop.f32.mrb[0].mxu0
      %2582 = vdwg.mxu0
      %v2583 = vadd.f32 %v2531, %v2577
      %v2584 = vadd.f32 %v2532, %v2580
      %v2585 = vpack.c.bf16 %v2345, %v2342
      %s2586 = scalar_lea.vmem %s5, 16
      %v2587 = vld [vmem:[%s2586] sm:$0xf]
      %v2589 = vsel %vm2385, %v2585, 0
      %v2592 = vsel %vm2389, %v2587, 0
      %2594 = vmatprep.subr.bf16.mxu0 0
      %2595 = vmatpush1.bf16.msra.mxu0 %v2592
      %2596 = vmatprep.subr.bf16.mxu0 0
      %2597 = vmatpush1.bf16.msra.mxu0 0
      %2598 = vmatprep.subr.bf16.mxu0 0
      %2599 = vmatpush1.bf16.msra.mxu0 0
      %2600 = vmatprep.subr.bf16.mxu0 0
      %2601 = vmatpush1.bf16.msra.mxu0 0
      %2602 = vmatprep.subr.bf16.mxu0 0
      %2603 = vmatpush1.bf16.msra.mxu0 0
      %2604 = vmatprep.subr.bf16.mxu0 0
      %2605 = vmatpush1.bf16.msra.mxu0 0
      %2606 = vmatprep.subr.bf16.mxu0 0
      %2607 = vmatpush1.bf16.msra.mxu0 0
      %2608 = vmatprep.subr.bf16.mxu0 0
      %2609 = vmatpush1.bf16.msra.mxu0 0
      %2610 = vmatprep.subr.bf16.mxu0 0
      %2611 = vmatpush1.bf16.msra.mxu0 0
      %2612 = vmatprep.subr.bf16.mxu0 0
      %2613 = vmatpush1.bf16.msra.mxu0 0
      %2614 = vmatprep.subr.bf16.mxu0 0
      %2615 = vmatpush1.bf16.msra.mxu0 0
      %2616 = vmatprep.subr.bf16.mxu0 0
      %2617 = vmatpush1.bf16.msra.mxu0 0
      %2618 = vmatprep.subr.bf16.mxu0 0
      %2619 = vmatpush1.bf16.msra.mxu0 0
      %2620 = vmatprep.subr.bf16.mxu0 0
      %2621 = vmatpush1.bf16.msra.mxu0 0
      %2622 = vmatprep.subr.bf16.mxu0 0
      %2623 = vmatpush1.bf16.msra.mxu0 0
      %2624 = vmatprep.subr.bf16.mxu0 0
      %2625 = vmatpush1.bf16.msra.mxu0 0
      %2626 = vmatprep.mubr.bf16.mxu0 0
      %2627 = vmatmul.mubr.bf16.gmra.mrb[0].mxu0 %v2589
      %v2628 = vpop.f32.mrb[0].mxu0
      %v2629 = vadd.f32 0.0, %v2628
      %v2630 = vpop.f32.mrb[0].mxu0
      %v2631 = vpop.f32.mrb[0].mxu0
      %v2632 = vadd.f32 0.0, %v2631
      %v2633 = vpop.f32.mrb[0].mxu0
      %2634 = vdwg.mxu0
      %v2635 = vadd.f32 %v2583, %v2629
      %v2636 = vadd.f32 %v2584, %v2632
      %v2637 = vpack.c.bf16 %v2353, %v2350
      %s2638 = scalar_lea.vmem %s5, 20
      %v2639 = vld [vmem:[%s2638] sm:$0xf]
      %v2641 = vsel %vm2385, %v2637, 0
      %v2644 = vsel %vm2389, %v2639, 0
      %2646 = vmatprep.subr.bf16.mxu0 0
      %2647 = vmatpush1.bf16.msra.mxu0 %v2644
      %2648 = vmatprep.subr.bf16.mxu0 0
      %2649 = vmatpush1.bf16.msra.mxu0 0
      %2650 = vmatprep.subr.bf16.mxu0 0
      %2651 = vmatpush1.bf16.msra.mxu0 0
      %2652 = vmatprep.subr.bf16.mxu0 0
      %2653 = vmatpush1.bf16.msra.mxu0 0
      %2654 = vmatprep.subr.bf16.mxu0 0
      %2655 = vmatpush1.bf16.msra.mxu0 0
      %2656 = vmatprep.subr.bf16.mxu0 0
      %2657 = vmatpush1.bf16.msra.mxu0 0
      %2658 = vmatprep.subr.bf16.mxu0 0
      %2659 = vmatpush1.bf16.msra.mxu0 0
      %2660 = vmatprep.subr.bf16.mxu0 0
      %2661 = vmatpush1.bf16.msra.mxu0 0
      %2662 = vmatprep.subr.bf16.mxu0 0
      %2663 = vmatpush1.bf16.msra.mxu0 0
      %2664 = vmatprep.subr.bf16.mxu0 0
      %2665 = vmatpush1.bf16.msra.mxu0 0
      %2666 = vmatprep.subr.bf16.mxu0 0
      %2667 = vmatpush1.bf16.msra.mxu0 0
      %2668 = vmatprep.subr.bf16.mxu0 0
      %2669 = vmatpush1.bf16.msra.mxu0 0
      %2670 = vmatprep.subr.bf16.mxu0 0
      %2671 = vmatpush1.bf16.msra.mxu0 0
      %2672 = vmatprep.subr.bf16.mxu0 0
      %2673 = vmatpush1.bf16.msra.mxu0 0
      %2674 = vmatprep.subr.bf16.mxu0 0
      %2675 = vmatpush1.bf16.msra.mxu0 0
      %2676 = vmatprep.subr.bf16.mxu0 0
      %2677 = vmatpush1.bf16.msra.mxu0 0
      %2678 = vmatprep.mubr.bf16.mxu0 0
      %2679 = vmatmul.mubr.bf16.gmra.mrb[0].mxu0 %v2641
      %v2680 = vpop.f32.mrb[0].mxu0
      %v2681 = vadd.f32 0.0, %v2680
      %v2682 = vpop.f32.mrb[0].mxu0
      %v2683 = vpop.f32.mrb[0].mxu0
      %v2684 = vadd.f32 0.0, %v2683
      %v2685 = vpop.f32.mrb[0].mxu0
      %2686 = vdwg.mxu0
      %v2687 = vadd.f32 %v2635, %v2681
      %v2688 = vadd.f32 %v2636, %v2684
      %v2689 = vpack.c.bf16 %v2361, %v2358
      %s2690 = scalar_lea.vmem %s5, 24
      %v2691 = vld [vmem:[%s2690] sm:$0xf]
      %v2693 = vsel %vm2385, %v2689, 0
      %v2696 = vsel %vm2389, %v2691, 0
      %2698 = vmatprep.subr.bf16.mxu0 0
      %2699 = vmatpush1.bf16.msra.mxu0 %v2696
      %2700 = vmatprep.subr.bf16.mxu0 0
      %2701 = vmatpush1.bf16.msra.mxu0 0
      %2702 = vmatprep.subr.bf16.mxu0 0
      %2703 = vmatpush1.bf16.msra.mxu0 0
      %2704 = vmatprep.subr.bf16.mxu0 0
      %2705 = vmatpush1.bf16.msra.mxu0 0
      %2706 = vmatprep.subr.bf16.mxu0 0
      %2707 = vmatpush1.bf16.msra.mxu0 0
      %2708 = vmatprep.subr.bf16.mxu0 0
      %2709 = vmatpush1.bf16.msra.mxu0 0
      %2710 = vmatprep.subr.bf16.mxu0 0
      %2711 = vmatpush1.bf16.msra.mxu0 0
      %2712 = vmatprep.subr.bf16.mxu0 0
      %2713 = vmatpush1.bf16.msra.mxu0 0
      %2714 = vmatprep.subr.bf16.mxu0 0
      %2715 = vmatpush1.bf16.msra.mxu0 0
      %2716 = vmatprep.subr.bf16.mxu0 0
      %2717 = vmatpush1.bf16.msra.mxu0 0
      %2718 = vmatprep.subr.bf16.mxu0 0
      %2719 = vmatpush1.bf16.msra.mxu0 0
      %2720 = vmatprep.subr.bf16.mxu0 0
      %2721 = vmatpush1.bf16.msra.mxu0 0
      %2722 = vmatprep.subr.bf16.mxu0 0
      %2723 = vmatpush1.bf16.msra.mxu0 0
      %2724 = vmatprep.subr.bf16.mxu0 0
      %2725 = vmatpush1.bf16.msra.mxu0 0
      %2726 = vmatprep.subr.bf16.mxu0 0
      %2727 = vmatpush1.bf16.msra.mxu0 0
      %2728 = vmatprep.subr.bf16.mxu0 0
      %2729 = vmatpush1.bf16.msra.mxu0 0
      %2730 = vmatprep.mubr.bf16.mxu0 0
      %2731 = vmatmul.mubr.bf16.gmra.mrb[0].mxu0 %v2693
      %v2732 = vpop.f32.mrb[0].mxu0
      %v2733 = vadd.f32 0.0, %v2732
      %v2734 = vpop.f32.mrb[0].mxu0
      %v2735 = vpop.f32.mrb[0].mxu0
      %v2736 = vadd.f32 0.0, %v2735
      %v2737 = vpop.f32.mrb[0].mxu0
      %2738 = vdwg.mxu0
      %v2739 = vadd.f32 %v2687, %v2733
      %v2740 = vadd.f32 %v2688, %v2736
      %v2741 = vpack.c.bf16 %v2369, %v2366
      %s2742 = scalar_lea.vmem %s5, 28
      %v2743 = vld [vmem:[%s2742] sm:$0xf]
      %v2745 = vsel %vm2385, %v2741, 0
      %v2748 = vsel %vm2389, %v2743, 0
      %2750 = vmatprep.subr.bf16.mxu0 0
      %2751 = vmatpush1.bf16.msra.mxu0 %v2748
      %2752 = vmatprep.subr.bf16.mxu0 0
      %2753 = vmatpush1.bf16.msra.mxu0 0
      %2754 = vmatprep.subr.bf16.mxu0 0
      %2755 = vmatpush1.bf16.msra.mxu0 0
      %2756 = vmatprep.subr.bf16.mxu0 0
      %2757 = vmatpush1.bf16.msra.mxu0 0
      %2758 = vmatprep.subr.bf16.mxu0 0
      %2759 = vmatpush1.bf16.msra.mxu0 0
      %2760 = vmatprep.subr.bf16.mxu0 0
      %2761 = vmatpush1.bf16.msra.mxu0 0
      %2762 = vmatprep.subr.bf16.mxu0 0
      %2763 = vmatpush1.bf16.msra.mxu0 0
      %2764 = vmatprep.subr.bf16.mxu0 0
      %2765 = vmatpush1.bf16.msra.mxu0 0
      %2766 = vmatprep.subr.bf16.mxu0 0
      %2767 = vmatpush1.bf16.msra.mxu0 0
      %2768 = vmatprep.subr.bf16.mxu0 0
      %2769 = vmatpush1.bf16.msra.mxu0 0
      %2770 = vmatprep.subr.bf16.mxu0 0
      %2771 = vmatpush1.bf16.msra.mxu0 0
      %2772 = vmatprep.subr.bf16.mxu0 0
      %2773 = vmatpush1.bf16.msra.mxu0 0
      %2774 = vmatprep.subr.bf16.mxu0 0
      %2775 = vmatpush1.bf16.msra.mxu0 0
      %2776 = vmatprep.subr.bf16.mxu0 0
      %2777 = vmatpush1.bf16.msra.mxu0 0
      %2778 = vmatprep.subr.bf16.mxu0 0
      %2779 = vmatpush1.bf16.msra.mxu0 0
      %2780 = vmatprep.subr.bf16.mxu0 0
      %2781 = vmatpush1.bf16.msra.mxu0 0
      %2782 = vmatprep.mubr.bf16.mxu0 0
      %2783 = vmatmul.mubr.bf16.gmra.mrb[0].mxu0 %v2745
      %v2784 = vpop.f32.mrb[0].mxu0
      %v2785 = vadd.f32 0.0, %v2784
      %v2786 = vpop.f32.mrb[0].mxu0
      %v2787 = vpop.f32.mrb[0].mxu0
      %v2788 = vadd.f32 0.0, %v2787
      %v2789 = vpop.f32.mrb[0].mxu0
      %2790 = vdwg.mxu0
      %v2791 = vadd.f32 %v2739, %v2785
      %v2792 = vadd.f32 %v2740, %v2788
      %v2793 = vpack.c.bf16 %v2377, %v2374
      %s2794 = scalar_lea.vmem %s5, 32
      %v2795 = vld [vmem:[%s2794] sm:$0xf]
      %v2797 = vsel %vm2385, %v2793, 0
      %v2800 = vsel %vm2389, %v2795, 0
      %2802 = vmatprep.subr.bf16.mxu0 0
      %2803 = vmatpush1.bf16.msra.mxu0 %v2800
      %2804 = vmatprep.subr.bf16.mxu0 0
      %2805 = vmatpush1.bf16.msra.mxu0 0
      %2806 = vmatprep.subr.bf16.mxu0 0
      %2807 = vmatpush1.bf16.msra.mxu0 0
      %2808 = vmatprep.subr.bf16.mxu0 0
      %2809 = vmatpush1.bf16.msra.mxu0 0
      %2810 = vmatprep.subr.bf16.mxu0 0
      %2811 = vmatpush1.bf16.msra.mxu0 0
      %2812 = vmatprep.subr.bf16.mxu0 0
      %2813 = vmatpush1.bf16.msra.mxu0 0
      %2814 = vmatprep.subr.bf16.mxu0 0
      %2815 = vmatpush1.bf16.msra.mxu0 0
      %2816 = vmatprep.subr.bf16.mxu0 0
      %2817 = vmatpush1.bf16.msra.mxu0 0
      %2818 = vmatprep.subr.bf16.mxu0 0
      %2819 = vmatpush1.bf16.msra.mxu0 0
      %2820 = vmatprep.subr.bf16.mxu0 0
      %2821 = vmatpush1.bf16.msra.mxu0 0
      %2822 = vmatprep.subr.bf16.mxu0 0
      %2823 = vmatpush1.bf16.msra.mxu0 0
      %2824 = vmatprep.subr.bf16.mxu0 0
      %2825 = vmatpush1.bf16.msra.mxu0 0
      %2826 = vmatprep.subr.bf16.mxu0 0
      %2827 = vmatpush1.bf16.msra.mxu0 0
      %2828 = vmatprep.subr.bf16.mxu0 0
      %2829 = vmatpush1.bf16.msra.mxu0 0
      %2830 = vmatprep.subr.bf16.mxu0 0
      %2831 = vmatpush1.bf16.msra.mxu0 0
      %2832 = vmatprep.subr.bf16.mxu0 0
      %2833 = vmatpush1.bf16.msra.mxu0 0
      %2834 = vmatprep.mubr.bf16.mxu0 0
      %2835 = vmatmul.mubr.bf16.gmra.mrb[0].mxu0 %v2797
      %v2836 = vpop.f32.mrb[0].mxu0
      %v2837 = vadd.f32 0.0, %v2836
      %v2838 = vpop.f32.mrb[0].mxu0
      %v2839 = vpop.f32.mrb[0].mxu0
      %v2840 = vadd.f32 0.0, %v2839
      %v2841 = vpop.f32.mrb[0].mxu0
      %2842 = vdwg.mxu0
      %v2843 = vadd.f32 %v2791, %v2837
      %v2844 = vadd.f32 %v2792, %v2840
      %v2845 = vld [vmem:[%s6] sm:$0x1]
      %v2847 = vlaneseq
      %v2848 = vshrl.u32 %v2847, 7
      %v2849 = vsub.s32 0, %v2848
      %v2850 = vrot.slane %v2845, %v2849
      %v2852 = vadd.f32 %v2843, %v2850
      %v2853 = vadd.f32 %v2844, %v2850
      %v2854 = vmax.f32 %v2852, 0.0
      %v2855 = vmax.f32 %v2853, 0.0
      %v2856 = vpack.c.bf16 %v2855, %v2854
      %v2857 = vld [vmem:[%s7] sm:$0xf]
      %v2858 = vld [vmem:[%s7 + $0x4] sm:$0xf]
      %v2859 = vld [vmem:[%s7 + $0x8] sm:$0xf]
      %v2860 = vld [vmem:[%s7 + $0xc] sm:$0xf]
      %v2861 = vld [vmem:[%s7 + $0x10] sm:$0xf]
      %v2862 = vld [vmem:[%s7 + $0x14] sm:$0xf]
      %v2863 = vld [vmem:[%s7 + $0x18] sm:$0xf]
      %v2864 = vld [vmem:[%s7 + $0x1c] sm:$0xf]
      %v2865 = vld [vmem:[%s7 + $0x20] sm:$0xf]
      %v2866 = vld [vmem:[%s7 + $0x24] sm:$0xf]
      %v2867 = vld [vmem:[%s7 + $0x28] sm:$0xf]
      %v2868 = vld [vmem:[%s7 + $0x2c] sm:$0xf]
      %v2869 = vld [vmem:[%s7 + $0x30] sm:$0xf]
      %v2870 = vld [vmem:[%s7 + $0x34] sm:$0xf]
      %v2871 = vld [vmem:[%s7 + $0x38] sm:$0xf]
      %v2872 = vld [vmem:[%s7 + $0x3c] sm:$0xf]
      %v2873 = vld [vmem:[%s7 + $0x40] sm:$0xf]
      %v2874 = vld [vmem:[%s7 + $0x44] sm:$0xf]
      %v2875 = vld [vmem:[%s7 + $0x48] sm:$0xf]
      %v2876 = vld [vmem:[%s7 + $0x4c] sm:$0xf]
      %v2877 = vld [vmem:[%s7 + $0x50] sm:$0xf]
      %v2878 = vld [vmem:[%s7 + $0x54] sm:$0xf]
      %v2879 = vld [vmem:[%s7 + $0x58] sm:$0xf]
      %v2880 = vld [vmem:[%s7 + $0x5c] sm:$0xf]
      %v2881 = vld [vmem:[%s7 + $0x60] sm:$0xf]
      %v2882 = vld [vmem:[%s7 + $0x64] sm:$0xf]
      %v2883 = vld [vmem:[%s7 + $0x68] sm:$0xf]
      %v2884 = vld [vmem:[%s7 + $0x6c] sm:$0xf]
      %v2885 = vld [vmem:[%s7 + $0x70] sm:$0xf]
      %v2886 = vld [vmem:[%s7 + $0x74] sm:$0xf]
      %v2887 = vld [vmem:[%s7 + $0x78] sm:$0xf]
      %v2888 = vld [vmem:[%s7 + $0x7c] sm:$0xf]
      %v2889 = vld [vmem:[%s7 + $0x80] sm:$0xf]
      %v2890 = vld [vmem:[%s7 + $0x84] sm:$0xf]
      %v2891 = vld [vmem:[%s7 + $0x88] sm:$0xf]
      %v2892 = vld [vmem:[%s7 + $0x8c] sm:$0xf]
      %v2893 = vld [vmem:[%s7 + $0x90] sm:$0xf]
      %v2894 = vld [vmem:[%s7 + $0x94] sm:$0xf]
      %v2895 = vld [vmem:[%s7 + $0x98] sm:$0xf]
      %v2896 = vld [vmem:[%s7 + $0x9c] sm:$0xf]
      %v2897 = vld [vmem:[%s7 + $0xa0] sm:$0xf]
      %v2898 = vld [vmem:[%s7 + $0xa4] sm:$0xf]
      %v2899 = vld [vmem:[%s7 + $0xa8] sm:$0xf]
      %v2900 = vld [vmem:[%s7 + $0xac] sm:$0xf]
      %v2901 = vld [vmem:[%s7 + $0xb0] sm:$0xf]
      %v2902 = vld [vmem:[%s7 + $0xb4] sm:$0xf]
      %v2903 = vld [vmem:[%s7 + $0xb8] sm:$0xf]
      %v2904 = vld [vmem:[%s7 + $0xbc] sm:$0xf]
      %v2905 = vld [vmem:[%s7 + $0xc0] sm:$0xf]
      %v2906 = vld [vmem:[%s7 + $0xc4] sm:$0xf]
      %v2907 = vld [vmem:[%s7 + $0xc8] sm:$0xf]
      %v2908 = vld [vmem:[%s7 + $0xcc] sm:$0xf]
      %v2909 = vld [vmem:[%s7 + $0xd0] sm:$0xf]
      %v2910 = vld [vmem:[%s7 + $0xd4] sm:$0xf]
      %v2911 = vld [vmem:[%s7 + $0xd8] sm:$0xf]
      %v2912 = vld [vmem:[%s7 + $0xdc] sm:$0xf]
      %v2913 = vld [vmem:[%s7 + $0xe0] sm:$0xf]
      %v2914 = vld [vmem:[%s7 + $0xe4] sm:$0xf]
      %v2915 = vld [vmem:[%s7 + $0xe8] sm:$0xf]
      %v2916 = vld [vmem:[%s7 + $0xec] sm:$0xf]
      %v2917 = vld [vmem:[%s7 + $0xf0] sm:$0xf]
      %v2918 = vld [vmem:[%s7 + $0xf4] sm:$0xf]
      %v2919 = vld [vmem:[%s7 + $0xf8] sm:$0xf]
      %v2920 = vld [vmem:[%s7 + $0xfc] sm:$0xf]
      %v2921 = vld [vmem:[%s7 + $0x100] sm:$0xf]
      %v2922 = vld [vmem:[%s7 + $0x104] sm:$0xf]
      %v2923 = vld [vmem:[%s7 + $0x108] sm:$0xf]
      %v2924 = vld [vmem:[%s7 + $0x10c] sm:$0xf]
      %v2925 = vld [vmem:[%s7 + $0x110] sm:$0xf]
      %v2926 = vld [vmem:[%s7 + $0x114] sm:$0xf]
      %v2927 = vld [vmem:[%s7 + $0x118] sm:$0xf]
      %v2928 = vld [vmem:[%s7 + $0x11c] sm:$0xf]
      %v3001 = vunpack.c.l.b16 %v2857
      %v3002 = vunpack.c.l.b16 %v2858
      %v3003 = vunpack.c.l.b16 %v2859
      %v3004 = vunpack.c.l.b16 %v2860
      %v3005 = vunpack.c.l.b16 %v2861
      %v3006 = vunpack.c.l.b16 %v2862
      %v3007 = vunpack.c.l.b16 %v2863
      %v3008 = vunpack.c.l.b16 %v2864
      %v3009 = vunpack.c.l.b16 %v2865
      %v3010 = vunpack.c.l.b16 %v2866
      %v3011 = vunpack.c.l.b16 %v2867
      %v3012 = vunpack.c.l.b16 %v2868
      %v3013 = vunpack.c.l.b16 %v2869
      %v3014 = vunpack.c.l.b16 %v2870
      %v3015 = vunpack.c.l.b16 %v2871
      %v3016 = vunpack.c.l.b16 %v2872
      %v3017 = vunpack.c.l.b16 %v2873
      %v3018 = vunpack.c.l.b16 %v2874
      %v3019 = vunpack.c.l.b16 %v2875
      %v3020 = vunpack.c.l.b16 %v2876
      %v3021 = vunpack.c.l.b16 %v2877
      %v3022 = vunpack.c.l.b16 %v2878
      %v3023 = vunpack.c.l.b16 %v2879
      %v3024 = vunpack.c.l.b16 %v2880
      %v3025 = vunpack.c.l.b16 %v2881
      %v3026 = vunpack.c.l.b16 %v2882
      %v3027 = vunpack.c.l.b16 %v2883
      %v3028 = vunpack.c.l.b16 %v2884
      %v3029 = vunpack.c.l.b16 %v2885
      %v3030 = vunpack.c.l.b16 %v2886
      %v3031 = vunpack.c.l.b16 %v2887
      %v3032 = vunpack.c.l.b16 %v2888
      %v3033 = vunpack.c.l.b16 %v2889
      %v3034 = vunpack.c.l.b16 %v2890
      %v3035 = vunpack.c.l.b16 %v2891
      %v3036 = vunpack.c.l.b16 %v2892
      %v3037 = vunpack.c.l.b16 %v2893
      %v3038 = vunpack.c.l.b16 %v2894
      %v3039 = vunpack.c.l.b16 %v2895
      %v3040 = vunpack.c.l.b16 %v2896
      %v3041 = vunpack.c.l.b16 %v2897
      %v3042 = vunpack.c.l.b16 %v2898
      %v3043 = vunpack.c.l.b16 %v2899
      %v3044 = vunpack.c.l.b16 %v2900
      %v3045 = vunpack.c.l.b16 %v2901
      %v3046 = vunpack.c.l.b16 %v2902
      %v3047 = vunpack.c.l.b16 %v2903
      %v3048 = vunpack.c.l.b16 %v2904
      %v3049 = vunpack.c.l.b16 %v2905
      %v3050 = vunpack.c.l.b16 %v2906
      %v3051 = vunpack.c.l.b16 %v2907
      %v3052 = vunpack.c.l.b16 %v2908
      %v3053 = vunpack.c.l.b16 %v2909
      %v3054 = vunpack.c.l.b16 %v2910
      %v3055 = vunpack.c.l.b16 %v2911
      %v3056 = vunpack.c.l.b16 %v2912
      %v3057 = vunpack.c.l.b16 %v2913
      %v3058 = vunpack.c.l.b16 %v2914
      %v3059 = vunpack.c.l.b16 %v2915
      %v3060 = vunpack.c.l.b16 %v2916
      %v3061 = vunpack.c.l.b16 %v2917
      %v3062 = vunpack.c.l.b16 %v2918
      %v3063 = vunpack.c.l.b16 %v2919
      %v3064 = vunpack.c.l.b16 %v2920
      %v3065 = vunpack.c.l.b16 %v2921
      %v3066 = vunpack.c.l.b16 %v2922
      %v3067 = vunpack.c.l.b16 %v2923
      %v3068 = vunpack.c.l.b16 %v2924
      %v3069 = vunpack.c.l.b16 %v2925
      %v3070 = vunpack.c.l.b16 %v2926
      %v3071 = vunpack.c.l.b16 %v2927
      %v3072 = vunpack.c.l.b16 %v2928
      %v3073 = vpack.c.b16 %v3002, %v3001
      %v3074 = vpack.c.b16 %v3004, %v3003
      %v3075 = vpack.c.b16 %v3006, %v3005
      %v3076 = vpack.c.b16 %v3008, %v3007
      %v3077 = vpack.c.b16 %v3010, %v3009
      %v3078 = vpack.c.b16 %v3012, %v3011
      %v3079 = vpack.c.b16 %v3014, %v3013
      %v3080 = vpack.c.b16 %v3016, %v3015
      %v3081 = vpack.c.b16 %v3018, %v3017
      %v3082 = vpack.c.b16 %v3020, %v3019
      %v3083 = vpack.c.b16 %v3022, %v3021
      %v3084 = vpack.c.b16 %v3024, %v3023
      %v3085 = vpack.c.b16 %v3026, %v3025
      %v3086 = vpack.c.b16 %v3028, %v3027
      %v3087 = vpack.c.b16 %v3030, %v3029
      %v3088 = vpack.c.b16 %v3032, %v3031
      %v3089 = vpack.c.b16 %v3034, %v3033
      %v3090 = vpack.c.b16 %v3036, %v3035
      %v3091 = vpack.c.b16 %v3038, %v3037
      %v3092 = vpack.c.b16 %v3040, %v3039
      %v3093 = vpack.c.b16 %v3042, %v3041
      %v3094 = vpack.c.b16 %v3044, %v3043
      %v3095 = vpack.c.b16 %v3046, %v3045
      %v3096 = vpack.c.b16 %v3048, %v3047
      %v3097 = vpack.c.b16 %v3050, %v3049
      %v3098 = vpack.c.b16 %v3052, %v3051
      %v3099 = vpack.c.b16 %v3054, %v3053
      %v3100 = vpack.c.b16 %v3056, %v3055
      %v3101 = vpack.c.b16 %v3058, %v3057
      %v3102 = vpack.c.b16 %v3060, %v3059
      %v3103 = vpack.c.b16 %v3062, %v3061
      %v3104 = vpack.c.b16 %v3064, %v3063
      %v3105 = vpack.c.b16 %v3066, %v3065
      %v3106 = vpack.c.b16 %v3068, %v3067
      %v3107 = vpack.c.b16 %v3070, %v3069
      %v3108 = vpack.c.b16 %v3072, %v3071
      %vm3109 = vcmask 130048
      %v3111 = vsel %vm3109, %v3073, 0
      %v3114 = vsel %vm3109, %v3074, 0
      %v3117 = vsel %vm3109, %v3075, 0
      %v3120 = vsel %vm3109, %v3076, 0
      %v3123 = vsel %vm3109, %v3077, 0
      %v3126 = vsel %vm3109, %v3078, 0
      %v3129 = vsel %vm3109, %v3079, 0
      %v3132 = vsel %vm3109, %v3080, 0
      %v3135 = vsel %vm3109, %v3081, 0
      %v3138 = vsel %vm3109, %v3082, 0
      %v3141 = vsel %vm3109, %v3083, 0
      %v3144 = vsel %vm3109, %v3084, 0
      %v3147 = vsel %vm3109, %v3085, 0
      %v3150 = vsel %vm3109, %v3086, 0
      %v3153 = vsel %vm3109, %v3087, 0
      %v3156 = vsel %vm3109, %v3088, 0
      %v3159 = vsel %vm3109, %v3089, 0
      %v3162 = vsel %vm3109, %v3090, 0
      %v3165 = vsel %vm3109, %v3091, 0
      %v3168 = vsel %vm3109, %v3092, 0
      %v3171 = vsel %vm3109, %v3093, 0
      %v3174 = vsel %vm3109, %v3094, 0
      %v3177 = vsel %vm3109, %v3095, 0
      %v3180 = vsel %vm3109, %v3096, 0
      %v3183 = vsel %vm3109, %v3097, 0
      %v3186 = vsel %vm3109, %v3098, 0
      %v3189 = vsel %vm3109, %v3099, 0
      %v3192 = vsel %vm3109, %v3100, 0
      %v3195 = vsel %vm3109, %v3101, 0
      %v3198 = vsel %vm3109, %v3102, 0
      %v3201 = vsel %vm3109, %v3103, 0
      %v3204 = vsel %vm3109, %v3104, 0
      %v3207 = vsel %vm3109, %v3105, 0
      %v3210 = vsel %vm3109, %v3106, 0
      %v3213 = vsel %vm3109, %v3107, 0
      %v3216 = vsel %vm3109, %v3108, 0
      %3218 = vmatprep.subr.bf16.mxu0 0
      %3219 = vmatpush1.bf16.msra.mxu0 %v2856
      %3220 = vmatprep.subr.bf16.mxu0 0
      %3221 = vmatpush1.bf16.msra.mxu0 0
      %3222 = vmatprep.subr.bf16.mxu0 0
      %3223 = vmatpush1.bf16.msra.mxu0 0
      %3224 = vmatprep.subr.bf16.mxu0 0
      %3225 = vmatpush1.bf16.msra.mxu0 0
      %3226 = vmatprep.subr.bf16.mxu0 0
      %3227 = vmatpush1.bf16.msra.mxu0 0
      %3228 = vmatprep.subr.bf16.mxu0 0
      %3229 = vmatpush1.bf16.msra.mxu0 0
      %3230 = vmatprep.subr.bf16.mxu0 0
      %3231 = vmatpush1.bf16.msra.mxu0 0
      %3232 = vmatprep.subr.bf16.mxu0 0
      %3233 = vmatpush1.bf16.msra.mxu0 0
      %3234 = vmatprep.subr.bf16.mxu0 0
      %3235 = vmatpush1.bf16.msra.mxu0 0
      %3236 = vmatprep.subr.bf16.mxu0 0
      %3237 = vmatpush1.bf16.msra.mxu0 0
      %3238 = vmatprep.subr.bf16.mxu0 0
      %3239 = vmatpush1.bf16.msra.mxu0 0
      %3240 = vmatprep.subr.bf16.mxu0 0
      %3241 = vmatpush1.bf16.msra.mxu0 0
      %3242 = vmatprep.subr.bf16.mxu0 0
      %3243 = vmatpush1.bf16.msra.mxu0 0
      %3244 = vmatprep.subr.bf16.mxu0 0
      %3245 = vmatpush1.bf16.msra.mxu0 0
      %3246 = vmatprep.subr.bf16.mxu0 0
      %3247 = vmatpush1.bf16.msra.mxu0 0
      %3248 = vmatprep.subr.bf16.mxu0 0
      %3249 = vmatpush1.bf16.msra.mxu0 0
      %3250 = vmatprep.mubr.bf16.mxu0 0
      %3251 = vmatmul.mubr.bf16.gmra.mrb[0].mxu0 %v3111
      %v3252 = vpop.f32.mrb[0].mxu0
      %v3253 = vadd.f32 0.0, %v3252
      %v3254 = vpop.f32.mrb[0].mxu0
      %v3255 = vpop.f32.mrb[0].mxu0
      %v3256 = vadd.f32 0.0, %v3255
      %v3257 = vpop.f32.mrb[0].mxu0
      %3258 = vmatprep.mubr.bf16.mxu0 0
      %3259 = vmatmul.mubr.bf16.gmra.mrb[0].mxu0 %v3114
      %v3260 = vpop.f32.mrb[0].mxu0
      %v3261 = vadd.f32 0.0, %v3260
      %v3262 = vpop.f32.mrb[0].mxu0
      %v3263 = vpop.f32.mrb[0].mxu0
      %v3264 = vadd.f32 0.0, %v3263
      %v3265 = vpop.f32.mrb[0].mxu0
      %3266 = vmatprep.mubr.bf16.mxu0 0
      %3267 = vmatmul.mubr.bf16.gmra.mrb[0].mxu0 %v3117
      %v3268 = vpop.f32.mrb[0].mxu0
      %v3269 = vadd.f32 0.0, %v3268
      %v3270 = vpop.f32.mrb[0].mxu0
      %v3271 = vpop.f32.mrb[0].mxu0
      %v3272 = vadd.f32 0.0, %v3271
      %v3273 = vpop.f32.mrb[0].mxu0
      %3274 = vmatprep.mubr.bf16.mxu0 0
      %3275 = vmatmul.mubr.bf16.gmra.mrb[0].mxu0 %v3120
      %v3276 = vpop.f32.mrb[0].mxu0
      %v3277 = vadd.f32 0.0, %v3276
      %v3278 = vpop.f32.mrb[0].mxu0
      %v3279 = vpop.f32.mrb[0].mxu0
      %v3280 = vadd.f32 0.0, %v3279
      %v3281 = vpop.f32.mrb[0].mxu0
      %3282 = vmatprep.mubr.bf16.mxu0 0
      %3283 = vmatmul.mubr.bf16.gmra.mrb[0].mxu0 %v3123
      %v3284 = vpop.f32.mrb[0].mxu0
      %v3285 = vadd.f32 0.0, %v3284
      %v3286 = vpop.f32.mrb[0].mxu0
      %v3287 = vpop.f32.mrb[0].mxu0
      %v3288 = vadd.f32 0.0, %v3287
      %v3289 = vpop.f32.mrb[0].mxu0
      %3290 = vmatprep.mubr.bf16.mxu0 0
      %3291 = vmatmul.mubr.bf16.gmra.mrb[0].mxu0 %v3126
      %v3292 = vpop.f32.mrb[0].mxu0
      %v3293 = vadd.f32 0.0, %v3292
      %v3294 = vpop.f32.mrb[0].mxu0
      %v3295 = vpop.f32.mrb[0].mxu0
      %v3296 = vadd.f32 0.0, %v3295
      %v3297 = vpop.f32.mrb[0].mxu0
      %3298 = vmatprep.mubr.bf16.mxu0 0
      %3299 = vmatmul.mubr.bf16.gmra.mrb[0].mxu0 %v3129
      %v3300 = vpop.f32.mrb[0].mxu0
      %v3301 = vadd.f32 0.0, %v3300
      %v3302 = vpop.f32.mrb[0].mxu0
      %v3303 = vpop.f32.mrb[0].mxu0
      %v3304 = vadd.f32 0.0, %v3303
      %v3305 = vpop.f32.mrb[0].mxu0
      %3306 = vmatprep.mubr.bf16.mxu0 0
      %3307 = vmatmul.mubr.bf16.gmra.mrb[0].mxu0 %v3132
      %v3308 = vpop.f32.mrb[0].mxu0
      %v3309 = vadd.f32 0.0, %v3308
      %v3310 = vpop.f32.mrb[0].mxu0
      %v3311 = vpop.f32.mrb[0].mxu0
      %v3312 = vadd.f32 0.0, %v3311
      %v3313 = vpop.f32.mrb[0].mxu0
      %3314 = vmatprep.mubr.bf16.mxu0 0
      %3315 = vmatmul.mubr.bf16.gmra.mrb[0].mxu0 %v3135
      %v3316 = vpop.f32.mrb[0].mxu0
      %v3317 = vadd.f32 0.0, %v3316
      %v3318 = vpop.f32.mrb[0].mxu0
      %v3319 = vpop.f32.mrb[0].mxu0
      %v3320 = vadd.f32 0.0, %v3319
      %v3321 = vpop.f32.mrb[0].mxu0
      %3322 = vmatprep.mubr.bf16.mxu0 0
      %3323 = vmatmul.mubr.bf16.gmra.mrb[0].mxu0 %v3138
      %v3324 = vpop.f32.mrb[0].mxu0
      %v3325 = vadd.f32 0.0, %v3324
      %v3326 = vpop.f32.mrb[0].mxu0
      %v3327 = vpop.f32.mrb[0].mxu0
      %v3328 = vadd.f32 0.0, %v3327
      %v3329 = vpop.f32.mrb[0].mxu0
      %3330 = vmatprep.mubr.bf16.mxu0 0
      %3331 = vmatmul.mubr.bf16.gmra.mrb[0].mxu0 %v3141
      %v3332 = vpop.f32.mrb[0].mxu0
      %v3333 = vadd.f32 0.0, %v3332
      %v3334 = vpop.f32.mrb[0].mxu0
      %v3335 = vpop.f32.mrb[0].mxu0
      %v3336 = vadd.f32 0.0, %v3335
      %v3337 = vpop.f32.mrb[0].mxu0
      %3338 = vmatprep.mubr.bf16.mxu0 0
      %3339 = vmatmul.mubr.bf16.gmra.mrb[0].mxu0 %v3144
      %v3340 = vpop.f32.mrb[0].mxu0
      %v3341 = vadd.f32 0.0, %v3340
      %v3342 = vpop.f32.mrb[0].mxu0
      %v3343 = vpop.f32.mrb[0].mxu0
      %v3344 = vadd.f32 0.0, %v3343
      %v3345 = vpop.f32.mrb[0].mxu0
      %3346 = vmatprep.mubr.bf16.mxu0 0
      %3347 = vmatmul.mubr.bf16.gmra.mrb[0].mxu0 %v3147
      %v3348 = vpop.f32.mrb[0].mxu0
      %v3349 = vadd.f32 0.0, %v3348
      %v3350 = vpop.f32.mrb[0].mxu0
      %v3351 = vpop.f32.mrb[0].mxu0
      %v3352 = vadd.f32 0.0, %v3351
      %v3353 = vpop.f32.mrb[0].mxu0
      %3354 = vmatprep.mubr.bf16.mxu0 0
      %3355 = vmatmul.mubr.bf16.gmra.mrb[0].mxu0 %v3150
      %v3356 = vpop.f32.mrb[0].mxu0
      %v3357 = vadd.f32 0.0, %v3356
      %v3358 = vpop.f32.mrb[0].mxu0
      %v3359 = vpop.f32.mrb[0].mxu0
      %v3360 = vadd.f32 0.0, %v3359
      %v3361 = vpop.f32.mrb[0].mxu0
      %3362 = vmatprep.mubr.bf16.mxu0 0
      %3363 = vmatmul.mubr.bf16.gmra.mrb[0].mxu0 %v3153
      %v3364 = vpop.f32.mrb[0].mxu0
      %v3365 = vadd.f32 0.0, %v3364
      %v3366 = vpop.f32.mrb[0].mxu0
      %v3367 = vpop.f32.mrb[0].mxu0
      %v3368 = vadd.f32 0.0, %v3367
      %v3369 = vpop.f32.mrb[0].mxu0
      %3370 = vmatprep.mubr.bf16.mxu0 0
      %3371 = vmatmul.mubr.bf16.gmra.mrb[0].mxu0 %v3156
      %v3372 = vpop.f32.mrb[0].mxu0
      %v3373 = vadd.f32 0.0, %v3372
      %v3374 = vpop.f32.mrb[0].mxu0
      %v3375 = vpop.f32.mrb[0].mxu0
      %v3376 = vadd.f32 0.0, %v3375
      %v3377 = vpop.f32.mrb[0].mxu0
      %3378 = vmatprep.mubr.bf16.mxu0 0
      %3379 = vmatmul.mubr.bf16.gmra.mrb[0].mxu0 %v3159
      %v3380 = vpop.f32.mrb[0].mxu0
      %v3381 = vadd.f32 0.0, %v3380
      %v3382 = vpop.f32.mrb[0].mxu0
      %v3383 = vpop.f32.mrb[0].mxu0
      %v3384 = vadd.f32 0.0, %v3383
      %v3385 = vpop.f32.mrb[0].mxu0
      %3386 = vmatprep.mubr.bf16.mxu0 0
      %3387 = vmatmul.mubr.bf16.gmra.mrb[0].mxu0 %v3162
      %v3388 = vpop.f32.mrb[0].mxu0
      %v3389 = vadd.f32 0.0, %v3388
      %v3390 = vpop.f32.mrb[0].mxu0
      %v3391 = vpop.f32.mrb[0].mxu0
      %v3392 = vadd.f32 0.0, %v3391
      %v3393 = vpop.f32.mrb[0].mxu0
      %3394 = vmatprep.mubr.bf16.mxu0 0
      %3395 = vmatmul.mubr.bf16.gmra.mrb[0].mxu0 %v3165
      %v3396 = vpop.f32.mrb[0].mxu0
      %v3397 = vadd.f32 0.0, %v3396
      %v3398 = vpop.f32.mrb[0].mxu0
      %v3399 = vpop.f32.mrb[0].mxu0
      %v3400 = vadd.f32 0.0, %v3399
      %v3401 = vpop.f32.mrb[0].mxu0
      %3402 = vmatprep.mubr.bf16.mxu0 0
      %3403 = vmatmul.mubr.bf16.gmra.mrb[0].mxu0 %v3168
      %v3404 = vpop.f32.mrb[0].mxu0
      %v3405 = vadd.f32 0.0, %v3404
      %v3406 = vpop.f32.mrb[0].mxu0
      %v3407 = vpop.f32.mrb[0].mxu0
      %v3408 = vadd.f32 0.0, %v3407
      %v3409 = vpop.f32.mrb[0].mxu0
      %3410 = vmatprep.mubr.bf16.mxu0 0
      %3411 = vmatmul.mubr.bf16.gmra.mrb[0].mxu0 %v3171
      %v3412 = vpop.f32.mrb[0].mxu0
      %v3413 = vadd.f32 0.0, %v3412
      %v3414 = vpop.f32.mrb[0].mxu0
      %v3415 = vpop.f32.mrb[0].mxu0
      %v3416 = vadd.f32 0.0, %v3415
      %v3417 = vpop.f32.mrb[0].mxu0
      %3418 = vmatprep.mubr.bf16.mxu0 0
      %3419 = vmatmul.mubr.bf16.gmra.mrb[0].mxu0 %v3174
      %v3420 = vpop.f32.mrb[0].mxu0
      %v3421 = vadd.f32 0.0, %v3420
      %v3422 = vpop.f32.mrb[0].mxu0
      %v3423 = vpop.f32.mrb[0].mxu0
      %v3424 = vadd.f32 0.0, %v3423
      %v3425 = vpop.f32.mrb[0].mxu0
      %3426 = vmatprep.mubr.bf16.mxu0 0
      %3427 = vmatmul.mubr.bf16.gmra.mrb[0].mxu0 %v3177
      %v3428 = vpop.f32.mrb[0].mxu0
      %v3429 = vadd.f32 0.0, %v3428
      %v3430 = vpop.f32.mrb[0].mxu0
      %v3431 = vpop.f32.mrb[0].mxu0
      %v3432 = vadd.f32 0.0, %v3431
      %v3433 = vpop.f32.mrb[0].mxu0
      %3434 = vmatprep.mubr.bf16.mxu0 0
      %3435 = vmatmul.mubr.bf16.gmra.mrb[0].mxu0 %v3180
      %v3436 = vpop.f32.mrb[0].mxu0
      %v3437 = vadd.f32 0.0, %v3436
      %v3438 = vpop.f32.mrb[0].mxu0
      %v3439 = vpop.f32.mrb[0].mxu0
      %v3440 = vadd.f32 0.0, %v3439
      %v3441 = vpop.f32.mrb[0].mxu0
      %3442 = vmatprep.mubr.bf16.mxu0 0
      %3443 = vmatmul.mubr.bf16.gmra.mrb[0].mxu0 %v3183
      %v3444 = vpop.f32.mrb[0].mxu0
      %v3445 = vadd.f32 0.0, %v3444
      %v3446 = vpop.f32.mrb[0].mxu0
      %v3447 = vpop.f32.mrb[0].mxu0
      %v3448 = vadd.f32 0.0, %v3447
      %v3449 = vpop.f32.mrb[0].mxu0
      %3450 = vmatprep.mubr.bf16.mxu0 0
      %3451 = vmatmul.mubr.bf16.gmra.mrb[0].mxu0 %v3186
      %v3452 = vpop.f32.mrb[0].mxu0
      %v3453 = vadd.f32 0.0, %v3452
      %v3454 = vpop.f32.mrb[0].mxu0
      %v3455 = vpop.f32.mrb[0].mxu0
      %v3456 = vadd.f32 0.0, %v3455
      %v3457 = vpop.f32.mrb[0].mxu0
      %3458 = vmatprep.mubr.bf16.mxu0 0
      %3459 = vmatmul.mubr.bf16.gmra.mrb[0].mxu0 %v3189
      %v3460 = vpop.f32.mrb[0].mxu0
      %v3461 = vadd.f32 0.0, %v3460
      %v3462 = vpop.f32.mrb[0].mxu0
      %v3463 = vpop.f32.mrb[0].mxu0
      %v3464 = vadd.f32 0.0, %v3463
      %v3465 = vpop.f32.mrb[0].mxu0
      %3466 = vmatprep.mubr.bf16.mxu0 0
      %3467 = vmatmul.mubr.bf16.gmra.mrb[0].mxu0 %v3192
      %v3468 = vpop.f32.mrb[0].mxu0
      %v3469 = vadd.f32 0.0, %v3468
      %v3470 = vpop.f32.mrb[0].mxu0
      %v3471 = vpop.f32.mrb[0].mxu0
      %v3472 = vadd.f32 0.0, %v3471
      %v3473 = vpop.f32.mrb[0].mxu0
      %3474 = vmatprep.mubr.bf16.mxu0 0
      %3475 = vmatmul.mubr.bf16.gmra.mrb[0].mxu0 %v3195
      %v3476 = vpop.f32.mrb[0].mxu0
      %v3477 = vadd.f32 0.0, %v3476
      %v3478 = vpop.f32.mrb[0].mxu0
      %v3479 = vpop.f32.mrb[0].mxu0
      %v3480 = vadd.f32 0.0, %v3479
      %v3481 = vpop.f32.mrb[0].mxu0
      %3482 = vmatprep.mubr.bf16.mxu0 0
      %3483 = vmatmul.mubr.bf16.gmra.mrb[0].mxu0 %v3198
      %v3484 = vpop.f32.mrb[0].mxu0
      %v3485 = vadd.f32 0.0, %v3484
      %v3486 = vpop.f32.mrb[0].mxu0
      %v3487 = vpop.f32.mrb[0].mxu0
      %v3488 = vadd.f32 0.0, %v3487
      %v3489 = vpop.f32.mrb[0].mxu0
      %3490 = vmatprep.mubr.bf16.mxu0 0
      %3491 = vmatmul.mubr.bf16.gmra.mrb[0].mxu0 %v3201
      %v3492 = vpop.f32.mrb[0].mxu0
      %v3493 = vadd.f32 0.0, %v3492
      %v3494 = vpop.f32.mrb[0].mxu0
      %v3495 = vpop.f32.mrb[0].mxu0
      %v3496 = vadd.f32 0.0, %v3495
      %v3497 = vpop.f32.mrb[0].mxu0
      %3498 = vmatprep.mubr.bf16.mxu0 0
      %3499 = vmatmul.mubr.bf16.gmra.mrb[0].mxu0 %v3204
      %v3500 = vpop.f32.mrb[0].mxu0
      %v3501 = vadd.f32 0.0, %v3500
      %v3502 = vpop.f32.mrb[0].mxu0
      %v3503 = vpop.f32.mrb[0].mxu0
      %v3504 = vadd.f32 0.0, %v3503
      %v3505 = vpop.f32.mrb[0].mxu0
      %3506 = vmatprep.mubr.bf16.mxu0 0
      %3507 = vmatmul.mubr.bf16.gmra.mrb[0].mxu0 %v3207
      %v3508 = vpop.f32.mrb[0].mxu0
      %v3509 = vadd.f32 0.0, %v3508
      %v3510 = vpop.f32.mrb[0].mxu0
      %v3511 = vpop.f32.mrb[0].mxu0
      %v3512 = vadd.f32 0.0, %v3511
      %v3513 = vpop.f32.mrb[0].mxu0
      %3514 = vmatprep.mubr.bf16.mxu0 0
      %3515 = vmatmul.mubr.bf16.gmra.mrb[0].mxu0 %v3210
      %v3516 = vpop.f32.mrb[0].mxu0
      %v3517 = vadd.f32 0.0, %v3516
      %v3518 = vpop.f32.mrb[0].mxu0
      %v3519 = vpop.f32.mrb[0].mxu0
      %v3520 = vadd.f32 0.0, %v3519
      %v3521 = vpop.f32.mrb[0].mxu0
      %3522 = vmatprep.mubr.bf16.mxu0 0
      %3523 = vmatmul.mubr.bf16.gmra.mrb[0].mxu0 %v3213
      %v3524 = vpop.f32.mrb[0].mxu0
      %v3525 = vadd.f32 0.0, %v3524
      %v3526 = vpop.f32.mrb[0].mxu0
      %v3527 = vpop.f32.mrb[0].mxu0
      %v3528 = vadd.f32 0.0, %v3527
      %v3529 = vpop.f32.mrb[0].mxu0
      %3530 = vmatprep.mubr.bf16.mxu0 0
      %3531 = vmatmul.mubr.bf16.gmra.mrb[0].mxu0 %v3216
      %v3532 = vpop.f32.mrb[0].mxu0
      %v3533 = vadd.f32 0.0, %v3532
      %v3534 = vpop.f32.mrb[0].mxu0
      %v3535 = vpop.f32.mrb[0].mxu0
      %v3536 = vadd.f32 0.0, %v3535
      %v3537 = vpop.f32.mrb[0].mxu0
      %3538 = vdwg.mxu0
      %v3539 = vpack.c.bf16 %v3256, %v3253
      %v3540 = vpack.c.bf16 %v3264, %v3261
      %v3541 = vpack.c.bf16 %v3272, %v3269
      %v3542 = vpack.c.bf16 %v3280, %v3277
      %v3543 = vld [vmem:[%s8] sm:$0xf]
      %v3544 = vld [vmem:[%s8 + $0x4] sm:$0xf]
      %v3545 = vpack.c.bf16 %v3288, %v3285
      %v3546 = vpack.c.bf16 %v3296, %v3293
      %v3547 = vpack.c.bf16 %v3304, %v3301
      %v3548 = vpack.c.bf16 %v3312, %v3309
      %s3549 = scalar_lea.vmem %s8, 8
      %v3550 = vld [vmem:[%s3549] sm:$0xf]
      %v3551 = vld [vmem:[%s3549 + $0x4] sm:$0xf]
      %v3554 = vunpack.c.l.b16 %v3550
      %v3555 = vunpack.c.l.b16 %v3551
      %v3556 = vpack.c.b16 %v3555, %v3554
      %v3559 = vsel %vm3109, %v3545, 0
      %v3562 = vsel %vm3109, %v3546, 0
      %v3565 = vsel %vm3109, %v3547, 0
      %v3568 = vsel %vm3109, %v3548, 0
      %3570 = vmatprep.subr.bf16.mxu0 0
      %3571 = vmatpush1.bf16.msra.mxu0 %v3556
      %3572 = vmatprep.subr.bf16.mxu0 0
      %3573 = vmatpush1.bf16.msra.mxu0 0
      %3574 = vmatprep.subr.bf16.mxu0 0
      %3575 = vmatpush1.bf16.msra.mxu0 0
      %3576 = vmatprep.subr.bf16.mxu0 0
      %3577 = vmatpush1.bf16.msra.mxu0 0
      %3578 = vmatprep.subr.bf16.mxu0 0
      %3579 = vmatpush1.bf16.msra.mxu0 0
      %3580 = vmatprep.subr.bf16.mxu0 0
      %3581 = vmatpush1.bf16.msra.mxu0 0
      %3582 = vmatprep.subr.bf16.mxu0 0
      %3583 = vmatpush1.bf16.msra.mxu0 0
      %3584 = vmatprep.subr.bf16.mxu0 0
      %3585 = vmatpush1.bf16.msra.mxu0 0
      %3586 = vmatprep.subr.bf16.mxu0 0
      %3587 = vmatpush1.bf16.msra.mxu0 0
      %3588 = vmatprep.subr.bf16.mxu0 0
      %3589 = vmatpush1.bf16.msra.mxu0 0
      %3590 = vmatprep.subr.bf16.mxu0 0
      %3591 = vmatpush1.bf16.msra.mxu0 0
      %3592 = vmatprep.subr.bf16.mxu0 0
      %3593 = vmatpush1.bf16.msra.mxu0 0
      %3594 = vmatprep.subr.bf16.mxu0 0
      %3595 = vmatpush1.bf16.msra.mxu0 0
      %3596 = vmatprep.subr.bf16.mxu0 0
      %3597 = vmatpush1.bf16.msra.mxu0 0
      %3598 = vmatprep.subr.bf16.mxu0 0
      %3599 = vmatpush1.bf16.msra.mxu0 0
      %3600 = vmatprep.subr.bf16.mxu0 0
      %3601 = vmatpush1.bf16.msra.mxu0 0
      %3602 = vmatprep.mubr.bf16.mxu0 0
      %3603 = vmatmul.mubr.bf16.gmra.mrb[0].mxu0 %v3559
      %v3604 = vpop.f32.mrb[0].mxu0
      %v3605 = vadd.f32 0.0, %v3604
      %v3606 = vpop.f32.mrb[0].mxu0
      %v3607 = vpop.f32.mrb[0].mxu0
      %v3608 = vadd.f32 0.0, %v3607
      %v3609 = vpop.f32.mrb[0].mxu0
      %3610 = vmatprep.mubr.bf16.mxu0 0
      %3611 = vmatmul.mubr.bf16.gmra.mrb[0].mxu0 %v3562
      %v3612 = vpop.f32.mrb[0].mxu0
      %v3613 = vadd.f32 0.0, %v3612
      %v3614 = vpop.f32.mrb[0].mxu0
      %v3615 = vpop.f32.mrb[0].mxu0
      %v3616 = vadd.f32 0.0, %v3615
      %v3617 = vpop.f32.mrb[0].mxu0
      %3618 = vmatprep.mubr.bf16.mxu0 0
      %3619 = vmatmul.mubr.bf16.gmra.mrb[0].mxu0 %v3565
      %v3620 = vpop.f32.mrb[0].mxu0
      %v3621 = vadd.f32 0.0, %v3620
      %v3622 = vpop.f32.mrb[0].mxu0
      %v3623 = vpop.f32.mrb[0].mxu0
      %v3624 = vadd.f32 0.0, %v3623
      %v3625 = vpop.f32.mrb[0].mxu0
      %3626 = vmatprep.mubr.bf16.mxu0 0
      %3627 = vmatmul.mubr.bf16.gmra.mrb[0].mxu0 %v3568
      %v3628 = vpop.f32.mrb[0].mxu0
      %v3629 = vadd.f32 0.0, %v3628
      %v3630 = vpop.f32.mrb[0].mxu0
      %v3631 = vpop.f32.mrb[0].mxu0
      %v3632 = vadd.f32 0.0, %v3631
      %v3633 = vpop.f32.mrb[0].mxu0
      %3634 = vdwg.mxu0
      %v3637 = vunpack.c.l.b16 %v3543
      %v3638 = vunpack.c.l.b16 %v3544
      %v3639 = vpack.c.b16 %v3638, %v3637
      %v3642 = vsel %vm3109, %v3539, 0
      %v3645 = vsel %vm3109, %v3540, 0
      %v3648 = vsel %vm3109, %v3541, 0
      %v3651 = vsel %vm3109, %v3542, 0
      %3653 = vmatprep.subr.bf16.mxu0 0
      %3654 = vmatpush1.bf16.msra.mxu0 %v3639
      %3655 = vmatprep.subr.bf16.mxu0 0
      %3656 = vmatpush1.bf16.msra.mxu0 0
      %3657 = vmatprep.subr.bf16.mxu0 0
      %3658 = vmatpush1.bf16.msra.mxu0 0
      %3659 = vmatprep.subr.bf16.mxu0 0
      %3660 = vmatpush1.bf16.msra.mxu0 0
      %3661 = vmatprep.subr.bf16.mxu0 0
      %3662 = vmatpush1.bf16.msra.mxu0 0
      %3663 = vmatprep.subr.bf16.mxu0 0
      %3664 = vmatpush1.bf16.msra.mxu0 0
      %3665 = vmatprep.subr.bf16.mxu0 0
      %3666 = vmatpush1.bf16.msra.mxu0 0
      %3667 = vmatprep.subr.bf16.mxu0 0
      %3668 = vmatpush1.bf16.msra.mxu0 0
      %3669 = vmatprep.subr.bf16.mxu0 0
      %3670 = vmatpush1.bf16.msra.mxu0 0
      %3671 = vmatprep.subr.bf16.mxu0 0
      %3672 = vmatpush1.bf16.msra.mxu0 0
      %3673 = vmatprep.subr.bf16.mxu0 0
      %3674 = vmatpush1.bf16.msra.mxu0 0
      %3675 = vmatprep.subr.bf16.mxu0 0
      %3676 = vmatpush1.bf16.msra.mxu0 0
      %3677 = vmatprep.subr.bf16.mxu0 0
      %3678 = vmatpush1.bf16.msra.mxu0 0
      %3679 = vmatprep.subr.bf16.mxu0 0
      %3680 = vmatpush1.bf16.msra.mxu0 0
      %3681 = vmatprep.subr.bf16.mxu0 0
      %3682 = vmatpush1.bf16.msra.mxu0 0
      %3683 = vmatprep.subr.bf16.mxu0 0
      %3684 = vmatpush1.bf16.msra.mxu0 0
      %3685 = vmatprep.mubr.bf16.mxu0 0
      %3686 = vmatmul.mubr.bf16.gmra.mrb[0].mxu0 %v3642
      %v3687 = vpop.f32.mrb[0].mxu0
      %v3688 = vadd.f32 %v3605, %v3687
      %v3689 = vpop.f32.mrb[0].mxu0
      %v3690 = vpop.f32.mrb[0].mxu0
      %v3691 = vadd.f32 %v3608, %v3690
      %v3692 = vpop.f32.mrb[0].mxu0
      %3693 = vmatprep.mubr.bf16.mxu0 0
      %3694 = vmatmul.mubr.bf16.gmra.mrb[0].mxu0 %v3645
      %v3695 = vpop.f32.mrb[0].mxu0
      %v3696 = vadd.f32 %v3613, %v3695
      %v3697 = vpop.f32.mrb[0].mxu0
      %v3698 = vpop.f32.mrb[0].mxu0
      %v3699 = vadd.f32 %v3616, %v3698
      %v3700 = vpop.f32.mrb[0].mxu0
      %3701 = vmatprep.mubr.bf16.mxu0 0
      %3702 = vmatmul.mubr.bf16.gmra.mrb[0].mxu0 %v3648
      %v3703 = vpop.f32.mrb[0].mxu0
      %v3704 = vadd.f32 %v3621, %v3703
      %v3705 = vpop.f32.mrb[0].mxu0
      %v3706 = vpop.f32.mrb[0].mxu0
      %v3707 = vadd.f32 %v3624, %v3706
      %v3708 = vpop.f32.mrb[0].mxu0
      %3709 = vmatprep.mubr.bf16.mxu0 0
      %3710 = vmatmul.mubr.bf16.gmra.mrb[0].mxu0 %v3651
      %v3711 = vpop.f32.mrb[0].mxu0
      %v3712 = vadd.f32 %v3629, %v3711
      %v3713 = vpop.f32.mrb[0].mxu0
      %v3714 = vpop.f32.mrb[0].mxu0
      %v3715 = vadd.f32 %v3632, %v3714
      %v3716 = vpop.f32.mrb[0].mxu0
      %3717 = vdwg.mxu0
      %v3718 = vpack.c.bf16 %v3320, %v3317
      %v3719 = vpack.c.bf16 %v3328, %v3325
      %v3720 = vpack.c.bf16 %v3336, %v3333
      %v3721 = vpack.c.bf16 %v3344, %v3341
      %s3722 = scalar_lea.vmem %s8, 16
      %v3723 = vld [vmem:[%s3722] sm:$0xf]
      %v3724 = vld [vmem:[%s3722 + $0x4] sm:$0xf]
      %v3727 = vunpack.c.l.b16 %v3723
      %v3728 = vunpack.c.l.b16 %v3724
      %v3729 = vpack.c.b16 %v3728, %v3727
      %v3732 = vsel %vm3109, %v3718, 0
      %v3735 = vsel %vm3109, %v3719, 0
      %v3738 = vsel %vm3109, %v3720, 0
      %v3741 = vsel %vm3109, %v3721, 0
      %3743 = vmatprep.subr.bf16.mxu0 0
      %3744 = vmatpush1.bf16.msra.mxu0 %v3729
      %3745 = vmatprep.subr.bf16.mxu0 0
      %3746 = vmatpush1.bf16.msra.mxu0 0
      %3747 = vmatprep.subr.bf16.mxu0 0
      %3748 = vmatpush1.bf16.msra.mxu0 0
      %3749 = vmatprep.subr.bf16.mxu0 0
      %3750 = vmatpush1.bf16.msra.mxu0 0
      %3751 = vmatprep.subr.bf16.mxu0 0
      %3752 = vmatpush1.bf16.msra.mxu0 0
      %3753 = vmatprep.subr.bf16.mxu0 0
      %3754 = vmatpush1.bf16.msra.mxu0 0
      %3755 = vmatprep.subr.bf16.mxu0 0
      %3756 = vmatpush1.bf16.msra.mxu0 0
      %3757 = vmatprep.subr.bf16.mxu0 0
      %3758 = vmatpush1.bf16.msra.mxu0 0
      %3759 = vmatprep.subr.bf16.mxu0 0
      %3760 = vmatpush1.bf16.msra.mxu0 0
      %3761 = vmatprep.subr.bf16.mxu0 0
      %3762 = vmatpush1.bf16.msra.mxu0 0
      %3763 = vmatprep.subr.bf16.mxu0 0
      %3764 = vmatpush1.bf16.msra.mxu0 0
      %3765 = vmatprep.subr.bf16.mxu0 0
      %3766 = vmatpush1.bf16.msra.mxu0 0
      %3767 = vmatprep.subr.bf16.mxu0 0
      %3768 = vmatpush1.bf16.msra.mxu0 0
      %3769 = vmatprep.subr.bf16.mxu0 0
      %3770 = vmatpush1.bf16.msra.mxu0 0
      %3771 = vmatprep.subr.bf16.mxu0 0
      %3772 = vmatpush1.bf16.msra.mxu0 0
      %3773 = vmatprep.subr.bf16.mxu0 0
      %3774 = vmatpush1.bf16.msra.mxu0 0
      %3775 = vmatprep.mubr.bf16.mxu0 0
      %3776 = vmatmul.mubr.bf16.gmra.mrb[0].mxu0 %v3732
      %v3777 = vpop.f32.mrb[0].mxu0
      %v3778 = vadd.f32 0.0, %v3777
      %v3779 = vpop.f32.mrb[0].mxu0
      %v3780 = vpop.f32.mrb[0].mxu0
      %v3781 = vadd.f32 0.0, %v3780
      %v3782 = vpop.f32.mrb[0].mxu0
      %3783 = vmatprep.mubr.bf16.mxu0 0
      %3784 = vmatmul.mubr.bf16.gmra.mrb[0].mxu0 %v3735
      %v3785 = vpop.f32.mrb[0].mxu0
      %v3786 = vadd.f32 0.0, %v3785
      %v3787 = vpop.f32.mrb[0].mxu0
      %v3788 = vpop.f32.mrb[0].mxu0
      %v3789 = vadd.f32 0.0, %v3788
      %v3790 = vpop.f32.mrb[0].mxu0
      %3791 = vmatprep.mubr.bf16.mxu0 0
      %3792 = vmatmul.mubr.bf16.gmra.mrb[0].mxu0 %v3738
      %v3793 = vpop.f32.mrb[0].mxu0
      %v3794 = vadd.f32 0.0, %v3793
      %v3795 = vpop.f32.mrb[0].mxu0
      %v3796 = vpop.f32.mrb[0].mxu0
      %v3797 = vadd.f32 0.0, %v3796
      %v3798 = vpop.f32.mrb[0].mxu0
      %3799 = vmatprep.mubr.bf16.mxu0 0
      %3800 = vmatmul.mubr.bf16.gmra.mrb[0].mxu0 %v3741
      %v3801 = vpop.f32.mrb[0].mxu0
      %v3802 = vadd.f32 0.0, %v3801
      %v3803 = vpop.f32.mrb[0].mxu0
      %v3804 = vpop.f32.mrb[0].mxu0
      %v3805 = vadd.f32 0.0, %v3804
      %v3806 = vpop.f32.mrb[0].mxu0
      %3807 = vdwg.mxu0
      %v3808 = vadd.f32 %v3688, %v3778
      %v3809 = vadd.f32 %v3691, %v3781
      %v3810 = vadd.f32 %v3696, %v3786
      %v3811 = vadd.f32 %v3699, %v3789
      %v3812 = vadd.f32 %v3704, %v3794
      %v3813 = vadd.f32 %v3707, %v3797
      %v3814 = vadd.f32 %v3712, %v3802
      %v3815 = vadd.f32 %v3715, %v3805
      %v3816 = vpack.c.bf16 %v3352, %v3349
      %v3817 = vpack.c.bf16 %v3360, %v3357
      %v3818 = vpack.c.bf16 %v3368, %v3365
      %v3819 = vpack.c.bf16 %v3376, %v3373
      %s3820 = scalar_lea.vmem %s8, 24
      %v3821 = vld [vmem:[%s3820] sm:$0xf]
      %v3822 = vld [vmem:[%s3820 + $0x4] sm:$0xf]
      %v3825 = vunpack.c.l.b16 %v3821
      %v3826 = vunpack.c.l.b16 %v3822
      %v3827 = vpack.c.b16 %v3826, %v3825
      %v3830 = vsel %vm3109, %v3816, 0
      %v3833 = vsel %vm3109, %v3817, 0
      %v3836 = vsel %vm3109, %v3818, 0
      %v3839 = vsel %vm3109, %v3819, 0
      %3841 = vmatprep.subr.bf16.mxu0 0
      %3842 = vmatpush1.bf16.msra.mxu0 %v3827
      %3843 = vmatprep.subr.bf16.mxu0 0
      %3844 = vmatpush1.bf16.msra.mxu0 0
      %3845 = vmatprep.subr.bf16.mxu0 0
      %3846 = vmatpush1.bf16.msra.mxu0 0
      %3847 = vmatprep.subr.bf16.mxu0 0
      %3848 = vmatpush1.bf16.msra.mxu0 0
      %3849 = vmatprep.subr.bf16.mxu0 0
      %3850 = vmatpush1.bf16.msra.mxu0 0
      %3851 = vmatprep.subr.bf16.mxu0 0
      %3852 = vmatpush1.bf16.msra.mxu0 0
      %3853 = vmatprep.subr.bf16.mxu0 0
      %3854 = vmatpush1.bf16.msra.mxu0 0
      %3855 = vmatprep.subr.bf16.mxu0 0
      %3856 = vmatpush1.bf16.msra.mxu0 0
      %3857 = vmatprep.subr.bf16.mxu0 0
      %3858 = vmatpush1.bf16.msra.mxu0 0
      %3859 = vmatprep.subr.bf16.mxu0 0
      %3860 = vmatpush1.bf16.msra.mxu0 0
      %3861 = vmatprep.subr.bf16.mxu0 0
      %3862 = vmatpush1.bf16.msra.mxu0 0
      %3863 = vmatprep.subr.bf16.mxu0 0
      %3864 = vmatpush1.bf16.msra.mxu0 0
      %3865 = vmatprep.subr.bf16.mxu0 0
      %3866 = vmatpush1.bf16.msra.mxu0 0
      %3867 = vmatprep.subr.bf16.mxu0 0
      %3868 = vmatpush1.bf16.msra.mxu0 0
      %3869 = vmatprep.subr.bf16.mxu0 0
      %3870 = vmatpush1.bf16.msra.mxu0 0
      %3871 = vmatprep.subr.bf16.mxu0 0
      %3872 = vmatpush1.bf16.msra.mxu0 0
      %3873 = vmatprep.mubr.bf16.mxu0 0
      %3874 = vmatmul.mubr.bf16.gmra.mrb[0].mxu0 %v3830
      %v3875 = vpop.f32.mrb[0].mxu0
      %v3876 = vadd.f32 0.0, %v3875
      %v3877 = vpop.f32.mrb[0].mxu0
      %v3878 = vpop.f32.mrb[0].mxu0
      %v3879 = vadd.f32 0.0, %v3878
      %v3880 = vpop.f32.mrb[0].mxu0
      %3881 = vmatprep.mubr.bf16.mxu0 0
      %3882 = vmatmul.mubr.bf16.gmra.mrb[0].mxu0 %v3833
      %v3883 = vpop.f32.mrb[0].mxu0
      %v3884 = vadd.f32 0.0, %v3883
      %v3885 = vpop.f32.mrb[0].mxu0
      %v3886 = vpop.f32.mrb[0].mxu0
      %v3887 = vadd.f32 0.0, %v3886
      %v3888 = vpop.f32.mrb[0].mxu0
      %3889 = vmatprep.mubr.bf16.mxu0 0
      %3890 = vmatmul.mubr.bf16.gmra.mrb[0].mxu0 %v3836
      %v3891 = vpop.f32.mrb[0].mxu0
      %v3892 = vadd.f32 0.0, %v3891
      %v3893 = vpop.f32.mrb[0].mxu0
      %v3894 = vpop.f32.mrb[0].mxu0
      %v3895 = vadd.f32 0.0, %v3894
      %v3896 = vpop.f32.mrb[0].mxu0
      %3897 = vmatprep.mubr.bf16.mxu0 0
      %3898 = vmatmul.mubr.bf16.gmra.mrb[0].mxu0 %v3839
      %v3899 = vpop.f32.mrb[0].mxu0
      %v3900 = vadd.f32 0.0, %v3899
      %v3901 = vpop.f32.mrb[0].mxu0
      %v3902 = vpop.f32.mrb[0].mxu0
      %v3903 = vadd.f32 0.0, %v3902
      %v3904 = vpop.f32.mrb[0].mxu0
      %3905 = vdwg.mxu0
      %v3906 = vadd.f32 %v3808, %v3876
      %v3907 = vadd.f32 %v3809, %v3879
      %v3908 = vadd.f32 %v3810, %v3884
      %v3909 = vadd.f32 %v3811, %v3887
      %v3910 = vadd.f32 %v3812, %v3892
      %v3911 = vadd.f32 %v3813, %v3895
      %v3912 = vadd.f32 %v3814, %v3900
      %v3913 = vadd.f32 %v3815, %v3903
      %v3914 = vpack.c.bf16 %v3384, %v3381
      %v3915 = vpack.c.bf16 %v3392, %v3389
      %v3916 = vpack.c.bf16 %v3400, %v3397
      %v3917 = vpack.c.bf16 %v3408, %v3405
      %s3918 = scalar_lea.vmem %s8, 32
      %v3919 = vld [vmem:[%s3918] sm:$0xf]
      %v3920 = vld [vmem:[%s3918 + $0x4] sm:$0xf]
      %v3923 = vunpack.c.l.b16 %v3919
      %v3924 = vunpack.c.l.b16 %v3920
      %v3925 = vpack.c.b16 %v3924, %v3923
      %v3928 = vsel %vm3109, %v3914, 0
      %v3931 = vsel %vm3109, %v3915, 0
      %v3934 = vsel %vm3109, %v3916, 0
      %v3937 = vsel %vm3109, %v3917, 0
      %3939 = vmatprep.subr.bf16.mxu0 0
      %3940 = vmatpush1.bf16.msra.mxu0 %v3925
      %3941 = vmatprep.subr.bf16.mxu0 0
      %3942 = vmatpush1.bf16.msra.mxu0 0
      %3943 = vmatprep.subr.bf16.mxu0 0
      %3944 = vmatpush1.bf16.msra.mxu0 0
      %3945 = vmatprep.subr.bf16.mxu0 0
      %3946 = vmatpush1.bf16.msra.mxu0 0
      %3947 = vmatprep.subr.bf16.mxu0 0
      %3948 = vmatpush1.bf16.msra.mxu0 0
      %3949 = vmatprep.subr.bf16.mxu0 0
      %3950 = vmatpush1.bf16.msra.mxu0 0
      %3951 = vmatprep.subr.bf16.mxu0 0
      %3952 = vmatpush1.bf16.msra.mxu0 0
      %3953 = vmatprep.subr.bf16.mxu0 0
      %3954 = vmatpush1.bf16.msra.mxu0 0
      %3955 = vmatprep.subr.bf16.mxu0 0
      %3956 = vmatpush1.bf16.msra.mxu0 0
      %3957 = vmatprep.subr.bf16.mxu0 0
      %3958 = vmatpush1.bf16.msra.mxu0 0
      %3959 = vmatprep.subr.bf16.mxu0 0
      %3960 = vmatpush1.bf16.msra.mxu0 0
      %3961 = vmatprep.subr.bf16.mxu0 0
      %3962 = vmatpush1.bf16.msra.mxu0 0
      %3963 = vmatprep.subr.bf16.mxu0 0
      %3964 = vmatpush1.bf16.msra.mxu0 0
      %3965 = vmatprep.subr.bf16.mxu0 0
      %3966 = vmatpush1.bf16.msra.mxu0 0
      %3967 = vmatprep.subr.bf16.mxu0 0
      %3968 = vmatpush1.bf16.msra.mxu0 0
      %3969 = vmatprep.subr.bf16.mxu0 0
      %3970 = vmatpush1.bf16.msra.mxu0 0
      %3971 = vmatprep.mubr.bf16.mxu0 0
      %3972 = vmatmul.mubr.bf16.gmra.mrb[0].mxu0 %v3928
      %v3973 = vpop.f32.mrb[0].mxu0
      %v3974 = vadd.f32 0.0, %v3973
      %v3975 = vpop.f32.mrb[0].mxu0
      %v3976 = vpop.f32.mrb[0].mxu0
      %v3977 = vadd.f32 0.0, %v3976
      %v3978 = vpop.f32.mrb[0].mxu0
      %3979 = vmatprep.mubr.bf16.mxu0 0
      %3980 = vmatmul.mubr.bf16.gmra.mrb[0].mxu0 %v3931
      %v3981 = vpop.f32.mrb[0].mxu0
      %v3982 = vadd.f32 0.0, %v3981
      %v3983 = vpop.f32.mrb[0].mxu0
      %v3984 = vpop.f32.mrb[0].mxu0
      %v3985 = vadd.f32 0.0, %v3984
      %v3986 = vpop.f32.mrb[0].mxu0
      %3987 = vmatprep.mubr.bf16.mxu0 0
      %3988 = vmatmul.mubr.bf16.gmra.mrb[0].mxu0 %v3934
      %v3989 = vpop.f32.mrb[0].mxu0
      %v3990 = vadd.f32 0.0, %v3989
      %v3991 = vpop.f32.mrb[0].mxu0
      %v3992 = vpop.f32.mrb[0].mxu0
      %v3993 = vadd.f32 0.0, %v3992
      %v3994 = vpop.f32.mrb[0].mxu0
      %3995 = vmatprep.mubr.bf16.mxu0 0
      %3996 = vmatmul.mubr.bf16.gmra.mrb[0].mxu0 %v3937
      %v3997 = vpop.f32.mrb[0].mxu0
      %v3998 = vadd.f32 0.0, %v3997
      %v3999 = vpop.f32.mrb[0].mxu0
      %v4000 = vpop.f32.mrb[0].mxu0
      %v4001 = vadd.f32 0.0, %v4000
      %v4002 = vpop.f32.mrb[0].mxu0
      %4003 = vdwg.mxu0
      %v4004 = vadd.f32 %v3906, %v3974
      %v4005 = vadd.f32 %v3907, %v3977
      %v4006 = vadd.f32 %v3908, %v3982
      %v4007 = vadd.f32 %v3909, %v3985
      %v4008 = vadd.f32 %v3910, %v3990
      %v4009 = vadd.f32 %v3911, %v3993
      %v4010 = vadd.f32 %v3912, %v3998
      %v4011 = vadd.f32 %v3913, %v4001
      %v4012 = vpack.c.bf16 %v3416, %v3413
      %v4013 = vpack.c.bf16 %v3424, %v3421
      %v4014 = vpack.c.bf16 %v3432, %v3429
      %v4015 = vpack.c.bf16 %v3440, %v3437
      %s4016 = scalar_lea.vmem %s8, 40
      %v4017 = vld [vmem:[%s4016] sm:$0xf]
      %v4018 = vld [vmem:[%s4016 + $0x4] sm:$0xf]
      %v4021 = vunpack.c.l.b16 %v4017
      %v4022 = vunpack.c.l.b16 %v4018
      %v4023 = vpack.c.b16 %v4022, %v4021
      %v4026 = vsel %vm3109, %v4012, 0
      %v4029 = vsel %vm3109, %v4013, 0
      %v4032 = vsel %vm3109, %v4014, 0
      %v4035 = vsel %vm3109, %v4015, 0
      %4037 = vmatprep.subr.bf16.mxu0 0
      %4038 = vmatpush1.bf16.msra.mxu0 %v4023
      %4039 = vmatprep.subr.bf16.mxu0 0
      %4040 = vmatpush1.bf16.msra.mxu0 0
      %4041 = vmatprep.subr.bf16.mxu0 0
      %4042 = vmatpush1.bf16.msra.mxu0 0
      %4043 = vmatprep.subr.bf16.mxu0 0
      %4044 = vmatpush1.bf16.msra.mxu0 0
      %4045 = vmatprep.subr.bf16.mxu0 0
      %4046 = vmatpush1.bf16.msra.mxu0 0
      %4047 = vmatprep.subr.bf16.mxu0 0
      %4048 = vmatpush1.bf16.msra.mxu0 0
      %4049 = vmatprep.subr.bf16.mxu0 0
      %4050 = vmatpush1.bf16.msra.mxu0 0
      %4051 = vmatprep.subr.bf16.mxu0 0
      %4052 = vmatpush1.bf16.msra.mxu0 0
      %4053 = vmatprep.subr.bf16.mxu0 0
      %4054 = vmatpush1.bf16.msra.mxu0 0
      %4055 = vmatprep.subr.bf16.mxu0 0
      %4056 = vmatpush1.bf16.msra.mxu0 0
      %4057 = vmatprep.subr.bf16.mxu0 0
      %4058 = vmatpush1.bf16.msra.mxu0 0
      %4059 = vmatprep.subr.bf16.mxu0 0
      %4060 = vmatpush1.bf16.msra.mxu0 0
      %4061 = vmatprep.subr.bf16.mxu0 0
      %4062 = vmatpush1.bf16.msra.mxu0 0
      %4063 = vmatprep.subr.bf16.mxu0 0
      %4064 = vmatpush1.bf16.msra.mxu0 0
      %4065 = vmatprep.subr.bf16.mxu0 0
      %4066 = vmatpush1.bf16.msra.mxu0 0
      %4067 = vmatprep.subr.bf16.mxu0 0
      %4068 = vmatpush1.bf16.msra.mxu0 0
      %4069 = vmatprep.mubr.bf16.mxu0 0
      %4070 = vmatmul.mubr.bf16.gmra.mrb[0].mxu0 %v4026
      %v4071 = vpop.f32.mrb[0].mxu0
      %v4072 = vadd.f32 0.0, %v4071
      %v4073 = vpop.f32.mrb[0].mxu0
      %v4074 = vpop.f32.mrb[0].mxu0
      %v4075 = vadd.f32 0.0, %v4074
      %v4076 = vpop.f32.mrb[0].mxu0
      %4077 = vmatprep.mubr.bf16.mxu0 0
      %4078 = vmatmul.mubr.bf16.gmra.mrb[0].mxu0 %v4029
      %v4079 = vpop.f32.mrb[0].mxu0
      %v4080 = vadd.f32 0.0, %v4079
      %v4081 = vpop.f32.mrb[0].mxu0
      %v4082 = vpop.f32.mrb[0].mxu0
      %v4083 = vadd.f32 0.0, %v4082
      %v4084 = vpop.f32.mrb[0].mxu0
      %4085 = vmatprep.mubr.bf16.mxu0 0
      %4086 = vmatmul.mubr.bf16.gmra.mrb[0].mxu0 %v4032
      %v4087 = vpop.f32.mrb[0].mxu0
      %v4088 = vadd.f32 0.0, %v4087
      %v4089 = vpop.f32.mrb[0].mxu0
      %v4090 = vpop.f32.mrb[0].mxu0
      %v4091 = vadd.f32 0.0, %v4090
      %v4092 = vpop.f32.mrb[0].mxu0
      %4093 = vmatprep.mubr.bf16.mxu0 0
      %4094 = vmatmul.mubr.bf16.gmra.mrb[0].mxu0 %v4035
      %v4095 = vpop.f32.mrb[0].mxu0
      %v4096 = vadd.f32 0.0, %v4095
      %v4097 = vpop.f32.mrb[0].mxu0
      %v4098 = vpop.f32.mrb[0].mxu0
      %v4099 = vadd.f32 0.0, %v4098
      %v4100 = vpop.f32.mrb[0].mxu0
      %4101 = vdwg.mxu0
      %v4102 = vadd.f32 %v4004, %v4072
      %v4103 = vadd.f32 %v4005, %v4075
      %v4104 = vadd.f32 %v4006, %v4080
      %v4105 = vadd.f32 %v4007, %v4083
      %v4106 = vadd.f32 %v4008, %v4088
      %v4107 = vadd.f32 %v4009, %v4091
      %v4108 = vadd.f32 %v4010, %v4096
      %v4109 = vadd.f32 %v4011, %v4099
      %v4110 = vpack.c.bf16 %v3448, %v3445
      %v4111 = vpack.c.bf16 %v3456, %v3453
      %v4112 = vpack.c.bf16 %v3464, %v3461
      %v4113 = vpack.c.bf16 %v3472, %v3469
      %s4114 = scalar_lea.vmem %s8, 48
      %v4115 = vld [vmem:[%s4114] sm:$0xf]
      %v4116 = vld [vmem:[%s4114 + $0x4] sm:$0xf]
      %v4119 = vunpack.c.l.b16 %v4115
      %v4120 = vunpack.c.l.b16 %v4116
      %v4121 = vpack.c.b16 %v4120, %v4119
      %v4124 = vsel %vm3109, %v4110, 0
      %v4127 = vsel %vm3109, %v4111, 0
      %v4130 = vsel %vm3109, %v4112, 0
      %v4133 = vsel %vm3109, %v4113, 0
      %4135 = vmatprep.subr.bf16.mxu0 0
      %4136 = vmatpush1.bf16.msra.mxu0 %v4121
      %4137 = vmatprep.subr.bf16.mxu0 0
      %4138 = vmatpush1.bf16.msra.mxu0 0
      %4139 = vmatprep.subr.bf16.mxu0 0
      %4140 = vmatpush1.bf16.msra.mxu0 0
      %4141 = vmatprep.subr.bf16.mxu0 0
      %4142 = vmatpush1.bf16.msra.mxu0 0
      %4143 = vmatprep.subr.bf16.mxu0 0
      %4144 = vmatpush1.bf16.msra.mxu0 0
      %4145 = vmatprep.subr.bf16.mxu0 0
      %4146 = vmatpush1.bf16.msra.mxu0 0
      %4147 = vmatprep.subr.bf16.mxu0 0
      %4148 = vmatpush1.bf16.msra.mxu0 0
      %4149 = vmatprep.subr.bf16.mxu0 0
      %4150 = vmatpush1.bf16.msra.mxu0 0
      %4151 = vmatprep.subr.bf16.mxu0 0
      %4152 = vmatpush1.bf16.msra.mxu0 0
      %4153 = vmatprep.subr.bf16.mxu0 0
      %4154 = vmatpush1.bf16.msra.mxu0 0
      %4155 = vmatprep.subr.bf16.mxu0 0
      %4156 = vmatpush1.bf16.msra.mxu0 0
      %4157 = vmatprep.subr.bf16.mxu0 0
      %4158 = vmatpush1.bf16.msra.mxu0 0
      %4159 = vmatprep.subr.bf16.mxu0 0
      %4160 = vmatpush1.bf16.msra.mxu0 0
      %4161 = vmatprep.subr.bf16.mxu0 0
      %4162 = vmatpush1.bf16.msra.mxu0 0
      %4163 = vmatprep.subr.bf16.mxu0 0
      %4164 = vmatpush1.bf16.msra.mxu0 0
      %4165 = vmatprep.subr.bf16.mxu0 0
      %4166 = vmatpush1.bf16.msra.mxu0 0
      %4167 = vmatprep.mubr.bf16.mxu0 0
      %4168 = vmatmul.mubr.bf16.gmra.mrb[0].mxu0 %v4124
      %v4169 = vpop.f32.mrb[0].mxu0
      %v4170 = vadd.f32 0.0, %v4169
      %v4171 = vpop.f32.mrb[0].mxu0
      %v4172 = vpop.f32.mrb[0].mxu0
      %v4173 = vadd.f32 0.0, %v4172
      %v4174 = vpop.f32.mrb[0].mxu0
      %4175 = vmatprep.mubr.bf16.mxu0 0
      %4176 = vmatmul.mubr.bf16.gmra.mrb[0].mxu0 %v4127
      %v4177 = vpop.f32.mrb[0].mxu0
      %v4178 = vadd.f32 0.0, %v4177
      %v4179 = vpop.f32.mrb[0].mxu0
      %v4180 = vpop.f32.mrb[0].mxu0
      %v4181 = vadd.f32 0.0, %v4180
      %v4182 = vpop.f32.mrb[0].mxu0
      %4183 = vmatprep.mubr.bf16.mxu0 0
      %4184 = vmatmul.mubr.bf16.gmra.mrb[0].mxu0 %v4130
      %v4185 = vpop.f32.mrb[0].mxu0
      %v4186 = vadd.f32 0.0, %v4185
      %v4187 = vpop.f32.mrb[0].mxu0
      %v4188 = vpop.f32.mrb[0].mxu0
      %v4189 = vadd.f32 0.0, %v4188
      %v4190 = vpop.f32.mrb[0].mxu0
      %4191 = vmatprep.mubr.bf16.mxu0 0
      %4192 = vmatmul.mubr.bf16.gmra.mrb[0].mxu0 %v4133
      %v4193 = vpop.f32.mrb[0].mxu0
      %v4194 = vadd.f32 0.0, %v4193
      %v4195 = vpop.f32.mrb[0].mxu0
      %v4196 = vpop.f32.mrb[0].mxu0
      %v4197 = vadd.f32 0.0, %v4196
      %v4198 = vpop.f32.mrb[0].mxu0
      %4199 = vdwg.mxu0
      %v4200 = vadd.f32 %v4102, %v4170
      %v4201 = vadd.f32 %v4103, %v4173
      %v4202 = vadd.f32 %v4104, %v4178
      %v4203 = vadd.f32 %v4105, %v4181
      %v4204 = vadd.f32 %v4106, %v4186
      %v4205 = vadd.f32 %v4107, %v4189
      %v4206 = vadd.f32 %v4108, %v4194
      %v4207 = vadd.f32 %v4109, %v4197
      %v4208 = vpack.c.bf16 %v3480, %v3477
      %v4209 = vpack.c.bf16 %v3488, %v3485
      %v4210 = vpack.c.bf16 %v3496, %v3493
      %v4211 = vpack.c.bf16 %v3504, %v3501
      %s4212 = scalar_lea.vmem %s8, 56
      %v4213 = vld [vmem:[%s4212] sm:$0xf]
      %v4214 = vld [vmem:[%s4212 + $0x4] sm:$0xf]
      %v4217 = vunpack.c.l.b16 %v4213
      %v4218 = vunpack.c.l.b16 %v4214
      %v4219 = vpack.c.b16 %v4218, %v4217
      %v4222 = vsel %vm3109, %v4208, 0
      %v4225 = vsel %vm3109, %v4209, 0
      %v4228 = vsel %vm3109, %v4210, 0
      %v4231 = vsel %vm3109, %v4211, 0
      %4233 = vmatprep.subr.bf16.mxu0 0
      %4234 = vmatpush1.bf16.msra.mxu0 %v4219
      %4235 = vmatprep.subr.bf16.mxu0 0
      %4236 = vmatpush1.bf16.msra.mxu0 0
      %4237 = vmatprep.subr.bf16.mxu0 0
      %4238 = vmatpush1.bf16.msra.mxu0 0
      %4239 = vmatprep.subr.bf16.mxu0 0
      %4240 = vmatpush1.bf16.msra.mxu0 0
      %4241 = vmatprep.subr.bf16.mxu0 0
      %4242 = vmatpush1.bf16.msra.mxu0 0
      %4243 = vmatprep.subr.bf16.mxu0 0
      %4244 = vmatpush1.bf16.msra.mxu0 0
      %4245 = vmatprep.subr.bf16.mxu0 0
      %4246 = vmatpush1.bf16.msra.mxu0 0
      %4247 = vmatprep.subr.bf16.mxu0 0
      %4248 = vmatpush1.bf16.msra.mxu0 0
      %4249 = vmatprep.subr.bf16.mxu0 0
      %4250 = vmatpush1.bf16.msra.mxu0 0
      %4251 = vmatprep.subr.bf16.mxu0 0
      %4252 = vmatpush1.bf16.msra.mxu0 0
      %4253 = vmatprep.subr.bf16.mxu0 0
      %4254 = vmatpush1.bf16.msra.mxu0 0
      %4255 = vmatprep.subr.bf16.mxu0 0
      %4256 = vmatpush1.bf16.msra.mxu0 0
      %4257 = vmatprep.subr.bf16.mxu0 0
      %4258 = vmatpush1.bf16.msra.mxu0 0
      %4259 = vmatprep.subr.bf16.mxu0 0
      %4260 = vmatpush1.bf16.msra.mxu0 0
      %4261 = vmatprep.subr.bf16.mxu0 0
      %4262 = vmatpush1.bf16.msra.mxu0 0
      %4263 = vmatprep.subr.bf16.mxu0 0
      %4264 = vmatpush1.bf16.msra.mxu0 0
      %4265 = vmatprep.mubr.bf16.mxu0 0
      %4266 = vmatmul.mubr.bf16.gmra.mrb[0].mxu0 %v4222
      %v4267 = vpop.f32.mrb[0].mxu0
      %v4268 = vadd.f32 0.0, %v4267
      %v4269 = vpop.f32.mrb[0].mxu0
      %v4270 = vpop.f32.mrb[0].mxu0
      %v4271 = vadd.f32 0.0, %v4270
      %v4272 = vpop.f32.mrb[0].mxu0
      %4273 = vmatprep.mubr.bf16.mxu0 0
      %4274 = vmatmul.mubr.bf16.gmra.mrb[0].mxu0 %v4225
      %v4275 = vpop.f32.mrb[0].mxu0
      %v4276 = vadd.f32 0.0, %v4275
      %v4277 = vpop.f32.mrb[0].mxu0
      %v4278 = vpop.f32.mrb[0].mxu0
      %v4279 = vadd.f32 0.0, %v4278
      %v4280 = vpop.f32.mrb[0].mxu0
      %4281 = vmatprep.mubr.bf16.mxu0 0
      %4282 = vmatmul.mubr.bf16.gmra.mrb[0].mxu0 %v4228
      %v4283 = vpop.f32.mrb[0].mxu0
      %v4284 = vadd.f32 0.0, %v4283
      %v4285 = vpop.f32.mrb[0].mxu0
      %v4286 = vpop.f32.mrb[0].mxu0
      %v4287 = vadd.f32 0.0, %v4286
      %v4288 = vpop.f32.mrb[0].mxu0
      %4289 = vmatprep.mubr.bf16.mxu0 0
      %4290 = vmatmul.mubr.bf16.gmra.mrb[0].mxu0 %v4231
      %v4291 = vpop.f32.mrb[0].mxu0
      %v4292 = vadd.f32 0.0, %v4291
      %v4293 = vpop.f32.mrb[0].mxu0
      %v4294 = vpop.f32.mrb[0].mxu0
      %v4295 = vadd.f32 0.0, %v4294
      %v4296 = vpop.f32.mrb[0].mxu0
      %4297 = vdwg.mxu0
      %v4298 = vadd.f32 %v4200, %v4268
      %v4299 = vadd.f32 %v4201, %v4271
      %v4300 = vadd.f32 %v4202, %v4276
      %v4301 = vadd.f32 %v4203, %v4279
      %v4302 = vadd.f32 %v4204, %v4284
      %v4303 = vadd.f32 %v4205, %v4287
      %v4304 = vadd.f32 %v4206, %v4292
      %v4305 = vadd.f32 %v4207, %v4295
      %v4306 = vpack.c.bf16 %v3512, %v3509
      %v4307 = vpack.c.bf16 %v3520, %v3517
      %v4308 = vpack.c.bf16 %v3528, %v3525
      %v4309 = vpack.c.bf16 %v3536, %v3533
      %s4310 = scalar_lea.vmem %s8, 64
      %v4311 = vld [vmem:[%s4310] sm:$0xf]
      %v4312 = vld [vmem:[%s4310 + $0x4] sm:$0xf]
      %v4315 = vunpack.c.l.b16 %v4311
      %v4316 = vunpack.c.l.b16 %v4312
      %v4317 = vpack.c.b16 %v4316, %v4315
      %v4320 = vsel %vm3109, %v4306, 0
      %v4323 = vsel %vm3109, %v4307, 0
      %v4326 = vsel %vm3109, %v4308, 0
      %v4329 = vsel %vm3109, %v4309, 0
      %4331 = vmatprep.subr.bf16.mxu0 0
      %4332 = vmatpush1.bf16.msra.mxu0 %v4317
      %4333 = vmatprep.subr.bf16.mxu0 0
      %4334 = vmatpush1.bf16.msra.mxu0 0
      %4335 = vmatprep.subr.bf16.mxu0 0
      %4336 = vmatpush1.bf16.msra.mxu0 0
      %4337 = vmatprep.subr.bf16.mxu0 0
      %4338 = vmatpush1.bf16.msra.mxu0 0
      %4339 = vmatprep.subr.bf16.mxu0 0
      %4340 = vmatpush1.bf16.msra.mxu0 0
      %4341 = vmatprep.subr.bf16.mxu0 0
      %4342 = vmatpush1.bf16.msra.mxu0 0
      %4343 = vmatprep.subr.bf16.mxu0 0
      %4344 = vmatpush1.bf16.msra.mxu0 0
      %4345 = vmatprep.subr.bf16.mxu0 0
      %4346 = vmatpush1.bf16.msra.mxu0 0
      %4347 = vmatprep.subr.bf16.mxu0 0
      %4348 = vmatpush1.bf16.msra.mxu0 0
      %4349 = vmatprep.subr.bf16.mxu0 0
      %4350 = vmatpush1.bf16.msra.mxu0 0
      %4351 = vmatprep.subr.bf16.mxu0 0
      %4352 = vmatpush1.bf16.msra.mxu0 0
      %4353 = vmatprep.subr.bf16.mxu0 0
      %4354 = vmatpush1.bf16.msra.mxu0 0
      %4355 = vmatprep.subr.bf16.mxu0 0
      %4356 = vmatpush1.bf16.msra.mxu0 0
      %4357 = vmatprep.subr.bf16.mxu0 0
      %4358 = vmatpush1.bf16.msra.mxu0 0
      %4359 = vmatprep.subr.bf16.mxu0 0
      %4360 = vmatpush1.bf16.msra.mxu0 0
      %4361 = vmatprep.subr.bf16.mxu0 0
      %4362 = vmatpush1.bf16.msra.mxu0 0
      %4363 = vmatprep.mubr.bf16.mxu0 0
      %4364 = vmatmul.mubr.bf16.gmra.mrb[0].mxu0 %v4320
      %v4365 = vpop.f32.mrb[0].mxu0
      %v4366 = vadd.f32 0.0, %v4365
      %v4367 = vpop.f32.mrb[0].mxu0
      %v4368 = vpop.f32.mrb[0].mxu0
      %v4369 = vadd.f32 0.0, %v4368
      %v4370 = vpop.f32.mrb[0].mxu0
      %4371 = vmatprep.mubr.bf16.mxu0 0
      %4372 = vmatmul.mubr.bf16.gmra.mrb[0].mxu0 %v4323
      %v4373 = vpop.f32.mrb[0].mxu0
      %v4374 = vadd.f32 0.0, %v4373
      %v4375 = vpop.f32.mrb[0].mxu0
      %v4376 = vpop.f32.mrb[0].mxu0
      %v4377 = vadd.f32 0.0, %v4376
      %v4378 = vpop.f32.mrb[0].mxu0
      %4379 = vmatprep.mubr.bf16.mxu0 0
      %4380 = vmatmul.mubr.bf16.gmra.mrb[0].mxu0 %v4326
      %v4381 = vpop.f32.mrb[0].mxu0
      %v4382 = vadd.f32 0.0, %v4381
      %v4383 = vpop.f32.mrb[0].mxu0
      %v4384 = vpop.f32.mrb[0].mxu0
      %v4385 = vadd.f32 0.0, %v4384
      %v4386 = vpop.f32.mrb[0].mxu0
      %4387 = vmatprep.mubr.bf16.mxu0 0
      %4388 = vmatmul.mubr.bf16.gmra.mrb[0].mxu0 %v4329
      %v4389 = vpop.f32.mrb[0].mxu0
      %v4390 = vadd.f32 0.0, %v4389
      %v4391 = vpop.f32.mrb[0].mxu0
      %v4392 = vpop.f32.mrb[0].mxu0
      %v4393 = vadd.f32 0.0, %v4392
      %v4394 = vpop.f32.mrb[0].mxu0
      %4395 = vdwg.mxu0
      %v4396 = vadd.f32 %v4298, %v4366
      %v4397 = vadd.f32 %v4299, %v4369
      %v4398 = vadd.f32 %v4300, %v4374
      %v4399 = vadd.f32 %v4301, %v4377
      %v4400 = vadd.f32 %v4302, %v4382
      %v4401 = vadd.f32 %v4303, %v4385
      %v4402 = vadd.f32 %v4304, %v4390
      %v4403 = vadd.f32 %v4305, %v4393
      %v4404 = vld [vmem:[%s9] sm:$0x1]
      %v4406 = vlaneseq
      %v4407 = vshrl.u32 %v4406, 7
      %v4408 = vsub.s32 0, %v4407
      %v4409 = vrot.slane %v4404, %v4408
      %v4411 = vadd.f32 %v4396, %v4409
      %v4412 = vadd.f32 %v4397, %v4409
      %v4413 = vadd.f32 %v4398, %v4409
      %v4414 = vadd.f32 %v4399, %v4409
      %v4415 = vadd.f32 %v4400, %v4409
      %v4416 = vadd.f32 %v4401, %v4409
      %v4417 = vadd.f32 %v4402, %v4409
      %v4418 = vadd.f32 %v4403, %v4409
      %v4419 = vmax.f32 %v4411, 0.0
      %v4420 = vmax.f32 %v4412, 0.0
      %v4421 = vmax.f32 %v4413, 0.0
      %v4422 = vmax.f32 %v4414, 0.0
      %v4423 = vmax.f32 %v4415, 0.0
      %v4424 = vmax.f32 %v4416, 0.0
      %v4425 = vmax.f32 %v4417, 0.0
      %v4426 = vmax.f32 %v4418, 0.0
      %v4427 = vpack.c.bf16 %v4420, %v4419
      %v4428 = vpack.c.bf16 %v4422, %v4421
      %v4429 = vpack.c.bf16 %v4424, %v4423
      %v4430 = vpack.c.bf16 %v4426, %v4425
      %v4431 = vld [vmem:[%s10] sm:$0xf]
      %v4432 = vld [vmem:[%s10 + $0x4] sm:$0xf]
      %v4433 = vld [vmem:[%s10 + $0x8] sm:$0xf]
      %v4434 = vld [vmem:[%s10 + $0xc] sm:$0xf]
      %v4435 = vld [vmem:[%s10 + $0x10] sm:$0xf]
      %v4436 = vld [vmem:[%s10 + $0x14] sm:$0xf]
      %v4437 = vld [vmem:[%s10 + $0x18] sm:$0xf]
      %v4438 = vld [vmem:[%s10 + $0x1c] sm:$0xf]
      %v4439 = vld [vmem:[%s10 + $0x20] sm:$0xf]
      %v4440 = vld [vmem:[%s10 + $0x24] sm:$0xf]
      %v4441 = vld [vmem:[%s10 + $0x28] sm:$0xf]
      %v4442 = vld [vmem:[%s10 + $0x2c] sm:$0xf]
      %v4443 = vld [vmem:[%s10 + $0x30] sm:$0xf]
      %v4444 = vld [vmem:[%s10 + $0x34] sm:$0xf]
      %v4445 = vld [vmem:[%s10 + $0x38] sm:$0xf]
      %v4446 = vld [vmem:[%s10 + $0x3c] sm:$0xf]
      %v4447 = vld [vmem:[%s10 + $0x40] sm:$0xf]
      %v4448 = vld [vmem:[%s10 + $0x44] sm:$0xf]
      %v4449 = vld [vmem:[%s10 + $0x48] sm:$0xf]
      %v4450 = vld [vmem:[%s10 + $0x4c] sm:$0xf]
      %v4451 = vld [vmem:[%s10 + $0x50] sm:$0xf]
      %v4452 = vld [vmem:[%s10 + $0x54] sm:$0xf]
      %v4453 = vld [vmem:[%s10 + $0x58] sm:$0xf]
      %v4454 = vld [vmem:[%s10 + $0x5c] sm:$0xf]
      %v4455 = vld [vmem:[%s10 + $0x60] sm:$0xf]
      %v4456 = vld [vmem:[%s10 + $0x64] sm:$0xf]
      %v4457 = vld [vmem:[%s10 + $0x68] sm:$0xf]
      %v4458 = vld [vmem:[%s10 + $0x6c] sm:$0xf]
      %v4459 = vld [vmem:[%s10 + $0x70] sm:$0xf]
      %v4460 = vld [vmem:[%s10 + $0x74] sm:$0xf]
      %v4461 = vld [vmem:[%s10 + $0x78] sm:$0xf]
      %v4462 = vld [vmem:[%s10 + $0x7c] sm:$0xf]
      %v4463 = vld [vmem:[%s10 + $0x80] sm:$0xf]
      %v4464 = vld [vmem:[%s10 + $0x84] sm:$0xf]
      %v4465 = vld [vmem:[%s10 + $0x88] sm:$0xf]
      %v4466 = vld [vmem:[%s10 + $0x8c] sm:$0xf]
      %v4467 = vld [vmem:[%s10 + $0x90] sm:$0xf]
      %v4468 = vld [vmem:[%s10 + $0x94] sm:$0xf]
      %v4469 = vld [vmem:[%s10 + $0x98] sm:$0xf]
      %v4470 = vld [vmem:[%s10 + $0x9c] sm:$0xf]
      %v4471 = vld [vmem:[%s10 + $0xa0] sm:$0xf]
      %v4472 = vld [vmem:[%s10 + $0xa4] sm:$0xf]
      %v4473 = vld [vmem:[%s10 + $0xa8] sm:$0xf]
      %v4474 = vld [vmem:[%s10 + $0xac] sm:$0xf]
      %v4475 = vld [vmem:[%s10 + $0xb0] sm:$0xf]
      %v4476 = vld [vmem:[%s10 + $0xb4] sm:$0xf]
      %v4477 = vld [vmem:[%s10 + $0xb8] sm:$0xf]
      %v4478 = vld [vmem:[%s10 + $0xbc] sm:$0xf]
      %v4479 = vld [vmem:[%s10 + $0xc0] sm:$0xf]
      %v4480 = vld [vmem:[%s10 + $0xc4] sm:$0xf]
      %v4481 = vld [vmem:[%s10 + $0xc8] sm:$0xf]
      %v4482 = vld [vmem:[%s10 + $0xcc] sm:$0xf]
      %v4483 = vld [vmem:[%s10 + $0xd0] sm:$0xf]
      %v4484 = vld [vmem:[%s10 + $0xd4] sm:$0xf]
      %v4485 = vld [vmem:[%s10 + $0xd8] sm:$0xf]
      %v4486 = vld [vmem:[%s10 + $0xdc] sm:$0xf]
      %v4487 = vld [vmem:[%s10 + $0xe0] sm:$0xf]
      %v4488 = vld [vmem:[%s10 + $0xe4] sm:$0xf]
      %v4489 = vld [vmem:[%s10 + $0xe8] sm:$0xf]
      %v4490 = vld [vmem:[%s10 + $0xec] sm:$0xf]
      %v4491 = vld [vmem:[%s10 + $0xf0] sm:$0xf]
      %v4492 = vld [vmem:[%s10 + $0xf4] sm:$0xf]
      %v4493 = vld [vmem:[%s10 + $0xf8] sm:$0xf]
      %v4494 = vld [vmem:[%s10 + $0xfc] sm:$0xf]
      %v4495 = vld [vmem:[%s10 + $0x100] sm:$0xf]
      %v4496 = vld [vmem:[%s10 + $0x104] sm:$0xf]
      %v4497 = vld [vmem:[%s10 + $0x108] sm:$0xf]
      %v4498 = vld [vmem:[%s10 + $0x10c] sm:$0xf]
      %v4499 = vld [vmem:[%s10 + $0x110] sm:$0xf]
      %v4500 = vld [vmem:[%s10 + $0x114] sm:$0xf]
      %v4501 = vld [vmem:[%s10 + $0x118] sm:$0xf]
      %v4502 = vld [vmem:[%s10 + $0x11c] sm:$0xf]
      %v4503 = vld [vmem:[%s10 + $0x120] sm:$0xf]
      %v4504 = vld [vmem:[%s10 + $0x124] sm:$0xf]
      %v4505 = vld [vmem:[%s10 + $0x128] sm:$0xf]
      %v4506 = vld [vmem:[%s10 + $0x12c] sm:$0xf]
      %v4507 = vld [vmem:[%s10 + $0x130] sm:$0xf]
      %v4508 = vld [vmem:[%s10 + $0x134] sm:$0xf]
      %v4509 = vld [vmem:[%s10 + $0x138] sm:$0xf]
      %v4510 = vld [vmem:[%s10 + $0x13c] sm:$0xf]
      %v4511 = vld [vmem:[%s10 + $0x140] sm:$0xf]
      %v4512 = vld [vmem:[%s10 + $0x144] sm:$0xf]
      %v4513 = vld [vmem:[%s10 + $0x148] sm:$0xf]
      %v4514 = vld [vmem:[%s10 + $0x14c] sm:$0xf]
      %v4515 = vld [vmem:[%s10 + $0x150] sm:$0xf]
      %v4516 = vld [vmem:[%s10 + $0x154] sm:$0xf]
      %v4517 = vld [vmem:[%s10 + $0x158] sm:$0xf]
      %v4518 = vld [vmem:[%s10 + $0x15c] sm:$0xf]
      %v4519 = vld [vmem:[%s10 + $0x160] sm:$0xf]
      %v4520 = vld [vmem:[%s10 + $0x164] sm:$0xf]
      %v4521 = vld [vmem:[%s10 + $0x168] sm:$0xf]
      %v4522 = vld [vmem:[%s10 + $0x16c] sm:$0xf]
      %v4523 = vld [vmem:[%s10 + $0x170] sm:$0xf]
      %v4524 = vld [vmem:[%s10 + $0x174] sm:$0xf]
      %v4525 = vld [vmem:[%s10 + $0x178] sm:$0xf]
      %v4526 = vld [vmem:[%s10 + $0x17c] sm:$0xf]
      %v4527 = vld [vmem:[%s10 + $0x180] sm:$0xf]
      %v4528 = vld [vmem:[%s10 + $0x184] sm:$0xf]
      %v4529 = vld [vmem:[%s10 + $0x188] sm:$0xf]
      %v4530 = vld [vmem:[%s10 + $0x18c] sm:$0xf]
      %v4531 = vld [vmem:[%s10 + $0x190] sm:$0xf]
      %v4532 = vld [vmem:[%s10 + $0x194] sm:$0xf]
      %v4533 = vld [vmem:[%s10 + $0x198] sm:$0xf]
      %v4534 = vld [vmem:[%s10 + $0x19c] sm:$0xf]
      %v4535 = vld [vmem:[%s10 + $0x1a0] sm:$0xf]
      %v4536 = vld [vmem:[%s10 + $0x1a4] sm:$0xf]
      %v4537 = vld [vmem:[%s10 + $0x1a8] sm:$0xf]
      %v4538 = vld [vmem:[%s10 + $0x1ac] sm:$0xf]
      %v4539 = vld [vmem:[%s10 + $0x1b0] sm:$0xf]
      %v4540 = vld [vmem:[%s10 + $0x1b4] sm:$0xf]
      %v4541 = vld [vmem:[%s10 + $0x1b8] sm:$0xf]
      %v4542 = vld [vmem:[%s10 + $0x1bc] sm:$0xf]
      %v4543 = vld [vmem:[%s10 + $0x1c0] sm:$0xf]
      %v4544 = vld [vmem:[%s10 + $0x1c4] sm:$0xf]
      %v4545 = vld [vmem:[%s10 + $0x1c8] sm:$0xf]
      %v4546 = vld [vmem:[%s10 + $0x1cc] sm:$0xf]
      %v4547 = vld [vmem:[%s10 + $0x1d0] sm:$0xf]
      %v4548 = vld [vmem:[%s10 + $0x1d4] sm:$0xf]
      %v4549 = vld [vmem:[%s10 + $0x1d8] sm:$0xf]
      %v4550 = vld [vmem:[%s10 + $0x1dc] sm:$0xf]
      %v4551 = vld [vmem:[%s10 + $0x1e0] sm:$0xf]
      %v4552 = vld [vmem:[%s10 + $0x1e4] sm:$0xf]
      %v4553 = vld [vmem:[%s10 + $0x1e8] sm:$0xf]
      %v4554 = vld [vmem:[%s10 + $0x1ec] sm:$0xf]
      %v4555 = vld [vmem:[%s10 + $0x1f0] sm:$0xf]
      %v4556 = vld [vmem:[%s10 + $0x1f4] sm:$0xf]
      %v4557 = vld [vmem:[%s10 + $0x1f8] sm:$0xf]
      %v4558 = vld [vmem:[%s10 + $0x1fc] sm:$0xf]
      %v4559 = vld [vmem:[%s10 + $0x200] sm:$0xf]
      %v4560 = vld [vmem:[%s10 + $0x204] sm:$0xf]
      %v4561 = vld [vmem:[%s10 + $0x208] sm:$0xf]
      %v4562 = vld [vmem:[%s10 + $0x20c] sm:$0xf]
      %v4563 = vld [vmem:[%s10 + $0x210] sm:$0xf]
      %v4564 = vld [vmem:[%s10 + $0x214] sm:$0xf]
      %v4565 = vld [vmem:[%s10 + $0x218] sm:$0xf]
      %v4566 = vld [vmem:[%s10 + $0x21c] sm:$0xf]
      %v4567 = vld [vmem:[%s10 + $0x220] sm:$0xf]
      %v4568 = vld [vmem:[%s10 + $0x224] sm:$0xf]
      %v4569 = vld [vmem:[%s10 + $0x228] sm:$0xf]
      %v4570 = vld [vmem:[%s10 + $0x22c] sm:$0xf]
      %v4571 = vld [vmem:[%s10 + $0x230] sm:$0xf]
      %v4572 = vld [vmem:[%s10 + $0x234] sm:$0xf]
      %v4573 = vld [vmem:[%s10 + $0x238] sm:$0xf]
      %v4574 = vld [vmem:[%s10 + $0x23c] sm:$0xf]
      %v4575 = vld [vmem:[%s10 + $0x240] sm:$0xf]
      %v4576 = vld [vmem:[%s10 + $0x244] sm:$0xf]
      %v4577 = vld [vmem:[%s10 + $0x248] sm:$0xf]
      %v4578 = vld [vmem:[%s10 + $0x24c] sm:$0xf]
      %v4579 = vld [vmem:[%s10 + $0x250] sm:$0xf]
      %v4580 = vld [vmem:[%s10 + $0x254] sm:$0xf]
      %v4581 = vld [vmem:[%s10 + $0x258] sm:$0xf]
      %v4582 = vld [vmem:[%s10 + $0x25c] sm:$0xf]
      %v4583 = vld [vmem:[%s10 + $0x260] sm:$0xf]
      %v4584 = vld [vmem:[%s10 + $0x264] sm:$0xf]
      %v4585 = vld [vmem:[%s10 + $0x268] sm:$0xf]
      %v4586 = vld [vmem:[%s10 + $0x26c] sm:$0xf]
      %v4587 = vld [vmem:[%s10 + $0x270] sm:$0xf]
      %v4588 = vld [vmem:[%s10 + $0x274] sm:$0xf]
      %v4589 = vld [vmem:[%s10 + $0x278] sm:$0xf]
      %v4590 = vld [vmem:[%s10 + $0x27c] sm:$0xf]
      %v4591 = vld [vmem:[%s10 + $0x280] sm:$0xf]
      %v4592 = vld [vmem:[%s10 + $0x284] sm:$0xf]
      %v4593 = vld [vmem:[%s10 + $0x288] sm:$0xf]
      %v4594 = vld [vmem:[%s10 + $0x28c] sm:$0xf]
      %v4595 = vld [vmem:[%s10 + $0x290] sm:$0xf]
      %v4596 = vld [vmem:[%s10 + $0x294] sm:$0xf]
      %v4597 = vld [vmem:[%s10 + $0x298] sm:$0xf]
      %v4598 = vld [vmem:[%s10 + $0x29c] sm:$0xf]
      %v4599 = vld [vmem:[%s10 + $0x2a0] sm:$0xf]
      %v4600 = vld [vmem:[%s10 + $0x2a4] sm:$0xf]
      %v4601 = vld [vmem:[%s10 + $0x2a8] sm:$0xf]
      %v4602 = vld [vmem:[%s10 + $0x2ac] sm:$0xf]
      %v4603 = vld [vmem:[%s10 + $0x2b0] sm:$0xf]
      %v4604 = vld [vmem:[%s10 + $0x2b4] sm:$0xf]
      %v4605 = vld [vmem:[%s10 + $0x2b8] sm:$0xf]
      %v4606 = vld [vmem:[%s10 + $0x2bc] sm:$0xf]
      %v4607 = vld [vmem:[%s10 + $0x2c0] sm:$0xf]
      %v4608 = vld [vmem:[%s10 + $0x2c4] sm:$0xf]
      %v4609 = vld [vmem:[%s10 + $0x2c8] sm:$0xf]
      %v4610 = vld [vmem:[%s10 + $0x2cc] sm:$0xf]
      %v4611 = vld [vmem:[%s10 + $0x2d0] sm:$0xf]
      %v4612 = vld [vmem:[%s10 + $0x2d4] sm:$0xf]
      %v4613 = vld [vmem:[%s10 + $0x2d8] sm:$0xf]
      %v4614 = vld [vmem:[%s10 + $0x2dc] sm:$0xf]
      %v4615 = vld [vmem:[%s10 + $0x2e0] sm:$0xf]
      %v4616 = vld [vmem:[%s10 + $0x2e4] sm:$0xf]
      %v4617 = vld [vmem:[%s10 + $0x2e8] sm:$0xf]
      %v4618 = vld [vmem:[%s10 + $0x2ec] sm:$0xf]
      %v4619 = vld [vmem:[%s10 + $0x2f0] sm:$0xf]
      %v4620 = vld [vmem:[%s10 + $0x2f4] sm:$0xf]
      %v4621 = vld [vmem:[%s10 + $0x2f8] sm:$0xf]
      %v4622 = vld [vmem:[%s10 + $0x2fc] sm:$0xf]
      %v4623 = vld [vmem:[%s10 + $0x300] sm:$0xf]
      %v4624 = vld [vmem:[%s10 + $0x304] sm:$0xf]
      %v4625 = vld [vmem:[%s10 + $0x308] sm:$0xf]
      %v4626 = vld [vmem:[%s10 + $0x30c] sm:$0xf]
      %v4627 = vld [vmem:[%s10 + $0x310] sm:$0xf]
      %v4628 = vld [vmem:[%s10 + $0x314] sm:$0xf]
      %v4629 = vld [vmem:[%s10 + $0x318] sm:$0xf]
      %v4630 = vld [vmem:[%s10 + $0x31c] sm:$0xf]
      %v4631 = vld [vmem:[%s10 + $0x320] sm:$0xf]
      %v4632 = vld [vmem:[%s10 + $0x324] sm:$0xf]
      %v4633 = vld [vmem:[%s10 + $0x328] sm:$0xf]
      %v4634 = vld [vmem:[%s10 + $0x32c] sm:$0xf]
      %v4635 = vld [vmem:[%s10 + $0x330] sm:$0xf]
      %v4636 = vld [vmem:[%s10 + $0x334] sm:$0xf]
      %v4637 = vld [vmem:[%s10 + $0x338] sm:$0xf]
      %v4638 = vld [vmem:[%s10 + $0x33c] sm:$0xf]
      %v4639 = vld [vmem:[%s10 + $0x340] sm:$0xf]
      %v4640 = vld [vmem:[%s10 + $0x344] sm:$0xf]
      %v4641 = vld [vmem:[%s10 + $0x348] sm:$0xf]
      %v4642 = vld [vmem:[%s10 + $0x34c] sm:$0xf]
      %v4643 = vld [vmem:[%s10 + $0x350] sm:$0xf]
      %v4644 = vld [vmem:[%s10 + $0x354] sm:$0xf]
      %v4645 = vld [vmem:[%s10 + $0x358] sm:$0xf]
      %v4646 = vld [vmem:[%s10 + $0x35c] sm:$0xf]
      %v4647 = vld [vmem:[%s10 + $0x360] sm:$0xf]
      %v4648 = vld [vmem:[%s10 + $0x364] sm:$0xf]
      %v4649 = vld [vmem:[%s10 + $0x368] sm:$0xf]
      %v4650 = vld [vmem:[%s10 + $0x36c] sm:$0xf]
      %v4651 = vld [vmem:[%s10 + $0x370] sm:$0xf]
      %v4652 = vld [vmem:[%s10 + $0x374] sm:$0xf]
      %v4653 = vld [vmem:[%s10 + $0x378] sm:$0xf]
      %v4654 = vld [vmem:[%s10 + $0x37c] sm:$0xf]
      %v4655 = vld [vmem:[%s10 + $0x380] sm:$0xf]
      %v4656 = vld [vmem:[%s10 + $0x384] sm:$0xf]
      %v4657 = vld [vmem:[%s10 + $0x388] sm:$0xf]
      %v4658 = vld [vmem:[%s10 + $0x38c] sm:$0xf]
      %v4659 = vld [vmem:[%s10 + $0x390] sm:$0xf]
      %v4660 = vld [vmem:[%s10 + $0x394] sm:$0xf]
      %v4661 = vld [vmem:[%s10 + $0x398] sm:$0xf]
      %v4662 = vld [vmem:[%s10 + $0x39c] sm:$0xf]
      %v4663 = vld [vmem:[%s10 + $0x3a0] sm:$0xf]
      %v4664 = vld [vmem:[%s10 + $0x3a4] sm:$0xf]
      %v4665 = vld [vmem:[%s10 + $0x3a8] sm:$0xf]
      %v4666 = vld [vmem:[%s10 + $0x3ac] sm:$0xf]
      %v4667 = vld [vmem:[%s10 + $0x3b0] sm:$0xf]
      %v4668 = vld [vmem:[%s10 + $0x3b4] sm:$0xf]
      %v4669 = vld [vmem:[%s10 + $0x3b8] sm:$0xf]
      %v4670 = vld [vmem:[%s10 + $0x3bc] sm:$0xf]
      %v4671 = vld [vmem:[%s10 + $0x3c0] sm:$0xf]
      %v4672 = vld [vmem:[%s10 + $0x3c4] sm:$0xf]
      %v4673 = vld [vmem:[%s10 + $0x3c8] sm:$0xf]
      %v4674 = vld [vmem:[%s10 + $0x3cc] sm:$0xf]
      %v4675 = vld [vmem:[%s10 + $0x3d0] sm:$0xf]
      %v4676 = vld [vmem:[%s10 + $0x3d4] sm:$0xf]
      %v4677 = vld [vmem:[%s10 + $0x3d8] sm:$0xf]
      %v4678 = vld [vmem:[%s10 + $0x3dc] sm:$0xf]
      %v4679 = vld [vmem:[%s10 + $0x3e0] sm:$0xf]
      %v4680 = vld [vmem:[%s10 + $0x3e4] sm:$0xf]
      %v4681 = vld [vmem:[%s10 + $0x3e8] sm:$0xf]
      %v4682 = vld [vmem:[%s10 + $0x3ec] sm:$0xf]
      %v4683 = vld [vmem:[%s10 + $0x3f0] sm:$0xf]
      %v4684 = vld [vmem:[%s10 + $0x3f4] sm:$0xf]
      %v4685 = vld [vmem:[%s10 + $0x3f8] sm:$0xf]
      %v4686 = vld [vmem:[%s10 + $0x3fc] sm:$0xf]
      %v4687 = vld [vmem:[%s10 + $0x400] sm:$0xf]
      %v4688 = vld [vmem:[%s10 + $0x404] sm:$0xf]
      %v4689 = vld [vmem:[%s10 + $0x408] sm:$0xf]
      %v4690 = vld [vmem:[%s10 + $0x40c] sm:$0xf]
      %v4691 = vld [vmem:[%s10 + $0x410] sm:$0xf]
      %v4692 = vld [vmem:[%s10 + $0x414] sm:$0xf]
      %v4693 = vld [vmem:[%s10 + $0x418] sm:$0xf]
      %v4694 = vld [vmem:[%s10 + $0x41c] sm:$0xf]
      %v4695 = vld [vmem:[%s10 + $0x420] sm:$0xf]
      %v4696 = vld [vmem:[%s10 + $0x424] sm:$0xf]
      %v4697 = vld [vmem:[%s10 + $0x428] sm:$0xf]
      %v4698 = vld [vmem:[%s10 + $0x42c] sm:$0xf]
      %v4699 = vld [vmem:[%s10 + $0x430] sm:$0xf]
      %v4700 = vld [vmem:[%s10 + $0x434] sm:$0xf]
      %v4701 = vld [vmem:[%s10 + $0x438] sm:$0xf]
      %v4702 = vld [vmem:[%s10 + $0x43c] sm:$0xf]
      %v4703 = vld [vmem:[%s10 + $0x440] sm:$0xf]
      %v4704 = vld [vmem:[%s10 + $0x444] sm:$0xf]
      %v4705 = vld [vmem:[%s10 + $0x448] sm:$0xf]
      %v4706 = vld [vmem:[%s10 + $0x44c] sm:$0xf]
      %v4707 = vld [vmem:[%s10 + $0x450] sm:$0xf]
      %v4708 = vld [vmem:[%s10 + $0x454] sm:$0xf]
      %v4709 = vld [vmem:[%s10 + $0x458] sm:$0xf]
      %v4710 = vld [vmem:[%s10 + $0x45c] sm:$0xf]
      %v4711 = vld [vmem:[%s10 + $0x460] sm:$0xf]
      %v4712 = vld [vmem:[%s10 + $0x464] sm:$0xf]
      %v4713 = vld [vmem:[%s10 + $0x468] sm:$0xf]
      %v4714 = vld [vmem:[%s10 + $0x46c] sm:$0xf]
      %v4715 = vld [vmem:[%s10 + $0x470] sm:$0xf]
      %v4716 = vld [vmem:[%s10 + $0x474] sm:$0xf]
      %v4717 = vld [vmem:[%s10 + $0x478] sm:$0xf]
      %v4718 = vld [vmem:[%s10 + $0x47c] sm:$0xf]
      %v5007 = vunpack.c.l.b16 %v4431
      %v5008 = vunpack.c.l.b16 %v4432
      %v5009 = vunpack.c.l.b16 %v4433
      %v5010 = vunpack.c.l.b16 %v4434
      %v5011 = vunpack.c.l.b16 %v4435
      %v5012 = vunpack.c.l.b16 %v4436
      %v5013 = vunpack.c.l.b16 %v4437
      %v5014 = vunpack.c.l.b16 %v4438
      %v5015 = vunpack.c.l.b16 %v4439
      %v5016 = vunpack.c.l.b16 %v4440
      %v5017 = vunpack.c.l.b16 %v4441
      %v5018 = vunpack.c.l.b16 %v4442
      %v5019 = vunpack.c.l.b16 %v4443
      %v5020 = vunpack.c.l.b16 %v4444
      %v5021 = vunpack.c.l.b16 %v4445
      %v5022 = vunpack.c.l.b16 %v4446
      %v5023 = vunpack.c.l.b16 %v4447
      %v5024 = vunpack.c.l.b16 %v4448
      %v5025 = vunpack.c.l.b16 %v4449
      %v5026 = vunpack.c.l.b16 %v4450
      %v5027 = vunpack.c.l.b16 %v4451
      %v5028 = vunpack.c.l.b16 %v4452
      %v5029 = vunpack.c.l.b16 %v4453
      %v5030 = vunpack.c.l.b16 %v4454
      %v5031 = vunpack.c.l.b16 %v4455
      %v5032 = vunpack.c.l.b16 %v4456
      %v5033 = vunpack.c.l.b16 %v4457
      %v5034 = vunpack.c.l.b16 %v4458
      %v5035 = vunpack.c.l.b16 %v4459
      %v5036 = vunpack.c.l.b16 %v4460
      %v5037 = vunpack.c.l.b16 %v4461
      %v5038 = vunpack.c.l.b16 %v4462
      %v5039 = vunpack.c.l.b16 %v4463
      %v5040 = vunpack.c.l.b16 %v4464
      %v5041 = vunpack.c.l.b16 %v4465
      %v5042 = vunpack.c.l.b16 %v4466
      %v5043 = vunpack.c.l.b16 %v4467
      %v5044 = vunpack.c.l.b16 %v4468
      %v5045 = vunpack.c.l.b16 %v4469
      %v5046 = vunpack.c.l.b16 %v4470
      %v5047 = vunpack.c.l.b16 %v4471
      %v5048 = vunpack.c.l.b16 %v4472
      %v5049 = vunpack.c.l.b16 %v4473
      %v5050 = vunpack.c.l.b16 %v4474
      %v5051 = vunpack.c.l.b16 %v4475
      %v5052 = vunpack.c.l.b16 %v4476
      %v5053 = vunpack.c.l.b16 %v4477
      %v5054 = vunpack.c.l.b16 %v4478
      %v5055 = vunpack.c.l.b16 %v4479
      %v5056 = vunpack.c.l.b16 %v4480
      %v5057 = vunpack.c.l.b16 %v4481
      %v5058 = vunpack.c.l.b16 %v4482
      %v5059 = vunpack.c.l.b16 %v4483
      %v5060 = vunpack.c.l.b16 %v4484
      %v5061 = vunpack.c.l.b16 %v4485
      %v5062 = vunpack.c.l.b16 %v4486
      %v5063 = vunpack.c.l.b16 %v4487
      %v5064 = vunpack.c.l.b16 %v4488
      %v5065 = vunpack.c.l.b16 %v4489
      %v5066 = vunpack.c.l.b16 %v4490
      %v5067 = vunpack.c.l.b16 %v4491
      %v5068 = vunpack.c.l.b16 %v4492
      %v5069 = vunpack.c.l.b16 %v4493
      %v5070 = vunpack.c.l.b16 %v4494
      %v5071 = vunpack.c.l.b16 %v4495
      %v5072 = vunpack.c.l.b16 %v4496
      %v5073 = vunpack.c.l.b16 %v4497
      %v5074 = vunpack.c.l.b16 %v4498
      %v5075 = vunpack.c.l.b16 %v4499
      %v5076 = vunpack.c.l.b16 %v4500
      %v5077 = vunpack.c.l.b16 %v4501
      %v5078 = vunpack.c.l.b16 %v4502
      %v5079 = vunpack.c.l.b16 %v4503
      %v5080 = vunpack.c.l.b16 %v4504
      %v5081 = vunpack.c.l.b16 %v4505
      %v5082 = vunpack.c.l.b16 %v4506
      %v5083 = vunpack.c.l.b16 %v4507
      %v5084 = vunpack.c.l.b16 %v4508
      %v5085 = vunpack.c.l.b16 %v4509
      %v5086 = vunpack.c.l.b16 %v4510
      %v5087 = vunpack.c.l.b16 %v4511
      %v5088 = vunpack.c.l.b16 %v4512
      %v5089 = vunpack.c.l.b16 %v4513
      %v5090 = vunpack.c.l.b16 %v4514
      %v5091 = vunpack.c.l.b16 %v4515
      %v5092 = vunpack.c.l.b16 %v4516
      %v5093 = vunpack.c.l.b16 %v4517
      %v5094 = vunpack.c.l.b16 %v4518
      %v5095 = vunpack.c.l.b16 %v4519
      %v5096 = vunpack.c.l.b16 %v4520
      %v5097 = vunpack.c.l.b16 %v4521
      %v5098 = vunpack.c.l.b16 %v4522
      %v5099 = vunpack.c.l.b16 %v4523
      %v5100 = vunpack.c.l.b16 %v4524
      %v5101 = vunpack.c.l.b16 %v4525
      %v5102 = vunpack.c.l.b16 %v4526
      %v5103 = vunpack.c.l.b16 %v4527
      %v5104 = vunpack.c.l.b16 %v4528
      %v5105 = vunpack.c.l.b16 %v4529
      %v5106 = vunpack.c.l.b16 %v4530
      %v5107 = vunpack.c.l.b16 %v4531
      %v5108 = vunpack.c.l.b16 %v4532
      %v5109 = vunpack.c.l.b16 %v4533
      %v5110 = vunpack.c.l.b16 %v4534
      %v5111 = vunpack.c.l.b16 %v4535
      %v5112 = vunpack.c.l.b16 %v4536
      %v5113 = vunpack.c.l.b16 %v4537
      %v5114 = vunpack.c.l.b16 %v4538
      %v5115 = vunpack.c.l.b16 %v4539
      %v5116 = vunpack.c.l.b16 %v4540
      %v5117 = vunpack.c.l.b16 %v4541
      %v5118 = vunpack.c.l.b16 %v4542
      %v5119 = vunpack.c.l.b16 %v4543
      %v5120 = vunpack.c.l.b16 %v4544
      %v5121 = vunpack.c.l.b16 %v4545
      %v5122 = vunpack.c.l.b16 %v4546
      %v5123 = vunpack.c.l.b16 %v4547
      %v5124 = vunpack.c.l.b16 %v4548
      %v5125 = vunpack.c.l.b16 %v4549
      %v5126 = vunpack.c.l.b16 %v4550
      %v5127 = vunpack.c.l.b16 %v4551
      %v5128 = vunpack.c.l.b16 %v4552
      %v5129 = vunpack.c.l.b16 %v4553
      %v5130 = vunpack.c.l.b16 %v4554
      %v5131 = vunpack.c.l.b16 %v4555
      %v5132 = vunpack.c.l.b16 %v4556
      %v5133 = vunpack.c.l.b16 %v4557
      %v5134 = vunpack.c.l.b16 %v4558
      %v5135 = vunpack.c.l.b16 %v4559
      %v5136 = vunpack.c.l.b16 %v4560
      %v5137 = vunpack.c.l.b16 %v4561
      %v5138 = vunpack.c.l.b16 %v4562
      %v5139 = vunpack.c.l.b16 %v4563
      %v5140 = vunpack.c.l.b16 %v4564
      %v5141 = vunpack.c.l.b16 %v4565
      %v5142 = vunpack.c.l.b16 %v4566
      %v5143 = vunpack.c.l.b16 %v4567
      %v5144 = vunpack.c.l.b16 %v4568
      %v5145 = vunpack.c.l.b16 %v4569
      %v5146 = vunpack.c.l.b16 %v4570
      %v5147 = vunpack.c.l.b16 %v4571
      %v5148 = vunpack.c.l.b16 %v4572
      %v5149 = vunpack.c.l.b16 %v4573
      %v5150 = vunpack.c.l.b16 %v4574
      %v5151 = vunpack.c.l.b16 %v4575
      %v5152 = vunpack.c.l.b16 %v4576
      %v5153 = vunpack.c.l.b16 %v4577
      %v5154 = vunpack.c.l.b16 %v4578
      %v5155 = vunpack.c.l.b16 %v4579
      %v5156 = vunpack.c.l.b16 %v4580
      %v5157 = vunpack.c.l.b16 %v4581
      %v5158 = vunpack.c.l.b16 %v4582
      %v5159 = vunpack.c.l.b16 %v4583
      %v5160 = vunpack.c.l.b16 %v4584
      %v5161 = vunpack.c.l.b16 %v4585
      %v5162 = vunpack.c.l.b16 %v4586
      %v5163 = vunpack.c.l.b16 %v4587
      %v5164 = vunpack.c.l.b16 %v4588
      %v5165 = vunpack.c.l.b16 %v4589
      %v5166 = vunpack.c.l.b16 %v4590
      %v5167 = vunpack.c.l.b16 %v4591
      %v5168 = vunpack.c.l.b16 %v4592
      %v5169 = vunpack.c.l.b16 %v4593
      %v5170 = vunpack.c.l.b16 %v4594
      %v5171 = vunpack.c.l.b16 %v4595
      %v5172 = vunpack.c.l.b16 %v4596
      %v5173 = vunpack.c.l.b16 %v4597
      %v5174 = vunpack.c.l.b16 %v4598
      %v5175 = vunpack.c.l.b16 %v4599
      %v5176 = vunpack.c.l.b16 %v4600
      %v5177 = vunpack.c.l.b16 %v4601
      %v5178 = vunpack.c.l.b16 %v4602
      %v5179 = vunpack.c.l.b16 %v4603
      %v5180 = vunpack.c.l.b16 %v4604
      %v5181 = vunpack.c.l.b16 %v4605
      %v5182 = vunpack.c.l.b16 %v4606
      %v5183 = vunpack.c.l.b16 %v4607
      %v5184 = vunpack.c.l.b16 %v4608
      %v5185 = vunpack.c.l.b16 %v4609
      %v5186 = vunpack.c.l.b16 %v4610
      %v5187 = vunpack.c.l.b16 %v4611
      %v5188 = vunpack.c.l.b16 %v4612
      %v5189 = vunpack.c.l.b16 %v4613
      %v5190 = vunpack.c.l.b16 %v4614
      %v5191 = vunpack.c.l.b16 %v4615
      %v5192 = vunpack.c.l.b16 %v4616
      %v5193 = vunpack.c.l.b16 %v4617
      %v5194 = vunpack.c.l.b16 %v4618
      %v5195 = vunpack.c.l.b16 %v4619
      %v5196 = vunpack.c.l.b16 %v4620
      %v5197 = vunpack.c.l.b16 %v4621
      %v5198 = vunpack.c.l.b16 %v4622
      %v5199 = vunpack.c.l.b16 %v4623
      %v5200 = vunpack.c.l.b16 %v4624
      %v5201 = vunpack.c.l.b16 %v4625
      %v5202 = vunpack.c.l.b16 %v4626
      %v5203 = vunpack.c.l.b16 %v4627
      %v5204 = vunpack.c.l.b16 %v4628
      %v5205 = vunpack.c.l.b16 %v4629
      %v5206 = vunpack.c.l.b16 %v4630
      %v5207 = vunpack.c.l.b16 %v4631
      %v5208 = vunpack.c.l.b16 %v4632
      %v5209 = vunpack.c.l.b16 %v4633
      %v5210 = vunpack.c.l.b16 %v4634
      %v5211 = vunpack.c.l.b16 %v4635
      %v5212 = vunpack.c.l.b16 %v4636
      %v5213 = vunpack.c.l.b16 %v4637
      %v5214 = vunpack.c.l.b16 %v4638
      %v5215 = vunpack.c.l.b16 %v4639
      %v5216 = vunpack.c.l.b16 %v4640
      %v5217 = vunpack.c.l.b16 %v4641
      %v5218 = vunpack.c.l.b16 %v4642
      %v5219 = vunpack.c.l.b16 %v4643
      %v5220 = vunpack.c.l.b16 %v4644
      %v5221 = vunpack.c.l.b16 %v4645
      %v5222 = vunpack.c.l.b16 %v4646
      %v5223 = vunpack.c.l.b16 %v4647
      %v5224 = vunpack.c.l.b16 %v4648
      %v5225 = vunpack.c.l.b16 %v4649
      %v5226 = vunpack.c.l.b16 %v4650
      %v5227 = vunpack.c.l.b16 %v4651
      %v5228 = vunpack.c.l.b16 %v4652
      %v5229 = vunpack.c.l.b16 %v4653
      %v5230 = vunpack.c.l.b16 %v4654
      %v5231 = vunpack.c.l.b16 %v4655
      %v5232 = vunpack.c.l.b16 %v4656
      %v5233 = vunpack.c.l.b16 %v4657
      %v5234 = vunpack.c.l.b16 %v4658
      %v5235 = vunpack.c.l.b16 %v4659
      %v5236 = vunpack.c.l.b16 %v4660
      %v5237 = vunpack.c.l.b16 %v4661
      %v5238 = vunpack.c.l.b16 %v4662
      %v5239 = vunpack.c.l.b16 %v4663
      %v5240 = vunpack.c.l.b16 %v4664
      %v5241 = vunpack.c.l.b16 %v4665
      %v5242 = vunpack.c.l.b16 %v4666
      %v5243 = vunpack.c.l.b16 %v4667
      %v5244 = vunpack.c.l.b16 %v4668
      %v5245 = vunpack.c.l.b16 %v4669
      %v5246 = vunpack.c.l.b16 %v4670
      %v5247 = vunpack.c.l.b16 %v4671
      %v5248 = vunpack.c.l.b16 %v4672
      %v5249 = vunpack.c.l.b16 %v4673
      %v5250 = vunpack.c.l.b16 %v4674
      %v5251 = vunpack.c.l.b16 %v4675
      %v5252 = vunpack.c.l.b16 %v4676
      %v5253 = vunpack.c.l.b16 %v4677
      %v5254 = vunpack.c.l.b16 %v4678
      %v5255 = vunpack.c.l.b16 %v4679
      %v5256 = vunpack.c.l.b16 %v4680
      %v5257 = vunpack.c.l.b16 %v4681
      %v5258 = vunpack.c.l.b16 %v4682
      %v5259 = vunpack.c.l.b16 %v4683
      %v5260 = vunpack.c.l.b16 %v4684
      %v5261 = vunpack.c.l.b16 %v4685
      %v5262 = vunpack.c.l.b16 %v4686
      %v5263 = vunpack.c.l.b16 %v4687
      %v5264 = vunpack.c.l.b16 %v4688
      %v5265 = vunpack.c.l.b16 %v4689
      %v5266 = vunpack.c.l.b16 %v4690
      %v5267 = vunpack.c.l.b16 %v4691
      %v5268 = vunpack.c.l.b16 %v4692
      %v5269 = vunpack.c.l.b16 %v4693
      %v5270 = vunpack.c.l.b16 %v4694
      %v5271 = vunpack.c.l.b16 %v4695
      %v5272 = vunpack.c.l.b16 %v4696
      %v5273 = vunpack.c.l.b16 %v4697
      %v5274 = vunpack.c.l.b16 %v4698
      %v5275 = vunpack.c.l.b16 %v4699
      %v5276 = vunpack.c.l.b16 %v4700
      %v5277 = vunpack.c.l.b16 %v4701
      %v5278 = vunpack.c.l.b16 %v4702
      %v5279 = vunpack.c.l.b16 %v4703
      %v5280 = vunpack.c.l.b16 %v4704
      %v5281 = vunpack.c.l.b16 %v4705
      %v5282 = vunpack.c.l.b16 %v4706
      %v5283 = vunpack.c.l.b16 %v4707
      %v5284 = vunpack.c.l.b16 %v4708
      %v5285 = vunpack.c.l.b16 %v4709
      %v5286 = vunpack.c.l.b16 %v4710
      %v5287 = vunpack.c.l.b16 %v4711
      %v5288 = vunpack.c.l.b16 %v4712
      %v5289 = vunpack.c.l.b16 %v4713
      %v5290 = vunpack.c.l.b16 %v4714
      %v5291 = vunpack.c.l.b16 %v4715
      %v5292 = vunpack.c.l.b16 %v4716
      %v5293 = vunpack.c.l.b16 %v4717
      %v5294 = vunpack.c.l.b16 %v4718
      %v5295 = vpack.c.b16 %v5008, %v5007
      %v5296 = vpack.c.b16 %v5010, %v5009
      %v5297 = vpack.c.b16 %v5012, %v5011
      %v5298 = vpack.c.b16 %v5014, %v5013
      %v5299 = vpack.c.b16 %v5016, %v5015
      %v5300 = vpack.c.b16 %v5018, %v5017
      %v5301 = vpack.c.b16 %v5020, %v5019
      %v5302 = vpack.c.b16 %v5022, %v5021
      %v5303 = vpack.c.b16 %v5024, %v5023
      %v5304 = vpack.c.b16 %v5026, %v5025
      %v5305 = vpack.c.b16 %v5028, %v5027
      %v5306 = vpack.c.b16 %v5030, %v5029
      %v5307 = vpack.c.b16 %v5032, %v5031
      %v5308 = vpack.c.b16 %v5034, %v5033
      %v5309 = vpack.c.b16 %v5036, %v5035
      %v5310 = vpack.c.b16 %v5038, %v5037
      %v5311 = vpack.c.b16 %v5040, %v5039
      %v5312 = vpack.c.b16 %v5042, %v5041
      %v5313 = vpack.c.b16 %v5044, %v5043
      %v5314 = vpack.c.b16 %v5046, %v5045
      %v5315 = vpack.c.b16 %v5048, %v5047
      %v5316 = vpack.c.b16 %v5050, %v5049
      %v5317 = vpack.c.b16 %v5052, %v5051
      %v5318 = vpack.c.b16 %v5054, %v5053
      %v5319 = vpack.c.b16 %v5056, %v5055
      %v5320 = vpack.c.b16 %v5058, %v5057
      %v5321 = vpack.c.b16 %v5060, %v5059
      %v5322 = vpack.c.b16 %v5062, %v5061
      %v5323 = vpack.c.b16 %v5064, %v5063
      %v5324 = vpack.c.b16 %v5066, %v5065
      %v5325 = vpack.c.b16 %v5068, %v5067
      %v5326 = vpack.c.b16 %v5070, %v5069
      %v5327 = vpack.c.b16 %v5072, %v5071
      %v5328 = vpack.c.b16 %v5074, %v5073
      %v5329 = vpack.c.b16 %v5076, %v5075
      %v5330 = vpack.c.b16 %v5078, %v5077
      %v5331 = vpack.c.b16 %v5080, %v5079
      %v5332 = vpack.c.b16 %v5082, %v5081
      %v5333 = vpack.c.b16 %v5084, %v5083
      %v5334 = vpack.c.b16 %v5086, %v5085
      %v5335 = vpack.c.b16 %v5088, %v5087
      %v5336 = vpack.c.b16 %v5090, %v5089
      %v5337 = vpack.c.b16 %v5092, %v5091
      %v5338 = vpack.c.b16 %v5094, %v5093
      %v5339 = vpack.c.b16 %v5096, %v5095
      %v5340 = vpack.c.b16 %v5098, %v5097
      %v5341 = vpack.c.b16 %v5100, %v5099
      %v5342 = vpack.c.b16 %v5102, %v5101
      %v5343 = vpack.c.b16 %v5104, %v5103
      %v5344 = vpack.c.b16 %v5106, %v5105
      %v5345 = vpack.c.b16 %v5108, %v5107
      %v5346 = vpack.c.b16 %v5110, %v5109
      %v5347 = vpack.c.b16 %v5112, %v5111
      %v5348 = vpack.c.b16 %v5114, %v5113
      %v5349 = vpack.c.b16 %v5116, %v5115
      %v5350 = vpack.c.b16 %v5118, %v5117
      %v5351 = vpack.c.b16 %v5120, %v5119
      %v5352 = vpack.c.b16 %v5122, %v5121
      %v5353 = vpack.c.b16 %v5124, %v5123
      %v5354 = vpack.c.b16 %v5126, %v5125
      %v5355 = vpack.c.b16 %v5128, %v5127
      %v5356 = vpack.c.b16 %v5130, %v5129
      %v5357 = vpack.c.b16 %v5132, %v5131
      %v5358 = vpack.c.b16 %v5134, %v5133
      %v5359 = vpack.c.b16 %v5136, %v5135
      %v5360 = vpack.c.b16 %v5138, %v5137
      %v5361 = vpack.c.b16 %v5140, %v5139
      %v5362 = vpack.c.b16 %v5142, %v5141
      %v5363 = vpack.c.b16 %v5144, %v5143
      %v5364 = vpack.c.b16 %v5146, %v5145
      %v5365 = vpack.c.b16 %v5148, %v5147
      %v5366 = vpack.c.b16 %v5150, %v5149
      %v5367 = vpack.c.b16 %v5152, %v5151
      %v5368 = vpack.c.b16 %v5154, %v5153
      %v5369 = vpack.c.b16 %v5156, %v5155
      %v5370 = vpack.c.b16 %v5158, %v5157
      %v5371 = vpack.c.b16 %v5160, %v5159
      %v5372 = vpack.c.b16 %v5162, %v5161
      %v5373 = vpack.c.b16 %v5164, %v5163
      %v5374 = vpack.c.b16 %v5166, %v5165
      %v5375 = vpack.c.b16 %v5168, %v5167
      %v5376 = vpack.c.b16 %v5170, %v5169
      %v5377 = vpack.c.b16 %v5172, %v5171
      %v5378 = vpack.c.b16 %v5174, %v5173
      %v5379 = vpack.c.b16 %v5176, %v5175
      %v5380 = vpack.c.b16 %v5178, %v5177
      %v5381 = vpack.c.b16 %v5180, %v5179
      %v5382 = vpack.c.b16 %v5182, %v5181
      %v5383 = vpack.c.b16 %v5184, %v5183
      %v5384 = vpack.c.b16 %v5186, %v5185
      %v5385 = vpack.c.b16 %v5188, %v5187
      %v5386 = vpack.c.b16 %v5190, %v5189
      %v5387 = vpack.c.b16 %v5192, %v5191
      %v5388 = vpack.c.b16 %v5194, %v5193
      %v5389 = vpack.c.b16 %v5196, %v5195
      %v5390 = vpack.c.b16 %v5198, %v5197
      %v5391 = vpack.c.b16 %v5200, %v5199
      %v5392 = vpack.c.b16 %v5202, %v5201
      %v5393 = vpack.c.b16 %v5204, %v5203
      %v5394 = vpack.c.b16 %v5206, %v5205
      %v5395 = vpack.c.b16 %v5208, %v5207
      %v5396 = vpack.c.b16 %v5210, %v5209
      %v5397 = vpack.c.b16 %v5212, %v5211
      %v5398 = vpack.c.b16 %v5214, %v5213
      %v5399 = vpack.c.b16 %v5216, %v5215
      %v5400 = vpack.c.b16 %v5218, %v5217
      %v5401 = vpack.c.b16 %v5220, %v5219
      %v5402 = vpack.c.b16 %v5222, %v5221
      %v5403 = vpack.c.b16 %v5224, %v5223
      %v5404 = vpack.c.b16 %v5226, %v5225
      %v5405 = vpack.c.b16 %v5228, %v5227
      %v5406 = vpack.c.b16 %v5230, %v5229
      %v5407 = vpack.c.b16 %v5232, %v5231
      %v5408 = vpack.c.b16 %v5234, %v5233
      %v5409 = vpack.c.b16 %v5236, %v5235
      %v5410 = vpack.c.b16 %v5238, %v5237
      %v5411 = vpack.c.b16 %v5240, %v5239
      %v5412 = vpack.c.b16 %v5242, %v5241
      %v5413 = vpack.c.b16 %v5244, %v5243
      %v5414 = vpack.c.b16 %v5246, %v5245
      %v5415 = vpack.c.b16 %v5248, %v5247
      %v5416 = vpack.c.b16 %v5250, %v5249
      %v5417 = vpack.c.b16 %v5252, %v5251
      %v5418 = vpack.c.b16 %v5254, %v5253
      %v5419 = vpack.c.b16 %v5256, %v5255
      %v5420 = vpack.c.b16 %v5258, %v5257
      %v5421 = vpack.c.b16 %v5260, %v5259
      %v5422 = vpack.c.b16 %v5262, %v5261
      %v5423 = vpack.c.b16 %v5264, %v5263
      %v5424 = vpack.c.b16 %v5266, %v5265
      %v5425 = vpack.c.b16 %v5268, %v5267
      %v5426 = vpack.c.b16 %v5270, %v5269
      %v5427 = vpack.c.b16 %v5272, %v5271
      %v5428 = vpack.c.b16 %v5274, %v5273
      %v5429 = vpack.c.b16 %v5276, %v5275
      %v5430 = vpack.c.b16 %v5278, %v5277
      %v5431 = vpack.c.b16 %v5280, %v5279
      %v5432 = vpack.c.b16 %v5282, %v5281
      %v5433 = vpack.c.b16 %v5284, %v5283
      %v5434 = vpack.c.b16 %v5286, %v5285
      %v5435 = vpack.c.b16 %v5288, %v5287
      %v5436 = vpack.c.b16 %v5290, %v5289
      %v5437 = vpack.c.b16 %v5292, %v5291
      %v5438 = vpack.c.b16 %v5294, %v5293
      %v5440 = vsel %vm2247, %v5295, 0
      %v5443 = vsel %vm2247, %v5296, 0
      %v5446 = vsel %vm2247, %v5297, 0
      %v5449 = vsel %vm2247, %v5298, 0
      %v5452 = vsel %vm2247, %v5299, 0
      %v5455 = vsel %vm2247, %v5300, 0
      %v5458 = vsel %vm2247, %v5301, 0
      %v5461 = vsel %vm2247, %v5302, 0
      %v5464 = vsel %vm2247, %v5303, 0
      %v5467 = vsel %vm2247, %v5304, 0
      %v5470 = vsel %vm2247, %v5305, 0
      %v5473 = vsel %vm2247, %v5306, 0
      %v5476 = vsel %vm2247, %v5307, 0
      %v5479 = vsel %vm2247, %v5308, 0
      %v5482 = vsel %vm2247, %v5309, 0
      %v5485 = vsel %vm2247, %v5310, 0
      %v5488 = vsel %vm2247, %v5311, 0
      %v5491 = vsel %vm2247, %v5312, 0
      %v5494 = vsel %vm2247, %v5313, 0
      %v5497 = vsel %vm2247, %v5314, 0
      %v5500 = vsel %vm2247, %v5315, 0
      %v5503 = vsel %vm2247, %v5316, 0
      %v5506 = vsel %vm2247, %v5317, 0
      %v5509 = vsel %vm2247, %v5318, 0
      %v5512 = vsel %vm2247, %v5319, 0
      %v5515 = vsel %vm2247, %v5320, 0
      %v5518 = vsel %vm2247, %v5321, 0
      %v5521 = vsel %vm2247, %v5322, 0
      %v5524 = vsel %vm2247, %v5323, 0
      %v5527 = vsel %vm2247, %v5324, 0
      %v5530 = vsel %vm2247, %v5325, 0
      %v5533 = vsel %vm2247, %v5326, 0
      %v5536 = vsel %vm2247, %v5327, 0
      %v5539 = vsel %vm2247, %v5328, 0
      %v5542 = vsel %vm2247, %v5329, 0
      %v5545 = vsel %vm2247, %v5330, 0
      %v5548 = vsel %vm2247, %v5331, 0
      %v5551 = vsel %vm2247, %v5332, 0
      %v5554 = vsel %vm2247, %v5333, 0
      %v5557 = vsel %vm2247, %v5334, 0
      %v5560 = vsel %vm2247, %v5335, 0
      %v5563 = vsel %vm2247, %v5336, 0
      %v5566 = vsel %vm2247, %v5337, 0
      %v5569 = vsel %vm2247, %v5338, 0
      %v5572 = vsel %vm2247, %v5339, 0
      %v5575 = vsel %vm2247, %v5340, 0
      %v5578 = vsel %vm2247, %v5341, 0
      %v5581 = vsel %vm2247, %v5342, 0
      %v5584 = vsel %vm2247, %v5343, 0
      %v5587 = vsel %vm2247, %v5344, 0
      %v5590 = vsel %vm2247, %v5345, 0
      %v5593 = vsel %vm2247, %v5346, 0
      %v5596 = vsel %vm2247, %v5347, 0
      %v5599 = vsel %vm2247, %v5348, 0
      %v5602 = vsel %vm2247, %v5349, 0
      %v5605 = vsel %vm2247, %v5350, 0
      %v5608 = vsel %vm2247, %v5351, 0
      %v5611 = vsel %vm2247, %v5352, 0
      %v5614 = vsel %vm2247, %v5353, 0
      %v5617 = vsel %vm2247, %v5354, 0
      %v5620 = vsel %vm2247, %v5355, 0
      %v5623 = vsel %vm2247, %v5356, 0
      %v5626 = vsel %vm2247, %v5357, 0
      %v5629 = vsel %vm2247, %v5358, 0
      %v5632 = vsel %vm2247, %v5359, 0
      %v5635 = vsel %vm2247, %v5360, 0
      %v5638 = vsel %vm2247, %v5361, 0
      %v5641 = vsel %vm2247, %v5362, 0
      %v5644 = vsel %vm2247, %v5363, 0
      %v5647 = vsel %vm2247, %v5364, 0
      %v5650 = vsel %vm2247, %v5365, 0
      %v5653 = vsel %vm2247, %v5366, 0
      %v5656 = vsel %vm2247, %v5367, 0
      %v5659 = vsel %vm2247, %v5368, 0
      %v5662 = vsel %vm2247, %v5369, 0
      %v5665 = vsel %vm2247, %v5370, 0
      %v5668 = vsel %vm2247, %v5371, 0
      %v5671 = vsel %vm2247, %v5372, 0
      %v5674 = vsel %vm2247, %v5373, 0
      %v5677 = vsel %vm2247, %v5374, 0
      %v5680 = vsel %vm2247, %v5375, 0
      %v5683 = vsel %vm2247, %v5376, 0
      %v5686 = vsel %vm2247, %v5377, 0
      %v5689 = vsel %vm2247, %v5378, 0
      %v5692 = vsel %vm2247, %v5379, 0
      %v5695 = vsel %vm2247, %v5380, 0
      %v5698 = vsel %vm2247, %v5381, 0
      %v5701 = vsel %vm2247, %v5382, 0
      %v5704 = vsel %vm2247, %v5383, 0
      %v5707 = vsel %vm2247, %v5384, 0
      %v5710 = vsel %vm2247, %v5385, 0
      %v5713 = vsel %vm2247, %v5386, 0
      %v5716 = vsel %vm2247, %v5387, 0
      %v5719 = vsel %vm2247, %v5388, 0
      %v5722 = vsel %vm2247, %v5389, 0
      %v5725 = vsel %vm2247, %v5390, 0
      %v5728 = vsel %vm2247, %v5391, 0
      %v5731 = vsel %vm2247, %v5392, 0
      %v5734 = vsel %vm2247, %v5393, 0
      %v5737 = vsel %vm2247, %v5394, 0
      %v5740 = vsel %vm2247, %v5395, 0
      %v5743 = vsel %vm2247, %v5396, 0
      %v5746 = vsel %vm2247, %v5397, 0
      %v5749 = vsel %vm2247, %v5398, 0
      %v5752 = vsel %vm2247, %v5399, 0
      %v5755 = vsel %vm2247, %v5400, 0
      %v5758 = vsel %vm2247, %v5401, 0
      %v5761 = vsel %vm2247, %v5402, 0
      %v5764 = vsel %vm2247, %v5403, 0
      %v5767 = vsel %vm2247, %v5404, 0
      %v5770 = vsel %vm2247, %v5405, 0
      %v5773 = vsel %vm2247, %v5406, 0
      %v5776 = vsel %vm2247, %v5407, 0
      %v5779 = vsel %vm2247, %v5408, 0
      %v5782 = vsel %vm2247, %v5409, 0
      %v5785 = vsel %vm2247, %v5410, 0
      %v5788 = vsel %vm2247, %v5411, 0
      %v5791 = vsel %vm2247, %v5412, 0
      %v5794 = vsel %vm2247, %v5413, 0
      %v5797 = vsel %vm2247, %v5414, 0
      %v5800 = vsel %vm2247, %v5415, 0
      %v5803 = vsel %vm2247, %v5416, 0
      %v5806 = vsel %vm2247, %v5417, 0
      %v5809 = vsel %vm2247, %v5418, 0
      %v5812 = vsel %vm2247, %v5419, 0
      %v5815 = vsel %vm2247, %v5420, 0
      %v5818 = vsel %vm2247, %v5421, 0
      %v5821 = vsel %vm2247, %v5422, 0
      %v5824 = vsel %vm2247, %v5423, 0
      %v5827 = vsel %vm2247, %v5424, 0
      %v5830 = vsel %vm2247, %v5425, 0
      %v5833 = vsel %vm2247, %v5426, 0
      %v5836 = vsel %vm2247, %v5427, 0
      %v5839 = vsel %vm2247, %v5428, 0
      %v5842 = vsel %vm2247, %v5429, 0
      %v5845 = vsel %vm2247, %v5430, 0
      %v5848 = vsel %vm2247, %v5431, 0
      %v5851 = vsel %vm2247, %v5432, 0
      %v5854 = vsel %vm2247, %v5433, 0
      %v5857 = vsel %vm2247, %v5434, 0
      %v5860 = vsel %vm2247, %v5435, 0
      %v5863 = vsel %vm2247, %v5436, 0
      %v5866 = vsel %vm2247, %v5437, 0
      %v5869 = vsel %vm2247, %v5438, 0
      %5871 = vmatprep.subr.bf16.mxu0 0
      %5872 = vmatpush1.bf16.msra.mxu0 %v4427
      %5873 = vmatprep.subr.bf16.mxu0 0
      %5874 = vmatpush1.bf16.msra.mxu0 %v4428
      %5875 = vmatprep.subr.bf16.mxu0 0
      %5876 = vmatpush1.bf16.msra.mxu0 %v4429
      %5877 = vmatprep.subr.bf16.mxu0 0
      %5878 = vmatpush1.bf16.msra.mxu0 %v4430
      %5879 = vmatprep.subr.bf16.mxu0 0
      %5880 = vmatpush1.bf16.msra.mxu0 0
      %5881 = vmatprep.subr.bf16.mxu0 0
      %5882 = vmatpush1.bf16.msra.mxu0 0
      %5883 = vmatprep.subr.bf16.mxu0 0
      %5884 = vmatpush1.bf16.msra.mxu0 0
      %5885 = vmatprep.subr.bf16.mxu0 0
      %5886 = vmatpush1.bf16.msra.mxu0 0
      %5887 = vmatprep.subr.bf16.mxu0 0
      %5888 = vmatpush1.bf16.msra.mxu0 0
      %5889 = vmatprep.subr.bf16.mxu0 0
      %5890 = vmatpush1.bf16.msra.mxu0 0
      %5891 = vmatprep.subr.bf16.mxu0 0
      %5892 = vmatpush1.bf16.msra.mxu0 0
      %5893 = vmatprep.subr.bf16.mxu0 0
      %5894 = vmatpush1.bf16.msra.mxu0 0
      %5895 = vmatprep.subr.bf16.mxu0 0
      %5896 = vmatpush1.bf16.msra.mxu0 0
      %5897 = vmatprep.subr.bf16.mxu0 0
      %5898 = vmatpush1.bf16.msra.mxu0 0
      %5899 = vmatprep.subr.bf16.mxu0 0
      %5900 = vmatpush1.bf16.msra.mxu0 0
      %5901 = vmatprep.subr.bf16.mxu0 0
      %5902 = vmatpush1.bf16.msra.mxu0 0
      %5903 = vmatprep.mubr.bf16.mxu0 0
      %5904 = vmatmul.mubr.bf16.gmra.mrb[0].mxu0 %v5440
      %v5905 = vpop.f32.mrb[0].mxu0
      %v5906 = vadd.f32 0.0, %v5905
      %v5907 = vpop.f32.mrb[0].mxu0
      %v5908 = vpop.f32.mrb[0].mxu0
      %v5909 = vadd.f32 0.0, %v5908
      %v5910 = vpop.f32.mrb[0].mxu0
      %5911 = vmatprep.mubr.bf16.mxu0 0
      %5912 = vmatmul.mubr.bf16.gmra.mrb[0].mxu0 %v5443
      %v5913 = vpop.f32.mrb[0].mxu0
      %v5914 = vadd.f32 0.0, %v5913
      %v5915 = vpop.f32.mrb[0].mxu0
      %v5916 = vpop.f32.mrb[0].mxu0
      %v5917 = vadd.f32 0.0, %v5916
      %v5918 = vpop.f32.mrb[0].mxu0
      %5919 = vmatprep.mubr.bf16.mxu0 0
      %5920 = vmatmul.mubr.bf16.gmra.mrb[0].mxu0 %v5446
      %v5921 = vpop.f32.mrb[0].mxu0
      %v5922 = vadd.f32 0.0, %v5921
      %v5923 = vpop.f32.mrb[0].mxu0
      %v5924 = vpop.f32.mrb[0].mxu0
      %v5925 = vadd.f32 0.0, %v5924
      %v5926 = vpop.f32.mrb[0].mxu0
      %5927 = vmatprep.mubr.bf16.mxu0 0
      %5928 = vmatmul.mubr.bf16.gmra.mrb[0].mxu0 %v5449
      %v5929 = vpop.f32.mrb[0].mxu0
      %v5930 = vadd.f32 0.0, %v5929
      %v5931 = vpop.f32.mrb[0].mxu0
      %v5932 = vpop.f32.mrb[0].mxu0
      %v5933 = vadd.f32 0.0, %v5932
      %v5934 = vpop.f32.mrb[0].mxu0
      %5935 = vmatprep.mubr.bf16.mxu0 0
      %5936 = vmatmul.mubr.bf16.gmra.mrb[0].mxu0 %v5452
      %v5937 = vpop.f32.mrb[0].mxu0
      %v5938 = vadd.f32 0.0, %v5937
      %v5939 = vpop.f32.mrb[0].mxu0
      %v5940 = vpop.f32.mrb[0].mxu0
      %v5941 = vadd.f32 0.0, %v5940
      %v5942 = vpop.f32.mrb[0].mxu0
      %5943 = vmatprep.mubr.bf16.mxu0 0
      %5944 = vmatmul.mubr.bf16.gmra.mrb[0].mxu0 %v5455
      %v5945 = vpop.f32.mrb[0].mxu0
      %v5946 = vadd.f32 0.0, %v5945
      %v5947 = vpop.f32.mrb[0].mxu0
      %v5948 = vpop.f32.mrb[0].mxu0
      %v5949 = vadd.f32 0.0, %v5948
      %v5950 = vpop.f32.mrb[0].mxu0
      %5951 = vmatprep.mubr.bf16.mxu0 0
      %5952 = vmatmul.mubr.bf16.gmra.mrb[0].mxu0 %v5458
      %v5953 = vpop.f32.mrb[0].mxu0
      %v5954 = vadd.f32 0.0, %v5953
      %v5955 = vpop.f32.mrb[0].mxu0
      %v5956 = vpop.f32.mrb[0].mxu0
      %v5957 = vadd.f32 0.0, %v5956
      %v5958 = vpop.f32.mrb[0].mxu0
      %5959 = vmatprep.mubr.bf16.mxu0 0
      %5960 = vmatmul.mubr.bf16.gmra.mrb[0].mxu0 %v5461
      %v5961 = vpop.f32.mrb[0].mxu0
      %v5962 = vadd.f32 0.0, %v5961
      %v5963 = vpop.f32.mrb[0].mxu0
      %v5964 = vpop.f32.mrb[0].mxu0
      %v5965 = vadd.f32 0.0, %v5964
      %v5966 = vpop.f32.mrb[0].mxu0
      %5967 = vmatprep.mubr.bf16.mxu0 0
      %5968 = vmatmul.mubr.bf16.gmra.mrb[0].mxu0 %v5464
      %v5969 = vpop.f32.mrb[0].mxu0
      %v5970 = vadd.f32 0.0, %v5969
      %v5971 = vpop.f32.mrb[0].mxu0
      %v5972 = vpop.f32.mrb[0].mxu0
      %v5973 = vadd.f32 0.0, %v5972
      %v5974 = vpop.f32.mrb[0].mxu0
      %5975 = vmatprep.mubr.bf16.mxu0 0
      %5976 = vmatmul.mubr.bf16.gmra.mrb[0].mxu0 %v5467
      %v5977 = vpop.f32.mrb[0].mxu0
      %v5978 = vadd.f32 0.0, %v5977
      %v5979 = vpop.f32.mrb[0].mxu0
      %v5980 = vpop.f32.mrb[0].mxu0
      %v5981 = vadd.f32 0.0, %v5980
      %v5982 = vpop.f32.mrb[0].mxu0
      %5983 = vmatprep.mubr.bf16.mxu0 0
      %5984 = vmatmul.mubr.bf16.gmra.mrb[0].mxu0 %v5470
      %v5985 = vpop.f32.mrb[0].mxu0
      %v5986 = vadd.f32 0.0, %v5985
      %v5987 = vpop.f32.mrb[0].mxu0
      %v5988 = vpop.f32.mrb[0].mxu0
      %v5989 = vadd.f32 0.0, %v5988
      %v5990 = vpop.f32.mrb[0].mxu0
      %5991 = vmatprep.mubr.bf16.mxu0 0
      %5992 = vmatmul.mubr.bf16.gmra.mrb[0].mxu0 %v5473
      %v5993 = vpop.f32.mrb[0].mxu0
      %v5994 = vadd.f32 0.0, %v5993
      %v5995 = vpop.f32.mrb[0].mxu0
      %v5996 = vpop.f32.mrb[0].mxu0
      %v5997 = vadd.f32 0.0, %v5996
      %v5998 = vpop.f32.mrb[0].mxu0
      %5999 = vmatprep.mubr.bf16.mxu0 0
      %6000 = vmatmul.mubr.bf16.gmra.mrb[0].mxu0 %v5476
      %v6001 = vpop.f32.mrb[0].mxu0
      %v6002 = vadd.f32 0.0, %v6001
      %v6003 = vpop.f32.mrb[0].mxu0
      %v6004 = vpop.f32.mrb[0].mxu0
      %v6005 = vadd.f32 0.0, %v6004
      %v6006 = vpop.f32.mrb[0].mxu0
      %6007 = vmatprep.mubr.bf16.mxu0 0
      %6008 = vmatmul.mubr.bf16.gmra.mrb[0].mxu0 %v5479
      %v6009 = vpop.f32.mrb[0].mxu0
      %v6010 = vadd.f32 0.0, %v6009
      %v6011 = vpop.f32.mrb[0].mxu0
      %v6012 = vpop.f32.mrb[0].mxu0
      %v6013 = vadd.f32 0.0, %v6012
      %v6014 = vpop.f32.mrb[0].mxu0
      %6015 = vmatprep.mubr.bf16.mxu0 0
      %6016 = vmatmul.mubr.bf16.gmra.mrb[0].mxu0 %v5482
      %v6017 = vpop.f32.mrb[0].mxu0
      %v6018 = vadd.f32 0.0, %v6017
      %v6019 = vpop.f32.mrb[0].mxu0
      %v6020 = vpop.f32.mrb[0].mxu0
      %v6021 = vadd.f32 0.0, %v6020
      %v6022 = vpop.f32.mrb[0].mxu0
      %6023 = vmatprep.mubr.bf16.mxu0 0
      %6024 = vmatmul.mubr.bf16.gmra.mrb[0].mxu0 %v5485
      %v6025 = vpop.f32.mrb[0].mxu0
      %v6026 = vadd.f32 0.0, %v6025
      %v6027 = vpop.f32.mrb[0].mxu0
      %v6028 = vpop.f32.mrb[0].mxu0
      %v6029 = vadd.f32 0.0, %v6028
      %v6030 = vpop.f32.mrb[0].mxu0
      %6031 = vmatprep.mubr.bf16.mxu0 0
      %6032 = vmatmul.mubr.bf16.gmra.mrb[0].mxu0 %v5488
      %v6033 = vpop.f32.mrb[0].mxu0
      %v6034 = vadd.f32 0.0, %v6033
      %v6035 = vpop.f32.mrb[0].mxu0
      %v6036 = vpop.f32.mrb[0].mxu0
      %v6037 = vadd.f32 0.0, %v6036
      %v6038 = vpop.f32.mrb[0].mxu0
      %6039 = vmatprep.mubr.bf16.mxu0 0
      %6040 = vmatmul.mubr.bf16.gmra.mrb[0].mxu0 %v5491
      %v6041 = vpop.f32.mrb[0].mxu0
      %v6042 = vadd.f32 0.0, %v6041
      %v6043 = vpop.f32.mrb[0].mxu0
      %v6044 = vpop.f32.mrb[0].mxu0
      %v6045 = vadd.f32 0.0, %v6044
      %v6046 = vpop.f32.mrb[0].mxu0
      %6047 = vmatprep.mubr.bf16.mxu0 0
      %6048 = vmatmul.mubr.bf16.gmra.mrb[0].mxu0 %v5494
      %v6049 = vpop.f32.mrb[0].mxu0
      %v6050 = vadd.f32 0.0, %v6049
      %v6051 = vpop.f32.mrb[0].mxu0
      %v6052 = vpop.f32.mrb[0].mxu0
      %v6053 = vadd.f32 0.0, %v6052
      %v6054 = vpop.f32.mrb[0].mxu0
      %6055 = vmatprep.mubr.bf16.mxu0 0
      %6056 = vmatmul.mubr.bf16.gmra.mrb[0].mxu0 %v5497
      %v6057 = vpop.f32.mrb[0].mxu0
      %v6058 = vadd.f32 0.0, %v6057
      %v6059 = vpop.f32.mrb[0].mxu0
      %v6060 = vpop.f32.mrb[0].mxu0
      %v6061 = vadd.f32 0.0, %v6060
      %v6062 = vpop.f32.mrb[0].mxu0
      %6063 = vmatprep.mubr.bf16.mxu0 0
      %6064 = vmatmul.mubr.bf16.gmra.mrb[0].mxu0 %v5500
      %v6065 = vpop.f32.mrb[0].mxu0
      %v6066 = vadd.f32 0.0, %v6065
      %v6067 = vpop.f32.mrb[0].mxu0
      %v6068 = vpop.f32.mrb[0].mxu0
      %v6069 = vadd.f32 0.0, %v6068
      %v6070 = vpop.f32.mrb[0].mxu0
      %6071 = vmatprep.mubr.bf16.mxu0 0
      %6072 = vmatmul.mubr.bf16.gmra.mrb[0].mxu0 %v5503
      %v6073 = vpop.f32.mrb[0].mxu0
      %v6074 = vadd.f32 0.0, %v6073
      %v6075 = vpop.f32.mrb[0].mxu0
      %v6076 = vpop.f32.mrb[0].mxu0
      %v6077 = vadd.f32 0.0, %v6076
      %v6078 = vpop.f32.mrb[0].mxu0
      %6079 = vmatprep.mubr.bf16.mxu0 0
      %6080 = vmatmul.mubr.bf16.gmra.mrb[0].mxu0 %v5506
      %v6081 = vpop.f32.mrb[0].mxu0
      %v6082 = vadd.f32 0.0, %v6081
      %v6083 = vpop.f32.mrb[0].mxu0
      %v6084 = vpop.f32.mrb[0].mxu0
      %v6085 = vadd.f32 0.0, %v6084
      %v6086 = vpop.f32.mrb[0].mxu0
      %6087 = vmatprep.mubr.bf16.mxu0 0
      %6088 = vmatmul.mubr.bf16.gmra.mrb[0].mxu0 %v5509
      %v6089 = vpop.f32.mrb[0].mxu0
      %v6090 = vadd.f32 0.0, %v6089
      %v6091 = vpop.f32.mrb[0].mxu0
      %v6092 = vpop.f32.mrb[0].mxu0
      %v6093 = vadd.f32 0.0, %v6092
      %v6094 = vpop.f32.mrb[0].mxu0
      %6095 = vmatprep.mubr.bf16.mxu0 0
      %6096 = vmatmul.mubr.bf16.gmra.mrb[0].mxu0 %v5512
      %v6097 = vpop.f32.mrb[0].mxu0
      %v6098 = vadd.f32 0.0, %v6097
      %v6099 = vpop.f32.mrb[0].mxu0
      %v6100 = vpop.f32.mrb[0].mxu0
      %v6101 = vadd.f32 0.0, %v6100
      %v6102 = vpop.f32.mrb[0].mxu0
      %6103 = vmatprep.mubr.bf16.mxu0 0
      %6104 = vmatmul.mubr.bf16.gmra.mrb[0].mxu0 %v5515
      %v6105 = vpop.f32.mrb[0].mxu0
      %v6106 = vadd.f32 0.0, %v6105
      %v6107 = vpop.f32.mrb[0].mxu0
      %v6108 = vpop.f32.mrb[0].mxu0
      %v6109 = vadd.f32 0.0, %v6108
      %v6110 = vpop.f32.mrb[0].mxu0
      %6111 = vmatprep.mubr.bf16.mxu0 0
      %6112 = vmatmul.mubr.bf16.gmra.mrb[0].mxu0 %v5518
      %v6113 = vpop.f32.mrb[0].mxu0
      %v6114 = vadd.f32 0.0, %v6113
      %v6115 = vpop.f32.mrb[0].mxu0
      %v6116 = vpop.f32.mrb[0].mxu0
      %v6117 = vadd.f32 0.0, %v6116
      %v6118 = vpop.f32.mrb[0].mxu0
      %6119 = vmatprep.mubr.bf16.mxu0 0
      %6120 = vmatmul.mubr.bf16.gmra.mrb[0].mxu0 %v5521
      %v6121 = vpop.f32.mrb[0].mxu0
      %v6122 = vadd.f32 0.0, %v6121
      %v6123 = vpop.f32.mrb[0].mxu0
      %v6124 = vpop.f32.mrb[0].mxu0
      %v6125 = vadd.f32 0.0, %v6124
      %v6126 = vpop.f32.mrb[0].mxu0
      %6127 = vmatprep.mubr.bf16.mxu0 0
      %6128 = vmatmul.mubr.bf16.gmra.mrb[0].mxu0 %v5524
      %v6129 = vpop.f32.mrb[0].mxu0
      %v6130 = vadd.f32 0.0, %v6129
      %v6131 = vpop.f32.mrb[0].mxu0
      %v6132 = vpop.f32.mrb[0].mxu0
      %v6133 = vadd.f32 0.0, %v6132
      %v6134 = vpop.f32.mrb[0].mxu0
      %6135 = vmatprep.mubr.bf16.mxu0 0
      %6136 = vmatmul.mubr.bf16.gmra.mrb[0].mxu0 %v5527
      %v6137 = vpop.f32.mrb[0].mxu0
      %v6138 = vadd.f32 0.0, %v6137
      %v6139 = vpop.f32.mrb[0].mxu0
      %v6140 = vpop.f32.mrb[0].mxu0
      %v6141 = vadd.f32 0.0, %v6140
      %v6142 = vpop.f32.mrb[0].mxu0
      %6143 = vmatprep.mubr.bf16.mxu0 0
      %6144 = vmatmul.mubr.bf16.gmra.mrb[0].mxu0 %v5530
      %v6145 = vpop.f32.mrb[0].mxu0
      %v6146 = vadd.f32 0.0, %v6145
      %v6147 = vpop.f32.mrb[0].mxu0
      %v6148 = vpop.f32.mrb[0].mxu0
      %v6149 = vadd.f32 0.0, %v6148
      %v6150 = vpop.f32.mrb[0].mxu0
      %6151 = vmatprep.mubr.bf16.mxu0 0
      %6152 = vmatmul.mubr.bf16.gmra.mrb[0].mxu0 %v5533
      %v6153 = vpop.f32.mrb[0].mxu0
      %v6154 = vadd.f32 0.0, %v6153
      %v6155 = vpop.f32.mrb[0].mxu0
      %v6156 = vpop.f32.mrb[0].mxu0
      %v6157 = vadd.f32 0.0, %v6156
      %v6158 = vpop.f32.mrb[0].mxu0
      %6159 = vmatprep.mubr.bf16.mxu0 0
      %6160 = vmatmul.mubr.bf16.gmra.mrb[0].mxu0 %v5536
      %v6161 = vpop.f32.mrb[0].mxu0
      %v6162 = vadd.f32 0.0, %v6161
      %v6163 = vpop.f32.mrb[0].mxu0
      %v6164 = vpop.f32.mrb[0].mxu0
      %v6165 = vadd.f32 0.0, %v6164
      %v6166 = vpop.f32.mrb[0].mxu0
      %6167 = vmatprep.mubr.bf16.mxu0 0
      %6168 = vmatmul.mubr.bf16.gmra.mrb[0].mxu0 %v5539
      %v6169 = vpop.f32.mrb[0].mxu0
      %v6170 = vadd.f32 0.0, %v6169
      %v6171 = vpop.f32.mrb[0].mxu0
      %v6172 = vpop.f32.mrb[0].mxu0
      %v6173 = vadd.f32 0.0, %v6172
      %v6174 = vpop.f32.mrb[0].mxu0
      %6175 = vmatprep.mubr.bf16.mxu0 0
      %6176 = vmatmul.mubr.bf16.gmra.mrb[0].mxu0 %v5542
      %v6177 = vpop.f32.mrb[0].mxu0
      %v6178 = vadd.f32 0.0, %v6177
      %v6179 = vpop.f32.mrb[0].mxu0
      %v6180 = vpop.f32.mrb[0].mxu0
      %v6181 = vadd.f32 0.0, %v6180
      %v6182 = vpop.f32.mrb[0].mxu0
      %6183 = vmatprep.mubr.bf16.mxu0 0
      %6184 = vmatmul.mubr.bf16.gmra.mrb[0].mxu0 %v5545
      %v6185 = vpop.f32.mrb[0].mxu0
      %v6186 = vadd.f32 0.0, %v6185
      %v6187 = vpop.f32.mrb[0].mxu0
      %v6188 = vpop.f32.mrb[0].mxu0
      %v6189 = vadd.f32 0.0, %v6188
      %v6190 = vpop.f32.mrb[0].mxu0
      %6191 = vmatprep.mubr.bf16.mxu0 0
      %6192 = vmatmul.mubr.bf16.gmra.mrb[0].mxu0 %v5548
      %v6193 = vpop.f32.mrb[0].mxu0
      %v6194 = vadd.f32 0.0, %v6193
      %v6195 = vpop.f32.mrb[0].mxu0
      %v6196 = vpop.f32.mrb[0].mxu0
      %v6197 = vadd.f32 0.0, %v6196
      %v6198 = vpop.f32.mrb[0].mxu0
      %6199 = vmatprep.mubr.bf16.mxu0 0
      %6200 = vmatmul.mubr.bf16.gmra.mrb[0].mxu0 %v5551
      %v6201 = vpop.f32.mrb[0].mxu0
      %v6202 = vadd.f32 0.0, %v6201
      %v6203 = vpop.f32.mrb[0].mxu0
      %v6204 = vpop.f32.mrb[0].mxu0
      %v6205 = vadd.f32 0.0, %v6204
      %v6206 = vpop.f32.mrb[0].mxu0
      %6207 = vmatprep.mubr.bf16.mxu0 0
      %6208 = vmatmul.mubr.bf16.gmra.mrb[0].mxu0 %v5554
      %v6209 = vpop.f32.mrb[0].mxu0
      %v6210 = vadd.f32 0.0, %v6209
      %v6211 = vpop.f32.mrb[0].mxu0
      %v6212 = vpop.f32.mrb[0].mxu0
      %v6213 = vadd.f32 0.0, %v6212
      %v6214 = vpop.f32.mrb[0].mxu0
      %6215 = vmatprep.mubr.bf16.mxu0 0
      %6216 = vmatmul.mubr.bf16.gmra.mrb[0].mxu0 %v5557
      %v6217 = vpop.f32.mrb[0].mxu0
      %v6218 = vadd.f32 0.0, %v6217
      %v6219 = vpop.f32.mrb[0].mxu0
      %v6220 = vpop.f32.mrb[0].mxu0
      %v6221 = vadd.f32 0.0, %v6220
      %v6222 = vpop.f32.mrb[0].mxu0
      %6223 = vmatprep.mubr.bf16.mxu0 0
      %6224 = vmatmul.mubr.bf16.gmra.mrb[0].mxu0 %v5560
      %v6225 = vpop.f32.mrb[0].mxu0
      %v6226 = vadd.f32 0.0, %v6225
      %v6227 = vpop.f32.mrb[0].mxu0
      %v6228 = vpop.f32.mrb[0].mxu0
      %v6229 = vadd.f32 0.0, %v6228
      %v6230 = vpop.f32.mrb[0].mxu0
      %6231 = vmatprep.mubr.bf16.mxu0 0
      %6232 = vmatmul.mubr.bf16.gmra.mrb[0].mxu0 %v5563
      %v6233 = vpop.f32.mrb[0].mxu0
      %v6234 = vadd.f32 0.0, %v6233
      %v6235 = vpop.f32.mrb[0].mxu0
      %v6236 = vpop.f32.mrb[0].mxu0
      %v6237 = vadd.f32 0.0, %v6236
      %v6238 = vpop.f32.mrb[0].mxu0
      %6239 = vmatprep.mubr.bf16.mxu0 0
      %6240 = vmatmul.mubr.bf16.gmra.mrb[0].mxu0 %v5566
      %v6241 = vpop.f32.mrb[0].mxu0
      %v6242 = vadd.f32 0.0, %v6241
      %v6243 = vpop.f32.mrb[0].mxu0
      %v6244 = vpop.f32.mrb[0].mxu0
      %v6245 = vadd.f32 0.0, %v6244
      %v6246 = vpop.f32.mrb[0].mxu0
      %6247 = vmatprep.mubr.bf16.mxu0 0
      %6248 = vmatmul.mubr.bf16.gmra.mrb[0].mxu0 %v5569
      %v6249 = vpop.f32.mrb[0].mxu0
      %v6250 = vadd.f32 0.0, %v6249
      %v6251 = vpop.f32.mrb[0].mxu0
      %v6252 = vpop.f32.mrb[0].mxu0
      %v6253 = vadd.f32 0.0, %v6252
      %v6254 = vpop.f32.mrb[0].mxu0
      %6255 = vmatprep.mubr.bf16.mxu0 0
      %6256 = vmatmul.mubr.bf16.gmra.mrb[0].mxu0 %v5572
      %v6257 = vpop.f32.mrb[0].mxu0
      %v6258 = vadd.f32 0.0, %v6257
      %v6259 = vpop.f32.mrb[0].mxu0
      %v6260 = vpop.f32.mrb[0].mxu0
      %v6261 = vadd.f32 0.0, %v6260
      %v6262 = vpop.f32.mrb[0].mxu0
      %6263 = vmatprep.mubr.bf16.mxu0 0
      %6264 = vmatmul.mubr.bf16.gmra.mrb[0].mxu0 %v5575
      %v6265 = vpop.f32.mrb[0].mxu0
      %v6266 = vadd.f32 0.0, %v6265
      %v6267 = vpop.f32.mrb[0].mxu0
      %v6268 = vpop.f32.mrb[0].mxu0
      %v6269 = vadd.f32 0.0, %v6268
      %v6270 = vpop.f32.mrb[0].mxu0
      %6271 = vmatprep.mubr.bf16.mxu0 0
      %6272 = vmatmul.mubr.bf16.gmra.mrb[0].mxu0 %v5578
      %v6273 = vpop.f32.mrb[0].mxu0
      %v6274 = vadd.f32 0.0, %v6273
      %v6275 = vpop.f32.mrb[0].mxu0
      %v6276 = vpop.f32.mrb[0].mxu0
      %v6277 = vadd.f32 0.0, %v6276
      %v6278 = vpop.f32.mrb[0].mxu0
      %6279 = vmatprep.mubr.bf16.mxu0 0
      %6280 = vmatmul.mubr.bf16.gmra.mrb[0].mxu0 %v5581
      %v6281 = vpop.f32.mrb[0].mxu0
      %v6282 = vadd.f32 0.0, %v6281
      %v6283 = vpop.f32.mrb[0].mxu0
      %v6284 = vpop.f32.mrb[0].mxu0
      %v6285 = vadd.f32 0.0, %v6284
      %v6286 = vpop.f32.mrb[0].mxu0
      %6287 = vmatprep.mubr.bf16.mxu0 0
      %6288 = vmatmul.mubr.bf16.gmra.mrb[0].mxu0 %v5584
      %v6289 = vpop.f32.mrb[0].mxu0
      %v6290 = vadd.f32 0.0, %v6289
      %v6291 = vpop.f32.mrb[0].mxu0
      %v6292 = vpop.f32.mrb[0].mxu0
      %v6293 = vadd.f32 0.0, %v6292
      %v6294 = vpop.f32.mrb[0].mxu0
      %6295 = vmatprep.mubr.bf16.mxu0 0
      %6296 = vmatmul.mubr.bf16.gmra.mrb[0].mxu0 %v5587
      %v6297 = vpop.f32.mrb[0].mxu0
      %v6298 = vadd.f32 0.0, %v6297
      %v6299 = vpop.f32.mrb[0].mxu0
      %v6300 = vpop.f32.mrb[0].mxu0
      %v6301 = vadd.f32 0.0, %v6300
      %v6302 = vpop.f32.mrb[0].mxu0
      %6303 = vmatprep.mubr.bf16.mxu0 0
      %6304 = vmatmul.mubr.bf16.gmra.mrb[0].mxu0 %v5590
      %v6305 = vpop.f32.mrb[0].mxu0
      %v6306 = vadd.f32 0.0, %v6305
      %v6307 = vpop.f32.mrb[0].mxu0
      %v6308 = vpop.f32.mrb[0].mxu0
      %v6309 = vadd.f32 0.0, %v6308
      %v6310 = vpop.f32.mrb[0].mxu0
      %6311 = vmatprep.mubr.bf16.mxu0 0
      %6312 = vmatmul.mubr.bf16.gmra.mrb[0].mxu0 %v5593
      %v6313 = vpop.f32.mrb[0].mxu0
      %v6314 = vadd.f32 0.0, %v6313
      %v6315 = vpop.f32.mrb[0].mxu0
      %v6316 = vpop.f32.mrb[0].mxu0
      %v6317 = vadd.f32 0.0, %v6316
      %v6318 = vpop.f32.mrb[0].mxu0
      %6319 = vmatprep.mubr.bf16.mxu0 0
      %6320 = vmatmul.mubr.bf16.gmra.mrb[0].mxu0 %v5596
      %v6321 = vpop.f32.mrb[0].mxu0
      %v6322 = vadd.f32 0.0, %v6321
      %v6323 = vpop.f32.mrb[0].mxu0
      %v6324 = vpop.f32.mrb[0].mxu0
      %v6325 = vadd.f32 0.0, %v6324
      %v6326 = vpop.f32.mrb[0].mxu0
      %6327 = vmatprep.mubr.bf16.mxu0 0
      %6328 = vmatmul.mubr.bf16.gmra.mrb[0].mxu0 %v5599
      %v6329 = vpop.f32.mrb[0].mxu0
      %v6330 = vadd.f32 0.0, %v6329
      %v6331 = vpop.f32.mrb[0].mxu0
      %v6332 = vpop.f32.mrb[0].mxu0
      %v6333 = vadd.f32 0.0, %v6332
      %v6334 = vpop.f32.mrb[0].mxu0
      %6335 = vmatprep.mubr.bf16.mxu0 0
      %6336 = vmatmul.mubr.bf16.gmra.mrb[0].mxu0 %v5602
      %v6337 = vpop.f32.mrb[0].mxu0
      %v6338 = vadd.f32 0.0, %v6337
      %v6339 = vpop.f32.mrb[0].mxu0
      %v6340 = vpop.f32.mrb[0].mxu0
      %v6341 = vadd.f32 0.0, %v6340
      %v6342 = vpop.f32.mrb[0].mxu0
      %6343 = vmatprep.mubr.bf16.mxu0 0
      %6344 = vmatmul.mubr.bf16.gmra.mrb[0].mxu0 %v5605
      %v6345 = vpop.f32.mrb[0].mxu0
      %v6346 = vadd.f32 0.0, %v6345
      %v6347 = vpop.f32.mrb[0].mxu0
      %v6348 = vpop.f32.mrb[0].mxu0
      %v6349 = vadd.f32 0.0, %v6348
      %v6350 = vpop.f32.mrb[0].mxu0
      %6351 = vmatprep.mubr.bf16.mxu0 0
      %6352 = vmatmul.mubr.bf16.gmra.mrb[0].mxu0 %v5608
      %v6353 = vpop.f32.mrb[0].mxu0
      %v6354 = vadd.f32 0.0, %v6353
      %v6355 = vpop.f32.mrb[0].mxu0
      %v6356 = vpop.f32.mrb[0].mxu0
      %v6357 = vadd.f32 0.0, %v6356
      %v6358 = vpop.f32.mrb[0].mxu0
      %6359 = vmatprep.mubr.bf16.mxu0 0
      %6360 = vmatmul.mubr.bf16.gmra.mrb[0].mxu0 %v5611
      %v6361 = vpop.f32.mrb[0].mxu0
      %v6362 = vadd.f32 0.0, %v6361
      %v6363 = vpop.f32.mrb[0].mxu0
      %v6364 = vpop.f32.mrb[0].mxu0
      %v6365 = vadd.f32 0.0, %v6364
      %v6366 = vpop.f32.mrb[0].mxu0
      %6367 = vmatprep.mubr.bf16.mxu0 0
      %6368 = vmatmul.mubr.bf16.gmra.mrb[0].mxu0 %v5614
      %v6369 = vpop.f32.mrb[0].mxu0
      %v6370 = vadd.f32 0.0, %v6369
      %v6371 = vpop.f32.mrb[0].mxu0
      %v6372 = vpop.f32.mrb[0].mxu0
      %v6373 = vadd.f32 0.0, %v6372
      %v6374 = vpop.f32.mrb[0].mxu0
      %6375 = vmatprep.mubr.bf16.mxu0 0
      %6376 = vmatmul.mubr.bf16.gmra.mrb[0].mxu0 %v5617
      %v6377 = vpop.f32.mrb[0].mxu0
      %v6378 = vadd.f32 0.0, %v6377
      %v6379 = vpop.f32.mrb[0].mxu0
      %v6380 = vpop.f32.mrb[0].mxu0
      %v6381 = vadd.f32 0.0, %v6380
      %v6382 = vpop.f32.mrb[0].mxu0
      %6383 = vmatprep.mubr.bf16.mxu0 0
      %6384 = vmatmul.mubr.bf16.gmra.mrb[0].mxu0 %v5620
      %v6385 = vpop.f32.mrb[0].mxu0
      %v6386 = vadd.f32 0.0, %v6385
      %v6387 = vpop.f32.mrb[0].mxu0
      %v6388 = vpop.f32.mrb[0].mxu0
      %v6389 = vadd.f32 0.0, %v6388
      %v6390 = vpop.f32.mrb[0].mxu0
      %6391 = vmatprep.mubr.bf16.mxu0 0
      %6392 = vmatmul.mubr.bf16.gmra.mrb[0].mxu0 %v5623
      %v6393 = vpop.f32.mrb[0].mxu0
      %v6394 = vadd.f32 0.0, %v6393
      %v6395 = vpop.f32.mrb[0].mxu0
      %v6396 = vpop.f32.mrb[0].mxu0
      %v6397 = vadd.f32 0.0, %v6396
      %v6398 = vpop.f32.mrb[0].mxu0
      %6399 = vmatprep.mubr.bf16.mxu0 0
      %6400 = vmatmul.mubr.bf16.gmra.mrb[0].mxu0 %v5626
      %v6401 = vpop.f32.mrb[0].mxu0
      %v6402 = vadd.f32 0.0, %v6401
      %v6403 = vpop.f32.mrb[0].mxu0
      %v6404 = vpop.f32.mrb[0].mxu0
      %v6405 = vadd.f32 0.0, %v6404
      %v6406 = vpop.f32.mrb[0].mxu0
      %6407 = vmatprep.mubr.bf16.mxu0 0
      %6408 = vmatmul.mubr.bf16.gmra.mrb[0].mxu0 %v5629
      %v6409 = vpop.f32.mrb[0].mxu0
      %v6410 = vadd.f32 0.0, %v6409
      %v6411 = vpop.f32.mrb[0].mxu0
      %v6412 = vpop.f32.mrb[0].mxu0
      %v6413 = vadd.f32 0.0, %v6412
      %v6414 = vpop.f32.mrb[0].mxu0
      %6415 = vmatprep.mubr.bf16.mxu0 0
      %6416 = vmatmul.mubr.bf16.gmra.mrb[0].mxu0 %v5632
      %v6417 = vpop.f32.mrb[0].mxu0
      %v6418 = vadd.f32 0.0, %v6417
      %v6419 = vpop.f32.mrb[0].mxu0
      %v6420 = vpop.f32.mrb[0].mxu0
      %v6421 = vadd.f32 0.0, %v6420
      %v6422 = vpop.f32.mrb[0].mxu0
      %6423 = vmatprep.mubr.bf16.mxu0 0
      %6424 = vmatmul.mubr.bf16.gmra.mrb[0].mxu0 %v5635
      %v6425 = vpop.f32.mrb[0].mxu0
      %v6426 = vadd.f32 0.0, %v6425
      %v6427 = vpop.f32.mrb[0].mxu0
      %v6428 = vpop.f32.mrb[0].mxu0
      %v6429 = vadd.f32 0.0, %v6428
      %v6430 = vpop.f32.mrb[0].mxu0
      %6431 = vmatprep.mubr.bf16.mxu0 0
      %6432 = vmatmul.mubr.bf16.gmra.mrb[0].mxu0 %v5638
      %v6433 = vpop.f32.mrb[0].mxu0
      %v6434 = vadd.f32 0.0, %v6433
      %v6435 = vpop.f32.mrb[0].mxu0
      %v6436 = vpop.f32.mrb[0].mxu0
      %v6437 = vadd.f32 0.0, %v6436
      %v6438 = vpop.f32.mrb[0].mxu0
      %6439 = vmatprep.mubr.bf16.mxu0 0
      %6440 = vmatmul.mubr.bf16.gmra.mrb[0].mxu0 %v5641
      %v6441 = vpop.f32.mrb[0].mxu0
      %v6442 = vadd.f32 0.0, %v6441
      %v6443 = vpop.f32.mrb[0].mxu0
      %v6444 = vpop.f32.mrb[0].mxu0
      %v6445 = vadd.f32 0.0, %v6444
      %v6446 = vpop.f32.mrb[0].mxu0
      %6447 = vmatprep.mubr.bf16.mxu0 0
      %6448 = vmatmul.mubr.bf16.gmra.mrb[0].mxu0 %v5644
      %v6449 = vpop.f32.mrb[0].mxu0
      %v6450 = vadd.f32 0.0, %v6449
      %v6451 = vpop.f32.mrb[0].mxu0
      %v6452 = vpop.f32.mrb[0].mxu0
      %v6453 = vadd.f32 0.0, %v6452
      %v6454 = vpop.f32.mrb[0].mxu0
      %6455 = vmatprep.mubr.bf16.mxu0 0
      %6456 = vmatmul.mubr.bf16.gmra.mrb[0].mxu0 %v5647
      %v6457 = vpop.f32.mrb[0].mxu0
      %v6458 = vadd.f32 0.0, %v6457
      %v6459 = vpop.f32.mrb[0].mxu0
      %v6460 = vpop.f32.mrb[0].mxu0
      %v6461 = vadd.f32 0.0, %v6460
      %v6462 = vpop.f32.mrb[0].mxu0
      %6463 = vmatprep.mubr.bf16.mxu0 0
      %6464 = vmatmul.mubr.bf16.gmra.mrb[0].mxu0 %v5650
      %v6465 = vpop.f32.mrb[0].mxu0
      %v6466 = vadd.f32 0.0, %v6465
      %v6467 = vpop.f32.mrb[0].mxu0
      %v6468 = vpop.f32.mrb[0].mxu0
      %v6469 = vadd.f32 0.0, %v6468
      %v6470 = vpop.f32.mrb[0].mxu0
      %6471 = vmatprep.mubr.bf16.mxu0 0
      %6472 = vmatmul.mubr.bf16.gmra.mrb[0].mxu0 %v5653
      %v6473 = vpop.f32.mrb[0].mxu0
      %v6474 = vadd.f32 0.0, %v6473
      %v6475 = vpop.f32.mrb[0].mxu0
      %v6476 = vpop.f32.mrb[0].mxu0
      %v6477 = vadd.f32 0.0, %v6476
      %v6478 = vpop.f32.mrb[0].mxu0
      %6479 = vmatprep.mubr.bf16.mxu0 0
      %6480 = vmatmul.mubr.bf16.gmra.mrb[0].mxu0 %v5656
      %v6481 = vpop.f32.mrb[0].mxu0
      %v6482 = vadd.f32 0.0, %v6481
      %v6483 = vpop.f32.mrb[0].mxu0
      %v6484 = vpop.f32.mrb[0].mxu0
      %v6485 = vadd.f32 0.0, %v6484
      %v6486 = vpop.f32.mrb[0].mxu0
      %6487 = vmatprep.mubr.bf16.mxu0 0
      %6488 = vmatmul.mubr.bf16.gmra.mrb[0].mxu0 %v5659
      %v6489 = vpop.f32.mrb[0].mxu0
      %v6490 = vadd.f32 0.0, %v6489
      %v6491 = vpop.f32.mrb[0].mxu0
      %v6492 = vpop.f32.mrb[0].mxu0
      %v6493 = vadd.f32 0.0, %v6492
      %v6494 = vpop.f32.mrb[0].mxu0
      %6495 = vmatprep.mubr.bf16.mxu0 0
      %6496 = vmatmul.mubr.bf16.gmra.mrb[0].mxu0 %v5662
      %v6497 = vpop.f32.mrb[0].mxu0
      %v6498 = vadd.f32 0.0, %v6497
      %v6499 = vpop.f32.mrb[0].mxu0
      %v6500 = vpop.f32.mrb[0].mxu0
      %v6501 = vadd.f32 0.0, %v6500
      %v6502 = vpop.f32.mrb[0].mxu0
      %6503 = vmatprep.mubr.bf16.mxu0 0
      %6504 = vmatmul.mubr.bf16.gmra.mrb[0].mxu0 %v5665
      %v6505 = vpop.f32.mrb[0].mxu0
      %v6506 = vadd.f32 0.0, %v6505
      %v6507 = vpop.f32.mrb[0].mxu0
      %v6508 = vpop.f32.mrb[0].mxu0
      %v6509 = vadd.f32 0.0, %v6508
      %v6510 = vpop.f32.mrb[0].mxu0
      %6511 = vmatprep.mubr.bf16.mxu0 0
      %6512 = vmatmul.mubr.bf16.gmra.mrb[0].mxu0 %v5668
      %v6513 = vpop.f32.mrb[0].mxu0
      %v6514 = vadd.f32 0.0, %v6513
      %v6515 = vpop.f32.mrb[0].mxu0
      %v6516 = vpop.f32.mrb[0].mxu0
      %v6517 = vadd.f32 0.0, %v6516
      %v6518 = vpop.f32.mrb[0].mxu0
      %6519 = vmatprep.mubr.bf16.mxu0 0
      %6520 = vmatmul.mubr.bf16.gmra.mrb[0].mxu0 %v5671
      %v6521 = vpop.f32.mrb[0].mxu0
      %v6522 = vadd.f32 0.0, %v6521
      %v6523 = vpop.f32.mrb[0].mxu0
      %v6524 = vpop.f32.mrb[0].mxu0
      %v6525 = vadd.f32 0.0, %v6524
      %v6526 = vpop.f32.mrb[0].mxu0
      %6527 = vmatprep.mubr.bf16.mxu0 0
      %6528 = vmatmul.mubr.bf16.gmra.mrb[0].mxu0 %v5674
      %v6529 = vpop.f32.mrb[0].mxu0
      %v6530 = vadd.f32 0.0, %v6529
      %v6531 = vpop.f32.mrb[0].mxu0
      %v6532 = vpop.f32.mrb[0].mxu0
      %v6533 = vadd.f32 0.0, %v6532
      %v6534 = vpop.f32.mrb[0].mxu0
      %6535 = vmatprep.mubr.bf16.mxu0 0
      %6536 = vmatmul.mubr.bf16.gmra.mrb[0].mxu0 %v5677
      %v6537 = vpop.f32.mrb[0].mxu0
      %v6538 = vadd.f32 0.0, %v6537
      %v6539 = vpop.f32.mrb[0].mxu0
      %v6540 = vpop.f32.mrb[0].mxu0
      %v6541 = vadd.f32 0.0, %v6540
      %v6542 = vpop.f32.mrb[0].mxu0
      %6543 = vmatprep.mubr.bf16.mxu0 0
      %6544 = vmatmul.mubr.bf16.gmra.mrb[0].mxu0 %v5680
      %v6545 = vpop.f32.mrb[0].mxu0
      %v6546 = vadd.f32 0.0, %v6545
      %v6547 = vpop.f32.mrb[0].mxu0
      %v6548 = vpop.f32.mrb[0].mxu0
      %v6549 = vadd.f32 0.0, %v6548
      %v6550 = vpop.f32.mrb[0].mxu0
      %6551 = vmatprep.mubr.bf16.mxu0 0
      %6552 = vmatmul.mubr.bf16.gmra.mrb[0].mxu0 %v5683
      %v6553 = vpop.f32.mrb[0].mxu0
      %v6554 = vadd.f32 0.0, %v6553
      %v6555 = vpop.f32.mrb[0].mxu0
      %v6556 = vpop.f32.mrb[0].mxu0
      %v6557 = vadd.f32 0.0, %v6556
      %v6558 = vpop.f32.mrb[0].mxu0
      %6559 = vmatprep.mubr.bf16.mxu0 0
      %6560 = vmatmul.mubr.bf16.gmra.mrb[0].mxu0 %v5686
      %v6561 = vpop.f32.mrb[0].mxu0
      %v6562 = vadd.f32 0.0, %v6561
      %v6563 = vpop.f32.mrb[0].mxu0
      %v6564 = vpop.f32.mrb[0].mxu0
      %v6565 = vadd.f32 0.0, %v6564
      %v6566 = vpop.f32.mrb[0].mxu0
      %6567 = vmatprep.mubr.bf16.mxu0 0
      %6568 = vmatmul.mubr.bf16.gmra.mrb[0].mxu0 %v5689
      %v6569 = vpop.f32.mrb[0].mxu0
      %v6570 = vadd.f32 0.0, %v6569
      %v6571 = vpop.f32.mrb[0].mxu0
      %v6572 = vpop.f32.mrb[0].mxu0
      %v6573 = vadd.f32 0.0, %v6572
      %v6574 = vpop.f32.mrb[0].mxu0
      %6575 = vmatprep.mubr.bf16.mxu0 0
      %6576 = vmatmul.mubr.bf16.gmra.mrb[0].mxu0 %v5692
      %v6577 = vpop.f32.mrb[0].mxu0
      %v6578 = vadd.f32 0.0, %v6577
      %v6579 = vpop.f32.mrb[0].mxu0
      %v6580 = vpop.f32.mrb[0].mxu0
      %v6581 = vadd.f32 0.0, %v6580
      %v6582 = vpop.f32.mrb[0].mxu0
      %6583 = vmatprep.mubr.bf16.mxu0 0
      %6584 = vmatmul.mubr.bf16.gmra.mrb[0].mxu0 %v5695
      %v6585 = vpop.f32.mrb[0].mxu0
      %v6586 = vadd.f32 0.0, %v6585
      %v6587 = vpop.f32.mrb[0].mxu0
      %v6588 = vpop.f32.mrb[0].mxu0
      %v6589 = vadd.f32 0.0, %v6588
      %v6590 = vpop.f32.mrb[0].mxu0
      %6591 = vmatprep.mubr.bf16.mxu0 0
      %6592 = vmatmul.mubr.bf16.gmra.mrb[0].mxu0 %v5698
      %v6593 = vpop.f32.mrb[0].mxu0
      %v6594 = vadd.f32 0.0, %v6593
      %v6595 = vpop.f32.mrb[0].mxu0
      %v6596 = vpop.f32.mrb[0].mxu0
      %v6597 = vadd.f32 0.0, %v6596
      %v6598 = vpop.f32.mrb[0].mxu0
      %6599 = vmatprep.mubr.bf16.mxu0 0
      %6600 = vmatmul.mubr.bf16.gmra.mrb[0].mxu0 %v5701
      %v6601 = vpop.f32.mrb[0].mxu0
      %v6602 = vadd.f32 0.0, %v6601
      %v6603 = vpop.f32.mrb[0].mxu0
      %v6604 = vpop.f32.mrb[0].mxu0
      %v6605 = vadd.f32 0.0, %v6604
      %v6606 = vpop.f32.mrb[0].mxu0
      %6607 = vmatprep.mubr.bf16.mxu0 0
      %6608 = vmatmul.mubr.bf16.gmra.mrb[0].mxu0 %v5704
      %v6609 = vpop.f32.mrb[0].mxu0
      %v6610 = vadd.f32 0.0, %v6609
      %v6611 = vpop.f32.mrb[0].mxu0
      %v6612 = vpop.f32.mrb[0].mxu0
      %v6613 = vadd.f32 0.0, %v6612
      %v6614 = vpop.f32.mrb[0].mxu0
      %6615 = vmatprep.mubr.bf16.mxu0 0
      %6616 = vmatmul.mubr.bf16.gmra.mrb[0].mxu0 %v5707
      %v6617 = vpop.f32.mrb[0].mxu0
      %v6618 = vadd.f32 0.0, %v6617
      %v6619 = vpop.f32.mrb[0].mxu0
      %v6620 = vpop.f32.mrb[0].mxu0
      %v6621 = vadd.f32 0.0, %v6620
      %v6622 = vpop.f32.mrb[0].mxu0
      %6623 = vmatprep.mubr.bf16.mxu0 0
      %6624 = vmatmul.mubr.bf16.gmra.mrb[0].mxu0 %v5710
      %v6625 = vpop.f32.mrb[0].mxu0
      %v6626 = vadd.f32 0.0, %v6625
      %v6627 = vpop.f32.mrb[0].mxu0
      %v6628 = vpop.f32.mrb[0].mxu0
      %v6629 = vadd.f32 0.0, %v6628
      %v6630 = vpop.f32.mrb[0].mxu0
      %6631 = vmatprep.mubr.bf16.mxu0 0
      %6632 = vmatmul.mubr.bf16.gmra.mrb[0].mxu0 %v5713
      %v6633 = vpop.f32.mrb[0].mxu0
      %v6634 = vadd.f32 0.0, %v6633
      %v6635 = vpop.f32.mrb[0].mxu0
      %v6636 = vpop.f32.mrb[0].mxu0
      %v6637 = vadd.f32 0.0, %v6636
      %v6638 = vpop.f32.mrb[0].mxu0
      %6639 = vmatprep.mubr.bf16.mxu0 0
      %6640 = vmatmul.mubr.bf16.gmra.mrb[0].mxu0 %v5716
      %v6641 = vpop.f32.mrb[0].mxu0
      %v6642 = vadd.f32 0.0, %v6641
      %v6643 = vpop.f32.mrb[0].mxu0
      %v6644 = vpop.f32.mrb[0].mxu0
      %v6645 = vadd.f32 0.0, %v6644
      %v6646 = vpop.f32.mrb[0].mxu0
      %6647 = vmatprep.mubr.bf16.mxu0 0
      %6648 = vmatmul.mubr.bf16.gmra.mrb[0].mxu0 %v5719
      %v6649 = vpop.f32.mrb[0].mxu0
      %v6650 = vadd.f32 0.0, %v6649
      %v6651 = vpop.f32.mrb[0].mxu0
      %v6652 = vpop.f32.mrb[0].mxu0
      %v6653 = vadd.f32 0.0, %v6652
      %v6654 = vpop.f32.mrb[0].mxu0
      %6655 = vmatprep.mubr.bf16.mxu0 0
      %6656 = vmatmul.mubr.bf16.gmra.mrb[0].mxu0 %v5722
      %v6657 = vpop.f32.mrb[0].mxu0
      %v6658 = vadd.f32 0.0, %v6657
      %v6659 = vpop.f32.mrb[0].mxu0
      %v6660 = vpop.f32.mrb[0].mxu0
      %v6661 = vadd.f32 0.0, %v6660
      %v6662 = vpop.f32.mrb[0].mxu0
      %6663 = vmatprep.mubr.bf16.mxu0 0
      %6664 = vmatmul.mubr.bf16.gmra.mrb[0].mxu0 %v5725
      %v6665 = vpop.f32.mrb[0].mxu0
      %v6666 = vadd.f32 0.0, %v6665
      %v6667 = vpop.f32.mrb[0].mxu0
      %v6668 = vpop.f32.mrb[0].mxu0
      %v6669 = vadd.f32 0.0, %v6668
      %v6670 = vpop.f32.mrb[0].mxu0
      %6671 = vmatprep.mubr.bf16.mxu0 0
      %6672 = vmatmul.mubr.bf16.gmra.mrb[0].mxu0 %v5728
      %v6673 = vpop.f32.mrb[0].mxu0
      %v6674 = vadd.f32 0.0, %v6673
      %v6675 = vpop.f32.mrb[0].mxu0
      %v6676 = vpop.f32.mrb[0].mxu0
      %v6677 = vadd.f32 0.0, %v6676
      %v6678 = vpop.f32.mrb[0].mxu0
      %6679 = vmatprep.mubr.bf16.mxu0 0
      %6680 = vmatmul.mubr.bf16.gmra.mrb[0].mxu0 %v5731
      %v6681 = vpop.f32.mrb[0].mxu0
      %v6682 = vadd.f32 0.0, %v6681
      %v6683 = vpop.f32.mrb[0].mxu0
      %v6684 = vpop.f32.mrb[0].mxu0
      %v6685 = vadd.f32 0.0, %v6684
      %v6686 = vpop.f32.mrb[0].mxu0
      %6687 = vmatprep.mubr.bf16.mxu0 0
      %6688 = vmatmul.mubr.bf16.gmra.mrb[0].mxu0 %v5734
      %v6689 = vpop.f32.mrb[0].mxu0
      %v6690 = vadd.f32 0.0, %v6689
      %v6691 = vpop.f32.mrb[0].mxu0
      %v6692 = vpop.f32.mrb[0].mxu0
      %v6693 = vadd.f32 0.0, %v6692
      %v6694 = vpop.f32.mrb[0].mxu0
      %6695 = vmatprep.mubr.bf16.mxu0 0
      %6696 = vmatmul.mubr.bf16.gmra.mrb[0].mxu0 %v5737
      %v6697 = vpop.f32.mrb[0].mxu0
      %v6698 = vadd.f32 0.0, %v6697
      %v6699 = vpop.f32.mrb[0].mxu0
      %v6700 = vpop.f32.mrb[0].mxu0
      %v6701 = vadd.f32 0.0, %v6700
      %v6702 = vpop.f32.mrb[0].mxu0
      %6703 = vmatprep.mubr.bf16.mxu0 0
      %6704 = vmatmul.mubr.bf16.gmra.mrb[0].mxu0 %v5740
      %v6705 = vpop.f32.mrb[0].mxu0
      %v6706 = vadd.f32 0.0, %v6705
      %v6707 = vpop.f32.mrb[0].mxu0
      %v6708 = vpop.f32.mrb[0].mxu0
      %v6709 = vadd.f32 0.0, %v6708
      %v6710 = vpop.f32.mrb[0].mxu0
      %6711 = vmatprep.mubr.bf16.mxu0 0
      %6712 = vmatmul.mubr.bf16.gmra.mrb[0].mxu0 %v5743
      %v6713 = vpop.f32.mrb[0].mxu0
      %v6714 = vadd.f32 0.0, %v6713
      %v6715 = vpop.f32.mrb[0].mxu0
      %v6716 = vpop.f32.mrb[0].mxu0
      %v6717 = vadd.f32 0.0, %v6716
      %v6718 = vpop.f32.mrb[0].mxu0
      %6719 = vmatprep.mubr.bf16.mxu0 0
      %6720 = vmatmul.mubr.bf16.gmra.mrb[0].mxu0 %v5746
      %v6721 = vpop.f32.mrb[0].mxu0
      %v6722 = vadd.f32 0.0, %v6721
      %v6723 = vpop.f32.mrb[0].mxu0
      %v6724 = vpop.f32.mrb[0].mxu0
      %v6725 = vadd.f32 0.0, %v6724
      %v6726 = vpop.f32.mrb[0].mxu0
      %6727 = vmatprep.mubr.bf16.mxu0 0
      %6728 = vmatmul.mubr.bf16.gmra.mrb[0].mxu0 %v5749
      %v6729 = vpop.f32.mrb[0].mxu0
      %v6730 = vadd.f32 0.0, %v6729
      %v6731 = vpop.f32.mrb[0].mxu0
      %v6732 = vpop.f32.mrb[0].mxu0
      %v6733 = vadd.f32 0.0, %v6732
      %v6734 = vpop.f32.mrb[0].mxu0
      %6735 = vmatprep.mubr.bf16.mxu0 0
      %6736 = vmatmul.mubr.bf16.gmra.mrb[0].mxu0 %v5752
      %v6737 = vpop.f32.mrb[0].mxu0
      %v6738 = vadd.f32 0.0, %v6737
      %v6739 = vpop.f32.mrb[0].mxu0
      %v6740 = vpop.f32.mrb[0].mxu0
      %v6741 = vadd.f32 0.0, %v6740
      %v6742 = vpop.f32.mrb[0].mxu0
      %6743 = vmatprep.mubr.bf16.mxu0 0
      %6744 = vmatmul.mubr.bf16.gmra.mrb[0].mxu0 %v5755
      %v6745 = vpop.f32.mrb[0].mxu0
      %v6746 = vadd.f32 0.0, %v6745
      %v6747 = vpop.f32.mrb[0].mxu0
      %v6748 = vpop.f32.mrb[0].mxu0
      %v6749 = vadd.f32 0.0, %v6748
      %v6750 = vpop.f32.mrb[0].mxu0
      %6751 = vmatprep.mubr.bf16.mxu0 0
      %6752 = vmatmul.mubr.bf16.gmra.mrb[0].mxu0 %v5758
      %v6753 = vpop.f32.mrb[0].mxu0
      %v6754 = vadd.f32 0.0, %v6753
      %v6755 = vpop.f32.mrb[0].mxu0
      %v6756 = vpop.f32.mrb[0].mxu0
      %v6757 = vadd.f32 0.0, %v6756
      %v6758 = vpop.f32.mrb[0].mxu0
      %6759 = vmatprep.mubr.bf16.mxu0 0
      %6760 = vmatmul.mubr.bf16.gmra.mrb[0].mxu0 %v5761
      %v6761 = vpop.f32.mrb[0].mxu0
      %v6762 = vadd.f32 0.0, %v6761
      %v6763 = vpop.f32.mrb[0].mxu0
      %v6764 = vpop.f32.mrb[0].mxu0
      %v6765 = vadd.f32 0.0, %v6764
      %v6766 = vpop.f32.mrb[0].mxu0
      %6767 = vmatprep.mubr.bf16.mxu0 0
      %6768 = vmatmul.mubr.bf16.gmra.mrb[0].mxu0 %v5764
      %v6769 = vpop.f32.mrb[0].mxu0
      %v6770 = vadd.f32 0.0, %v6769
      %v6771 = vpop.f32.mrb[0].mxu0
      %v6772 = vpop.f32.mrb[0].mxu0
      %v6773 = vadd.f32 0.0, %v6772
      %v6774 = vpop.f32.mrb[0].mxu0
      %6775 = vmatprep.mubr.bf16.mxu0 0
      %6776 = vmatmul.mubr.bf16.gmra.mrb[0].mxu0 %v5767
      %v6777 = vpop.f32.mrb[0].mxu0
      %v6778 = vadd.f32 0.0, %v6777
      %v6779 = vpop.f32.mrb[0].mxu0
      %v6780 = vpop.f32.mrb[0].mxu0
      %v6781 = vadd.f32 0.0, %v6780
      %v6782 = vpop.f32.mrb[0].mxu0
      %6783 = vmatprep.mubr.bf16.mxu0 0
      %6784 = vmatmul.mubr.bf16.gmra.mrb[0].mxu0 %v5770
      %v6785 = vpop.f32.mrb[0].mxu0
      %v6786 = vadd.f32 0.0, %v6785
      %v6787 = vpop.f32.mrb[0].mxu0
      %v6788 = vpop.f32.mrb[0].mxu0
      %v6789 = vadd.f32 0.0, %v6788
      %v6790 = vpop.f32.mrb[0].mxu0
      %6791 = vmatprep.mubr.bf16.mxu0 0
      %6792 = vmatmul.mubr.bf16.gmra.mrb[0].mxu0 %v5773
      %v6793 = vpop.f32.mrb[0].mxu0
      %v6794 = vadd.f32 0.0, %v6793
      %v6795 = vpop.f32.mrb[0].mxu0
      %v6796 = vpop.f32.mrb[0].mxu0
      %v6797 = vadd.f32 0.0, %v6796
      %v6798 = vpop.f32.mrb[0].mxu0
      %6799 = vmatprep.mubr.bf16.mxu0 0
      %6800 = vmatmul.mubr.bf16.gmra.mrb[0].mxu0 %v5776
      %v6801 = vpop.f32.mrb[0].mxu0
      %v6802 = vadd.f32 0.0, %v6801
      %v6803 = vpop.f32.mrb[0].mxu0
      %v6804 = vpop.f32.mrb[0].mxu0
      %v6805 = vadd.f32 0.0, %v6804
      %v6806 = vpop.f32.mrb[0].mxu0
      %6807 = vmatprep.mubr.bf16.mxu0 0
      %6808 = vmatmul.mubr.bf16.gmra.mrb[0].mxu0 %v5779
      %v6809 = vpop.f32.mrb[0].mxu0
      %v6810 = vadd.f32 0.0, %v6809
      %v6811 = vpop.f32.mrb[0].mxu0
      %v6812 = vpop.f32.mrb[0].mxu0
      %v6813 = vadd.f32 0.0, %v6812
      %v6814 = vpop.f32.mrb[0].mxu0
      %6815 = vmatprep.mubr.bf16.mxu0 0
      %6816 = vmatmul.mubr.bf16.gmra.mrb[0].mxu0 %v5782
      %v6817 = vpop.f32.mrb[0].mxu0
      %v6818 = vadd.f32 0.0, %v6817
      %v6819 = vpop.f32.mrb[0].mxu0
      %v6820 = vpop.f32.mrb[0].mxu0
      %v6821 = vadd.f32 0.0, %v6820
      %v6822 = vpop.f32.mrb[0].mxu0
      %6823 = vmatprep.mubr.bf16.mxu0 0
      %6824 = vmatmul.mubr.bf16.gmra.mrb[0].mxu0 %v5785
      %v6825 = vpop.f32.mrb[0].mxu0
      %v6826 = vadd.f32 0.0, %v6825
      %v6827 = vpop.f32.mrb[0].mxu0
      %v6828 = vpop.f32.mrb[0].mxu0
      %v6829 = vadd.f32 0.0, %v6828
      %v6830 = vpop.f32.mrb[0].mxu0
      %6831 = vmatprep.mubr.bf16.mxu0 0
      %6832 = vmatmul.mubr.bf16.gmra.mrb[0].mxu0 %v5788
      %v6833 = vpop.f32.mrb[0].mxu0
      %v6834 = vadd.f32 0.0, %v6833
      %v6835 = vpop.f32.mrb[0].mxu0
      %v6836 = vpop.f32.mrb[0].mxu0
      %v6837 = vadd.f32 0.0, %v6836
      %v6838 = vpop.f32.mrb[0].mxu0
      %6839 = vmatprep.mubr.bf16.mxu0 0
      %6840 = vmatmul.mubr.bf16.gmra.mrb[0].mxu0 %v5791
      %v6841 = vpop.f32.mrb[0].mxu0
      %v6842 = vadd.f32 0.0, %v6841
      %v6843 = vpop.f32.mrb[0].mxu0
      %v6844 = vpop.f32.mrb[0].mxu0
      %v6845 = vadd.f32 0.0, %v6844
      %v6846 = vpop.f32.mrb[0].mxu0
      %6847 = vmatprep.mubr.bf16.mxu0 0
      %6848 = vmatmul.mubr.bf16.gmra.mrb[0].mxu0 %v5794
      %v6849 = vpop.f32.mrb[0].mxu0
      %v6850 = vadd.f32 0.0, %v6849
      %v6851 = vpop.f32.mrb[0].mxu0
      %v6852 = vpop.f32.mrb[0].mxu0
      %v6853 = vadd.f32 0.0, %v6852
      %v6854 = vpop.f32.mrb[0].mxu0
      %6855 = vmatprep.mubr.bf16.mxu0 0
      %6856 = vmatmul.mubr.bf16.gmra.mrb[0].mxu0 %v5797
      %v6857 = vpop.f32.mrb[0].mxu0
      %v6858 = vadd.f32 0.0, %v6857
      %v6859 = vpop.f32.mrb[0].mxu0
      %v6860 = vpop.f32.mrb[0].mxu0
      %v6861 = vadd.f32 0.0, %v6860
      %v6862 = vpop.f32.mrb[0].mxu0
      %6863 = vmatprep.mubr.bf16.mxu0 0
      %6864 = vmatmul.mubr.bf16.gmra.mrb[0].mxu0 %v5800
      %v6865 = vpop.f32.mrb[0].mxu0
      %v6866 = vadd.f32 0.0, %v6865
      %v6867 = vpop.f32.mrb[0].mxu0
      %v6868 = vpop.f32.mrb[0].mxu0
      %v6869 = vadd.f32 0.0, %v6868
      %v6870 = vpop.f32.mrb[0].mxu0
      %6871 = vmatprep.mubr.bf16.mxu0 0
      %6872 = vmatmul.mubr.bf16.gmra.mrb[0].mxu0 %v5803
      %v6873 = vpop.f32.mrb[0].mxu0
      %v6874 = vadd.f32 0.0, %v6873
      %v6875 = vpop.f32.mrb[0].mxu0
      %v6876 = vpop.f32.mrb[0].mxu0
      %v6877 = vadd.f32 0.0, %v6876
      %v6878 = vpop.f32.mrb[0].mxu0
      %6879 = vmatprep.mubr.bf16.mxu0 0
      %6880 = vmatmul.mubr.bf16.gmra.mrb[0].mxu0 %v5806
      %v6881 = vpop.f32.mrb[0].mxu0
      %v6882 = vadd.f32 0.0, %v6881
      %v6883 = vpop.f32.mrb[0].mxu0
      %v6884 = vpop.f32.mrb[0].mxu0
      %v6885 = vadd.f32 0.0, %v6884
      %v6886 = vpop.f32.mrb[0].mxu0
      %6887 = vmatprep.mubr.bf16.mxu0 0
      %6888 = vmatmul.mubr.bf16.gmra.mrb[0].mxu0 %v5809
      %v6889 = vpop.f32.mrb[0].mxu0
      %v6890 = vadd.f32 0.0, %v6889
      %v6891 = vpop.f32.mrb[0].mxu0
      %v6892 = vpop.f32.mrb[0].mxu0
      %v6893 = vadd.f32 0.0, %v6892
      %v6894 = vpop.f32.mrb[0].mxu0
      %6895 = vmatprep.mubr.bf16.mxu0 0
      %6896 = vmatmul.mubr.bf16.gmra.mrb[0].mxu0 %v5812
      %v6897 = vpop.f32.mrb[0].mxu0
      %v6898 = vadd.f32 0.0, %v6897
      %v6899 = vpop.f32.mrb[0].mxu0
      %v6900 = vpop.f32.mrb[0].mxu0
      %v6901 = vadd.f32 0.0, %v6900
      %v6902 = vpop.f32.mrb[0].mxu0
      %6903 = vmatprep.mubr.bf16.mxu0 0
      %6904 = vmatmul.mubr.bf16.gmra.mrb[0].mxu0 %v5815
      %v6905 = vpop.f32.mrb[0].mxu0
      %v6906 = vadd.f32 0.0, %v6905
      %v6907 = vpop.f32.mrb[0].mxu0
      %v6908 = vpop.f32.mrb[0].mxu0
      %v6909 = vadd.f32 0.0, %v6908
      %v6910 = vpop.f32.mrb[0].mxu0
      %6911 = vmatprep.mubr.bf16.mxu0 0
      %6912 = vmatmul.mubr.bf16.gmra.mrb[0].mxu0 %v5818
      %v6913 = vpop.f32.mrb[0].mxu0
      %v6914 = vadd.f32 0.0, %v6913
      %v6915 = vpop.f32.mrb[0].mxu0
      %v6916 = vpop.f32.mrb[0].mxu0
      %v6917 = vadd.f32 0.0, %v6916
      %v6918 = vpop.f32.mrb[0].mxu0
      %6919 = vmatprep.mubr.bf16.mxu0 0
      %6920 = vmatmul.mubr.bf16.gmra.mrb[0].mxu0 %v5821
      %v6921 = vpop.f32.mrb[0].mxu0
      %v6922 = vadd.f32 0.0, %v6921
      %v6923 = vpop.f32.mrb[0].mxu0
      %v6924 = vpop.f32.mrb[0].mxu0
      %v6925 = vadd.f32 0.0, %v6924
      %v6926 = vpop.f32.mrb[0].mxu0
      %6927 = vmatprep.mubr.bf16.mxu0 0
      %6928 = vmatmul.mubr.bf16.gmra.mrb[0].mxu0 %v5824
      %v6929 = vpop.f32.mrb[0].mxu0
      %v6930 = vadd.f32 0.0, %v6929
      %v6931 = vpop.f32.mrb[0].mxu0
      %v6932 = vpop.f32.mrb[0].mxu0
      %v6933 = vadd.f32 0.0, %v6932
      %v6934 = vpop.f32.mrb[0].mxu0
      %6935 = vmatprep.mubr.bf16.mxu0 0
      %6936 = vmatmul.mubr.bf16.gmra.mrb[0].mxu0 %v5827
      %v6937 = vpop.f32.mrb[0].mxu0
      %v6938 = vadd.f32 0.0, %v6937
      %v6939 = vpop.f32.mrb[0].mxu0
      %v6940 = vpop.f32.mrb[0].mxu0
      %v6941 = vadd.f32 0.0, %v6940
      %v6942 = vpop.f32.mrb[0].mxu0
      %6943 = vmatprep.mubr.bf16.mxu0 0
      %6944 = vmatmul.mubr.bf16.gmra.mrb[0].mxu0 %v5830
      %v6945 = vpop.f32.mrb[0].mxu0
      %v6946 = vadd.f32 0.0, %v6945
      %v6947 = vpop.f32.mrb[0].mxu0
      %v6948 = vpop.f32.mrb[0].mxu0
      %v6949 = vadd.f32 0.0, %v6948
      %v6950 = vpop.f32.mrb[0].mxu0
      %6951 = vmatprep.mubr.bf16.mxu0 0
      %6952 = vmatmul.mubr.bf16.gmra.mrb[0].mxu0 %v5833
      %v6953 = vpop.f32.mrb[0].mxu0
      %v6954 = vadd.f32 0.0, %v6953
      %v6955 = vpop.f32.mrb[0].mxu0
      %v6956 = vpop.f32.mrb[0].mxu0
      %v6957 = vadd.f32 0.0, %v6956
      %v6958 = vpop.f32.mrb[0].mxu0
      %6959 = vmatprep.mubr.bf16.mxu0 0
      %6960 = vmatmul.mubr.bf16.gmra.mrb[0].mxu0 %v5836
      %v6961 = vpop.f32.mrb[0].mxu0
      %v6962 = vadd.f32 0.0, %v6961
      %v6963 = vpop.f32.mrb[0].mxu0
      %v6964 = vpop.f32.mrb[0].mxu0
      %v6965 = vadd.f32 0.0, %v6964
      %v6966 = vpop.f32.mrb[0].mxu0
      %6967 = vmatprep.mubr.bf16.mxu0 0
      %6968 = vmatmul.mubr.bf16.gmra.mrb[0].mxu0 %v5839
      %v6969 = vpop.f32.mrb[0].mxu0
      %v6970 = vadd.f32 0.0, %v6969
      %v6971 = vpop.f32.mrb[0].mxu0
      %v6972 = vpop.f32.mrb[0].mxu0
      %v6973 = vadd.f32 0.0, %v6972
      %v6974 = vpop.f32.mrb[0].mxu0
      %6975 = vmatprep.mubr.bf16.mxu0 0
      %6976 = vmatmul.mubr.bf16.gmra.mrb[0].mxu0 %v5842
      %v6977 = vpop.f32.mrb[0].mxu0
      %v6978 = vadd.f32 0.0, %v6977
      %v6979 = vpop.f32.mrb[0].mxu0
      %v6980 = vpop.f32.mrb[0].mxu0
      %v6981 = vadd.f32 0.0, %v6980
      %v6982 = vpop.f32.mrb[0].mxu0
      %6983 = vmatprep.mubr.bf16.mxu0 0
      %6984 = vmatmul.mubr.bf16.gmra.mrb[0].mxu0 %v5845
      %v6985 = vpop.f32.mrb[0].mxu0
      %v6986 = vadd.f32 0.0, %v6985
      %v6987 = vpop.f32.mrb[0].mxu0
      %v6988 = vpop.f32.mrb[0].mxu0
      %v6989 = vadd.f32 0.0, %v6988
      %v6990 = vpop.f32.mrb[0].mxu0
      %6991 = vmatprep.mubr.bf16.mxu0 0
      %6992 = vmatmul.mubr.bf16.gmra.mrb[0].mxu0 %v5848
      %v6993 = vpop.f32.mrb[0].mxu0
      %v6994 = vadd.f32 0.0, %v6993
      %v6995 = vpop.f32.mrb[0].mxu0
      %v6996 = vpop.f32.mrb[0].mxu0
      %v6997 = vadd.f32 0.0, %v6996
      %v6998 = vpop.f32.mrb[0].mxu0
      %6999 = vmatprep.mubr.bf16.mxu0 0
      %7000 = vmatmul.mubr.bf16.gmra.mrb[0].mxu0 %v5851
      %v7001 = vpop.f32.mrb[0].mxu0
      %v7002 = vadd.f32 0.0, %v7001
      %v7003 = vpop.f32.mrb[0].mxu0
      %v7004 = vpop.f32.mrb[0].mxu0
      %v7005 = vadd.f32 0.0, %v7004
      %v7006 = vpop.f32.mrb[0].mxu0
      %7007 = vmatprep.mubr.bf16.mxu0 0
      %7008 = vmatmul.mubr.bf16.gmra.mrb[0].mxu0 %v5854
      %v7009 = vpop.f32.mrb[0].mxu0
      %v7010 = vadd.f32 0.0, %v7009
      %v7011 = vpop.f32.mrb[0].mxu0
      %v7012 = vpop.f32.mrb[0].mxu0
      %v7013 = vadd.f32 0.0, %v7012
      %v7014 = vpop.f32.mrb[0].mxu0
      %7015 = vmatprep.mubr.bf16.mxu0 0
      %7016 = vmatmul.mubr.bf16.gmra.mrb[0].mxu0 %v5857
      %v7017 = vpop.f32.mrb[0].mxu0
      %v7018 = vadd.f32 0.0, %v7017
      %v7019 = vpop.f32.mrb[0].mxu0
      %v7020 = vpop.f32.mrb[0].mxu0
      %v7021 = vadd.f32 0.0, %v7020
      %v7022 = vpop.f32.mrb[0].mxu0
      %7023 = vmatprep.mubr.bf16.mxu0 0
      %7024 = vmatmul.mubr.bf16.gmra.mrb[0].mxu0 %v5860
      %v7025 = vpop.f32.mrb[0].mxu0
      %v7026 = vadd.f32 0.0, %v7025
      %v7027 = vpop.f32.mrb[0].mxu0
      %v7028 = vpop.f32.mrb[0].mxu0
      %v7029 = vadd.f32 0.0, %v7028
      %v7030 = vpop.f32.mrb[0].mxu0
      %7031 = vmatprep.mubr.bf16.mxu0 0
      %7032 = vmatmul.mubr.bf16.gmra.mrb[0].mxu0 %v5863
      %v7033 = vpop.f32.mrb[0].mxu0
      %v7034 = vadd.f32 0.0, %v7033
      %v7035 = vpop.f32.mrb[0].mxu0
      %v7036 = vpop.f32.mrb[0].mxu0
      %v7037 = vadd.f32 0.0, %v7036
      %v7038 = vpop.f32.mrb[0].mxu0
      %7039 = vmatprep.mubr.bf16.mxu0 0
      %7040 = vmatmul.mubr.bf16.gmra.mrb[0].mxu0 %v5866
      %v7041 = vpop.f32.mrb[0].mxu0
      %v7042 = vadd.f32 0.0, %v7041
      %v7043 = vpop.f32.mrb[0].mxu0
      %v7044 = vpop.f32.mrb[0].mxu0
      %v7045 = vadd.f32 0.0, %v7044
      %v7046 = vpop.f32.mrb[0].mxu0
      %7047 = vmatprep.mubr.bf16.mxu0 0
      %7048 = vmatmul.mubr.bf16.gmra.mrb[0].mxu0 %v5869
      %v7049 = vpop.f32.mrb[0].mxu0
      %v7050 = vadd.f32 0.0, %v7049
      %v7051 = vpop.f32.mrb[0].mxu0
      %v7052 = vpop.f32.mrb[0].mxu0
      %v7053 = vadd.f32 0.0, %v7052
      %v7054 = vpop.f32.mrb[0].mxu0
      %7055 = vdwg.mxu0
      %v7056 = vpack.c.bf16 %v5909, %v5906
      %v7057 = vpack.c.bf16 %v5917, %v5914
      %v7058 = vpack.c.bf16 %v5925, %v5922
      %v7059 = vpack.c.bf16 %v5933, %v5930
      %v7060 = vpack.c.bf16 %v5941, %v5938
      %v7061 = vpack.c.bf16 %v5949, %v5946
      %v7062 = vpack.c.bf16 %v5957, %v5954
      %v7063 = vpack.c.bf16 %v5965, %v5962
      %v7064 = vpack.c.bf16 %v5973, %v5970
      %v7065 = vpack.c.bf16 %v5981, %v5978
      %v7066 = vpack.c.bf16 %v5989, %v5986
      %v7067 = vpack.c.bf16 %v5997, %v5994
      %v7068 = vpack.c.bf16 %v6005, %v6002
      %v7069 = vpack.c.bf16 %v6013, %v6010
      %v7070 = vpack.c.bf16 %v6021, %v6018
      %v7071 = vpack.c.bf16 %v6029, %v6026
      %v7072 = vld [vmem:[%s11] sm:$0xf]
      %v7073 = vpack.c.bf16 %v6037, %v6034
      %v7074 = vpack.c.bf16 %v6045, %v6042
      %v7075 = vpack.c.bf16 %v6053, %v6050
      %v7076 = vpack.c.bf16 %v6061, %v6058
      %v7077 = vpack.c.bf16 %v6069, %v6066
      %v7078 = vpack.c.bf16 %v6077, %v6074
      %v7079 = vpack.c.bf16 %v6085, %v6082
      %v7080 = vpack.c.bf16 %v6093, %v6090
      %v7081 = vpack.c.bf16 %v6101, %v6098
      %v7082 = vpack.c.bf16 %v6109, %v6106
      %v7083 = vpack.c.bf16 %v6117, %v6114
      %v7084 = vpack.c.bf16 %v6125, %v6122
      %v7085 = vpack.c.bf16 %v6133, %v6130
      %v7086 = vpack.c.bf16 %v6141, %v6138
      %v7087 = vpack.c.bf16 %v6149, %v6146
      %v7088 = vpack.c.bf16 %v6157, %v6154
      %s7089 = scalar_lea.vmem %s11, 4
      %v7090 = vld [vmem:[%s7089] sm:$0xf]
      %v7092 = vsel %vm2385, %v7073, 0
      %v7095 = vsel %vm2385, %v7074, 0
      %v7098 = vsel %vm2385, %v7075, 0
      %v7101 = vsel %vm2385, %v7076, 0
      %v7104 = vsel %vm2385, %v7077, 0
      %v7107 = vsel %vm2385, %v7078, 0
      %v7110 = vsel %vm2385, %v7079, 0
      %v7113 = vsel %vm2385, %v7080, 0
      %v7116 = vsel %vm2385, %v7081, 0
      %v7119 = vsel %vm2385, %v7082, 0
      %v7122 = vsel %vm2385, %v7083, 0
      %v7125 = vsel %vm2385, %v7084, 0
      %v7128 = vsel %vm2385, %v7085, 0
      %v7131 = vsel %vm2385, %v7086, 0
      %v7134 = vsel %vm2385, %v7087, 0
      %v7137 = vsel %vm2385, %v7088, 0
      %v7140 = vsel %vm2389, %v7090, 0
      %7142 = vmatprep.subr.bf16.mxu0 0
      %7143 = vmatpush1.bf16.msra.mxu0 %v7140
      %7144 = vmatprep.subr.bf16.mxu0 0
      %7145 = vmatpush1.bf16.msra.mxu0 0
      %7146 = vmatprep.subr.bf16.mxu0 0
      %7147 = vmatpush1.bf16.msra.mxu0 0
      %7148 = vmatprep.subr.bf16.mxu0 0
      %7149 = vmatpush1.bf16.msra.mxu0 0
      %7150 = vmatprep.subr.bf16.mxu0 0
      %7151 = vmatpush1.bf16.msra.mxu0 0
      %7152 = vmatprep.subr.bf16.mxu0 0
      %7153 = vmatpush1.bf16.msra.mxu0 0
      %7154 = vmatprep.subr.bf16.mxu0 0
      %7155 = vmatpush1.bf16.msra.mxu0 0
      %7156 = vmatprep.subr.bf16.mxu0 0
      %7157 = vmatpush1.bf16.msra.mxu0 0
      %7158 = vmatprep.subr.bf16.mxu0 0
      %7159 = vmatpush1.bf16.msra.mxu0 0
      %7160 = vmatprep.subr.bf16.mxu0 0
      %7161 = vmatpush1.bf16.msra.mxu0 0
      %7162 = vmatprep.subr.bf16.mxu0 0
      %7163 = vmatpush1.bf16.msra.mxu0 0
      %7164 = vmatprep.subr.bf16.mxu0 0
      %7165 = vmatpush1.bf16.msra.mxu0 0
      %7166 = vmatprep.subr.bf16.mxu0 0
      %7167 = vmatpush1.bf16.msra.mxu0 0
      %7168 = vmatprep.subr.bf16.mxu0 0
      %7169 = vmatpush1.bf16.msra.mxu0 0
      %7170 = vmatprep.subr.bf16.mxu0 0
      %7171 = vmatpush1.bf16.msra.mxu0 0
      %7172 = vmatprep.subr.bf16.mxu0 0
      %7173 = vmatpush1.bf16.msra.mxu0 0
      %7174 = vmatprep.mubr.bf16.mxu0 0
      %7175 = vmatmul.mubr.bf16.gmra.mrb[0].mxu0 %v7092
      %v7176 = vpop.f32.mrb[0].mxu0
      %v7177 = vadd.f32 0.0, %v7176
      %v7178 = vpop.f32.mrb[0].mxu0
      %v7179 = vpop.f32.mrb[0].mxu0
      %v7180 = vadd.f32 0.0, %v7179
      %v7181 = vpop.f32.mrb[0].mxu0
      %7182 = vmatprep.mubr.bf16.mxu0 0
      %7183 = vmatmul.mubr.bf16.gmra.mrb[0].mxu0 %v7095
      %v7184 = vpop.f32.mrb[0].mxu0
      %v7185 = vadd.f32 0.0, %v7184
      %v7186 = vpop.f32.mrb[0].mxu0
      %v7187 = vpop.f32.mrb[0].mxu0
      %v7188 = vadd.f32 0.0, %v7187
      %v7189 = vpop.f32.mrb[0].mxu0
      %7190 = vmatprep.mubr.bf16.mxu0 0
      %7191 = vmatmul.mubr.bf16.gmra.mrb[0].mxu0 %v7098
      %v7192 = vpop.f32.mrb[0].mxu0
      %v7193 = vadd.f32 0.0, %v7192
      %v7194 = vpop.f32.mrb[0].mxu0
      %v7195 = vpop.f32.mrb[0].mxu0
      %v7196 = vadd.f32 0.0, %v7195
      %v7197 = vpop.f32.mrb[0].mxu0
      %7198 = vmatprep.mubr.bf16.mxu0 0
      %7199 = vmatmul.mubr.bf16.gmra.mrb[0].mxu0 %v7101
      %v7200 = vpop.f32.mrb[0].mxu0
      %v7201 = vadd.f32 0.0, %v7200
      %v7202 = vpop.f32.mrb[0].mxu0
      %v7203 = vpop.f32.mrb[0].mxu0
      %v7204 = vadd.f32 0.0, %v7203
      %v7205 = vpop.f32.mrb[0].mxu0
      %7206 = vmatprep.mubr.bf16.mxu0 0
      %7207 = vmatmul.mubr.bf16.gmra.mrb[0].mxu0 %v7104
      %v7208 = vpop.f32.mrb[0].mxu0
      %v7209 = vadd.f32 0.0, %v7208
      %v7210 = vpop.f32.mrb[0].mxu0
      %v7211 = vpop.f32.mrb[0].mxu0
      %v7212 = vadd.f32 0.0, %v7211
      %v7213 = vpop.f32.mrb[0].mxu0
      %7214 = vmatprep.mubr.bf16.mxu0 0
      %7215 = vmatmul.mubr.bf16.gmra.mrb[0].mxu0 %v7107
      %v7216 = vpop.f32.mrb[0].mxu0
      %v7217 = vadd.f32 0.0, %v7216
      %v7218 = vpop.f32.mrb[0].mxu0
      %v7219 = vpop.f32.mrb[0].mxu0
      %v7220 = vadd.f32 0.0, %v7219
      %v7221 = vpop.f32.mrb[0].mxu0
      %7222 = vmatprep.mubr.bf16.mxu0 0
      %7223 = vmatmul.mubr.bf16.gmra.mrb[0].mxu0 %v7110
      %v7224 = vpop.f32.mrb[0].mxu0
      %v7225 = vadd.f32 0.0, %v7224
      %v7226 = vpop.f32.mrb[0].mxu0
      %v7227 = vpop.f32.mrb[0].mxu0
      %v7228 = vadd.f32 0.0, %v7227
      %v7229 = vpop.f32.mrb[0].mxu0
      %7230 = vmatprep.mubr.bf16.mxu0 0
      %7231 = vmatmul.mubr.bf16.gmra.mrb[0].mxu0 %v7113
      %v7232 = vpop.f32.mrb[0].mxu0
      %v7233 = vadd.f32 0.0, %v7232
      %v7234 = vpop.f32.mrb[0].mxu0
      %v7235 = vpop.f32.mrb[0].mxu0
      %v7236 = vadd.f32 0.0, %v7235
      %v7237 = vpop.f32.mrb[0].mxu0
      %7238 = vmatprep.mubr.bf16.mxu0 0
      %7239 = vmatmul.mubr.bf16.gmra.mrb[0].mxu0 %v7116
      %v7240 = vpop.f32.mrb[0].mxu0
      %v7241 = vadd.f32 0.0, %v7240
      %v7242 = vpop.f32.mrb[0].mxu0
      %v7243 = vpop.f32.mrb[0].mxu0
      %v7244 = vadd.f32 0.0, %v7243
      %v7245 = vpop.f32.mrb[0].mxu0
      %7246 = vmatprep.mubr.bf16.mxu0 0
      %7247 = vmatmul.mubr.bf16.gmra.mrb[0].mxu0 %v7119
      %v7248 = vpop.f32.mrb[0].mxu0
      %v7249 = vadd.f32 0.0, %v7248
      %v7250 = vpop.f32.mrb[0].mxu0
      %v7251 = vpop.f32.mrb[0].mxu0
      %v7252 = vadd.f32 0.0, %v7251
      %v7253 = vpop.f32.mrb[0].mxu0
      %7254 = vmatprep.mubr.bf16.mxu0 0
      %7255 = vmatmul.mubr.bf16.gmra.mrb[0].mxu0 %v7122
      %v7256 = vpop.f32.mrb[0].mxu0
      %v7257 = vadd.f32 0.0, %v7256
      %v7258 = vpop.f32.mrb[0].mxu0
      %v7259 = vpop.f32.mrb[0].mxu0
      %v7260 = vadd.f32 0.0, %v7259
      %v7261 = vpop.f32.mrb[0].mxu0
      %7262 = vmatprep.mubr.bf16.mxu0 0
      %7263 = vmatmul.mubr.bf16.gmra.mrb[0].mxu0 %v7125
      %v7264 = vpop.f32.mrb[0].mxu0
      %v7265 = vadd.f32 0.0, %v7264
      %v7266 = vpop.f32.mrb[0].mxu0
      %v7267 = vpop.f32.mrb[0].mxu0
      %v7268 = vadd.f32 0.0, %v7267
      %v7269 = vpop.f32.mrb[0].mxu0
      %7270 = vmatprep.mubr.bf16.mxu0 0
      %7271 = vmatmul.mubr.bf16.gmra.mrb[0].mxu0 %v7128
      %v7272 = vpop.f32.mrb[0].mxu0
      %v7273 = vadd.f32 0.0, %v7272
      %v7274 = vpop.f32.mrb[0].mxu0
      %v7275 = vpop.f32.mrb[0].mxu0
      %v7276 = vadd.f32 0.0, %v7275
      %v7277 = vpop.f32.mrb[0].mxu0
      %7278 = vmatprep.mubr.bf16.mxu0 0
      %7279 = vmatmul.mubr.bf16.gmra.mrb[0].mxu0 %v7131
      %v7280 = vpop.f32.mrb[0].mxu0
      %v7281 = vadd.f32 0.0, %v7280
      %v7282 = vpop.f32.mrb[0].mxu0
      %v7283 = vpop.f32.mrb[0].mxu0
      %v7284 = vadd.f32 0.0, %v7283
      %v7285 = vpop.f32.mrb[0].mxu0
      %7286 = vmatprep.mubr.bf16.mxu0 0
      %7287 = vmatmul.mubr.bf16.gmra.mrb[0].mxu0 %v7134
      %v7288 = vpop.f32.mrb[0].mxu0
      %v7289 = vadd.f32 0.0, %v7288
      %v7290 = vpop.f32.mrb[0].mxu0
      %v7291 = vpop.f32.mrb[0].mxu0
      %v7292 = vadd.f32 0.0, %v7291
      %v7293 = vpop.f32.mrb[0].mxu0
      %7294 = vmatprep.mubr.bf16.mxu0 0
      %7295 = vmatmul.mubr.bf16.gmra.mrb[0].mxu0 %v7137
      %v7296 = vpop.f32.mrb[0].mxu0
      %v7297 = vadd.f32 0.0, %v7296
      %v7298 = vpop.f32.mrb[0].mxu0
      %v7299 = vpop.f32.mrb[0].mxu0
      %v7300 = vadd.f32 0.0, %v7299
      %v7301 = vpop.f32.mrb[0].mxu0
      %7302 = vdwg.mxu0
      %v7304 = vsel %vm2385, %v7056, 0
      %v7307 = vsel %vm2385, %v7057, 0
      %v7310 = vsel %vm2385, %v7058, 0
      %v7313 = vsel %vm2385, %v7059, 0
      %v7316 = vsel %vm2385, %v7060, 0
      %v7319 = vsel %vm2385, %v7061, 0
      %v7322 = vsel %vm2385, %v7062, 0
      %v7325 = vsel %vm2385, %v7063, 0
      %v7328 = vsel %vm2385, %v7064, 0
      %v7331 = vsel %vm2385, %v7065, 0
      %v7334 = vsel %vm2385, %v7066, 0
      %v7337 = vsel %vm2385, %v7067, 0
      %v7340 = vsel %vm2385, %v7068, 0
      %v7343 = vsel %vm2385, %v7069, 0
      %v7346 = vsel %vm2385, %v7070, 0
      %v7349 = vsel %vm2385, %v7071, 0
      %v7352 = vsel %vm2389, %v7072, 0
      %7354 = vmatprep.subr.bf16.mxu0 0
      %7355 = vmatpush1.bf16.msra.mxu0 %v7352
      %7356 = vmatprep.subr.bf16.mxu0 0
      %7357 = vmatpush1.bf16.msra.mxu0 0
      %7358 = vmatprep.subr.bf16.mxu0 0
      %7359 = vmatpush1.bf16.msra.mxu0 0
      %7360 = vmatprep.subr.bf16.mxu0 0
      %7361 = vmatpush1.bf16.msra.mxu0 0
      %7362 = vmatprep.subr.bf16.mxu0 0
      %7363 = vmatpush1.bf16.msra.mxu0 0
      %7364 = vmatprep.subr.bf16.mxu0 0
      %7365 = vmatpush1.bf16.msra.mxu0 0
      %7366 = vmatprep.subr.bf16.mxu0 0
      %7367 = vmatpush1.bf16.msra.mxu0 0
      %7368 = vmatprep.subr.bf16.mxu0 0
      %7369 = vmatpush1.bf16.msra.mxu0 0
      %7370 = vmatprep.subr.bf16.mxu0 0
      %7371 = vmatpush1.bf16.msra.mxu0 0
      %7372 = vmatprep.subr.bf16.mxu0 0
      %7373 = vmatpush1.bf16.msra.mxu0 0
      %7374 = vmatprep.subr.bf16.mxu0 0
      %7375 = vmatpush1.bf16.msra.mxu0 0
      %7376 = vmatprep.subr.bf16.mxu0 0
      %7377 = vmatpush1.bf16.msra.mxu0 0
      %7378 = vmatprep.subr.bf16.mxu0 0
      %7379 = vmatpush1.bf16.msra.mxu0 0
      %7380 = vmatprep.subr.bf16.mxu0 0
      %7381 = vmatpush1.bf16.msra.mxu0 0
      %7382 = vmatprep.subr.bf16.mxu0 0
      %7383 = vmatpush1.bf16.msra.mxu0 0
      %7384 = vmatprep.subr.bf16.mxu0 0
      %7385 = vmatpush1.bf16.msra.mxu0 0
      %7386 = vmatprep.mubr.bf16.mxu0 0
      %7387 = vmatmul.mubr.bf16.gmra.mrb[0].mxu0 %v7304
      %v7388 = vpop.f32.mrb[0].mxu0
      %v7389 = vadd.f32 %v7177, %v7388
      %v7390 = vpop.f32.mrb[0].mxu0
      %v7391 = vpop.f32.mrb[0].mxu0
      %v7392 = vadd.f32 %v7180, %v7391
      %v7393 = vpop.f32.mrb[0].mxu0
      %7394 = vmatprep.mubr.bf16.mxu0 0
      %7395 = vmatmul.mubr.bf16.gmra.mrb[0].mxu0 %v7307
      %v7396 = vpop.f32.mrb[0].mxu0
      %v7397 = vadd.f32 %v7185, %v7396
      %v7398 = vpop.f32.mrb[0].mxu0
      %v7399 = vpop.f32.mrb[0].mxu0
      %v7400 = vadd.f32 %v7188, %v7399
      %v7401 = vpop.f32.mrb[0].mxu0
      %7402 = vmatprep.mubr.bf16.mxu0 0
      %7403 = vmatmul.mubr.bf16.gmra.mrb[0].mxu0 %v7310
      %v7404 = vpop.f32.mrb[0].mxu0
      %v7405 = vadd.f32 %v7193, %v7404
      %v7406 = vpop.f32.mrb[0].mxu0
      %v7407 = vpop.f32.mrb[0].mxu0
      %v7408 = vadd.f32 %v7196, %v7407
      %v7409 = vpop.f32.mrb[0].mxu0
      %7410 = vmatprep.mubr.bf16.mxu0 0
      %7411 = vmatmul.mubr.bf16.gmra.mrb[0].mxu0 %v7313
      %v7412 = vpop.f32.mrb[0].mxu0
      %v7413 = vadd.f32 %v7201, %v7412
      %v7414 = vpop.f32.mrb[0].mxu0
      %v7415 = vpop.f32.mrb[0].mxu0
      %v7416 = vadd.f32 %v7204, %v7415
      %v7417 = vpop.f32.mrb[0].mxu0
      %7418 = vmatprep.mubr.bf16.mxu0 0
      %7419 = vmatmul.mubr.bf16.gmra.mrb[0].mxu0 %v7316
      %v7420 = vpop.f32.mrb[0].mxu0
      %v7421 = vadd.f32 %v7209, %v7420
      %v7422 = vpop.f32.mrb[0].mxu0
      %v7423 = vpop.f32.mrb[0].mxu0
      %v7424 = vadd.f32 %v7212, %v7423
      %v7425 = vpop.f32.mrb[0].mxu0
      %7426 = vmatprep.mubr.bf16.mxu0 0
      %7427 = vmatmul.mubr.bf16.gmra.mrb[0].mxu0 %v7319
      %v7428 = vpop.f32.mrb[0].mxu0
      %v7429 = vadd.f32 %v7217, %v7428
      %v7430 = vpop.f32.mrb[0].mxu0
      %v7431 = vpop.f32.mrb[0].mxu0
      %v7432 = vadd.f32 %v7220, %v7431
      %v7433 = vpop.f32.mrb[0].mxu0
      %7434 = vmatprep.mubr.bf16.mxu0 0
      %7435 = vmatmul.mubr.bf16.gmra.mrb[0].mxu0 %v7322
      %v7436 = vpop.f32.mrb[0].mxu0
      %v7437 = vadd.f32 %v7225, %v7436
      %v7438 = vpop.f32.mrb[0].mxu0
      %v7439 = vpop.f32.mrb[0].mxu0
      %v7440 = vadd.f32 %v7228, %v7439
      %v7441 = vpop.f32.mrb[0].mxu0
      %7442 = vmatprep.mubr.bf16.mxu0 0
      %7443 = vmatmul.mubr.bf16.gmra.mrb[0].mxu0 %v7325
      %v7444 = vpop.f32.mrb[0].mxu0
      %v7445 = vadd.f32 %v7233, %v7444
      %v7446 = vpop.f32.mrb[0].mxu0
      %v7447 = vpop.f32.mrb[0].mxu0
      %v7448 = vadd.f32 %v7236, %v7447
      %v7449 = vpop.f32.mrb[0].mxu0
      %7450 = vmatprep.mubr.bf16.mxu0 0
      %7451 = vmatmul.mubr.bf16.gmra.mrb[0].mxu0 %v7328
      %v7452 = vpop.f32.mrb[0].mxu0
      %v7453 = vadd.f32 %v7241, %v7452
      %v7454 = vpop.f32.mrb[0].mxu0
      %v7455 = vpop.f32.mrb[0].mxu0
      %v7456 = vadd.f32 %v7244, %v7455
      %v7457 = vpop.f32.mrb[0].mxu0
      %7458 = vmatprep.mubr.bf16.mxu0 0
      %7459 = vmatmul.mubr.bf16.gmra.mrb[0].mxu0 %v7331
      %v7460 = vpop.f32.mrb[0].mxu0
      %v7461 = vadd.f32 %v7249, %v7460
      %v7462 = vpop.f32.mrb[0].mxu0
      %v7463 = vpop.f32.mrb[0].mxu0
      %v7464 = vadd.f32 %v7252, %v7463
      %v7465 = vpop.f32.mrb[0].mxu0
      %7466 = vmatprep.mubr.bf16.mxu0 0
      %7467 = vmatmul.mubr.bf16.gmra.mrb[0].mxu0 %v7334
      %v7468 = vpop.f32.mrb[0].mxu0
      %v7469 = vadd.f32 %v7257, %v7468
      %v7470 = vpop.f32.mrb[0].mxu0
      %v7471 = vpop.f32.mrb[0].mxu0
      %v7472 = vadd.f32 %v7260, %v7471
      %v7473 = vpop.f32.mrb[0].mxu0
      %7474 = vmatprep.mubr.bf16.mxu0 0
      %7475 = vmatmul.mubr.bf16.gmra.mrb[0].mxu0 %v7337
      %v7476 = vpop.f32.mrb[0].mxu0
      %v7477 = vadd.f32 %v7265, %v7476
      %v7478 = vpop.f32.mrb[0].mxu0
      %v7479 = vpop.f32.mrb[0].mxu0
      %v7480 = vadd.f32 %v7268, %v7479
      %v7481 = vpop.f32.mrb[0].mxu0
      %7482 = vmatprep.mubr.bf16.mxu0 0
      %7483 = vmatmul.mubr.bf16.gmra.mrb[0].mxu0 %v7340
      %v7484 = vpop.f32.mrb[0].mxu0
      %v7485 = vadd.f32 %v7273, %v7484
      %v7486 = vpop.f32.mrb[0].mxu0
      %v7487 = vpop.f32.mrb[0].mxu0
      %v7488 = vadd.f32 %v7276, %v7487
      %v7489 = vpop.f32.mrb[0].mxu0
      %7490 = vmatprep.mubr.bf16.mxu0 0
      %7491 = vmatmul.mubr.bf16.gmra.mrb[0].mxu0 %v7343
      %v7492 = vpop.f32.mrb[0].mxu0
      %v7493 = vadd.f32 %v7281, %v7492
      %v7494 = vpop.f32.mrb[0].mxu0
      %v7495 = vpop.f32.mrb[0].mxu0
      %v7496 = vadd.f32 %v7284, %v7495
      %v7497 = vpop.f32.mrb[0].mxu0
      %7498 = vmatprep.mubr.bf16.mxu0 0
      %7499 = vmatmul.mubr.bf16.gmra.mrb[0].mxu0 %v7346
      %v7500 = vpop.f32.mrb[0].mxu0
      %v7501 = vadd.f32 %v7289, %v7500
      %v7502 = vpop.f32.mrb[0].mxu0
      %v7503 = vpop.f32.mrb[0].mxu0
      %v7504 = vadd.f32 %v7292, %v7503
      %v7505 = vpop.f32.mrb[0].mxu0
      %7506 = vmatprep.mubr.bf16.mxu0 0
      %7507 = vmatmul.mubr.bf16.gmra.mrb[0].mxu0 %v7349
      %v7508 = vpop.f32.mrb[0].mxu0
      %v7509 = vadd.f32 %v7297, %v7508
      %v7510 = vpop.f32.mrb[0].mxu0
      %v7511 = vpop.f32.mrb[0].mxu0
      %v7512 = vadd.f32 %v7300, %v7511
      %v7513 = vpop.f32.mrb[0].mxu0
      %7514 = vdwg.mxu0
      %v7515 = vpack.c.bf16 %v6165, %v6162
      %v7516 = vpack.c.bf16 %v6173, %v6170
      %v7517 = vpack.c.bf16 %v6181, %v6178
      %v7518 = vpack.c.bf16 %v6189, %v6186
      %v7519 = vpack.c.bf16 %v6197, %v6194
      %v7520 = vpack.c.bf16 %v6205, %v6202
      %v7521 = vpack.c.bf16 %v6213, %v6210
      %v7522 = vpack.c.bf16 %v6221, %v6218
      %v7523 = vpack.c.bf16 %v6229, %v6226
      %v7524 = vpack.c.bf16 %v6237, %v6234
      %v7525 = vpack.c.bf16 %v6245, %v6242
      %v7526 = vpack.c.bf16 %v6253, %v6250
      %v7527 = vpack.c.bf16 %v6261, %v6258
      %v7528 = vpack.c.bf16 %v6269, %v6266
      %v7529 = vpack.c.bf16 %v6277, %v6274
      %v7530 = vpack.c.bf16 %v6285, %v6282
      %s7531 = scalar_lea.vmem %s11, 8
      %v7532 = vld [vmem:[%s7531] sm:$0xf]
      %v7534 = vsel %vm2385, %v7515, 0
      %v7537 = vsel %vm2385, %v7516, 0
      %v7540 = vsel %vm2385, %v7517, 0
      %v7543 = vsel %vm2385, %v7518, 0
      %v7546 = vsel %vm2385, %v7519, 0
      %v7549 = vsel %vm2385, %v7520, 0
      %v7552 = vsel %vm2385, %v7521, 0
      %v7555 = vsel %vm2385, %v7522, 0
      %v7558 = vsel %vm2385, %v7523, 0
      %v7561 = vsel %vm2385, %v7524, 0
      %v7564 = vsel %vm2385, %v7525, 0
      %v7567 = vsel %vm2385, %v7526, 0
      %v7570 = vsel %vm2385, %v7527, 0
      %v7573 = vsel %vm2385, %v7528, 0
      %v7576 = vsel %vm2385, %v7529, 0
      %v7579 = vsel %vm2385, %v7530, 0
      %v7582 = vsel %vm2389, %v7532, 0
      %7584 = vmatprep.subr.bf16.mxu0 0
      %7585 = vmatpush1.bf16.msra.mxu0 %v7582
      %7586 = vmatprep.subr.bf16.mxu0 0
      %7587 = vmatpush1.bf16.msra.mxu0 0
      %7588 = vmatprep.subr.bf16.mxu0 0
      %7589 = vmatpush1.bf16.msra.mxu0 0
      %7590 = vmatprep.subr.bf16.mxu0 0
      %7591 = vmatpush1.bf16.msra.mxu0 0
      %7592 = vmatprep.subr.bf16.mxu0 0
      %7593 = vmatpush1.bf16.msra.mxu0 0
      %7594 = vmatprep.subr.bf16.mxu0 0
      %7595 = vmatpush1.bf16.msra.mxu0 0
      %7596 = vmatprep.subr.bf16.mxu0 0
      %7597 = vmatpush1.bf16.msra.mxu0 0
      %7598 = vmatprep.subr.bf16.mxu0 0
      %7599 = vmatpush1.bf16.msra.mxu0 0
      %7600 = vmatprep.subr.bf16.mxu0 0
      %7601 = vmatpush1.bf16.msra.mxu0 0
      %7602 = vmatprep.subr.bf16.mxu0 0
      %7603 = vmatpush1.bf16.msra.mxu0 0
      %7604 = vmatprep.subr.bf16.mxu0 0
      %7605 = vmatpush1.bf16.msra.mxu0 0
      %7606 = vmatprep.subr.bf16.mxu0 0
      %7607 = vmatpush1.bf16.msra.mxu0 0
      %7608 = vmatprep.subr.bf16.mxu0 0
      %7609 = vmatpush1.bf16.msra.mxu0 0
      %7610 = vmatprep.subr.bf16.mxu0 0
      %7611 = vmatpush1.bf16.msra.mxu0 0
      %7612 = vmatprep.subr.bf16.mxu0 0
      %7613 = vmatpush1.bf16.msra.mxu0 0
      %7614 = vmatprep.subr.bf16.mxu0 0
      %7615 = vmatpush1.bf16.msra.mxu0 0
      %7616 = vmatprep.mubr.bf16.mxu0 0
      %7617 = vmatmul.mubr.bf16.gmra.mrb[0].mxu0 %v7534
      %v7618 = vpop.f32.mrb[0].mxu0
      %v7619 = vadd.f32 0.0, %v7618
      %v7620 = vpop.f32.mrb[0].mxu0
      %v7621 = vpop.f32.mrb[0].mxu0
      %v7622 = vadd.f32 0.0, %v7621
      %v7623 = vpop.f32.mrb[0].mxu0
      %7624 = vmatprep.mubr.bf16.mxu0 0
      %7625 = vmatmul.mubr.bf16.gmra.mrb[0].mxu0 %v7537
      %v7626 = vpop.f32.mrb[0].mxu0
      %v7627 = vadd.f32 0.0, %v7626
      %v7628 = vpop.f32.mrb[0].mxu0
      %v7629 = vpop.f32.mrb[0].mxu0
      %v7630 = vadd.f32 0.0, %v7629
      %v7631 = vpop.f32.mrb[0].mxu0
      %7632 = vmatprep.mubr.bf16.mxu0 0
      %7633 = vmatmul.mubr.bf16.gmra.mrb[0].mxu0 %v7540
      %v7634 = vpop.f32.mrb[0].mxu0
      %v7635 = vadd.f32 0.0, %v7634
      %v7636 = vpop.f32.mrb[0].mxu0
      %v7637 = vpop.f32.mrb[0].mxu0
      %v7638 = vadd.f32 0.0, %v7637
      %v7639 = vpop.f32.mrb[0].mxu0
      %7640 = vmatprep.mubr.bf16.mxu0 0
      %7641 = vmatmul.mubr.bf16.gmra.mrb[0].mxu0 %v7543
      %v7642 = vpop.f32.mrb[0].mxu0
      %v7643 = vadd.f32 0.0, %v7642
      %v7644 = vpop.f32.mrb[0].mxu0
      %v7645 = vpop.f32.mrb[0].mxu0
      %v7646 = vadd.f32 0.0, %v7645
      %v7647 = vpop.f32.mrb[0].mxu0
      %7648 = vmatprep.mubr.bf16.mxu0 0
      %7649 = vmatmul.mubr.bf16.gmra.mrb[0].mxu0 %v7546
      %v7650 = vpop.f32.mrb[0].mxu0
      %v7651 = vadd.f32 0.0, %v7650
      %v7652 = vpop.f32.mrb[0].mxu0
      %v7653 = vpop.f32.mrb[0].mxu0
      %v7654 = vadd.f32 0.0, %v7653
      %v7655 = vpop.f32.mrb[0].mxu0
      %7656 = vmatprep.mubr.bf16.mxu0 0
      %7657 = vmatmul.mubr.bf16.gmra.mrb[0].mxu0 %v7549
      %v7658 = vpop.f32.mrb[0].mxu0
      %v7659 = vadd.f32 0.0, %v7658
      %v7660 = vpop.f32.mrb[0].mxu0
      %v7661 = vpop.f32.mrb[0].mxu0
      %v7662 = vadd.f32 0.0, %v7661
      %v7663 = vpop.f32.mrb[0].mxu0
      %7664 = vmatprep.mubr.bf16.mxu0 0
      %7665 = vmatmul.mubr.bf16.gmra.mrb[0].mxu0 %v7552
      %v7666 = vpop.f32.mrb[0].mxu0
      %v7667 = vadd.f32 0.0, %v7666
      %v7668 = vpop.f32.mrb[0].mxu0
      %v7669 = vpop.f32.mrb[0].mxu0
      %v7670 = vadd.f32 0.0, %v7669
      %v7671 = vpop.f32.mrb[0].mxu0
      %7672 = vmatprep.mubr.bf16.mxu0 0
      %7673 = vmatmul.mubr.bf16.gmra.mrb[0].mxu0 %v7555
      %v7674 = vpop.f32.mrb[0].mxu0
      %v7675 = vadd.f32 0.0, %v7674
      %v7676 = vpop.f32.mrb[0].mxu0
      %v7677 = vpop.f32.mrb[0].mxu0
      %v7678 = vadd.f32 0.0, %v7677
      %v7679 = vpop.f32.mrb[0].mxu0
      %7680 = vmatprep.mubr.bf16.mxu0 0
      %7681 = vmatmul.mubr.bf16.gmra.mrb[0].mxu0 %v7558
      %v7682 = vpop.f32.mrb[0].mxu0
      %v7683 = vadd.f32 0.0, %v7682
      %v7684 = vpop.f32.mrb[0].mxu0
      %v7685 = vpop.f32.mrb[0].mxu0
      %v7686 = vadd.f32 0.0, %v7685
      %v7687 = vpop.f32.mrb[0].mxu0
      %7688 = vmatprep.mubr.bf16.mxu0 0
      %7689 = vmatmul.mubr.bf16.gmra.mrb[0].mxu0 %v7561
      %v7690 = vpop.f32.mrb[0].mxu0
      %v7691 = vadd.f32 0.0, %v7690
      %v7692 = vpop.f32.mrb[0].mxu0
      %v7693 = vpop.f32.mrb[0].mxu0
      %v7694 = vadd.f32 0.0, %v7693
      %v7695 = vpop.f32.mrb[0].mxu0
      %7696 = vmatprep.mubr.bf16.mxu0 0
      %7697 = vmatmul.mubr.bf16.gmra.mrb[0].mxu0 %v7564
      %v7698 = vpop.f32.mrb[0].mxu0
      %v7699 = vadd.f32 0.0, %v7698
      %v7700 = vpop.f32.mrb[0].mxu0
      %v7701 = vpop.f32.mrb[0].mxu0
      %v7702 = vadd.f32 0.0, %v7701
      %v7703 = vpop.f32.mrb[0].mxu0
      %7704 = vmatprep.mubr.bf16.mxu0 0
      %7705 = vmatmul.mubr.bf16.gmra.mrb[0].mxu0 %v7567
      %v7706 = vpop.f32.mrb[0].mxu0
      %v7707 = vadd.f32 0.0, %v7706
      %v7708 = vpop.f32.mrb[0].mxu0
      %v7709 = vpop.f32.mrb[0].mxu0
      %v7710 = vadd.f32 0.0, %v7709
      %v7711 = vpop.f32.mrb[0].mxu0
      %7712 = vmatprep.mubr.bf16.mxu0 0
      %7713 = vmatmul.mubr.bf16.gmra.mrb[0].mxu0 %v7570
      %v7714 = vpop.f32.mrb[0].mxu0
      %v7715 = vadd.f32 0.0, %v7714
      %v7716 = vpop.f32.mrb[0].mxu0
      %v7717 = vpop.f32.mrb[0].mxu0
      %v7718 = vadd.f32 0.0, %v7717
      %v7719 = vpop.f32.mrb[0].mxu0
      %7720 = vmatprep.mubr.bf16.mxu0 0
      %7721 = vmatmul.mubr.bf16.gmra.mrb[0].mxu0 %v7573
      %v7722 = vpop.f32.mrb[0].mxu0
      %v7723 = vadd.f32 0.0, %v7722
      %v7724 = vpop.f32.mrb[0].mxu0
      %v7725 = vpop.f32.mrb[0].mxu0
      %v7726 = vadd.f32 0.0, %v7725
      %v7727 = vpop.f32.mrb[0].mxu0
      %7728 = vmatprep.mubr.bf16.mxu0 0
      %7729 = vmatmul.mubr.bf16.gmra.mrb[0].mxu0 %v7576
      %v7730 = vpop.f32.mrb[0].mxu0
      %v7731 = vadd.f32 0.0, %v7730
      %v7732 = vpop.f32.mrb[0].mxu0
      %v7733 = vpop.f32.mrb[0].mxu0
      %v7734 = vadd.f32 0.0, %v7733
      %v7735 = vpop.f32.mrb[0].mxu0
      %7736 = vmatprep.mubr.bf16.mxu0 0
      %7737 = vmatmul.mubr.bf16.gmra.mrb[0].mxu0 %v7579
      %v7738 = vpop.f32.mrb[0].mxu0
      %v7739 = vadd.f32 0.0, %v7738
      %v7740 = vpop.f32.mrb[0].mxu0
      %v7741 = vpop.f32.mrb[0].mxu0
      %v7742 = vadd.f32 0.0, %v7741
      %v7743 = vpop.f32.mrb[0].mxu0
      %7744 = vdwg.mxu0
      %v7745 = vadd.f32 %v7389, %v7619
      %v7746 = vadd.f32 %v7392, %v7622
      %v7747 = vadd.f32 %v7397, %v7627
      %v7748 = vadd.f32 %v7400, %v7630
      %v7749 = vadd.f32 %v7405, %v7635
      %v7750 = vadd.f32 %v7408, %v7638
      %v7751 = vadd.f32 %v7413, %v7643
      %v7752 = vadd.f32 %v7416, %v7646
      %v7753 = vadd.f32 %v7421, %v7651
      %v7754 = vadd.f32 %v7424, %v7654
      %v7755 = vadd.f32 %v7429, %v7659
      %v7756 = vadd.f32 %v7432, %v7662
      %v7757 = vadd.f32 %v7437, %v7667
      %v7758 = vadd.f32 %v7440, %v7670
      %v7759 = vadd.f32 %v7445, %v7675
      %v7760 = vadd.f32 %v7448, %v7678
      %v7761 = vadd.f32 %v7453, %v7683
      %v7762 = vadd.f32 %v7456, %v7686
      %v7763 = vadd.f32 %v7461, %v7691
      %v7764 = vadd.f32 %v7464, %v7694
      %v7765 = vadd.f32 %v7469, %v7699
      %v7766 = vadd.f32 %v7472, %v7702
      %v7767 = vadd.f32 %v7477, %v7707
      %v7768 = vadd.f32 %v7480, %v7710
      %v7769 = vadd.f32 %v7485, %v7715
      %v7770 = vadd.f32 %v7488, %v7718
      %v7771 = vadd.f32 %v7493, %v7723
      %v7772 = vadd.f32 %v7496, %v7726
      %v7773 = vadd.f32 %v7501, %v7731
      %v7774 = vadd.f32 %v7504, %v7734
      %v7775 = vadd.f32 %v7509, %v7739
      %v7776 = vadd.f32 %v7512, %v7742
      %v7777 = vpack.c.bf16 %v6293, %v6290
      %v7778 = vpack.c.bf16 %v6301, %v6298
      %v7779 = vpack.c.bf16 %v6309, %v6306
      %v7780 = vpack.c.bf16 %v6317, %v6314
      %v7781 = vpack.c.bf16 %v6325, %v6322
      %v7782 = vpack.c.bf16 %v6333, %v6330
      %v7783 = vpack.c.bf16 %v6341, %v6338
      %v7784 = vpack.c.bf16 %v6349, %v6346
      %v7785 = vpack.c.bf16 %v6357, %v6354
      %v7786 = vpack.c.bf16 %v6365, %v6362
      %v7787 = vpack.c.bf16 %v6373, %v6370
      %v7788 = vpack.c.bf16 %v6381, %v6378
      %v7789 = vpack.c.bf16 %v6389, %v6386
      %v7790 = vpack.c.bf16 %v6397, %v6394
      %v7791 = vpack.c.bf16 %v6405, %v6402
      %v7792 = vpack.c.bf16 %v6413, %v6410
      %s7793 = scalar_lea.vmem %s11, 12
      %v7794 = vld [vmem:[%s7793] sm:$0xf]
      %v7796 = vsel %vm2385, %v7777, 0
      %v7799 = vsel %vm2385, %v7778, 0
      %v7802 = vsel %vm2385, %v7779, 0
      %v7805 = vsel %vm2385, %v7780, 0
      %v7808 = vsel %vm2385, %v7781, 0
      %v7811 = vsel %vm2385, %v7782, 0
      %v7814 = vsel %vm2385, %v7783, 0
      %v7817 = vsel %vm2385, %v7784, 0
      %v7820 = vsel %vm2385, %v7785, 0
      %v7823 = vsel %vm2385, %v7786, 0
      %v7826 = vsel %vm2385, %v7787, 0
      %v7829 = vsel %vm2385, %v7788, 0
      %v7832 = vsel %vm2385, %v7789, 0
      %v7835 = vsel %vm2385, %v7790, 0
      %v7838 = vsel %vm2385, %v7791, 0
      %v7841 = vsel %vm2385, %v7792, 0
      %v7844 = vsel %vm2389, %v7794, 0
      %7846 = vmatprep.subr.bf16.mxu0 0
      %7847 = vmatpush1.bf16.msra.mxu0 %v7844
      %7848 = vmatprep.subr.bf16.mxu0 0
      %7849 = vmatpush1.bf16.msra.mxu0 0
      %7850 = vmatprep.subr.bf16.mxu0 0
      %7851 = vmatpush1.bf16.msra.mxu0 0
      %7852 = vmatprep.subr.bf16.mxu0 0
      %7853 = vmatpush1.bf16.msra.mxu0 0
      %7854 = vmatprep.subr.bf16.mxu0 0
      %7855 = vmatpush1.bf16.msra.mxu0 0
      %7856 = vmatprep.subr.bf16.mxu0 0
      %7857 = vmatpush1.bf16.msra.mxu0 0
      %7858 = vmatprep.subr.bf16.mxu0 0
      %7859 = vmatpush1.bf16.msra.mxu0 0
      %7860 = vmatprep.subr.bf16.mxu0 0
      %7861 = vmatpush1.bf16.msra.mxu0 0
      %7862 = vmatprep.subr.bf16.mxu0 0
      %7863 = vmatpush1.bf16.msra.mxu0 0
      %7864 = vmatprep.subr.bf16.mxu0 0
      %7865 = vmatpush1.bf16.msra.mxu0 0
      %7866 = vmatprep.subr.bf16.mxu0 0
      %7867 = vmatpush1.bf16.msra.mxu0 0
      %7868 = vmatprep.subr.bf16.mxu0 0
      %7869 = vmatpush1.bf16.msra.mxu0 0
      %7870 = vmatprep.subr.bf16.mxu0 0
      %7871 = vmatpush1.bf16.msra.mxu0 0
      %7872 = vmatprep.subr.bf16.mxu0 0
      %7873 = vmatpush1.bf16.msra.mxu0 0
      %7874 = vmatprep.subr.bf16.mxu0 0
      %7875 = vmatpush1.bf16.msra.mxu0 0
      %7876 = vmatprep.subr.bf16.mxu0 0
      %7877 = vmatpush1.bf16.msra.mxu0 0
      %7878 = vmatprep.mubr.bf16.mxu0 0
      %7879 = vmatmul.mubr.bf16.gmra.mrb[0].mxu0 %v7796
      %v7880 = vpop.f32.mrb[0].mxu0
      %v7881 = vadd.f32 0.0, %v7880
      %v7882 = vpop.f32.mrb[0].mxu0
      %v7883 = vpop.f32.mrb[0].mxu0
      %v7884 = vadd.f32 0.0, %v7883
      %v7885 = vpop.f32.mrb[0].mxu0
      %7886 = vmatprep.mubr.bf16.mxu0 0
      %7887 = vmatmul.mubr.bf16.gmra.mrb[0].mxu0 %v7799
      %v7888 = vpop.f32.mrb[0].mxu0
      %v7889 = vadd.f32 0.0, %v7888
      %v7890 = vpop.f32.mrb[0].mxu0
      %v7891 = vpop.f32.mrb[0].mxu0
      %v7892 = vadd.f32 0.0, %v7891
      %v7893 = vpop.f32.mrb[0].mxu0
      %7894 = vmatprep.mubr.bf16.mxu0 0
      %7895 = vmatmul.mubr.bf16.gmra.mrb[0].mxu0 %v7802
      %v7896 = vpop.f32.mrb[0].mxu0
      %v7897 = vadd.f32 0.0, %v7896
      %v7898 = vpop.f32.mrb[0].mxu0
      %v7899 = vpop.f32.mrb[0].mxu0
      %v7900 = vadd.f32 0.0, %v7899
      %v7901 = vpop.f32.mrb[0].mxu0
      %7902 = vmatprep.mubr.bf16.mxu0 0
      %7903 = vmatmul.mubr.bf16.gmra.mrb[0].mxu0 %v7805
      %v7904 = vpop.f32.mrb[0].mxu0
      %v7905 = vadd.f32 0.0, %v7904
      %v7906 = vpop.f32.mrb[0].mxu0
      %v7907 = vpop.f32.mrb[0].mxu0
      %v7908 = vadd.f32 0.0, %v7907
      %v7909 = vpop.f32.mrb[0].mxu0
      %7910 = vmatprep.mubr.bf16.mxu0 0
      %7911 = vmatmul.mubr.bf16.gmra.mrb[0].mxu0 %v7808
      %v7912 = vpop.f32.mrb[0].mxu0
      %v7913 = vadd.f32 0.0, %v7912
      %v7914 = vpop.f32.mrb[0].mxu0
      %v7915 = vpop.f32.mrb[0].mxu0
      %v7916 = vadd.f32 0.0, %v7915
      %v7917 = vpop.f32.mrb[0].mxu0
      %7918 = vmatprep.mubr.bf16.mxu0 0
      %7919 = vmatmul.mubr.bf16.gmra.mrb[0].mxu0 %v7811
      %v7920 = vpop.f32.mrb[0].mxu0
      %v7921 = vadd.f32 0.0, %v7920
      %v7922 = vpop.f32.mrb[0].mxu0
      %v7923 = vpop.f32.mrb[0].mxu0
      %v7924 = vadd.f32 0.0, %v7923
      %v7925 = vpop.f32.mrb[0].mxu0
      %7926 = vmatprep.mubr.bf16.mxu0 0
      %7927 = vmatmul.mubr.bf16.gmra.mrb[0].mxu0 %v7814
      %v7928 = vpop.f32.mrb[0].mxu0
      %v7929 = vadd.f32 0.0, %v7928
      %v7930 = vpop.f32.mrb[0].mxu0
      %v7931 = vpop.f32.mrb[0].mxu0
      %v7932 = vadd.f32 0.0, %v7931
      %v7933 = vpop.f32.mrb[0].mxu0
      %7934 = vmatprep.mubr.bf16.mxu0 0
      %7935 = vmatmul.mubr.bf16.gmra.mrb[0].mxu0 %v7817
      %v7936 = vpop.f32.mrb[0].mxu0
      %v7937 = vadd.f32 0.0, %v7936
      %v7938 = vpop.f32.mrb[0].mxu0
      %v7939 = vpop.f32.mrb[0].mxu0
      %v7940 = vadd.f32 0.0, %v7939
      %v7941 = vpop.f32.mrb[0].mxu0
      %7942 = vmatprep.mubr.bf16.mxu0 0
      %7943 = vmatmul.mubr.bf16.gmra.mrb[0].mxu0 %v7820
      %v7944 = vpop.f32.mrb[0].mxu0
      %v7945 = vadd.f32 0.0, %v7944
      %v7946 = vpop.f32.mrb[0].mxu0
      %v7947 = vpop.f32.mrb[0].mxu0
      %v7948 = vadd.f32 0.0, %v7947
      %v7949 = vpop.f32.mrb[0].mxu0
      %7950 = vmatprep.mubr.bf16.mxu0 0
      %7951 = vmatmul.mubr.bf16.gmra.mrb[0].mxu0 %v7823
      %v7952 = vpop.f32.mrb[0].mxu0
      %v7953 = vadd.f32 0.0, %v7952
      %v7954 = vpop.f32.mrb[0].mxu0
      %v7955 = vpop.f32.mrb[0].mxu0
      %v7956 = vadd.f32 0.0, %v7955
      %v7957 = vpop.f32.mrb[0].mxu0
      %7958 = vmatprep.mubr.bf16.mxu0 0
      %7959 = vmatmul.mubr.bf16.gmra.mrb[0].mxu0 %v7826
      %v7960 = vpop.f32.mrb[0].mxu0
      %v7961 = vadd.f32 0.0, %v7960
      %v7962 = vpop.f32.mrb[0].mxu0
      %v7963 = vpop.f32.mrb[0].mxu0
      %v7964 = vadd.f32 0.0, %v7963
      %v7965 = vpop.f32.mrb[0].mxu0
      %7966 = vmatprep.mubr.bf16.mxu0 0
      %7967 = vmatmul.mubr.bf16.gmra.mrb[0].mxu0 %v7829
      %v7968 = vpop.f32.mrb[0].mxu0
      %v7969 = vadd.f32 0.0, %v7968
      %v7970 = vpop.f32.mrb[0].mxu0
      %v7971 = vpop.f32.mrb[0].mxu0
      %v7972 = vadd.f32 0.0, %v7971
      %v7973 = vpop.f32.mrb[0].mxu0
      %7974 = vmatprep.mubr.bf16.mxu0 0
      %7975 = vmatmul.mubr.bf16.gmra.mrb[0].mxu0 %v7832
      %v7976 = vpop.f32.mrb[0].mxu0
      %v7977 = vadd.f32 0.0, %v7976
      %v7978 = vpop.f32.mrb[0].mxu0
      %v7979 = vpop.f32.mrb[0].mxu0
      %v7980 = vadd.f32 0.0, %v7979
      %v7981 = vpop.f32.mrb[0].mxu0
      %7982 = vmatprep.mubr.bf16.mxu0 0
      %7983 = vmatmul.mubr.bf16.gmra.mrb[0].mxu0 %v7835
      %v7984 = vpop.f32.mrb[0].mxu0
      %v7985 = vadd.f32 0.0, %v7984
      %v7986 = vpop.f32.mrb[0].mxu0
      %v7987 = vpop.f32.mrb[0].mxu0
      %v7988 = vadd.f32 0.0, %v7987
      %v7989 = vpop.f32.mrb[0].mxu0
      %7990 = vmatprep.mubr.bf16.mxu0 0
      %7991 = vmatmul.mubr.bf16.gmra.mrb[0].mxu0 %v7838
      %v7992 = vpop.f32.mrb[0].mxu0
      %v7993 = vadd.f32 0.0, %v7992
      %v7994 = vpop.f32.mrb[0].mxu0
      %v7995 = vpop.f32.mrb[0].mxu0
      %v7996 = vadd.f32 0.0, %v7995
      %v7997 = vpop.f32.mrb[0].mxu0
      %7998 = vmatprep.mubr.bf16.mxu0 0
      %7999 = vmatmul.mubr.bf16.gmra.mrb[0].mxu0 %v7841
      %v8000 = vpop.f32.mrb[0].mxu0
      %v8001 = vadd.f32 0.0, %v8000
      %v8002 = vpop.f32.mrb[0].mxu0
      %v8003 = vpop.f32.mrb[0].mxu0
      %v8004 = vadd.f32 0.0, %v8003
      %v8005 = vpop.f32.mrb[0].mxu0
      %8006 = vdwg.mxu0
      %v8007 = vadd.f32 %v7745, %v7881
      %v8008 = vadd.f32 %v7746, %v7884
      %v8009 = vadd.f32 %v7747, %v7889
      %v8010 = vadd.f32 %v7748, %v7892
      %v8011 = vadd.f32 %v7749, %v7897
      %v8012 = vadd.f32 %v7750, %v7900
      %v8013 = vadd.f32 %v7751, %v7905
      %v8014 = vadd.f32 %v7752, %v7908
      %v8015 = vadd.f32 %v7753, %v7913
      %v8016 = vadd.f32 %v7754, %v7916
      %v8017 = vadd.f32 %v7755, %v7921
      %v8018 = vadd.f32 %v7756, %v7924
      %v8019 = vadd.f32 %v7757, %v7929
      %v8020 = vadd.f32 %v7758, %v7932
      %v8021 = vadd.f32 %v7759, %v7937
      %v8022 = vadd.f32 %v7760, %v7940
      %v8023 = vadd.f32 %v7761, %v7945
      %v8024 = vadd.f32 %v7762, %v7948
      %v8025 = vadd.f32 %v7763, %v7953
      %v8026 = vadd.f32 %v7764, %v7956
      %v8027 = vadd.f32 %v7765, %v7961
      %v8028 = vadd.f32 %v7766, %v7964
      %v8029 = vadd.f32 %v7767, %v7969
      %v8030 = vadd.f32 %v7768, %v7972
      %v8031 = vadd.f32 %v7769, %v7977
      %v8032 = vadd.f32 %v7770, %v7980
      %v8033 = vadd.f32 %v7771, %v7985
      %v8034 = vadd.f32 %v7772, %v7988
      %v8035 = vadd.f32 %v7773, %v7993
      %v8036 = vadd.f32 %v7774, %v7996
      %v8037 = vadd.f32 %v7775, %v8001
      %v8038 = vadd.f32 %v7776, %v8004
      %v8039 = vpack.c.bf16 %v6421, %v6418
      %v8040 = vpack.c.bf16 %v6429, %v6426
      %v8041 = vpack.c.bf16 %v6437, %v6434
      %v8042 = vpack.c.bf16 %v6445, %v6442
      %v8043 = vpack.c.bf16 %v6453, %v6450
      %v8044 = vpack.c.bf16 %v6461, %v6458
      %v8045 = vpack.c.bf16 %v6469, %v6466
      %v8046 = vpack.c.bf16 %v6477, %v6474
      %v8047 = vpack.c.bf16 %v6485, %v6482
      %v8048 = vpack.c.bf16 %v6493, %v6490
      %v8049 = vpack.c.bf16 %v6501, %v6498
      %v8050 = vpack.c.bf16 %v6509, %v6506
      %v8051 = vpack.c.bf16 %v6517, %v6514
      %v8052 = vpack.c.bf16 %v6525, %v6522
      %v8053 = vpack.c.bf16 %v6533, %v6530
      %v8054 = vpack.c.bf16 %v6541, %v6538
      %s8055 = scalar_lea.vmem %s11, 16
      %v8056 = vld [vmem:[%s8055] sm:$0xf]
      %v8058 = vsel %vm2385, %v8039, 0
      %v8061 = vsel %vm2385, %v8040, 0
      %v8064 = vsel %vm2385, %v8041, 0
      %v8067 = vsel %vm2385, %v8042, 0
      %v8070 = vsel %vm2385, %v8043, 0
      %v8073 = vsel %vm2385, %v8044, 0
      %v8076 = vsel %vm2385, %v8045, 0
      %v8079 = vsel %vm2385, %v8046, 0
      %v8082 = vsel %vm2385, %v8047, 0
      %v8085 = vsel %vm2385, %v8048, 0
      %v8088 = vsel %vm2385, %v8049, 0
      %v8091 = vsel %vm2385, %v8050, 0
      %v8094 = vsel %vm2385, %v8051, 0
      %v8097 = vsel %vm2385, %v8052, 0
      %v8100 = vsel %vm2385, %v8053, 0
      %v8103 = vsel %vm2385, %v8054, 0
      %v8106 = vsel %vm2389, %v8056, 0
      %8108 = vmatprep.subr.bf16.mxu0 0
      %8109 = vmatpush1.bf16.msra.mxu0 %v8106
      %8110 = vmatprep.subr.bf16.mxu0 0
      %8111 = vmatpush1.bf16.msra.mxu0 0
      %8112 = vmatprep.subr.bf16.mxu0 0
      %8113 = vmatpush1.bf16.msra.mxu0 0
      %8114 = vmatprep.subr.bf16.mxu0 0
      %8115 = vmatpush1.bf16.msra.mxu0 0
      %8116 = vmatprep.subr.bf16.mxu0 0
      %8117 = vmatpush1.bf16.msra.mxu0 0
      %8118 = vmatprep.subr.bf16.mxu0 0
      %8119 = vmatpush1.bf16.msra.mxu0 0
      %8120 = vmatprep.subr.bf16.mxu0 0
      %8121 = vmatpush1.bf16.msra.mxu0 0
      %8122 = vmatprep.subr.bf16.mxu0 0
      %8123 = vmatpush1.bf16.msra.mxu0 0
      %8124 = vmatprep.subr.bf16.mxu0 0
      %8125 = vmatpush1.bf16.msra.mxu0 0
      %8126 = vmatprep.subr.bf16.mxu0 0
      %8127 = vmatpush1.bf16.msra.mxu0 0
      %8128 = vmatprep.subr.bf16.mxu0 0
      %8129 = vmatpush1.bf16.msra.mxu0 0
      %8130 = vmatprep.subr.bf16.mxu0 0
      %8131 = vmatpush1.bf16.msra.mxu0 0
      %8132 = vmatprep.subr.bf16.mxu0 0
      %8133 = vmatpush1.bf16.msra.mxu0 0
      %8134 = vmatprep.subr.bf16.mxu0 0
      %8135 = vmatpush1.bf16.msra.mxu0 0
      %8136 = vmatprep.subr.bf16.mxu0 0
      %8137 = vmatpush1.bf16.msra.mxu0 0
      %8138 = vmatprep.subr.bf16.mxu0 0
      %8139 = vmatpush1.bf16.msra.mxu0 0
      %8140 = vmatprep.mubr.bf16.mxu0 0
      %8141 = vmatmul.mubr.bf16.gmra.mrb[0].mxu0 %v8058
      %v8142 = vpop.f32.mrb[0].mxu0
      %v8143 = vadd.f32 0.0, %v8142
      %v8144 = vpop.f32.mrb[0].mxu0
      %v8145 = vpop.f32.mrb[0].mxu0
      %v8146 = vadd.f32 0.0, %v8145
      %v8147 = vpop.f32.mrb[0].mxu0
      %8148 = vmatprep.mubr.bf16.mxu0 0
      %8149 = vmatmul.mubr.bf16.gmra.mrb[0].mxu0 %v8061
      %v8150 = vpop.f32.mrb[0].mxu0
      %v8151 = vadd.f32 0.0, %v8150
      %v8152 = vpop.f32.mrb[0].mxu0
      %v8153 = vpop.f32.mrb[0].mxu0
      %v8154 = vadd.f32 0.0, %v8153
      %v8155 = vpop.f32.mrb[0].mxu0
      %8156 = vmatprep.mubr.bf16.mxu0 0
      %8157 = vmatmul.mubr.bf16.gmra.mrb[0].mxu0 %v8064
      %v8158 = vpop.f32.mrb[0].mxu0
      %v8159 = vadd.f32 0.0, %v8158
      %v8160 = vpop.f32.mrb[0].mxu0
      %v8161 = vpop.f32.mrb[0].mxu0
      %v8162 = vadd.f32 0.0, %v8161
      %v8163 = vpop.f32.mrb[0].mxu0
      %8164 = vmatprep.mubr.bf16.mxu0 0
      %8165 = vmatmul.mubr.bf16.gmra.mrb[0].mxu0 %v8067
      %v8166 = vpop.f32.mrb[0].mxu0
      %v8167 = vadd.f32 0.0, %v8166
      %v8168 = vpop.f32.mrb[0].mxu0
      %v8169 = vpop.f32.mrb[0].mxu0
      %v8170 = vadd.f32 0.0, %v8169
      %v8171 = vpop.f32.mrb[0].mxu0
      %8172 = vmatprep.mubr.bf16.mxu0 0
      %8173 = vmatmul.mubr.bf16.gmra.mrb[0].mxu0 %v8070
      %v8174 = vpop.f32.mrb[0].mxu0
      %v8175 = vadd.f32 0.0, %v8174
      %v8176 = vpop.f32.mrb[0].mxu0
      %v8177 = vpop.f32.mrb[0].mxu0
      %v8178 = vadd.f32 0.0, %v8177
      %v8179 = vpop.f32.mrb[0].mxu0
      %8180 = vmatprep.mubr.bf16.mxu0 0
      %8181 = vmatmul.mubr.bf16.gmra.mrb[0].mxu0 %v8073
      %v8182 = vpop.f32.mrb[0].mxu0
      %v8183 = vadd.f32 0.0, %v8182
      %v8184 = vpop.f32.mrb[0].mxu0
      %v8185 = vpop.f32.mrb[0].mxu0
      %v8186 = vadd.f32 0.0, %v8185
      %v8187 = vpop.f32.mrb[0].mxu0
      %8188 = vmatprep.mubr.bf16.mxu0 0
      %8189 = vmatmul.mubr.bf16.gmra.mrb[0].mxu0 %v8076
      %v8190 = vpop.f32.mrb[0].mxu0
      %v8191 = vadd.f32 0.0, %v8190
      %v8192 = vpop.f32.mrb[0].mxu0
      %v8193 = vpop.f32.mrb[0].mxu0
      %v8194 = vadd.f32 0.0, %v8193
      %v8195 = vpop.f32.mrb[0].mxu0
      %8196 = vmatprep.mubr.bf16.mxu0 0
      %8197 = vmatmul.mubr.bf16.gmra.mrb[0].mxu0 %v8079
      %v8198 = vpop.f32.mrb[0].mxu0
      %v8199 = vadd.f32 0.0, %v8198
      %v8200 = vpop.f32.mrb[0].mxu0
      %v8201 = vpop.f32.mrb[0].mxu0
      %v8202 = vadd.f32 0.0, %v8201
      %v8203 = vpop.f32.mrb[0].mxu0
      %8204 = vmatprep.mubr.bf16.mxu0 0
      %8205 = vmatmul.mubr.bf16.gmra.mrb[0].mxu0 %v8082
      %v8206 = vpop.f32.mrb[0].mxu0
      %v8207 = vadd.f32 0.0, %v8206
      %v8208 = vpop.f32.mrb[0].mxu0
      %v8209 = vpop.f32.mrb[0].mxu0
      %v8210 = vadd.f32 0.0, %v8209
      %v8211 = vpop.f32.mrb[0].mxu0
      %8212 = vmatprep.mubr.bf16.mxu0 0
      %8213 = vmatmul.mubr.bf16.gmra.mrb[0].mxu0 %v8085
      %v8214 = vpop.f32.mrb[0].mxu0
      %v8215 = vadd.f32 0.0, %v8214
      %v8216 = vpop.f32.mrb[0].mxu0
      %v8217 = vpop.f32.mrb[0].mxu0
      %v8218 = vadd.f32 0.0, %v8217
      %v8219 = vpop.f32.mrb[0].mxu0
      %8220 = vmatprep.mubr.bf16.mxu0 0
      %8221 = vmatmul.mubr.bf16.gmra.mrb[0].mxu0 %v8088
      %v8222 = vpop.f32.mrb[0].mxu0
      %v8223 = vadd.f32 0.0, %v8222
      %v8224 = vpop.f32.mrb[0].mxu0
      %v8225 = vpop.f32.mrb[0].mxu0
      %v8226 = vadd.f32 0.0, %v8225
      %v8227 = vpop.f32.mrb[0].mxu0
      %8228 = vmatprep.mubr.bf16.mxu0 0
      %8229 = vmatmul.mubr.bf16.gmra.mrb[0].mxu0 %v8091
      %v8230 = vpop.f32.mrb[0].mxu0
      %v8231 = vadd.f32 0.0, %v8230
      %v8232 = vpop.f32.mrb[0].mxu0
      %v8233 = vpop.f32.mrb[0].mxu0
      %v8234 = vadd.f32 0.0, %v8233
      %v8235 = vpop.f32.mrb[0].mxu0
      %8236 = vmatprep.mubr.bf16.mxu0 0
      %8237 = vmatmul.mubr.bf16.gmra.mrb[0].mxu0 %v8094
      %v8238 = vpop.f32.mrb[0].mxu0
      %v8239 = vadd.f32 0.0, %v8238
      %v8240 = vpop.f32.mrb[0].mxu0
      %v8241 = vpop.f32.mrb[0].mxu0
      %v8242 = vadd.f32 0.0, %v8241
      %v8243 = vpop.f32.mrb[0].mxu0
      %8244 = vmatprep.mubr.bf16.mxu0 0
      %8245 = vmatmul.mubr.bf16.gmra.mrb[0].mxu0 %v8097
      %v8246 = vpop.f32.mrb[0].mxu0
      %v8247 = vadd.f32 0.0, %v8246
      %v8248 = vpop.f32.mrb[0].mxu0
      %v8249 = vpop.f32.mrb[0].mxu0
      %v8250 = vadd.f32 0.0, %v8249
      %v8251 = vpop.f32.mrb[0].mxu0
      %8252 = vmatprep.mubr.bf16.mxu0 0
      %8253 = vmatmul.mubr.bf16.gmra.mrb[0].mxu0 %v8100
      %v8254 = vpop.f32.mrb[0].mxu0
      %v8255 = vadd.f32 0.0, %v8254
      %v8256 = vpop.f32.mrb[0].mxu0
      %v8257 = vpop.f32.mrb[0].mxu0
      %v8258 = vadd.f32 0.0, %v8257
      %v8259 = vpop.f32.mrb[0].mxu0
      %8260 = vmatprep.mubr.bf16.mxu0 0
      %8261 = vmatmul.mubr.bf16.gmra.mrb[0].mxu0 %v8103
      %v8262 = vpop.f32.mrb[0].mxu0
      %v8263 = vadd.f32 0.0, %v8262
      %v8264 = vpop.f32.mrb[0].mxu0
      %v8265 = vpop.f32.mrb[0].mxu0
      %v8266 = vadd.f32 0.0, %v8265
      %v8267 = vpop.f32.mrb[0].mxu0
      %8268 = vdwg.mxu0
      %v8269 = vadd.f32 %v8007, %v8143
      %v8270 = vadd.f32 %v8008, %v8146
      %v8271 = vadd.f32 %v8009, %v8151
      %v8272 = vadd.f32 %v8010, %v8154
      %v8273 = vadd.f32 %v8011, %v8159
      %v8274 = vadd.f32 %v8012, %v8162
      %v8275 = vadd.f32 %v8013, %v8167
      %v8276 = vadd.f32 %v8014, %v8170
      %v8277 = vadd.f32 %v8015, %v8175
      %v8278 = vadd.f32 %v8016, %v8178
      %v8279 = vadd.f32 %v8017, %v8183
      %v8280 = vadd.f32 %v8018, %v8186
      %v8281 = vadd.f32 %v8019, %v8191
      %v8282 = vadd.f32 %v8020, %v8194
      %v8283 = vadd.f32 %v8021, %v8199
      %v8284 = vadd.f32 %v8022, %v8202
      %v8285 = vadd.f32 %v8023, %v8207
      %v8286 = vadd.f32 %v8024, %v8210
      %v8287 = vadd.f32 %v8025, %v8215
      %v8288 = vadd.f32 %v8026, %v8218
      %v8289 = vadd.f32 %v8027, %v8223
      %v8290 = vadd.f32 %v8028, %v8226
      %v8291 = vadd.f32 %v8029, %v8231
      %v8292 = vadd.f32 %v8030, %v8234
      %v8293 = vadd.f32 %v8031, %v8239
      %v8294 = vadd.f32 %v8032, %v8242
      %v8295 = vadd.f32 %v8033, %v8247
      %v8296 = vadd.f32 %v8034, %v8250
      %v8297 = vadd.f32 %v8035, %v8255
      %v8298 = vadd.f32 %v8036, %v8258
      %v8299 = vadd.f32 %v8037, %v8263
      %v8300 = vadd.f32 %v8038, %v8266
      %v8301 = vpack.c.bf16 %v6549, %v6546
      %v8302 = vpack.c.bf16 %v6557, %v6554
      %v8303 = vpack.c.bf16 %v6565, %v6562
      %v8304 = vpack.c.bf16 %v6573, %v6570
      %v8305 = vpack.c.bf16 %v6581, %v6578
      %v8306 = vpack.c.bf16 %v6589, %v6586
      %v8307 = vpack.c.bf16 %v6597, %v6594
      %v8308 = vpack.c.bf16 %v6605, %v6602
      %v8309 = vpack.c.bf16 %v6613, %v6610
      %v8310 = vpack.c.bf16 %v6621, %v6618
      %v8311 = vpack.c.bf16 %v6629, %v6626
      %v8312 = vpack.c.bf16 %v6637, %v6634
      %v8313 = vpack.c.bf16 %v6645, %v6642
      %v8314 = vpack.c.bf16 %v6653, %v6650
      %v8315 = vpack.c.bf16 %v6661, %v6658
      %v8316 = vpack.c.bf16 %v6669, %v6666
      %s8317 = scalar_lea.vmem %s11, 20
      %v8318 = vld [vmem:[%s8317] sm:$0xf]
      %v8320 = vsel %vm2385, %v8301, 0
      %v8323 = vsel %vm2385, %v8302, 0
      %v8326 = vsel %vm2385, %v8303, 0
      %v8329 = vsel %vm2385, %v8304, 0
      %v8332 = vsel %vm2385, %v8305, 0
      %v8335 = vsel %vm2385, %v8306, 0
      %v8338 = vsel %vm2385, %v8307, 0
      %v8341 = vsel %vm2385, %v8308, 0
      %v8344 = vsel %vm2385, %v8309, 0
      %v8347 = vsel %vm2385, %v8310, 0
      %v8350 = vsel %vm2385, %v8311, 0
      %v8353 = vsel %vm2385, %v8312, 0
      %v8356 = vsel %vm2385, %v8313, 0
      %v8359 = vsel %vm2385, %v8314, 0
      %v8362 = vsel %vm2385, %v8315, 0
      %v8365 = vsel %vm2385, %v8316, 0
      %v8368 = vsel %vm2389, %v8318, 0
      %8370 = vmatprep.subr.bf16.mxu0 0
      %8371 = vmatpush1.bf16.msra.mxu0 %v8368
      %8372 = vmatprep.subr.bf16.mxu0 0
      %8373 = vmatpush1.bf16.msra.mxu0 0
      %8374 = vmatprep.subr.bf16.mxu0 0
      %8375 = vmatpush1.bf16.msra.mxu0 0
      %8376 = vmatprep.subr.bf16.mxu0 0
      %8377 = vmatpush1.bf16.msra.mxu0 0
      %8378 = vmatprep.subr.bf16.mxu0 0
      %8379 = vmatpush1.bf16.msra.mxu0 0
      %8380 = vmatprep.subr.bf16.mxu0 0
      %8381 = vmatpush1.bf16.msra.mxu0 0
      %8382 = vmatprep.subr.bf16.mxu0 0
      %8383 = vmatpush1.bf16.msra.mxu0 0
      %8384 = vmatprep.subr.bf16.mxu0 0
      %8385 = vmatpush1.bf16.msra.mxu0 0
      %8386 = vmatprep.subr.bf16.mxu0 0
      %8387 = vmatpush1.bf16.msra.mxu0 0
      %8388 = vmatprep.subr.bf16.mxu0 0
      %8389 = vmatpush1.bf16.msra.mxu0 0
      %8390 = vmatprep.subr.bf16.mxu0 0
      %8391 = vmatpush1.bf16.msra.mxu0 0
      %8392 = vmatprep.subr.bf16.mxu0 0
      %8393 = vmatpush1.bf16.msra.mxu0 0
      %8394 = vmatprep.subr.bf16.mxu0 0
      %8395 = vmatpush1.bf16.msra.mxu0 0
      %8396 = vmatprep.subr.bf16.mxu0 0
      %8397 = vmatpush1.bf16.msra.mxu0 0
      %8398 = vmatprep.subr.bf16.mxu0 0
      %8399 = vmatpush1.bf16.msra.mxu0 0
      %8400 = vmatprep.subr.bf16.mxu0 0
      %8401 = vmatpush1.bf16.msra.mxu0 0
      %8402 = vmatprep.mubr.bf16.mxu0 0
      %8403 = vmatmul.mubr.bf16.gmra.mrb[0].mxu0 %v8320
      %v8404 = vpop.f32.mrb[0].mxu0
      %v8405 = vadd.f32 0.0, %v8404
      %v8406 = vpop.f32.mrb[0].mxu0
      %v8407 = vpop.f32.mrb[0].mxu0
      %v8408 = vadd.f32 0.0, %v8407
      %v8409 = vpop.f32.mrb[0].mxu0
      %8410 = vmatprep.mubr.bf16.mxu0 0
      %8411 = vmatmul.mubr.bf16.gmra.mrb[0].mxu0 %v8323
      %v8412 = vpop.f32.mrb[0].mxu0
      %v8413 = vadd.f32 0.0, %v8412
      %v8414 = vpop.f32.mrb[0].mxu0
      %v8415 = vpop.f32.mrb[0].mxu0
      %v8416 = vadd.f32 0.0, %v8415
      %v8417 = vpop.f32.mrb[0].mxu0
      %8418 = vmatprep.mubr.bf16.mxu0 0
      %8419 = vmatmul.mubr.bf16.gmra.mrb[0].mxu0 %v8326
      %v8420 = vpop.f32.mrb[0].mxu0
      %v8421 = vadd.f32 0.0, %v8420
      %v8422 = vpop.f32.mrb[0].mxu0
      %v8423 = vpop.f32.mrb[0].mxu0
      %v8424 = vadd.f32 0.0, %v8423
      %v8425 = vpop.f32.mrb[0].mxu0
      %8426 = vmatprep.mubr.bf16.mxu0 0
      %8427 = vmatmul.mubr.bf16.gmra.mrb[0].mxu0 %v8329
      %v8428 = vpop.f32.mrb[0].mxu0
      %v8429 = vadd.f32 0.0, %v8428
      %v8430 = vpop.f32.mrb[0].mxu0
      %v8431 = vpop.f32.mrb[0].mxu0
      %v8432 = vadd.f32 0.0, %v8431
      %v8433 = vpop.f32.mrb[0].mxu0
      %8434 = vmatprep.mubr.bf16.mxu0 0
      %8435 = vmatmul.mubr.bf16.gmra.mrb[0].mxu0 %v8332
      %v8436 = vpop.f32.mrb[0].mxu0
      %v8437 = vadd.f32 0.0, %v8436
      %v8438 = vpop.f32.mrb[0].mxu0
      %v8439 = vpop.f32.mrb[0].mxu0
      %v8440 = vadd.f32 0.0, %v8439
      %v8441 = vpop.f32.mrb[0].mxu0
      %8442 = vmatprep.mubr.bf16.mxu0 0
      %8443 = vmatmul.mubr.bf16.gmra.mrb[0].mxu0 %v8335
      %v8444 = vpop.f32.mrb[0].mxu0
      %v8445 = vadd.f32 0.0, %v8444
      %v8446 = vpop.f32.mrb[0].mxu0
      %v8447 = vpop.f32.mrb[0].mxu0
      %v8448 = vadd.f32 0.0, %v8447
      %v8449 = vpop.f32.mrb[0].mxu0
      %8450 = vmatprep.mubr.bf16.mxu0 0
      %8451 = vmatmul.mubr.bf16.gmra.mrb[0].mxu0 %v8338
      %v8452 = vpop.f32.mrb[0].mxu0
      %v8453 = vadd.f32 0.0, %v8452
      %v8454 = vpop.f32.mrb[0].mxu0
      %v8455 = vpop.f32.mrb[0].mxu0
      %v8456 = vadd.f32 0.0, %v8455
      %v8457 = vpop.f32.mrb[0].mxu0
      %8458 = vmatprep.mubr.bf16.mxu0 0
      %8459 = vmatmul.mubr.bf16.gmra.mrb[0].mxu0 %v8341
      %v8460 = vpop.f32.mrb[0].mxu0
      %v8461 = vadd.f32 0.0, %v8460
      %v8462 = vpop.f32.mrb[0].mxu0
      %v8463 = vpop.f32.mrb[0].mxu0
      %v8464 = vadd.f32 0.0, %v8463
      %v8465 = vpop.f32.mrb[0].mxu0
      %8466 = vmatprep.mubr.bf16.mxu0 0
      %8467 = vmatmul.mubr.bf16.gmra.mrb[0].mxu0 %v8344
      %v8468 = vpop.f32.mrb[0].mxu0
      %v8469 = vadd.f32 0.0, %v8468
      %v8470 = vpop.f32.mrb[0].mxu0
      %v8471 = vpop.f32.mrb[0].mxu0
      %v8472 = vadd.f32 0.0, %v8471
      %v8473 = vpop.f32.mrb[0].mxu0
      %8474 = vmatprep.mubr.bf16.mxu0 0
      %8475 = vmatmul.mubr.bf16.gmra.mrb[0].mxu0 %v8347
      %v8476 = vpop.f32.mrb[0].mxu0
      %v8477 = vadd.f32 0.0, %v8476
      %v8478 = vpop.f32.mrb[0].mxu0
      %v8479 = vpop.f32.mrb[0].mxu0
      %v8480 = vadd.f32 0.0, %v8479
      %v8481 = vpop.f32.mrb[0].mxu0
      %8482 = vmatprep.mubr.bf16.mxu0 0
      %8483 = vmatmul.mubr.bf16.gmra.mrb[0].mxu0 %v8350
      %v8484 = vpop.f32.mrb[0].mxu0
      %v8485 = vadd.f32 0.0, %v8484
      %v8486 = vpop.f32.mrb[0].mxu0
      %v8487 = vpop.f32.mrb[0].mxu0
      %v8488 = vadd.f32 0.0, %v8487
      %v8489 = vpop.f32.mrb[0].mxu0
      %8490 = vmatprep.mubr.bf16.mxu0 0
      %8491 = vmatmul.mubr.bf16.gmra.mrb[0].mxu0 %v8353
      %v8492 = vpop.f32.mrb[0].mxu0
      %v8493 = vadd.f32 0.0, %v8492
      %v8494 = vpop.f32.mrb[0].mxu0
      %v8495 = vpop.f32.mrb[0].mxu0
      %v8496 = vadd.f32 0.0, %v8495
      %v8497 = vpop.f32.mrb[0].mxu0
      %8498 = vmatprep.mubr.bf16.mxu0 0
      %8499 = vmatmul.mubr.bf16.gmra.mrb[0].mxu0 %v8356
      %v8500 = vpop.f32.mrb[0].mxu0
      %v8501 = vadd.f32 0.0, %v8500
      %v8502 = vpop.f32.mrb[0].mxu0
      %v8503 = vpop.f32.mrb[0].mxu0
      %v8504 = vadd.f32 0.0, %v8503
      %v8505 = vpop.f32.mrb[0].mxu0
      %8506 = vmatprep.mubr.bf16.mxu0 0
      %8507 = vmatmul.mubr.bf16.gmra.mrb[0].mxu0 %v8359
      %v8508 = vpop.f32.mrb[0].mxu0
      %v8509 = vadd.f32 0.0, %v8508
      %v8510 = vpop.f32.mrb[0].mxu0
      %v8511 = vpop.f32.mrb[0].mxu0
      %v8512 = vadd.f32 0.0, %v8511
      %v8513 = vpop.f32.mrb[0].mxu0
      %8514 = vmatprep.mubr.bf16.mxu0 0
      %8515 = vmatmul.mubr.bf16.gmra.mrb[0].mxu0 %v8362
      %v8516 = vpop.f32.mrb[0].mxu0
      %v8517 = vadd.f32 0.0, %v8516
      %v8518 = vpop.f32.mrb[0].mxu0
      %v8519 = vpop.f32.mrb[0].mxu0
      %v8520 = vadd.f32 0.0, %v8519
      %v8521 = vpop.f32.mrb[0].mxu0
      %8522 = vmatprep.mubr.bf16.mxu0 0
      %8523 = vmatmul.mubr.bf16.gmra.mrb[0].mxu0 %v8365
      %v8524 = vpop.f32.mrb[0].mxu0
      %v8525 = vadd.f32 0.0, %v8524
      %v8526 = vpop.f32.mrb[0].mxu0
      %v8527 = vpop.f32.mrb[0].mxu0
      %v8528 = vadd.f32 0.0, %v8527
      %v8529 = vpop.f32.mrb[0].mxu0
      %8530 = vdwg.mxu0
      %v8531 = vadd.f32 %v8269, %v8405
      %v8532 = vadd.f32 %v8270, %v8408
      %v8533 = vadd.f32 %v8271, %v8413
      %v8534 = vadd.f32 %v8272, %v8416
      %v8535 = vadd.f32 %v8273, %v8421
      %v8536 = vadd.f32 %v8274, %v8424
      %v8537 = vadd.f32 %v8275, %v8429
      %v8538 = vadd.f32 %v8276, %v8432
      %v8539 = vadd.f32 %v8277, %v8437
      %v8540 = vadd.f32 %v8278, %v8440
      %v8541 = vadd.f32 %v8279, %v8445
      %v8542 = vadd.f32 %v8280, %v8448
      %v8543 = vadd.f32 %v8281, %v8453
      %v8544 = vadd.f32 %v8282, %v8456
      %v8545 = vadd.f32 %v8283, %v8461
      %v8546 = vadd.f32 %v8284, %v8464
      %v8547 = vadd.f32 %v8285, %v8469
      %v8548 = vadd.f32 %v8286, %v8472
      %v8549 = vadd.f32 %v8287, %v8477
      %v8550 = vadd.f32 %v8288, %v8480
      %v8551 = vadd.f32 %v8289, %v8485
      %v8552 = vadd.f32 %v8290, %v8488
      %v8553 = vadd.f32 %v8291, %v8493
      %v8554 = vadd.f32 %v8292, %v8496
      %v8555 = vadd.f32 %v8293, %v8501
      %v8556 = vadd.f32 %v8294, %v8504
      %v8557 = vadd.f32 %v8295, %v8509
      %v8558 = vadd.f32 %v8296, %v8512
      %v8559 = vadd.f32 %v8297, %v8517
      %v8560 = vadd.f32 %v8298, %v8520
      %v8561 = vadd.f32 %v8299, %v8525
      %v8562 = vadd.f32 %v8300, %v8528
      %v8563 = vpack.c.bf16 %v6677, %v6674
      %v8564 = vpack.c.bf16 %v6685, %v6682
      %v8565 = vpack.c.bf16 %v6693, %v6690
      %v8566 = vpack.c.bf16 %v6701, %v6698
      %v8567 = vpack.c.bf16 %v6709, %v6706
      %v8568 = vpack.c.bf16 %v6717, %v6714
      %v8569 = vpack.c.bf16 %v6725, %v6722
      %v8570 = vpack.c.bf16 %v6733, %v6730
      %v8571 = vpack.c.bf16 %v6741, %v6738
      %v8572 = vpack.c.bf16 %v6749, %v6746
      %v8573 = vpack.c.bf16 %v6757, %v6754
      %v8574 = vpack.c.bf16 %v6765, %v6762
      %v8575 = vpack.c.bf16 %v6773, %v6770
      %v8576 = vpack.c.bf16 %v6781, %v6778
      %v8577 = vpack.c.bf16 %v6789, %v6786
      %v8578 = vpack.c.bf16 %v6797, %v6794
      %s8579 = scalar_lea.vmem %s11, 24
      %v8580 = vld [vmem:[%s8579] sm:$0xf]
      %v8582 = vsel %vm2385, %v8563, 0
      %v8585 = vsel %vm2385, %v8564, 0
      %v8588 = vsel %vm2385, %v8565, 0
      %v8591 = vsel %vm2385, %v8566, 0
      %v8594 = vsel %vm2385, %v8567, 0
      %v8597 = vsel %vm2385, %v8568, 0
      %v8600 = vsel %vm2385, %v8569, 0
      %v8603 = vsel %vm2385, %v8570, 0
      %v8606 = vsel %vm2385, %v8571, 0
      %v8609 = vsel %vm2385, %v8572, 0
      %v8612 = vsel %vm2385, %v8573, 0
      %v8615 = vsel %vm2385, %v8574, 0
      %v8618 = vsel %vm2385, %v8575, 0
      %v8621 = vsel %vm2385, %v8576, 0
      %v8624 = vsel %vm2385, %v8577, 0
      %v8627 = vsel %vm2385, %v8578, 0
      %v8630 = vsel %vm2389, %v8580, 0
      %8632 = vmatprep.subr.bf16.mxu0 0
      %8633 = vmatpush1.bf16.msra.mxu0 %v8630
      %8634 = vmatprep.subr.bf16.mxu0 0
      %8635 = vmatpush1.bf16.msra.mxu0 0
      %8636 = vmatprep.subr.bf16.mxu0 0
      %8637 = vmatpush1.bf16.msra.mxu0 0
      %8638 = vmatprep.subr.bf16.mxu0 0
      %8639 = vmatpush1.bf16.msra.mxu0 0
      %8640 = vmatprep.subr.bf16.mxu0 0
      %8641 = vmatpush1.bf16.msra.mxu0 0
      %8642 = vmatprep.subr.bf16.mxu0 0
      %8643 = vmatpush1.bf16.msra.mxu0 0
      %8644 = vmatprep.subr.bf16.mxu0 0
      %8645 = vmatpush1.bf16.msra.mxu0 0
      %8646 = vmatprep.subr.bf16.mxu0 0
      %8647 = vmatpush1.bf16.msra.mxu0 0
      %8648 = vmatprep.subr.bf16.mxu0 0
      %8649 = vmatpush1.bf16.msra.mxu0 0
      %8650 = vmatprep.subr.bf16.mxu0 0
      %8651 = vmatpush1.bf16.msra.mxu0 0
      %8652 = vmatprep.subr.bf16.mxu0 0
      %8653 = vmatpush1.bf16.msra.mxu0 0
      %8654 = vmatprep.subr.bf16.mxu0 0
      %8655 = vmatpush1.bf16.msra.mxu0 0
      %8656 = vmatprep.subr.bf16.mxu0 0
      %8657 = vmatpush1.bf16.msra.mxu0 0
      %8658 = vmatprep.subr.bf16.mxu0 0
      %8659 = vmatpush1.bf16.msra.mxu0 0
      %8660 = vmatprep.subr.bf16.mxu0 0
      %8661 = vmatpush1.bf16.msra.mxu0 0
      %8662 = vmatprep.subr.bf16.mxu0 0
      %8663 = vmatpush1.bf16.msra.mxu0 0
      %8664 = vmatprep.mubr.bf16.mxu0 0
      %8665 = vmatmul.mubr.bf16.gmra.mrb[0].mxu0 %v8582
      %v8666 = vpop.f32.mrb[0].mxu0
      %v8667 = vadd.f32 0.0, %v8666
      %v8668 = vpop.f32.mrb[0].mxu0
      %v8669 = vpop.f32.mrb[0].mxu0
      %v8670 = vadd.f32 0.0, %v8669
      %v8671 = vpop.f32.mrb[0].mxu0
      %8672 = vmatprep.mubr.bf16.mxu0 0
      %8673 = vmatmul.mubr.bf16.gmra.mrb[0].mxu0 %v8585
      %v8674 = vpop.f32.mrb[0].mxu0
      %v8675 = vadd.f32 0.0, %v8674
      %v8676 = vpop.f32.mrb[0].mxu0
      %v8677 = vpop.f32.mrb[0].mxu0
      %v8678 = vadd.f32 0.0, %v8677
      %v8679 = vpop.f32.mrb[0].mxu0
      %8680 = vmatprep.mubr.bf16.mxu0 0
      %8681 = vmatmul.mubr.bf16.gmra.mrb[0].mxu0 %v8588
      %v8682 = vpop.f32.mrb[0].mxu0
      %v8683 = vadd.f32 0.0, %v8682
      %v8684 = vpop.f32.mrb[0].mxu0
      %v8685 = vpop.f32.mrb[0].mxu0
      %v8686 = vadd.f32 0.0, %v8685
      %v8687 = vpop.f32.mrb[0].mxu0
      %8688 = vmatprep.mubr.bf16.mxu0 0
      %8689 = vmatmul.mubr.bf16.gmra.mrb[0].mxu0 %v8591
      %v8690 = vpop.f32.mrb[0].mxu0
      %v8691 = vadd.f32 0.0, %v8690
      %v8692 = vpop.f32.mrb[0].mxu0
      %v8693 = vpop.f32.mrb[0].mxu0
      %v8694 = vadd.f32 0.0, %v8693
      %v8695 = vpop.f32.mrb[0].mxu0
      %8696 = vmatprep.mubr.bf16.mxu0 0
      %8697 = vmatmul.mubr.bf16.gmra.mrb[0].mxu0 %v8594
      %v8698 = vpop.f32.mrb[0].mxu0
      %v8699 = vadd.f32 0.0, %v8698
      %v8700 = vpop.f32.mrb[0].mxu0
      %v8701 = vpop.f32.mrb[0].mxu0
      %v8702 = vadd.f32 0.0, %v8701
      %v8703 = vpop.f32.mrb[0].mxu0
      %8704 = vmatprep.mubr.bf16.mxu0 0
      %8705 = vmatmul.mubr.bf16.gmra.mrb[0].mxu0 %v8597
      %v8706 = vpop.f32.mrb[0].mxu0
      %v8707 = vadd.f32 0.0, %v8706
      %v8708 = vpop.f32.mrb[0].mxu0
      %v8709 = vpop.f32.mrb[0].mxu0
      %v8710 = vadd.f32 0.0, %v8709
      %v8711 = vpop.f32.mrb[0].mxu0
      %8712 = vmatprep.mubr.bf16.mxu0 0
      %8713 = vmatmul.mubr.bf16.gmra.mrb[0].mxu0 %v8600
      %v8714 = vpop.f32.mrb[0].mxu0
      %v8715 = vadd.f32 0.0, %v8714
      %v8716 = vpop.f32.mrb[0].mxu0
      %v8717 = vpop.f32.mrb[0].mxu0
      %v8718 = vadd.f32 0.0, %v8717
      %v8719 = vpop.f32.mrb[0].mxu0
      %8720 = vmatprep.mubr.bf16.mxu0 0
      %8721 = vmatmul.mubr.bf16.gmra.mrb[0].mxu0 %v8603
      %v8722 = vpop.f32.mrb[0].mxu0
      %v8723 = vadd.f32 0.0, %v8722
      %v8724 = vpop.f32.mrb[0].mxu0
      %v8725 = vpop.f32.mrb[0].mxu0
      %v8726 = vadd.f32 0.0, %v8725
      %v8727 = vpop.f32.mrb[0].mxu0
      %8728 = vmatprep.mubr.bf16.mxu0 0
      %8729 = vmatmul.mubr.bf16.gmra.mrb[0].mxu0 %v8606
      %v8730 = vpop.f32.mrb[0].mxu0
      %v8731 = vadd.f32 0.0, %v8730
      %v8732 = vpop.f32.mrb[0].mxu0
      %v8733 = vpop.f32.mrb[0].mxu0
      %v8734 = vadd.f32 0.0, %v8733
      %v8735 = vpop.f32.mrb[0].mxu0
      %8736 = vmatprep.mubr.bf16.mxu0 0
      %8737 = vmatmul.mubr.bf16.gmra.mrb[0].mxu0 %v8609
      %v8738 = vpop.f32.mrb[0].mxu0
      %v8739 = vadd.f32 0.0, %v8738
      %v8740 = vpop.f32.mrb[0].mxu0
      %v8741 = vpop.f32.mrb[0].mxu0
      %v8742 = vadd.f32 0.0, %v8741
      %v8743 = vpop.f32.mrb[0].mxu0
      %8744 = vmatprep.mubr.bf16.mxu0 0
      %8745 = vmatmul.mubr.bf16.gmra.mrb[0].mxu0 %v8612
      %v8746 = vpop.f32.mrb[0].mxu0
      %v8747 = vadd.f32 0.0, %v8746
      %v8748 = vpop.f32.mrb[0].mxu0
      %v8749 = vpop.f32.mrb[0].mxu0
      %v8750 = vadd.f32 0.0, %v8749
      %v8751 = vpop.f32.mrb[0].mxu0
      %8752 = vmatprep.mubr.bf16.mxu0 0
      %8753 = vmatmul.mubr.bf16.gmra.mrb[0].mxu0 %v8615
      %v8754 = vpop.f32.mrb[0].mxu0
      %v8755 = vadd.f32 0.0, %v8754
      %v8756 = vpop.f32.mrb[0].mxu0
      %v8757 = vpop.f32.mrb[0].mxu0
      %v8758 = vadd.f32 0.0, %v8757
      %v8759 = vpop.f32.mrb[0].mxu0
      %8760 = vmatprep.mubr.bf16.mxu0 0
      %8761 = vmatmul.mubr.bf16.gmra.mrb[0].mxu0 %v8618
      %v8762 = vpop.f32.mrb[0].mxu0
      %v8763 = vadd.f32 0.0, %v8762
      %v8764 = vpop.f32.mrb[0].mxu0
      %v8765 = vpop.f32.mrb[0].mxu0
      %v8766 = vadd.f32 0.0, %v8765
      %v8767 = vpop.f32.mrb[0].mxu0
      %8768 = vmatprep.mubr.bf16.mxu0 0
      %8769 = vmatmul.mubr.bf16.gmra.mrb[0].mxu0 %v8621
      %v8770 = vpop.f32.mrb[0].mxu0
      %v8771 = vadd.f32 0.0, %v8770
      %v8772 = vpop.f32.mrb[0].mxu0
      %v8773 = vpop.f32.mrb[0].mxu0
      %v8774 = vadd.f32 0.0, %v8773
      %v8775 = vpop.f32.mrb[0].mxu0
      %8776 = vmatprep.mubr.bf16.mxu0 0
      %8777 = vmatmul.mubr.bf16.gmra.mrb[0].mxu0 %v8624
      %v8778 = vpop.f32.mrb[0].mxu0
      %v8779 = vadd.f32 0.0, %v8778
      %v8780 = vpop.f32.mrb[0].mxu0
      %v8781 = vpop.f32.mrb[0].mxu0
      %v8782 = vadd.f32 0.0, %v8781
      %v8783 = vpop.f32.mrb[0].mxu0
      %8784 = vmatprep.mubr.bf16.mxu0 0
      %8785 = vmatmul.mubr.bf16.gmra.mrb[0].mxu0 %v8627
      %v8786 = vpop.f32.mrb[0].mxu0
      %v8787 = vadd.f32 0.0, %v8786
      %v8788 = vpop.f32.mrb[0].mxu0
      %v8789 = vpop.f32.mrb[0].mxu0
      %v8790 = vadd.f32 0.0, %v8789
      %v8791 = vpop.f32.mrb[0].mxu0
      %8792 = vdwg.mxu0
      %v8793 = vadd.f32 %v8531, %v8667
      %v8794 = vadd.f32 %v8532, %v8670
      %v8795 = vadd.f32 %v8533, %v8675
      %v8796 = vadd.f32 %v8534, %v8678
      %v8797 = vadd.f32 %v8535, %v8683
      %v8798 = vadd.f32 %v8536, %v8686
      %v8799 = vadd.f32 %v8537, %v8691
      %v8800 = vadd.f32 %v8538, %v8694
      %v8801 = vadd.f32 %v8539, %v8699
      %v8802 = vadd.f32 %v8540, %v8702
      %v8803 = vadd.f32 %v8541, %v8707
      %v8804 = vadd.f32 %v8542, %v8710
      %v8805 = vadd.f32 %v8543, %v8715
      %v8806 = vadd.f32 %v8544, %v8718
      %v8807 = vadd.f32 %v8545, %v8723
      %v8808 = vadd.f32 %v8546, %v8726
      %v8809 = vadd.f32 %v8547, %v8731
      %v8810 = vadd.f32 %v8548, %v8734
      %v8811 = vadd.f32 %v8549, %v8739
      %v8812 = vadd.f32 %v8550, %v8742
      %v8813 = vadd.f32 %v8551, %v8747
      %v8814 = vadd.f32 %v8552, %v8750
      %v8815 = vadd.f32 %v8553, %v8755
      %v8816 = vadd.f32 %v8554, %v8758
      %v8817 = vadd.f32 %v8555, %v8763
      %v8818 = vadd.f32 %v8556, %v8766
      %v8819 = vadd.f32 %v8557, %v8771
      %v8820 = vadd.f32 %v8558, %v8774
      %v8821 = vadd.f32 %v8559, %v8779
      %v8822 = vadd.f32 %v8560, %v8782
      %v8823 = vadd.f32 %v8561, %v8787
      %v8824 = vadd.f32 %v8562, %v8790
      %v8825 = vpack.c.bf16 %v6805, %v6802
      %v8826 = vpack.c.bf16 %v6813, %v6810
      %v8827 = vpack.c.bf16 %v6821, %v6818
      %v8828 = vpack.c.bf16 %v6829, %v6826
      %v8829 = vpack.c.bf16 %v6837, %v6834
      %v8830 = vpack.c.bf16 %v6845, %v6842
      %v8831 = vpack.c.bf16 %v6853, %v6850
      %v8832 = vpack.c.bf16 %v6861, %v6858
      %v8833 = vpack.c.bf16 %v6869, %v6866
      %v8834 = vpack.c.bf16 %v6877, %v6874
      %v8835 = vpack.c.bf16 %v6885, %v6882
      %v8836 = vpack.c.bf16 %v6893, %v6890
      %v8837 = vpack.c.bf16 %v6901, %v6898
      %v8838 = vpack.c.bf16 %v6909, %v6906
      %v8839 = vpack.c.bf16 %v6917, %v6914
      %v8840 = vpack.c.bf16 %v6925, %v6922
      %s8841 = scalar_lea.vmem %s11, 28
      %v8842 = vld [vmem:[%s8841] sm:$0xf]
      %v8844 = vsel %vm2385, %v8825, 0
      %v8847 = vsel %vm2385, %v8826, 0
      %v8850 = vsel %vm2385, %v8827, 0
      %v8853 = vsel %vm2385, %v8828, 0
      %v8856 = vsel %vm2385, %v8829, 0
      %v8859 = vsel %vm2385, %v8830, 0
      %v8862 = vsel %vm2385, %v8831, 0
      %v8865 = vsel %vm2385, %v8832, 0
      %v8868 = vsel %vm2385, %v8833, 0
      %v8871 = vsel %vm2385, %v8834, 0
      %v8874 = vsel %vm2385, %v8835, 0
      %v8877 = vsel %vm2385, %v8836, 0
      %v8880 = vsel %vm2385, %v8837, 0
      %v8883 = vsel %vm2385, %v8838, 0
      %v8886 = vsel %vm2385, %v8839, 0
      %v8889 = vsel %vm2385, %v8840, 0
      %v8892 = vsel %vm2389, %v8842, 0
      %8894 = vmatprep.subr.bf16.mxu0 0
      %8895 = vmatpush1.bf16.msra.mxu0 %v8892
      %8896 = vmatprep.subr.bf16.mxu0 0
      %8897 = vmatpush1.bf16.msra.mxu0 0
      %8898 = vmatprep.subr.bf16.mxu0 0
      %8899 = vmatpush1.bf16.msra.mxu0 0
      %8900 = vmatprep.subr.bf16.mxu0 0
      %8901 = vmatpush1.bf16.msra.mxu0 0
      %8902 = vmatprep.subr.bf16.mxu0 0
      %8903 = vmatpush1.bf16.msra.mxu0 0
      %8904 = vmatprep.subr.bf16.mxu0 0
      %8905 = vmatpush1.bf16.msra.mxu0 0
      %8906 = vmatprep.subr.bf16.mxu0 0
      %8907 = vmatpush1.bf16.msra.mxu0 0
      %8908 = vmatprep.subr.bf16.mxu0 0
      %8909 = vmatpush1.bf16.msra.mxu0 0
      %8910 = vmatprep.subr.bf16.mxu0 0
      %8911 = vmatpush1.bf16.msra.mxu0 0
      %8912 = vmatprep.subr.bf16.mxu0 0
      %8913 = vmatpush1.bf16.msra.mxu0 0
      %8914 = vmatprep.subr.bf16.mxu0 0
      %8915 = vmatpush1.bf16.msra.mxu0 0
      %8916 = vmatprep.subr.bf16.mxu0 0
      %8917 = vmatpush1.bf16.msra.mxu0 0
      %8918 = vmatprep.subr.bf16.mxu0 0
      %8919 = vmatpush1.bf16.msra.mxu0 0
      %8920 = vmatprep.subr.bf16.mxu0 0
      %8921 = vmatpush1.bf16.msra.mxu0 0
      %8922 = vmatprep.subr.bf16.mxu0 0
      %8923 = vmatpush1.bf16.msra.mxu0 0
      %8924 = vmatprep.subr.bf16.mxu0 0
      %8925 = vmatpush1.bf16.msra.mxu0 0
      %8926 = vmatprep.mubr.bf16.mxu0 0
      %8927 = vmatmul.mubr.bf16.gmra.mrb[0].mxu0 %v8844
      %v8928 = vpop.f32.mrb[0].mxu0
      %v8929 = vadd.f32 0.0, %v8928
      %v8930 = vpop.f32.mrb[0].mxu0
      %v8931 = vpop.f32.mrb[0].mxu0
      %v8932 = vadd.f32 0.0, %v8931
      %v8933 = vpop.f32.mrb[0].mxu0
      %8934 = vmatprep.mubr.bf16.mxu0 0
      %8935 = vmatmul.mubr.bf16.gmra.mrb[0].mxu0 %v8847
      %v8936 = vpop.f32.mrb[0].mxu0
      %v8937 = vadd.f32 0.0, %v8936
      %v8938 = vpop.f32.mrb[0].mxu0
      %v8939 = vpop.f32.mrb[0].mxu0
      %v8940 = vadd.f32 0.0, %v8939
      %v8941 = vpop.f32.mrb[0].mxu0
      %8942 = vmatprep.mubr.bf16.mxu0 0
      %8943 = vmatmul.mubr.bf16.gmra.mrb[0].mxu0 %v8850
      %v8944 = vpop.f32.mrb[0].mxu0
      %v8945 = vadd.f32 0.0, %v8944
      %v8946 = vpop.f32.mrb[0].mxu0
      %v8947 = vpop.f32.mrb[0].mxu0
      %v8948 = vadd.f32 0.0, %v8947
      %v8949 = vpop.f32.mrb[0].mxu0
      %8950 = vmatprep.mubr.bf16.mxu0 0
      %8951 = vmatmul.mubr.bf16.gmra.mrb[0].mxu0 %v8853
      %v8952 = vpop.f32.mrb[0].mxu0
      %v8953 = vadd.f32 0.0, %v8952
      %v8954 = vpop.f32.mrb[0].mxu0
      %v8955 = vpop.f32.mrb[0].mxu0
      %v8956 = vadd.f32 0.0, %v8955
      %v8957 = vpop.f32.mrb[0].mxu0
      %8958 = vmatprep.mubr.bf16.mxu0 0
      %8959 = vmatmul.mubr.bf16.gmra.mrb[0].mxu0 %v8856
      %v8960 = vpop.f32.mrb[0].mxu0
      %v8961 = vadd.f32 0.0, %v8960
      %v8962 = vpop.f32.mrb[0].mxu0
      %v8963 = vpop.f32.mrb[0].mxu0
      %v8964 = vadd.f32 0.0, %v8963
      %v8965 = vpop.f32.mrb[0].mxu0
      %8966 = vmatprep.mubr.bf16.mxu0 0
      %8967 = vmatmul.mubr.bf16.gmra.mrb[0].mxu0 %v8859
      %v8968 = vpop.f32.mrb[0].mxu0
      %v8969 = vadd.f32 0.0, %v8968
      %v8970 = vpop.f32.mrb[0].mxu0
      %v8971 = vpop.f32.mrb[0].mxu0
      %v8972 = vadd.f32 0.0, %v8971
      %v8973 = vpop.f32.mrb[0].mxu0
      %8974 = vmatprep.mubr.bf16.mxu0 0
      %8975 = vmatmul.mubr.bf16.gmra.mrb[0].mxu0 %v8862
      %v8976 = vpop.f32.mrb[0].mxu0
      %v8977 = vadd.f32 0.0, %v8976
      %v8978 = vpop.f32.mrb[0].mxu0
      %v8979 = vpop.f32.mrb[0].mxu0
      %v8980 = vadd.f32 0.0, %v8979
      %v8981 = vpop.f32.mrb[0].mxu0
      %8982 = vmatprep.mubr.bf16.mxu0 0
      %8983 = vmatmul.mubr.bf16.gmra.mrb[0].mxu0 %v8865
      %v8984 = vpop.f32.mrb[0].mxu0
      %v8985 = vadd.f32 0.0, %v8984
      %v8986 = vpop.f32.mrb[0].mxu0
      %v8987 = vpop.f32.mrb[0].mxu0
      %v8988 = vadd.f32 0.0, %v8987
      %v8989 = vpop.f32.mrb[0].mxu0
      %8990 = vmatprep.mubr.bf16.mxu0 0
      %8991 = vmatmul.mubr.bf16.gmra.mrb[0].mxu0 %v8868
      %v8992 = vpop.f32.mrb[0].mxu0
      %v8993 = vadd.f32 0.0, %v8992
      %v8994 = vpop.f32.mrb[0].mxu0
      %v8995 = vpop.f32.mrb[0].mxu0
      %v8996 = vadd.f32 0.0, %v8995
      %v8997 = vpop.f32.mrb[0].mxu0
      %8998 = vmatprep.mubr.bf16.mxu0 0
      %8999 = vmatmul.mubr.bf16.gmra.mrb[0].mxu0 %v8871
      %v9000 = vpop.f32.mrb[0].mxu0
      %v9001 = vadd.f32 0.0, %v9000
      %v9002 = vpop.f32.mrb[0].mxu0
      %v9003 = vpop.f32.mrb[0].mxu0
      %v9004 = vadd.f32 0.0, %v9003
      %v9005 = vpop.f32.mrb[0].mxu0
      %9006 = vmatprep.mubr.bf16.mxu0 0
      %9007 = vmatmul.mubr.bf16.gmra.mrb[0].mxu0 %v8874
      %v9008 = vpop.f32.mrb[0].mxu0
      %v9009 = vadd.f32 0.0, %v9008
      %v9010 = vpop.f32.mrb[0].mxu0
      %v9011 = vpop.f32.mrb[0].mxu0
      %v9012 = vadd.f32 0.0, %v9011
      %v9013 = vpop.f32.mrb[0].mxu0
      %9014 = vmatprep.mubr.bf16.mxu0 0
      %9015 = vmatmul.mubr.bf16.gmra.mrb[0].mxu0 %v8877
      %v9016 = vpop.f32.mrb[0].mxu0
      %v9017 = vadd.f32 0.0, %v9016
      %v9018 = vpop.f32.mrb[0].mxu0
      %v9019 = vpop.f32.mrb[0].mxu0
      %v9020 = vadd.f32 0.0, %v9019
      %v9021 = vpop.f32.mrb[0].mxu0
      %9022 = vmatprep.mubr.bf16.mxu0 0
      %9023 = vmatmul.mubr.bf16.gmra.mrb[0].mxu0 %v8880
      %v9024 = vpop.f32.mrb[0].mxu0
      %v9025 = vadd.f32 0.0, %v9024
      %v9026 = vpop.f32.mrb[0].mxu0
      %v9027 = vpop.f32.mrb[0].mxu0
      %v9028 = vadd.f32 0.0, %v9027
      %v9029 = vpop.f32.mrb[0].mxu0
      %9030 = vmatprep.mubr.bf16.mxu0 0
      %9031 = vmatmul.mubr.bf16.gmra.mrb[0].mxu0 %v8883
      %v9032 = vpop.f32.mrb[0].mxu0
      %v9033 = vadd.f32 0.0, %v9032
      %v9034 = vpop.f32.mrb[0].mxu0
      %v9035 = vpop.f32.mrb[0].mxu0
      %v9036 = vadd.f32 0.0, %v9035
      %v9037 = vpop.f32.mrb[0].mxu0
      %9038 = vmatprep.mubr.bf16.mxu0 0
      %9039 = vmatmul.mubr.bf16.gmra.mrb[0].mxu0 %v8886
      %v9040 = vpop.f32.mrb[0].mxu0
      %v9041 = vadd.f32 0.0, %v9040
      %v9042 = vpop.f32.mrb[0].mxu0
      %v9043 = vpop.f32.mrb[0].mxu0
      %v9044 = vadd.f32 0.0, %v9043
      %v9045 = vpop.f32.mrb[0].mxu0
      %9046 = vmatprep.mubr.bf16.mxu0 0
      %9047 = vmatmul.mubr.bf16.gmra.mrb[0].mxu0 %v8889
      %v9048 = vpop.f32.mrb[0].mxu0
      %v9049 = vadd.f32 0.0, %v9048
      %v9050 = vpop.f32.mrb[0].mxu0
      %v9051 = vpop.f32.mrb[0].mxu0
      %v9052 = vadd.f32 0.0, %v9051
      %v9053 = vpop.f32.mrb[0].mxu0
      %9054 = vdwg.mxu0
      %v9055 = vadd.f32 %v8793, %v8929
      %v9056 = vadd.f32 %v8794, %v8932
      %v9057 = vadd.f32 %v8795, %v8937
      %v9058 = vadd.f32 %v8796, %v8940
      %v9059 = vadd.f32 %v8797, %v8945
      %v9060 = vadd.f32 %v8798, %v8948
      %v9061 = vadd.f32 %v8799, %v8953
      %v9062 = vadd.f32 %v8800, %v8956
      %v9063 = vadd.f32 %v8801, %v8961
      %v9064 = vadd.f32 %v8802, %v8964
      %v9065 = vadd.f32 %v8803, %v8969
      %v9066 = vadd.f32 %v8804, %v8972
      %v9067 = vadd.f32 %v8805, %v8977
      %v9068 = vadd.f32 %v8806, %v8980
      %v9069 = vadd.f32 %v8807, %v8985
      %v9070 = vadd.f32 %v8808, %v8988
      %v9071 = vadd.f32 %v8809, %v8993
      %v9072 = vadd.f32 %v8810, %v8996
      %v9073 = vadd.f32 %v8811, %v9001
      %v9074 = vadd.f32 %v8812, %v9004
      %v9075 = vadd.f32 %v8813, %v9009
      %v9076 = vadd.f32 %v8814, %v9012
      %v9077 = vadd.f32 %v8815, %v9017
      %v9078 = vadd.f32 %v8816, %v9020
      %v9079 = vadd.f32 %v8817, %v9025
      %v9080 = vadd.f32 %v8818, %v9028
      %v9081 = vadd.f32 %v8819, %v9033
      %v9082 = vadd.f32 %v8820, %v9036
      %v9083 = vadd.f32 %v8821, %v9041
      %v9084 = vadd.f32 %v8822, %v9044
      %v9085 = vadd.f32 %v8823, %v9049
      %v9086 = vadd.f32 %v8824, %v9052
      %v9087 = vpack.c.bf16 %v6933, %v6930
      %v9088 = vpack.c.bf16 %v6941, %v6938
      %v9089 = vpack.c.bf16 %v6949, %v6946
      %v9090 = vpack.c.bf16 %v6957, %v6954
      %v9091 = vpack.c.bf16 %v6965, %v6962
      %v9092 = vpack.c.bf16 %v6973, %v6970
      %v9093 = vpack.c.bf16 %v6981, %v6978
      %v9094 = vpack.c.bf16 %v6989, %v6986
      %v9095 = vpack.c.bf16 %v6997, %v6994
      %v9096 = vpack.c.bf16 %v7005, %v7002
      %v9097 = vpack.c.bf16 %v7013, %v7010
      %v9098 = vpack.c.bf16 %v7021, %v7018
      %v9099 = vpack.c.bf16 %v7029, %v7026
      %v9100 = vpack.c.bf16 %v7037, %v7034
      %v9101 = vpack.c.bf16 %v7045, %v7042
      %v9102 = vpack.c.bf16 %v7053, %v7050
      %s9103 = scalar_lea.vmem %s11, 32
      %v9104 = vld [vmem:[%s9103] sm:$0xf]
      %v9106 = vsel %vm2385, %v9087, 0
      %v9109 = vsel %vm2385, %v9088, 0
      %v9112 = vsel %vm2385, %v9089, 0
      %v9115 = vsel %vm2385, %v9090, 0
      %v9118 = vsel %vm2385, %v9091, 0
      %v9121 = vsel %vm2385, %v9092, 0
      %v9124 = vsel %vm2385, %v9093, 0
      %v9127 = vsel %vm2385, %v9094, 0
      %v9130 = vsel %vm2385, %v9095, 0
      %v9133 = vsel %vm2385, %v9096, 0
      %v9136 = vsel %vm2385, %v9097, 0
      %v9139 = vsel %vm2385, %v9098, 0
      %v9142 = vsel %vm2385, %v9099, 0
      %v9145 = vsel %vm2385, %v9100, 0
      %v9148 = vsel %vm2385, %v9101, 0
      %v9151 = vsel %vm2385, %v9102, 0
      %v9154 = vsel %vm2389, %v9104, 0
      %9156 = vmatprep.subr.bf16.mxu0 0
      %9157 = vmatpush1.bf16.msra.mxu0 %v9154
      %9158 = vmatprep.subr.bf16.mxu0 0
      %9159 = vmatpush1.bf16.msra.mxu0 0
      %9160 = vmatprep.subr.bf16.mxu0 0
      %9161 = vmatpush1.bf16.msra.mxu0 0
      %9162 = vmatprep.subr.bf16.mxu0 0
      %9163 = vmatpush1.bf16.msra.mxu0 0
      %9164 = vmatprep.subr.bf16.mxu0 0
      %9165 = vmatpush1.bf16.msra.mxu0 0
      %9166 = vmatprep.subr.bf16.mxu0 0
      %9167 = vmatpush1.bf16.msra.mxu0 0
      %9168 = vmatprep.subr.bf16.mxu0 0
      %9169 = vmatpush1.bf16.msra.mxu0 0
      %9170 = vmatprep.subr.bf16.mxu0 0
      %9171 = vmatpush1.bf16.msra.mxu0 0
      %9172 = vmatprep.subr.bf16.mxu0 0
      %9173 = vmatpush1.bf16.msra.mxu0 0
      %9174 = vmatprep.subr.bf16.mxu0 0
      %9175 = vmatpush1.bf16.msra.mxu0 0
      %9176 = vmatprep.subr.bf16.mxu0 0
      %9177 = vmatpush1.bf16.msra.mxu0 0
      %9178 = vmatprep.subr.bf16.mxu0 0
      %9179 = vmatpush1.bf16.msra.mxu0 0
      %9180 = vmatprep.subr.bf16.mxu0 0
      %9181 = vmatpush1.bf16.msra.mxu0 0
      %9182 = vmatprep.subr.bf16.mxu0 0
      %9183 = vmatpush1.bf16.msra.mxu0 0
      %9184 = vmatprep.subr.bf16.mxu0 0
      %9185 = vmatpush1.bf16.msra.mxu0 0
      %9186 = vmatprep.subr.bf16.mxu0 0
      %9187 = vmatpush1.bf16.msra.mxu0 0
      %9188 = vmatprep.mubr.bf16.mxu0 0
      %9189 = vmatmul.mubr.bf16.gmra.mrb[0].mxu0 %v9106
      %v9190 = vpop.f32.mrb[0].mxu0
      %v9191 = vadd.f32 0.0, %v9190
      %v9192 = vpop.f32.mrb[0].mxu0
      %v9193 = vpop.f32.mrb[0].mxu0
      %v9194 = vadd.f32 0.0, %v9193
      %v9195 = vpop.f32.mrb[0].mxu0
      %9196 = vmatprep.mubr.bf16.mxu0 0
      %9197 = vmatmul.mubr.bf16.gmra.mrb[0].mxu0 %v9109
      %v9198 = vpop.f32.mrb[0].mxu0
      %v9199 = vadd.f32 0.0, %v9198
      %v9200 = vpop.f32.mrb[0].mxu0
      %v9201 = vpop.f32.mrb[0].mxu0
      %v9202 = vadd.f32 0.0, %v9201
      %v9203 = vpop.f32.mrb[0].mxu0
      %9204 = vmatprep.mubr.bf16.mxu0 0
      %9205 = vmatmul.mubr.bf16.gmra.mrb[0].mxu0 %v9112
      %v9206 = vpop.f32.mrb[0].mxu0
      %v9207 = vadd.f32 0.0, %v9206
      %v9208 = vpop.f32.mrb[0].mxu0
      %v9209 = vpop.f32.mrb[0].mxu0
      %v9210 = vadd.f32 0.0, %v9209
      %v9211 = vpop.f32.mrb[0].mxu0
      %9212 = vmatprep.mubr.bf16.mxu0 0
      %9213 = vmatmul.mubr.bf16.gmra.mrb[0].mxu0 %v9115
      %v9214 = vpop.f32.mrb[0].mxu0
      %v9215 = vadd.f32 0.0, %v9214
      %v9216 = vpop.f32.mrb[0].mxu0
      %v9217 = vpop.f32.mrb[0].mxu0
      %v9218 = vadd.f32 0.0, %v9217
      %v9219 = vpop.f32.mrb[0].mxu0
      %9220 = vmatprep.mubr.bf16.mxu0 0
      %9221 = vmatmul.mubr.bf16.gmra.mrb[0].mxu0 %v9118
      %v9222 = vpop.f32.mrb[0].mxu0
      %v9223 = vadd.f32 0.0, %v9222
      %v9224 = vpop.f32.mrb[0].mxu0
      %v9225 = vpop.f32.mrb[0].mxu0
      %v9226 = vadd.f32 0.0, %v9225
      %v9227 = vpop.f32.mrb[0].mxu0
      %9228 = vmatprep.mubr.bf16.mxu0 0
      %9229 = vmatmul.mubr.bf16.gmra.mrb[0].mxu0 %v9121
      %v9230 = vpop.f32.mrb[0].mxu0
      %v9231 = vadd.f32 0.0, %v9230
      %v9232 = vpop.f32.mrb[0].mxu0
      %v9233 = vpop.f32.mrb[0].mxu0
      %v9234 = vadd.f32 0.0, %v9233
      %v9235 = vpop.f32.mrb[0].mxu0
      %9236 = vmatprep.mubr.bf16.mxu0 0
      %9237 = vmatmul.mubr.bf16.gmra.mrb[0].mxu0 %v9124
      %v9238 = vpop.f32.mrb[0].mxu0
      %v9239 = vadd.f32 0.0, %v9238
      %v9240 = vpop.f32.mrb[0].mxu0
      %v9241 = vpop.f32.mrb[0].mxu0
      %v9242 = vadd.f32 0.0, %v9241
      %v9243 = vpop.f32.mrb[0].mxu0
      %9244 = vmatprep.mubr.bf16.mxu0 0
      %9245 = vmatmul.mubr.bf16.gmra.mrb[0].mxu0 %v9127
      %v9246 = vpop.f32.mrb[0].mxu0
      %v9247 = vadd.f32 0.0, %v9246
      %v9248 = vpop.f32.mrb[0].mxu0
      %v9249 = vpop.f32.mrb[0].mxu0
      %v9250 = vadd.f32 0.0, %v9249
      %v9251 = vpop.f32.mrb[0].mxu0
      %9252 = vmatprep.mubr.bf16.mxu0 0
      %9253 = vmatmul.mubr.bf16.gmra.mrb[0].mxu0 %v9130
      %v9254 = vpop.f32.mrb[0].mxu0
      %v9255 = vadd.f32 0.0, %v9254
      %v9256 = vpop.f32.mrb[0].mxu0
      %v9257 = vpop.f32.mrb[0].mxu0
      %v9258 = vadd.f32 0.0, %v9257
      %v9259 = vpop.f32.mrb[0].mxu0
      %9260 = vmatprep.mubr.bf16.mxu0 0
      %9261 = vmatmul.mubr.bf16.gmra.mrb[0].mxu0 %v9133
      %v9262 = vpop.f32.mrb[0].mxu0
      %v9263 = vadd.f32 0.0, %v9262
      %v9264 = vpop.f32.mrb[0].mxu0
      %v9265 = vpop.f32.mrb[0].mxu0
      %v9266 = vadd.f32 0.0, %v9265
      %v9267 = vpop.f32.mrb[0].mxu0
      %9268 = vmatprep.mubr.bf16.mxu0 0
      %9269 = vmatmul.mubr.bf16.gmra.mrb[0].mxu0 %v9136
      %v9270 = vpop.f32.mrb[0].mxu0
      %v9271 = vadd.f32 0.0, %v9270
      %v9272 = vpop.f32.mrb[0].mxu0
      %v9273 = vpop.f32.mrb[0].mxu0
      %v9274 = vadd.f32 0.0, %v9273
      %v9275 = vpop.f32.mrb[0].mxu0
      %9276 = vmatprep.mubr.bf16.mxu0 0
      %9277 = vmatmul.mubr.bf16.gmra.mrb[0].mxu0 %v9139
      %v9278 = vpop.f32.mrb[0].mxu0
      %v9279 = vadd.f32 0.0, %v9278
      %v9280 = vpop.f32.mrb[0].mxu0
      %v9281 = vpop.f32.mrb[0].mxu0
      %v9282 = vadd.f32 0.0, %v9281
      %v9283 = vpop.f32.mrb[0].mxu0
      %9284 = vmatprep.mubr.bf16.mxu0 0
      %9285 = vmatmul.mubr.bf16.gmra.mrb[0].mxu0 %v9142
      %v9286 = vpop.f32.mrb[0].mxu0
      %v9287 = vadd.f32 0.0, %v9286
      %v9288 = vpop.f32.mrb[0].mxu0
      %v9289 = vpop.f32.mrb[0].mxu0
      %v9290 = vadd.f32 0.0, %v9289
      %v9291 = vpop.f32.mrb[0].mxu0
      %9292 = vmatprep.mubr.bf16.mxu0 0
      %9293 = vmatmul.mubr.bf16.gmra.mrb[0].mxu0 %v9145
      %v9294 = vpop.f32.mrb[0].mxu0
      %v9295 = vadd.f32 0.0, %v9294
      %v9296 = vpop.f32.mrb[0].mxu0
      %v9297 = vpop.f32.mrb[0].mxu0
      %v9298 = vadd.f32 0.0, %v9297
      %v9299 = vpop.f32.mrb[0].mxu0
      %9300 = vmatprep.mubr.bf16.mxu0 0
      %9301 = vmatmul.mubr.bf16.gmra.mrb[0].mxu0 %v9148
      %v9302 = vpop.f32.mrb[0].mxu0
      %v9303 = vadd.f32 0.0, %v9302
      %v9304 = vpop.f32.mrb[0].mxu0
      %v9305 = vpop.f32.mrb[0].mxu0
      %v9306 = vadd.f32 0.0, %v9305
      %v9307 = vpop.f32.mrb[0].mxu0
      %9308 = vmatprep.mubr.bf16.mxu0 0
      %9309 = vmatmul.mubr.bf16.gmra.mrb[0].mxu0 %v9151
      %v9310 = vpop.f32.mrb[0].mxu0
      %v9311 = vadd.f32 0.0, %v9310
      %v9312 = vpop.f32.mrb[0].mxu0
      %v9313 = vpop.f32.mrb[0].mxu0
      %v9314 = vadd.f32 0.0, %v9313
      %v9315 = vpop.f32.mrb[0].mxu0
      %9316 = vdwg.mxu0
      %v9317 = vadd.f32 %v9055, %v9191
      %v9318 = vadd.f32 %v9056, %v9194
      %v9319 = vadd.f32 %v9057, %v9199
      %v9320 = vadd.f32 %v9058, %v9202
      %v9321 = vadd.f32 %v9059, %v9207
      %v9322 = vadd.f32 %v9060, %v9210
      %v9323 = vadd.f32 %v9061, %v9215
      %v9324 = vadd.f32 %v9062, %v9218
      %v9325 = vadd.f32 %v9063, %v9223
      %v9326 = vadd.f32 %v9064, %v9226
      %v9327 = vadd.f32 %v9065, %v9231
      %v9328 = vadd.f32 %v9066, %v9234
      %v9329 = vadd.f32 %v9067, %v9239
      %v9330 = vadd.f32 %v9068, %v9242
      %v9331 = vadd.f32 %v9069, %v9247
      %v9332 = vadd.f32 %v9070, %v9250
      %v9333 = vadd.f32 %v9071, %v9255
      %v9334 = vadd.f32 %v9072, %v9258
      %v9335 = vadd.f32 %v9073, %v9263
      %v9336 = vadd.f32 %v9074, %v9266
      %v9337 = vadd.f32 %v9075, %v9271
      %v9338 = vadd.f32 %v9076, %v9274
      %v9339 = vadd.f32 %v9077, %v9279
      %v9340 = vadd.f32 %v9078, %v9282
      %v9341 = vadd.f32 %v9079, %v9287
      %v9342 = vadd.f32 %v9080, %v9290
      %v9343 = vadd.f32 %v9081, %v9295
      %v9344 = vadd.f32 %v9082, %v9298
      %v9345 = vadd.f32 %v9083, %v9303
      %v9346 = vadd.f32 %v9084, %v9306
      %v9347 = vadd.f32 %v9085, %v9311
      %v9348 = vadd.f32 %v9086, %v9314
      %v9349 = vld [vmem:[%s12] sm:$0x1]
      %v9351 = vlaneseq
      %v9352 = vshrl.u32 %v9351, 7
      %v9353 = vsub.s32 0, %v9352
      %v9354 = vrot.slane %v9349, %v9353
      %v9356 = vadd.f32 %v9317, %v9354
      %v9357 = vadd.f32 %v9318, %v9354
      %v9358 = vadd.f32 %v9319, %v9354
      %v9359 = vadd.f32 %v9320, %v9354
      %v9360 = vadd.f32 %v9321, %v9354
      %v9361 = vadd.f32 %v9322, %v9354
      %v9362 = vadd.f32 %v9323, %v9354
      %v9363 = vadd.f32 %v9324, %v9354
      %v9364 = vadd.f32 %v9325, %v9354
      %v9365 = vadd.f32 %v9326, %v9354
      %v9366 = vadd.f32 %v9327, %v9354
      %v9367 = vadd.f32 %v9328, %v9354
      %v9368 = vadd.f32 %v9329, %v9354
      %v9369 = vadd.f32 %v9330, %v9354
      %v9370 = vadd.f32 %v9331, %v9354
      %v9371 = vadd.f32 %v9332, %v9354
      %v9372 = vadd.f32 %v9333, %v9354
      %v9373 = vadd.f32 %v9334, %v9354
      %v9374 = vadd.f32 %v9335, %v9354
      %v9375 = vadd.f32 %v9336, %v9354
      %v9376 = vadd.f32 %v9337, %v9354
      %v9377 = vadd.f32 %v9338, %v9354
      %v9378 = vadd.f32 %v9339, %v9354
      %v9379 = vadd.f32 %v9340, %v9354
      %v9380 = vadd.f32 %v9341, %v9354
      %v9381 = vadd.f32 %v9342, %v9354
      %v9382 = vadd.f32 %v9343, %v9354
      %v9383 = vadd.f32 %v9344, %v9354
      %v9384 = vadd.f32 %v9345, %v9354
      %v9385 = vadd.f32 %v9346, %v9354
      %v9386 = vadd.f32 %v9347, %v9354
      %v9387 = vadd.f32 %v9348, %v9354
      %v9388 = vxor.u32 %v9356, 2147483648
      %v9389 = vxor.u32 %v9357, 2147483648
      %v9390 = vxor.u32 %v9358, 2147483648
      %v9391 = vxor.u32 %v9359, 2147483648
      %v9392 = vxor.u32 %v9360, 2147483648
      %v9393 = vxor.u32 %v9361, 2147483648
      %v9394 = vxor.u32 %v9362, 2147483648
      %v9395 = vxor.u32 %v9363, 2147483648
      %v9396 = vxor.u32 %v9364, 2147483648
      %v9397 = vxor.u32 %v9365, 2147483648
      %v9398 = vxor.u32 %v9366, 2147483648
      %v9399 = vxor.u32 %v9367, 2147483648
      %v9400 = vxor.u32 %v9368, 2147483648
      %v9401 = vxor.u32 %v9369, 2147483648
      %v9402 = vxor.u32 %v9370, 2147483648
      %v9403 = vxor.u32 %v9371, 2147483648
      %v9404 = vxor.u32 %v9372, 2147483648
      %v9405 = vxor.u32 %v9373, 2147483648
      %v9406 = vxor.u32 %v9374, 2147483648
      %v9407 = vxor.u32 %v9375, 2147483648
      %v9408 = vxor.u32 %v9376, 2147483648
      %v9409 = vxor.u32 %v9377, 2147483648
      %v9410 = vxor.u32 %v9378, 2147483648
      %v9411 = vxor.u32 %v9379, 2147483648
      %v9412 = vxor.u32 %v9380, 2147483648
      %v9413 = vxor.u32 %v9381, 2147483648
      %v9414 = vxor.u32 %v9382, 2147483648
      %v9415 = vxor.u32 %v9383, 2147483648
      %v9416 = vxor.u32 %v9384, 2147483648
      %v9417 = vxor.u32 %v9385, 2147483648
      %v9418 = vxor.u32 %v9386, 2147483648
      %v9419 = vxor.u32 %v9387, 2147483648
      %v9420 = vmul.f32 %v9388, 1.442695
      %v9421 = vpow.pop %v9420
      %v9422 = vmul.f32 %v9389, 1.442695
      %v9423 = vpow.pop %v9422
      %v9424 = vmul.f32 %v9390, 1.442695
      %v9425 = vpow.pop %v9424
      %v9426 = vmul.f32 %v9391, 1.442695
      %v9427 = vpow.pop %v9426
      %v9428 = vmul.f32 %v9392, 1.442695
      %v9429 = vpow.pop %v9428
      %v9430 = vmul.f32 %v9393, 1.442695
      %v9431 = vpow.pop %v9430
      %v9432 = vmul.f32 %v9394, 1.442695
      %v9433 = vpow.pop %v9432
      %v9434 = vmul.f32 %v9395, 1.442695
      %v9435 = vpow.pop %v9434
      %v9436 = vmul.f32 %v9396, 1.442695
      %v9437 = vpow.pop %v9436
      %v9438 = vmul.f32 %v9397, 1.442695
      %v9439 = vpow.pop %v9438
      %v9440 = vmul.f32 %v9398, 1.442695
      %v9441 = vpow.pop %v9440
      %v9442 = vmul.f32 %v9399, 1.442695
      %v9443 = vpow.pop %v9442
      %v9444 = vmul.f32 %v9400, 1.442695
      %v9445 = vpow.pop %v9444
      %v9446 = vmul.f32 %v9401, 1.442695
      %v9447 = vpow.pop %v9446
      %v9448 = vmul.f32 %v9402, 1.442695
      %v9449 = vpow.pop %v9448
      %v9450 = vmul.f32 %v9403, 1.442695
      %v9451 = vpow.pop %v9450
      %v9452 = vmul.f32 %v9404, 1.442695
      %v9453 = vpow.pop %v9452
      %v9454 = vmul.f32 %v9405, 1.442695
      %v9455 = vpow.pop %v9454
      %v9456 = vmul.f32 %v9406, 1.442695
      %v9457 = vpow.pop %v9456
      %v9458 = vmul.f32 %v9407, 1.442695
      %v9459 = vpow.pop %v9458
      %v9460 = vmul.f32 %v9408, 1.442695
      %v9461 = vpow.pop %v9460
      %v9462 = vmul.f32 %v9409, 1.442695
      %v9463 = vpow.pop %v9462
      %v9464 = vmul.f32 %v9410, 1.442695
      %v9465 = vpow.pop %v9464
      %v9466 = vmul.f32 %v9411, 1.442695
      %v9467 = vpow.pop %v9466
      %v9468 = vmul.f32 %v9412, 1.442695
      %v9469 = vpow.pop %v9468
      %v9470 = vmul.f32 %v9413, 1.442695
      %v9471 = vpow.pop %v9470
      %v9472 = vmul.f32 %v9414, 1.442695
      %v9473 = vpow.pop %v9472
      %v9474 = vmul.f32 %v9415, 1.442695
      %v9475 = vpow.pop %v9474
      %v9476 = vmul.f32 %v9416, 1.442695
      %v9477 = vpow.pop %v9476
      %v9478 = vmul.f32 %v9417, 1.442695
      %v9479 = vpow.pop %v9478
      %v9480 = vmul.f32 %v9418, 1.442695
      %v9481 = vpow.pop %v9480
      %v9482 = vmul.f32 %v9419, 1.442695
      %v9483 = vpow.pop %v9482
      %v9484 = vadd.f32 %v9421, 1.0
      %v9485 = vadd.f32 %v9423, 1.0
      %v9486 = vadd.f32 %v9425, 1.0
      %v9487 = vadd.f32 %v9427, 1.0
      %v9488 = vadd.f32 %v9429, 1.0
      %v9489 = vadd.f32 %v9431, 1.0
      %v9490 = vadd.f32 %v9433, 1.0
      %v9491 = vadd.f32 %v9435, 1.0
      %v9492 = vadd.f32 %v9437, 1.0
      %v9493 = vadd.f32 %v9439, 1.0
      %v9494 = vadd.f32 %v9441, 1.0
      %v9495 = vadd.f32 %v9443, 1.0
      %v9496 = vadd.f32 %v9445, 1.0
      %v9497 = vadd.f32 %v9447, 1.0
      %v9498 = vadd.f32 %v9449, 1.0
      %v9499 = vadd.f32 %v9451, 1.0
      %v9500 = vadd.f32 %v9453, 1.0
      %v9501 = vadd.f32 %v9455, 1.0
      %v9502 = vadd.f32 %v9457, 1.0
      %v9503 = vadd.f32 %v9459, 1.0
      %v9504 = vadd.f32 %v9461, 1.0
      %v9505 = vadd.f32 %v9463, 1.0
      %v9506 = vadd.f32 %v9465, 1.0
      %v9507 = vadd.f32 %v9467, 1.0
      %v9508 = vadd.f32 %v9469, 1.0
      %v9509 = vadd.f32 %v9471, 1.0
      %v9510 = vadd.f32 %v9473, 1.0
      %v9511 = vadd.f32 %v9475, 1.0
      %v9512 = vadd.f32 %v9477, 1.0
      %v9513 = vadd.f32 %v9479, 1.0
      %v9514 = vadd.f32 %v9481, 1.0
      %v9515 = vadd.f32 %v9483, 1.0
      %v9516 = vrcp.pop %v9484
      %v9517 = vmul.f32 1.0, %v9516
      %v9518 = vrcp.pop %v9485
      %v9519 = vmul.f32 1.0, %v9518
      %v9520 = vrcp.pop %v9486
      %v9521 = vmul.f32 1.0, %v9520
      %v9522 = vrcp.pop %v9487
      %v9523 = vmul.f32 1.0, %v9522
      %v9524 = vrcp.pop %v9488
      %v9525 = vmul.f32 1.0, %v9524
      %v9526 = vrcp.pop %v9489
      %v9527 = vmul.f32 1.0, %v9526
      %v9528 = vrcp.pop %v9490
      %v9529 = vmul.f32 1.0, %v9528
      %v9530 = vrcp.pop %v9491
      %v9531 = vmul.f32 1.0, %v9530
      %v9532 = vrcp.pop %v9492
      %v9533 = vmul.f32 1.0, %v9532
      %v9534 = vrcp.pop %v9493
      %v9535 = vmul.f32 1.0, %v9534
      %v9536 = vrcp.pop %v9494
      %v9537 = vmul.f32 1.0, %v9536
      %v9538 = vrcp.pop %v9495
      %v9539 = vmul.f32 1.0, %v9538
      %v9540 = vrcp.pop %v9496
      %v9541 = vmul.f32 1.0, %v9540
      %v9542 = vrcp.pop %v9497
      %v9543 = vmul.f32 1.0, %v9542
      %v9544 = vrcp.pop %v9498
      %v9545 = vmul.f32 1.0, %v9544
      %v9546 = vrcp.pop %v9499
      %v9547 = vmul.f32 1.0, %v9546
      %v9548 = vrcp.pop %v9500
      %v9549 = vmul.f32 1.0, %v9548
      %v9550 = vrcp.pop %v9501
      %v9551 = vmul.f32 1.0, %v9550
      %v9552 = vrcp.pop %v9502
      %v9553 = vmul.f32 1.0, %v9552
      %v9554 = vrcp.pop %v9503
      %v9555 = vmul.f32 1.0, %v9554
      %v9556 = vrcp.pop %v9504
      %v9557 = vmul.f32 1.0, %v9556
      %v9558 = vrcp.pop %v9505
      %v9559 = vmul.f32 1.0, %v9558
      %v9560 = vrcp.pop %v9506
      %v9561 = vmul.f32 1.0, %v9560
      %v9562 = vrcp.pop %v9507
      %v9563 = vmul.f32 1.0, %v9562
      %v9564 = vrcp.pop %v9508
      %v9565 = vmul.f32 1.0, %v9564
      %v9566 = vrcp.pop %v9509
      %v9567 = vmul.f32 1.0, %v9566
      %v9568 = vrcp.pop %v9510
      %v9569 = vmul.f32 1.0, %v9568
      %v9570 = vrcp.pop %v9511
      %v9571 = vmul.f32 1.0, %v9570
      %v9572 = vrcp.pop %v9512
      %v9573 = vmul.f32 1.0, %v9572
      %v9574 = vrcp.pop %v9513
      %v9575 = vmul.f32 1.0, %v9574
      %v9576 = vrcp.pop %v9514
      %v9577 = vmul.f32 1.0, %v9576
      %v9578 = vrcp.pop %v9515
      %v9579 = vmul.f32 1.0, %v9578
      %9580 = vst.msk [vmem:[%s440] sm:$0xff] %vm1334, %v9517
      %9581 = vst.msk [vmem:[%s440 + $0x8] sm:$0xff] %vm1334, %v9519
      %9582 = vst.msk [vmem:[%s440 + $0x10] sm:$0xff] %vm1334, %v9521
      %9583 = vst.msk [vmem:[%s440 + $0x18] sm:$0xff] %vm1334, %v9523
      %9584 = vst.msk [vmem:[%s440 + $0x20] sm:$0xff] %vm1334, %v9525
      %9585 = vst.msk [vmem:[%s440 + $0x28] sm:$0xff] %vm1334, %v9527
      %9586 = vst.msk [vmem:[%s440 + $0x30] sm:$0xff] %vm1334, %v9529
      %9587 = vst.msk [vmem:[%s440 + $0x38] sm:$0xff] %vm1334, %v9531
      %9588 = vst.msk [vmem:[%s440 + $0x40] sm:$0xff] %vm1334, %v9533
      %9589 = vst.msk [vmem:[%s440 + $0x48] sm:$0xff] %vm1334, %v9535
      %9590 = vst.msk [vmem:[%s440 + $0x50] sm:$0xff] %vm1334, %v9537
      %9591 = vst.msk [vmem:[%s440 + $0x58] sm:$0xff] %vm1334, %v9539
      %9592 = vst.msk [vmem:[%s440 + $0x60] sm:$0xff] %vm1334, %v9541
      %9593 = vst.msk [vmem:[%s440 + $0x68] sm:$0xff] %vm1334, %v9543
      %9594 = vst.msk [vmem:[%s440 + $0x70] sm:$0xff] %vm1334, %v9545
      %9595 = vst.msk [vmem:[%s440 + $0x78] sm:$0xff] %vm1334, %v9547
      %9596 = vst.msk [vmem:[%s440 + $0x80] sm:$0xff] %vm1334, %v9549
      %9597 = vst.msk [vmem:[%s440 + $0x88] sm:$0xff] %vm1334, %v9551
      %9598 = vst.msk [vmem:[%s440 + $0x90] sm:$0xff] %vm1334, %v9553
      %9599 = vst.msk [vmem:[%s440 + $0x98] sm:$0xff] %vm1334, %v9555
      %9600 = vst.msk [vmem:[%s440 + $0xa0] sm:$0xff] %vm1334, %v9557
      %9601 = vst.msk [vmem:[%s440 + $0xa8] sm:$0xff] %vm1334, %v9559
      %9602 = vst.msk [vmem:[%s440 + $0xb0] sm:$0xff] %vm1334, %v9561
      %9603 = vst.msk [vmem:[%s440 + $0xb8] sm:$0xff] %vm1334, %v9563
      %9604 = vst.msk [vmem:[%s440 + $0xc0] sm:$0xff] %vm1334, %v9565
      %9605 = vst.msk [vmem:[%s440 + $0xc8] sm:$0xff] %vm1334, %v9567
      %9606 = vst.msk [vmem:[%s440 + $0xd0] sm:$0xff] %vm1334, %v9569
      %9607 = vst.msk [vmem:[%s440 + $0xd8] sm:$0xff] %vm1334, %v9571
      %9608 = vst.msk [vmem:[%s440 + $0xe0] sm:$0xff] %vm1334, %v9573
      %9609 = vst.msk [vmem:[%s440 + $0xe8] sm:$0xff] %vm1334, %v9575
      %9610 = vst.msk [vmem:[%s440 + $0xf0] sm:$0xff] %vm1334, %v9577
      %9611 = vst.msk [vmem:[%s440 + $0xf8] sm:$0xff] %vm1334, %v9579
      %p9612 = scmp.lt.s32.totalorder %s24, 1
      %s9613 = scalar_select %p9612, %s24, 1
      %s9614 = smul.addr %s9613, 32
      %s9615 = smul.addr %s9614, 8
      %s9616 = scalar_lea.vmem %s13, %s9615
      // Predicated region
      $region73: #{cifar_autoencoder_forward.1} parent=71 // pred_check
        %p9617 = pneg %p320
      $region74: #{cifar_autoencoder_forward.1} parent=71 // pred_check_branch
        %9619 = sbr.rel (%p9617) target = $region76
      $region75: #{cifar_autoencoder_forward.1} parent=71 // pred_region
        _
      $region76: #{cifar_autoencoder_forward.1} parent=71 // pred_fallthru
        _
    $region72: #{cifar_autoencoder_forward.1} parent=5 // pred_fallthru
      _
    %p9620 = scmp.le.s32.totalorder 2, %s19
    // Predicated region
    $region77: #{cifar_autoencoder_forward.1} parent=5 // pred_check
      %p9621 = pneg %p9620
    $region78: #{cifar_autoencoder_forward.1} parent=5 // pred_check_branch
      %9623 = sbr.rel (%p9621) target = $region80
    $region79: #{cifar_autoencoder_forward.1} parent=5 // pred_region
      %s9624 = ssub.s32 %s19, 2
      // Predicated region
      $region81: #{cifar_autoencoder_forward.1} parent=79 // pred_check
        %p9625 = pneg %p326
      $region82: #{cifar_autoencoder_forward.1} parent=79 // pred_check_branch
        %9627 = sbr.rel (%p9625) target = $region84
      $region83: #{cifar_autoencoder_forward.1} parent=79 // pred_region
        %p9628 = scmp.lt.s32.totalorder %s25, 1
        %s9629 = scalar_select %p9628, %s25, 1
        %s9630 = smul.addr %s9629, 32
        %s9631 = smul.addr %s9630, 8
        %s9632 = scalar_lea.vmem %s13, %s9631
      $region84: #{cifar_autoencoder_forward.1} parent=79 // pred_fallthru
        _
    $region80: #{cifar_autoencoder_forward.1} parent=5 // pred_fallthru
      _
  $region6: #{cifar_autoencoder_forward.1} parent=0 // loop_footer
    %s23 = sadd.s32 1, %s19
  $region7: #{cifar_autoencoder_forward.1} parent=0 // loop_footer_branch
    %18 = sbr.rel target = $region3
  $region8: #{cifar_autoencoder_forward.1} parent=0 // loop_exit
    _

</llo_original>
